<compile_context>
chip_gen: v6e
topology: v6e:2x2x1
jax: 0.10.0
libtpu: 0.0.40
codegen_flags: <defaults>
</compile_context>

<pallas_src>
import functools

import jax
import jax.numpy as jnp
from jax import lax
from jax.experimental import pallas as pl
from jax.experimental.pallas import tpu as pltpu

KH = KW = 5          # conv kernel size
C_PAD = 128          # conv output channels / FC widths padded to one lane width


def _cdiv(a, b):
    return -(-a // b)


def _round_up(a, b):
    return _cdiv(a, b) * b


@functools.lru_cache(maxsize=1)
def _tpu_flavor():
    """(two_tensorcores_per_chip, scoped-VMEM budget bytes), generation aware."""
    kind = ""
    try:
        kind = jax.devices()[0].device_kind.lower()
    except Exception:
        pass
    two_tc = ("v7" in kind) or ("tpu7" in kind)          # v7x: 2 TCs, 64 MiB VMEM
    vmem_cap = 64 * 1024 * 1024 if two_tc else 128 * 1024 * 1024
    try:
        info_cap = int(pltpu.get_tpu_info().vmem_capacity_bytes)
        if info_cap > 0:
            vmem_cap = info_cap
    except Exception:
        pass
    return two_tc, min(vmem_cap // 2, 64 * 1024 * 1024)


def _choose_tile_q(q, k_pad, two_tc, vmem_budget):
    """Rows per grid step.
    * 1-TC chips (v5e/v6e): one grid step whenever the block fits the budget
      (the grid is a serial loop there; extra steps are pure overhead).
    * 2-TC chips (v7x): >=2 steps so both TensorCores get work, tiles capped so
      the double-buffered bf16 patch block stays well inside the smaller VMEM.
    """
    q = max(int(q), 1)
    patch_row_bytes = 4 * k_pad * 2                      # 4 phases, bf16
    cap = (vmem_budget // 4) // (2 * patch_row_bytes)    # double-buffered block
    cap = max(64, min(2048, cap))
    cap -= cap % 8
    if two_tc and q > 16:
        return min(cap, _round_up(_cdiv(q, 2), 8))
    if q <= cap:
        return q                                         # one step, no row padding
    return cap


# ----------------------------------------------------------------------------
# Kernels
# ----------------------------------------------------------------------------
def conv_block_kernel(p_ref, w_ref, aff_ref, o_ref):
    """Fused Conv2d(5x5)+bias + ReLU + BatchNorm(eval) + MaxPool2d(2x2).

    p_ref : (4, tile_q, K_pad) bf16  im2col patches, one slot per pool phase.
    w_ref : (K_pad, 128)       bf16  folded conv weight (Cout padded to 128).
    aff_ref: (3, 128)          f32   rows = [conv bias, BN scale, BN shift].
    o_ref : (tile_q, 128)      bf16  pooled output rows, lane-dense.
    """
    w = w_ref[...]
    bias = aff_ref[0:1, :]
    scale = aff_ref[1:2, :]
    shift = aff_ref[2:3, :]

    def phase(i):
        z = jnp.dot(p_ref[i], w, preferred_element_type=jnp.float32)
        # BN affine (scale may be negative) must precede the pool max.
        return jnp.maximum(z + bias, 0.0) * scale + shift

    y = jnp.maximum(jnp.maximum(phase(0), phase(1)),
                    jnp.maximum(phase(2), phase(3)))      # 2x2 max-pool
    o_ref[...] = y.astype(o_ref.dtype)


def conv3_head_kernel(p3_ref, kp_ref, w3_ref, aff3_ref, fcw_ref, fcb_ref, o_ref):
    """conv3 block fused with the FC head (conv3's pooled spatial is 1x1).

    fcw_ref: (6,128,128) f32 slab = [ln1, ln3, ln4, ln6, ln8_kp, ln8_img],
             each zero-padded to 128x128 (zero-padded lanes stay exactly zero
             through ReLU because the padded bias entries are zero).
    fcb_ref: (8,128) f32 = [b1, b3, b4, b6, b8, 0, 0, 0].
    """
    w3 = w3_ref[...]
    bias = aff3_ref[0:1, :]
    scale = aff3_ref[1:2, :]
    shift = aff3_ref[2:3, :]

    def conv_phase(i):
        z = jnp.dot(p3_ref[i], w3, preferred_element_type=jnp.float32)
        return jnp.maximum(z + bias, 0.0) * scale + shift

    feat = jnp.maximum(jnp.maximum(conv_phase(0), conv_phase(1)),
                       jnp.maximum(conv_phase(2), conv_phase(3)))   # (tile_b,128)

    def fc(x, idx):
        y = (jnp.dot(x, fcw_ref[idx], preferred_element_type=jnp.float32)
             + fcb_ref[idx:idx + 1, :])
        return jnp.maximum(y, 0.0)

    img = fc(feat, 0)           # ln1 (inferred Linear(64,16)) + ReLU
    k = fc(kp_ref[...], 1)      # ln3 + ReLU
    k = fc(k, 2)                # ln4 + ReLU
    k = fc(k, 3)                # ln6 + ReLU

    # softmax over the virtual 48-dim concat [k(:32) | img(:16)] (dim=1).
    lane = jax.lax.broadcasted_iota(jnp.int32, (1, C_PAD), 1)
    mk = lane < 32
    mi = lane < 16
    m = jnp.maximum(jnp.max(jnp.where(mk, k, 0.0), axis=1, keepdims=True),
                    jnp.max(jnp.where(mi, img, 0.0), axis=1, keepdims=True))
    ek = jnp.where(mk, jnp.exp(k - m), 0.0)
    ei = jnp.where(mi, jnp.exp(img - m), 0.0)
    denom = (jnp.sum(ek, axis=1, keepdims=True)
             + jnp.sum(ei, axis=1, keepdims=True))
    num = (jnp.dot(ek, fcw_ref[4], preferred_element_type=jnp.float32)
           + jnp.dot(ei, fcw_ref[5], preferred_element_type=jnp.float32))
    o_ref[...] = (num * pl.reciprocal(denom) + fcb_ref[4:5, :]).astype(o_ref.dtype)


# ----------------------------------------------------------------------------
# Glue (patch extraction, parameter folding) — plain JAX
# ----------------------------------------------------------------------------
def _pool_phase_patches(x, k_pad, q_pad):
    """x: (B,H,W,Cin) bf16 -> (4, q_pad, k_pad) bf16 patches, one slot per 2x2
    pool phase.  Built with 4 stride-2 dilated-patch extractions (one HBM pass)
    plus one stack+pad pass.  K order is (cin, dy, dx)."""
    B, H, W, Cin = x.shape
    Ho, Wo = H - KH + 1, W - KW + 1
    Hp, Wp = Ho // 2, Wo // 2
    q = B * Hp * Wp
    k = Cin * KH * KW

    def phase(py, px):
        p = lax.conv_general_dilated_patches(
            x[:, py:, px:, :], (KH, KW), (2, 2), "VALID",
            dimension_numbers=("NHWC", "HWIO", "NHWC"))   # (B, Hp, Wp, k)
        return p.reshape(q, k)

    p = jnp.stack([phase(0, 0), phase(0, 1), phase(1, 0), phase(1, 1)], axis=0)
    return jnp.pad(p, ((0, 0), (0, q_pad - q), (0, k_pad - k)))


def conv_block_apply(x_nhwc, cp, two_tc, vmem_budget):
    """One fused conv block via the Pallas kernel -> (B, Hp, Wp, Cout) bf16."""
    B, H, W, _ = x_nhwc.shape
    Ho, Wo = H - KH + 1, W - KW + 1
    Hp, Wp = Ho // 2, Wo // 2
    q = B * Hp * Wp
    k_pad = cp["k_pad"]
    tile_q = _choose_tile_q(q, k_pad, two_tc, vmem_budget)
    q_pad = _round_up(q, tile_q)

    p = _pool_phase_patches(x_nhwc, k_pad, q_pad)

    cost = pl.CostEstimate(
        flops=2 * 4 * q_pad * k_pad * C_PAD,
        transcendentals=0,
        bytes_accessed=(4 * q_pad * k_pad * 2 + k_pad * C_PAD * 2
                        + 3 * C_PAD * 4 + q_pad * C_PAD * 2))

    out = pl.pallas_call(
        conv_block_kernel,
        out_shape=jax.ShapeDtypeStruct((q_pad, C_PAD), jnp.bfloat16),
        grid=(q_pad // tile_q,),
        in_specs=[
            pl.BlockSpec((4, tile_q, k_pad), lambda i: (0, i, 0)),
            pl.BlockSpec((k_pad, C_PAD), lambda i: (0, 0)),
            pl.BlockSpec((3, C_PAD), lambda i: (0, 0)),
        ],
        out_specs=pl.BlockSpec((tile_q, C_PAD), lambda i: (i, 0)),
        compiler_params=pltpu.CompilerParams(
            dimension_semantics=("parallel",),
            vmem_limit_bytes=vmem_budget),
        cost_estimate=cost,
    )(p, cp["w"], cp["aff"])
    return out[:q, :cp["cout"]].reshape(B, Hp, Wp, cp["cout"])


def conv3_head_apply(kp, x_nhwc, params, two_tc, vmem_budget):
    """Fused conv3 block + FC head.  x_nhwc: (B,6,6,32).  Returns (B,32) f32."""
    cp = params["conv3"]
    B = x_nhwc.shape[0]
    k3 = cp["k_pad"]
    tile_b = _choose_tile_q(B, k3, two_tc, vmem_budget)
    b_pad = _round_up(B, tile_b)

    p3 = _pool_phase_patches(x_nhwc, k3, b_pad)                     # (4,b_pad,k3)
    kp_p = jnp.pad(kp.astype(jnp.float32),
                   ((0, b_pad - B), (0, C_PAD - kp.shape[1])))      # (b_pad,128)
    fcw, fcb = params["fcw"], params["fcb"]

    cost = pl.CostEstimate(
        flops=2 * b_pad * (4 * k3 * C_PAD + 6 * C_PAD * C_PAD),
        transcendentals=2 * b_pad * C_PAD,
        bytes_accessed=(4 * b_pad * k3 * 2 + b_pad * C_PAD * 4 + k3 * C_PAD * 2
                        + fcw.size * 4 + fcb.size * 4 + b_pad * C_PAD * 4))

    out = pl.pallas_call(
        conv3_head_kernel,
        out_shape=jax.ShapeDtypeStruct((b_pad, C_PAD), jnp.float32),
        grid=(b_pad // tile_b,),
        in_specs=[
            pl.BlockSpec((4, tile_b, k3), lambda i: (0, i, 0)),
            pl.BlockSpec((tile_b, C_PAD), lambda i: (i, 0)),
            pl.BlockSpec((k3, C_PAD), lambda i: (0, 0)),
            pl.BlockSpec((3, C_PAD), lambda i: (0, 0)),
            pl.BlockSpec((6, C_PAD, C_PAD), lambda i: (0, 0, 0)),
            pl.BlockSpec((8, C_PAD), lambda i: (0, 0)),
        ],
        out_specs=pl.BlockSpec((tile_b, C_PAD), lambda i: (i, 0)),
        compiler_params=pltpu.CompilerParams(
            dimension_semantics=("parallel",),
            vmem_limit_bytes=vmem_budget),
        cost_estimate=cost,
    )(p3, kp_p, cp["w"], cp["aff"], fcw, fcb)
    return out[:B, :32]


def make_params(key):
    keys = jax.random.split(key, 40)
    it = iter(keys)

    def nrm(shape, s=0.1):
        return s * jax.random.normal(next(it), shape, dtype=jnp.float32)

    def conv_fold(cin, cout):
        """Random torch-layout Conv2d + BatchNorm2d(eval), folded & padded."""
        w = nrm((cout, cin, KH, KW))                 # torch Conv2d layout
        b = nrm((cout,))
        gamma = 1.0 + nrm((cout,))
        beta = nrm((cout,))
        mean = nrm((cout,))
        var = 1.0 + 0.1 * jnp.abs(nrm((cout,), 1.0))
        k = cin * KH * KW
        k_pad = _round_up(k, 128)
        # Patch K order is (cin, dy, dx) -> fold the weight the same way.
        w_mat = jnp.transpose(w, (1, 2, 3, 0)).reshape(k, cout)
        w_p = jnp.zeros((k_pad, C_PAD), jnp.float32).at[:k, :cout].set(w_mat)
        scale = gamma / jnp.sqrt(var + 1e-5)
        shift = beta - mean * scale
        aff = (jnp.zeros((3, C_PAD), jnp.float32)
               .at[0, :cout].set(b).at[1, :cout].set(scale).at[2, :cout].set(shift))
        return dict(w=w_p.astype(jnp.bfloat16), aff=aff, cout=cout, k_pad=k_pad)

    def linear_pad(cin, cout):
        """Random torch-layout Linear, transposed for x @ W^T, padded to 128x128."""
        w = nrm((cout, cin))
        b = nrm((cout,))
        wp = jnp.zeros((C_PAD, C_PAD), jnp.float32).at[:cin, :cout].set(w.T)
        bp = jnp.zeros((C_PAD,), jnp.float32).at[:cout].set(b)
        return wp, bp

    conv1 = conv_fold(3, 16)
    conv2 = conv_fold(16, 32)
    conv3 = conv_fold(32, 64)

    w1, b1 = linear_pad(64, 16)    # ln1: used in forward, missing in __init__
    w3, b3 = linear_pad(86, 64)    # ln3 (kp zero-padded 86 -> 128 lanes)
    w4, b4 = linear_pad(64, 64)    # ln4
    w6, b6 = linear_pad(64, 32)    # ln6
    # ln8: Linear(48, 32); concat order is [kp_feat(32), img_feat(16)].
    w8 = nrm((32, 48))
    b8 = nrm((32,))
    w8t = w8.T
    w8k = jnp.zeros((C_PAD, C_PAD), jnp.float32).at[:32, :32].set(w8t[:32])
    w8i = jnp.zeros((C_PAD, C_PAD), jnp.float32).at[:16, :32].set(w8t[32:])
    b8p = jnp.zeros((C_PAD,), jnp.float32).at[:32].set(b8)

    fcw = jnp.stack([w1, w3, w4, w6, w8k, w8i], axis=0)              # (6,128,128)
    fcb = (jnp.zeros((8, C_PAD), jnp.float32)
           .at[0].set(b1).at[1].set(b3).at[2].set(b4).at[3].set(b6).at[4].set(b8p))

    return dict(conv1=conv1, conv2=conv2, conv3=conv3, fcw=fcw, fcb=fcb)


def classifier_forward(kp, img_nchw, params):
    # eval-mode forward; all Dropout2d layers are identities
    two_tc, vmem_budget = _tpu_flavor()
    x = jnp.transpose(img_nchw, (0, 2, 3, 1)).astype(jnp.bfloat16)   # NCHW -> NHWC
    x = conv_block_apply(x, params["conv1"], two_tc, vmem_budget)    # (B,16,16,16)
    x = conv_block_apply(x, params["conv2"], two_tc, vmem_budget)    # (B, 6, 6,32)
    # conv3 yields 1x1 spatial (flatten orders coincide); fused with the FC head.
    return conv3_head_apply(kp, x, params, two_tc, vmem_budget)      # (B, 32)


if __name__ == "__main__":
    key = jax.random.PRNGKey(0)
    kp_key, img_key, p_key = jax.random.split(key, 3)
    B = 2
    kp = jax.random.normal(kp_key, (B, 86), dtype=jnp.float32)
    img = jax.random.normal(img_key, (B, 3, 36, 36), dtype=jnp.float32)  # NCHW

    params = make_params(p_key)
    fwd = jax.jit(functools.partial(classifier_forward, params=params))
    out = jax.block_until_ready(fwd(kp, img))

    assert out.shape == (B, 32), out.shape
    assert bool(jnp.all(jnp.isfinite(out)))
    print("KERNEL_OK")
</pallas_src>

<mosaic_0001>
module attributes {stable_mosaic.version = 11 : i64} {
  func.func @conv_block_kernel(%arg0: i32, %arg1: memref<4x512x128xbf16, #tpu.memory_space<vmem>>, %arg2: memref<128x128xbf16, #tpu.memory_space<vmem>>, %arg3: memref<3x128xf32, #tpu.memory_space<vmem>>, %arg4: memref<512x128xbf16, #tpu.memory_space<vmem>>) attributes {dimension_semantics = [#tpu.dimension_semantics<parallel>], iteration_bounds = array<i64: 1>, scalar_prefetch = 0 : i64, scratch_operands = 0 : i64, tpu.core_type = #tpu.core_type<tc>, window_params = [{transform_indices = @transform_0, window_bounds = array<i64: 4, 512, 128>}, {pipeline_mode = #tpu.pipeline_mode<synchronous>, transform_indices = @transform_1, window_bounds = array<i64: 128, 128>}, {pipeline_mode = #tpu.pipeline_mode<synchronous>, transform_indices = @transform_2, window_bounds = array<i64: 3, 128>}, {transform_indices = @transform_3, window_bounds = array<i64: 512, 128>}]} {
    %c0 = arith.constant 0 : index
    %c0_0 = arith.constant 0 : index
    %0 = vector.load %arg2[%c0, %c0_0] : memref<128x128xbf16, #tpu.memory_space<vmem>>, vector<128x128xbf16>
    %c0_1 = arith.constant 0 : index
    %c0_2 = arith.constant 0 : index
    %1 = vector.load %arg3[%c0_1, %c0_2] : memref<3x128xf32, #tpu.memory_space<vmem>>, vector<1x128xf32>
    %c1 = arith.constant 1 : index
    %c0_3 = arith.constant 0 : index
    %2 = vector.load %arg3[%c1, %c0_3] : memref<3x128xf32, #tpu.memory_space<vmem>>, vector<1x128xf32>
    %c2 = arith.constant 2 : index
    %c0_4 = arith.constant 0 : index
    %3 = vector.load %arg3[%c2, %c0_4] : memref<3x128xf32, #tpu.memory_space<vmem>>, vector<1x128xf32>
    %c0_5 = arith.constant 0 : index
    %c0_6 = arith.constant 0 : index
    %c0_7 = arith.constant 0 : index
    %4 = vector.load %arg1[%c0_5, %c0_6, %c0_7] : memref<4x512x128xbf16, #tpu.memory_space<vmem>>, vector<1x512x128xbf16>
    %5 = vector.shape_cast %4 : vector<1x512x128xbf16> to vector<512x128xbf16>
    %cst = arith.constant dense<0.000000e+00> : vector<512x128xf32>
    %6 = tpu.matmul %5, %0, %cst {dimension_numbers = #tpu.dot_dimension_numbers<[1], [0], [0], [1], [0, 0, 1, 1], [], []>} : vector<512x128xbf16>, vector<128x128xbf16>, vector<512x128xf32> -> vector<512x128xf32>
    %7 = vector.broadcast %1 : vector<1x128xf32> to vector<512x128xf32>
    %8 = arith.addf %6, %7 : vector<512x128xf32>
    %cst_8 = arith.constant 0.000000e+00 : f32
    %9 = vector.broadcast %cst_8 : f32 to vector<512x128xf32>
    %10 = arith.maximumf %8, %9 : vector<512x128xf32>
    %11 = vector.broadcast %2 : vector<1x128xf32> to vector<512x128xf32>
    %12 = arith.mulf %10, %11 : vector<512x128xf32>
    %13 = vector.broadcast %3 : vector<1x128xf32> to vector<512x128xf32>
    %14 = arith.addf %12, %13 : vector<512x128xf32>
    %c1_9 = arith.constant 1 : index
    %c0_10 = arith.constant 0 : index
    %c0_11 = arith.constant 0 : index
    %15 = vector.load %arg1[%c1_9, %c0_10, %c0_11] : memref<4x512x128xbf16, #tpu.memory_space<vmem>>, vector<1x512x128xbf16>
    %16 = vector.shape_cast %15 : vector<1x512x128xbf16> to vector<512x128xbf16>
    %cst_12 = arith.constant dense<0.000000e+00> : vector<512x128xf32>
    %17 = tpu.matmul %16, %0, %cst_12 {dimension_numbers = #tpu.dot_dimension_numbers<[1], [0], [0], [1], [0, 0, 1, 1], [], []>} : vector<512x128xbf16>, vector<128x128xbf16>, vector<512x128xf32> -> vector<512x128xf32>
    %18 = vector.broadcast %1 : vector<1x128xf32> to vector<512x128xf32>
    %19 = arith.addf %17, %18 : vector<512x128xf32>
    %cst_13 = arith.constant 0.000000e+00 : f32
    %20 = vector.broadcast %cst_13 : f32 to vector<512x128xf32>
    %21 = arith.maximumf %19, %20 : vector<512x128xf32>
    %22 = vector.broadcast %2 : vector<1x128xf32> to vector<512x128xf32>
    %23 = arith.mulf %21, %22 : vector<512x128xf32>
    %24 = vector.broadcast %3 : vector<1x128xf32> to vector<512x128xf32>
    %25 = arith.addf %23, %24 : vector<512x128xf32>
    %26 = arith.maximumf %14, %25 : vector<512x128xf32>
    %c2_14 = arith.constant 2 : index
    %c0_15 = arith.constant 0 : index
    %c0_16 = arith.constant 0 : index
    %27 = vector.load %arg1[%c2_14, %c0_15, %c0_16] : memref<4x512x128xbf16, #tpu.memory_space<vmem>>, vector<1x512x128xbf16>
    %28 = vector.shape_cast %27 : vector<1x512x128xbf16> to vector<512x128xbf16>
    %cst_17 = arith.constant dense<0.000000e+00> : vector<512x128xf32>
    %29 = tpu.matmul %28, %0, %cst_17 {dimension_numbers = #tpu.dot_dimension_numbers<[1], [0], [0], [1], [0, 0, 1, 1], [], []>} : vector<512x128xbf16>, vector<128x128xbf16>, vector<512x128xf32> -> vector<512x128xf32>
    %30 = vector.broadcast %1 : vector<1x128xf32> to vector<512x128xf32>
    %31 = arith.addf %29, %30 : vector<512x128xf32>
    %cst_18 = arith.constant 0.000000e+00 : f32
    %32 = vector.broadcast %cst_18 : f32 to vector<512x128xf32>
    %33 = arith.maximumf %31, %32 : vector<512x128xf32>
    %34 = vector.broadcast %2 : vector<1x128xf32> to vector<512x128xf32>
    %35 = arith.mulf %33, %34 : vector<512x128xf32>
    %36 = vector.broadcast %3 : vector<1x128xf32> to vector<512x128xf32>
    %37 = arith.addf %35, %36 : vector<512x128xf32>
    %c3 = arith.constant 3 : index
    %c0_19 = arith.constant 0 : index
    %c0_20 = arith.constant 0 : index
    %38 = vector.load %arg1[%c3, %c0_19, %c0_20] : memref<4x512x128xbf16, #tpu.memory_space<vmem>>, vector<1x512x128xbf16>
    %39 = vector.shape_cast %38 : vector<1x512x128xbf16> to vector<512x128xbf16>
    %cst_21 = arith.constant dense<0.000000e+00> : vector<512x128xf32>
    %40 = tpu.matmul %39, %0, %cst_21 {dimension_numbers = #tpu.dot_dimension_numbers<[1], [0], [0], [1], [0, 0, 1, 1], [], []>} : vector<512x128xbf16>, vector<128x128xbf16>, vector<512x128xf32> -> vector<512x128xf32>
    %41 = vector.broadcast %1 : vector<1x128xf32> to vector<512x128xf32>
    %42 = arith.addf %40, %41 : vector<512x128xf32>
    %cst_22 = arith.constant 0.000000e+00 : f32
    %43 = vector.broadcast %cst_22 : f32 to vector<512x128xf32>
    %44 = arith.maximumf %42, %43 : vector<512x128xf32>
    %45 = vector.broadcast %2 : vector<1x128xf32> to vector<512x128xf32>
    %46 = arith.mulf %44, %45 : vector<512x128xf32>
    %47 = vector.broadcast %3 : vector<1x128xf32> to vector<512x128xf32>
    %48 = arith.addf %46, %47 : vector<512x128xf32>
    %49 = arith.maximumf %37, %48 : vector<512x128xf32>
    %50 = arith.maximumf %26, %49 : vector<512x128xf32>
    %51 = arith.truncf %50 : vector<512x128xf32> to vector<512x128xbf16>
    %c0_23 = arith.constant 0 : index
    %c0_24 = arith.constant 0 : index
    %52 = vector.load %arg4[%c0_23, %c0_24] : memref<512x128xbf16, #tpu.memory_space<vmem>>, vector<512x128xbf16>
    tpu.vector_store %arg4[%c0_23, %c0_24], %51 {strides = array<i32>} : memref<512x128xbf16, #tpu.memory_space<vmem>>, vector<512x128xbf16>,
    return
  }
  func.func @transform_0(%arg0: i32) -> (i32, i32, i32) {
    %c0_i32 = arith.constant 0 : i32
    %c0_i32_0 = arith.constant 0 : i32
    %c0_i32_1 = arith.constant 0 : i32
    return %c0_i32, %arg0, %c0_i32_0 : i32, i32, i32
  }
  func.func @transform_1(%arg0: i32) -> (i32, i32) {
    %c0_i32 = arith.constant 0 : i32
    %c0_i32_0 = arith.constant 0 : i32
    %c0_i32_1 = arith.constant 0 : i32
    return %c0_i32, %c0_i32_0 : i32, i32
  }
  func.func @transform_2(%arg0: i32) -> (i32, i32) {
    %c0_i32 = arith.constant 0 : i32
    %c0_i32_0 = arith.constant 0 : i32
    %c0_i32_1 = arith.constant 0 : i32
    return %c0_i32, %c0_i32_0 : i32, i32
  }
  func.func @transform_3(%arg0: i32) -> (i32, i32) {
    %c0_i32 = arith.constant 0 : i32
    %c0_i32_0 = arith.constant 0 : i32
    return %arg0, %c0_i32 : i32, i32
  }
}

module attributes {stable_mosaic.version = 11 : i64} {
  func.func @conv_block_kernel(%arg0: i32, %arg1: memref<4x72x512xbf16, #tpu.memory_space<vmem>>, %arg2: memref<512x128xbf16, #tpu.memory_space<vmem>>, %arg3: memref<3x128xf32, #tpu.memory_space<vmem>>, %arg4: memref<72x128xbf16, #tpu.memory_space<vmem>>) attributes {dimension_semantics = [#tpu.dimension_semantics<parallel>], iteration_bounds = array<i64: 1>, scalar_prefetch = 0 : i64, scratch_operands = 0 : i64, tpu.core_type = #tpu.core_type<tc>, window_params = [{transform_indices = @transform_0, window_bounds = array<i64: 4, 72, 512>}, {pipeline_mode = #tpu.pipeline_mode<synchronous>, transform_indices = @transform_1, window_bounds = array<i64: 512, 128>}, {pipeline_mode = #tpu.pipeline_mode<synchronous>, transform_indices = @transform_2, window_bounds = array<i64: 3, 128>}, {transform_indices = @transform_3, window_bounds = array<i64: 72, 128>}]} {
    %c0 = arith.constant 0 : index
    %c0_0 = arith.constant 0 : index
    %0 = vector.load %arg2[%c0, %c0_0] : memref<512x128xbf16, #tpu.memory_space<vmem>>, vector<512x128xbf16>
    %c0_1 = arith.constant 0 : index
    %c0_2 = arith.constant 0 : index
    %1 = vector.load %arg3[%c0_1, %c0_2] : memref<3x128xf32, #tpu.memory_space<vmem>>, vector<1x128xf32>
    %c1 = arith.constant 1 : index
    %c0_3 = arith.constant 0 : index
    %2 = vector.load %arg3[%c1, %c0_3] : memref<3x128xf32, #tpu.memory_space<vmem>>, vector<1x128xf32>
    %c2 = arith.constant 2 : index
    %c0_4 = arith.constant 0 : index
    %3 = vector.load %arg3[%c2, %c0_4] : memref<3x128xf32, #tpu.memory_space<vmem>>, vector<1x128xf32>
    %c0_5 = arith.constant 0 : index
    %c0_6 = arith.constant 0 : index
    %c0_7 = arith.constant 0 : index
    %4 = vector.load %arg1[%c0_5, %c0_6, %c0_7] : memref<4x72x512xbf16, #tpu.memory_space<vmem>>, vector<1x72x512xbf16>
    %5 = vector.shape_cast %4 : vector<1x72x512xbf16> to vector<72x512xbf16>
    %cst = arith.constant dense<0.000000e+00> : vector<72x128xf32>
    %6 = tpu.matmul %5, %0, %cst {dimension_numbers = #tpu.dot_dimension_numbers<[1], [0], [0], [1], [0, 0, 1, 1], [], []>} : vector<72x512xbf16>, vector<512x128xbf16>, vector<72x128xf32> -> vector<72x128xf32>
    %7 = vector.broadcast %1 : vector<1x128xf32> to vector<72x128xf32>
    %8 = arith.addf %6, %7 : vector<72x128xf32>
    %cst_8 = arith.constant 0.000000e+00 : f32
    %9 = vector.broadcast %cst_8 : f32 to vector<72x128xf32>
    %10 = arith.maximumf %8, %9 : vector<72x128xf32>
    %11 = vector.broadcast %2 : vector<1x128xf32> to vector<72x128xf32>
    %12 = arith.mulf %10, %11 : vector<72x128xf32>
    %13 = vector.broadcast %3 : vector<1x128xf32> to vector<72x128xf32>
    %14 = arith.addf %12, %13 : vector<72x128xf32>
    %c1_9 = arith.constant 1 : index
    %c0_10 = arith.constant 0 : index
    %c0_11 = arith.constant 0 : index
    %15 = vector.load %arg1[%c1_9, %c0_10, %c0_11] : memref<4x72x512xbf16, #tpu.memory_space<vmem>>, vector<1x72x512xbf16>
    %16 = vector.shape_cast %15 : vector<1x72x512xbf16> to vector<72x512xbf16>
    %cst_12 = arith.constant dense<0.000000e+00> : vector<72x128xf32>
    %17 = tpu.matmul %16, %0, %cst_12 {dimension_numbers = #tpu.dot_dimension_numbers<[1], [0], [0], [1], [0, 0, 1, 1], [], []>} : vector<72x512xbf16>, vector<512x128xbf16>, vector<72x128xf32> -> vector<72x128xf32>
    %18 = vector.broadcast %1 : vector<1x128xf32> to vector<72x128xf32>
    %19 = arith.addf %17, %18 : vector<72x128xf32>
    %cst_13 = arith.constant 0.000000e+00 : f32
    %20 = vector.broadcast %cst_13 : f32 to vector<72x128xf32>
    %21 = arith.maximumf %19, %20 : vector<72x128xf32>
    %22 = vector.broadcast %2 : vector<1x128xf32> to vector<72x128xf32>
    %23 = arith.mulf %21, %22 : vector<72x128xf32>
    %24 = vector.broadcast %3 : vector<1x128xf32> to vector<72x128xf32>
    %25 = arith.addf %23, %24 : vector<72x128xf32>
    %26 = arith.maximumf %14, %25 : vector<72x128xf32>
    %c2_14 = arith.constant 2 : index
    %c0_15 = arith.constant 0 : index
    %c0_16 = arith.constant 0 : index
    %27 = vector.load %arg1[%c2_14, %c0_15, %c0_16] : memref<4x72x512xbf16, #tpu.memory_space<vmem>>, vector<1x72x512xbf16>
    %28 = vector.shape_cast %27 : vector<1x72x512xbf16> to vector<72x512xbf16>
    %cst_17 = arith.constant dense<0.000000e+00> : vector<72x128xf32>
    %29 = tpu.matmul %28, %0, %cst_17 {dimension_numbers = #tpu.dot_dimension_numbers<[1], [0], [0], [1], [0, 0, 1, 1], [], []>} : vector<72x512xbf16>, vector<512x128xbf16>, vector<72x128xf32> -> vector<72x128xf32>
    %30 = vector.broadcast %1 : vector<1x128xf32> to vector<72x128xf32>
    %31 = arith.addf %29, %30 : vector<72x128xf32>
    %cst_18 = arith.constant 0.000000e+00 : f32
    %32 = vector.broadcast %cst_18 : f32 to vector<72x128xf32>
    %33 = arith.maximumf %31, %32 : vector<72x128xf32>
    %34 = vector.broadcast %2 : vector<1x128xf32> to vector<72x128xf32>
    %35 = arith.mulf %33, %34 : vector<72x128xf32>
    %36 = vector.broadcast %3 : vector<1x128xf32> to vector<72x128xf32>
    %37 = arith.addf %35, %36 : vector<72x128xf32>
    %c3 = arith.constant 3 : index
    %c0_19 = arith.constant 0 : index
    %c0_20 = arith.constant 0 : index
    %38 = vector.load %arg1[%c3, %c0_19, %c0_20] : memref<4x72x512xbf16, #tpu.memory_space<vmem>>, vector<1x72x512xbf16>
    %39 = vector.shape_cast %38 : vector<1x72x512xbf16> to vector<72x512xbf16>
    %cst_21 = arith.constant dense<0.000000e+00> : vector<72x128xf32>
    %40 = tpu.matmul %39, %0, %cst_21 {dimension_numbers = #tpu.dot_dimension_numbers<[1], [0], [0], [1], [0, 0, 1, 1], [], []>} : vector<72x512xbf16>, vector<512x128xbf16>, vector<72x128xf32> -> vector<72x128xf32>
    %41 = vector.broadcast %1 : vector<1x128xf32> to vector<72x128xf32>
    %42 = arith.addf %40, %41 : vector<72x128xf32>
    %cst_22 = arith.constant 0.000000e+00 : f32
    %43 = vector.broadcast %cst_22 : f32 to vector<72x128xf32>
    %44 = arith.maximumf %42, %43 : vector<72x128xf32>
    %45 = vector.broadcast %2 : vector<1x128xf32> to vector<72x128xf32>
    %46 = arith.mulf %44, %45 : vector<72x128xf32>
    %47 = vector.broadcast %3 : vector<1x128xf32> to vector<72x128xf32>
    %48 = arith.addf %46, %47 : vector<72x128xf32>
    %49 = arith.maximumf %37, %48 : vector<72x128xf32>
    %50 = arith.maximumf %26, %49 : vector<72x128xf32>
    %51 = arith.truncf %50 : vector<72x128xf32> to vector<72x128xbf16>
    %c0_23 = arith.constant 0 : index
    %c0_24 = arith.constant 0 : index
    %52 = vector.load %arg4[%c0_23, %c0_24] : memref<72x128xbf16, #tpu.memory_space<vmem>>, vector<72x128xbf16>
    tpu.vector_store %arg4[%c0_23, %c0_24], %51 {strides = array<i32>} : memref<72x128xbf16, #tpu.memory_space<vmem>>, vector<72x128xbf16>,
    return
  }
  func.func @transform_0(%arg0: i32) -> (i32, i32, i32) {
    %c0_i32 = arith.constant 0 : i32
    %c0_i32_0 = arith.constant 0 : i32
    %c0_i32_1 = arith.constant 0 : i32
    return %c0_i32, %arg0, %c0_i32_0 : i32, i32, i32
  }
  func.func @transform_1(%arg0: i32) -> (i32, i32) {
    %c0_i32 = arith.constant 0 : i32
    %c0_i32_0 = arith.constant 0 : i32
    %c0_i32_1 = arith.constant 0 : i32
    return %c0_i32, %c0_i32_0 : i32, i32
  }
  func.func @transform_2(%arg0: i32) -> (i32, i32) {
    %c0_i32 = arith.constant 0 : i32
    %c0_i32_0 = arith.constant 0 : i32
    %c0_i32_1 = arith.constant 0 : i32
    return %c0_i32, %c0_i32_0 : i32, i32
  }
  func.func @transform_3(%arg0: i32) -> (i32, i32) {
    %c0_i32 = arith.constant 0 : i32
    %c0_i32_0 = arith.constant 0 : i32
    return %arg0, %c0_i32 : i32, i32
  }
}

module attributes {stable_mosaic.version = 11 : i64} {
  func.func @conv3_head_kernel(%arg0: i32, %arg1: memref<4x2x896xbf16, #tpu.memory_space<vmem>>, %arg2: memref<2x128xf32, #tpu.memory_space<vmem>>, %arg3: memref<896x128xbf16, #tpu.memory_space<vmem>>, %arg4: memref<3x128xf32, #tpu.memory_space<vmem>>, %arg5: memref<6x128x128xf32, #tpu.memory_space<vmem>>, %arg6: memref<8x128xf32, #tpu.memory_space<vmem>>, %arg7: memref<2x128xf32, #tpu.memory_space<vmem>>) attributes {dimension_semantics = [#tpu.dimension_semantics<parallel>], iteration_bounds = array<i64: 1>, scalar_prefetch = 0 : i64, scratch_operands = 0 : i64, tpu.core_type = #tpu.core_type<tc>, window_params = [{transform_indices = @transform_0, window_bounds = array<i64: 4, 2, 896>}, {transform_indices = @transform_1, window_bounds = array<i64: 2, 128>}, {pipeline_mode = #tpu.pipeline_mode<synchronous>, transform_indices = @transform_2, window_bounds = array<i64: 896, 128>}, {pipeline_mode = #tpu.pipeline_mode<synchronous>, transform_indices = @transform_3, window_bounds = array<i64: 3, 128>}, {pipeline_mode = #tpu.pipeline_mode<synchronous>, transform_indices = @transform_4, window_bounds = array<i64: 6, 128, 128>}, {pipeline_mode = #tpu.pipeline_mode<synchronous>, transform_indices = @transform_5, window_bounds = array<i64: 8, 128>}, {transform_indices = @transform_6, window_bounds = array<i64: 2, 128>}]} {
    %c0 = arith.constant 0 : index
    %c0_0 = arith.constant 0 : index
    %0 = vector.load %arg3[%c0, %c0_0] : memref<896x128xbf16, #tpu.memory_space<vmem>>, vector<896x128xbf16>
    %c0_1 = arith.constant 0 : index
    %c0_2 = arith.constant 0 : index
    %1 = vector.load %arg4[%c0_1, %c0_2] : memref<3x128xf32, #tpu.memory_space<vmem>>, vector<1x128xf32>
    %c1 = arith.constant 1 : index
    %c0_3 = arith.constant 0 : index
    %2 = vector.load %arg4[%c1, %c0_3] : memref<3x128xf32, #tpu.memory_space<vmem>>, vector<1x128xf32>
    %c2 = arith.constant 2 : index
    %c0_4 = arith.constant 0 : index
    %3 = vector.load %arg4[%c2, %c0_4] : memref<3x128xf32, #tpu.memory_space<vmem>>, vector<1x128xf32>
    %c0_5 = arith.constant 0 : index
    %c0_6 = arith.constant 0 : index
    %c0_7 = arith.constant 0 : index
    %4 = vector.load %arg1[%c0_5, %c0_6, %c0_7] : memref<4x2x896xbf16, #tpu.memory_space<vmem>>, vector<1x2x896xbf16>
    %5 = vector.shape_cast %4 : vector<1x2x896xbf16> to vector<2x896xbf16>
    %cst = arith.constant dense<0.000000e+00> : vector<2x128xf32>
    %6 = tpu.matmul %5, %0, %cst {dimension_numbers = #tpu.dot_dimension_numbers<[1], [0], [0], [1], [0, 0, 1, 1], [], []>} : vector<2x896xbf16>, vector<896x128xbf16>, vector<2x128xf32> -> vector<2x128xf32>
    %7 = vector.broadcast %1 : vector<1x128xf32> to vector<2x128xf32>
    %8 = arith.addf %6, %7 : vector<2x128xf32>
    %cst_8 = arith.constant 0.000000e+00 : f32
    %9 = vector.broadcast %cst_8 : f32 to vector<2x128xf32>
    %10 = arith.maximumf %8, %9 : vector<2x128xf32>
    %11 = vector.broadcast %2 : vector<1x128xf32> to vector<2x128xf32>
    %12 = arith.mulf %10, %11 : vector<2x128xf32>
    %13 = vector.broadcast %3 : vector<1x128xf32> to vector<2x128xf32>
    %14 = arith.addf %12, %13 : vector<2x128xf32>
    %c1_9 = arith.constant 1 : index
    %c0_10 = arith.constant 0 : index
    %c0_11 = arith.constant 0 : index
    %15 = vector.load %arg1[%c1_9, %c0_10, %c0_11] : memref<4x2x896xbf16, #tpu.memory_space<vmem>>, vector<1x2x896xbf16>
    %16 = vector.shape_cast %15 : vector<1x2x896xbf16> to vector<2x896xbf16>
    %cst_12 = arith.constant dense<0.000000e+00> : vector<2x128xf32>
    %17 = tpu.matmul %16, %0, %cst_12 {dimension_numbers = #tpu.dot_dimension_numbers<[1], [0], [0], [1], [0, 0, 1, 1], [], []>} : vector<2x896xbf16>, vector<896x128xbf16>, vector<2x128xf32> -> vector<2x128xf32>
    %18 = vector.broadcast %1 : vector<1x128xf32> to vector<2x128xf32>
    %19 = arith.addf %17, %18 : vector<2x128xf32>
    %cst_13 = arith.constant 0.000000e+00 : f32
    %20 = vector.broadcast %cst_13 : f32 to vector<2x128xf32>
    %21 = arith.maximumf %19, %20 : vector<2x128xf32>
    %22 = vector.broadcast %2 : vector<1x128xf32> to vector<2x128xf32>
    %23 = arith.mulf %21, %22 : vector<2x128xf32>
    %24 = vector.broadcast %3 : vector<1x128xf32> to vector<2x128xf32>
    %25 = arith.addf %23, %24 : vector<2x128xf32>
    %26 = arith.maximumf %14, %25 : vector<2x128xf32>
    %c2_14 = arith.constant 2 : index
    %c0_15 = arith.constant 0 : index
    %c0_16 = arith.constant 0 : index
    %27 = vector.load %arg1[%c2_14, %c0_15, %c0_16] : memref<4x2x896xbf16, #tpu.memory_space<vmem>>, vector<1x2x896xbf16>
    %28 = vector.shape_cast %27 : vector<1x2x896xbf16> to vector<2x896xbf16>
    %cst_17 = arith.constant dense<0.000000e+00> : vector<2x128xf32>
    %29 = tpu.matmul %28, %0, %cst_17 {dimension_numbers = #tpu.dot_dimension_numbers<[1], [0], [0], [1], [0, 0, 1, 1], [], []>} : vector<2x896xbf16>, vector<896x128xbf16>, vector<2x128xf32> -> vector<2x128xf32>
    %30 = vector.broadcast %1 : vector<1x128xf32> to vector<2x128xf32>
    %31 = arith.addf %29, %30 : vector<2x128xf32>
    %cst_18 = arith.constant 0.000000e+00 : f32
    %32 = vector.broadcast %cst_18 : f32 to vector<2x128xf32>
    %33 = arith.maximumf %31, %32 : vector<2x128xf32>
    %34 = vector.broadcast %2 : vector<1x128xf32> to vector<2x128xf32>
    %35 = arith.mulf %33, %34 : vector<2x128xf32>
    %36 = vector.broadcast %3 : vector<1x128xf32> to vector<2x128xf32>
    %37 = arith.addf %35, %36 : vector<2x128xf32>
    %c3 = arith.constant 3 : index
    %c0_19 = arith.constant 0 : index
    %c0_20 = arith.constant 0 : index
    %38 = vector.load %arg1[%c3, %c0_19, %c0_20] : memref<4x2x896xbf16, #tpu.memory_space<vmem>>, vector<1x2x896xbf16>
    %39 = vector.shape_cast %38 : vector<1x2x896xbf16> to vector<2x896xbf16>
    %cst_21 = arith.constant dense<0.000000e+00> : vector<2x128xf32>
    %40 = tpu.matmul %39, %0, %cst_21 {dimension_numbers = #tpu.dot_dimension_numbers<[1], [0], [0], [1], [0, 0, 1, 1], [], []>} : vector<2x896xbf16>, vector<896x128xbf16>, vector<2x128xf32> -> vector<2x128xf32>
    %41 = vector.broadcast %1 : vector<1x128xf32> to vector<2x128xf32>
    %42 = arith.addf %40, %41 : vector<2x128xf32>
    %cst_22 = arith.constant 0.000000e+00 : f32
    %43 = vector.broadcast %cst_22 : f32 to vector<2x128xf32>
    %44 = arith.maximumf %42, %43 : vector<2x128xf32>
    %45 = vector.broadcast %2 : vector<1x128xf32> to vector<2x128xf32>
    %46 = arith.mulf %44, %45 : vector<2x128xf32>
    %47 = vector.broadcast %3 : vector<1x128xf32> to vector<2x128xf32>
    %48 = arith.addf %46, %47 : vector<2x128xf32>
    %49 = arith.maximumf %37, %48 : vector<2x128xf32>
    %50 = arith.maximumf %26, %49 : vector<2x128xf32>
    %c0_23 = arith.constant 0 : index
    %c0_24 = arith.constant 0 : index
    %c0_25 = arith.constant 0 : index
    %51 = vector.load %arg5[%c0_23, %c0_24, %c0_25] : memref<6x128x128xf32, #tpu.memory_space<vmem>>, vector<1x128x128xf32>
    %52 = vector.shape_cast %51 : vector<1x128x128xf32> to vector<128x128xf32>
    %cst_26 = arith.constant dense<0.000000e+00> : vector<2x128xf32>
    %53 = tpu.matmul %50, %52, %cst_26 {dimension_numbers = #tpu.dot_dimension_numbers<[1], [0], [0], [1], [0, 0, 1, 1], [], []>} : vector<2x128xf32>, vector<128x128xf32>, vector<2x128xf32> -> vector<2x128xf32>
    %c0_27 = arith.constant 0 : index
    %c0_28 = arith.constant 0 : index
    %54 = vector.load %arg6[%c0_27, %c0_28] : memref<8x128xf32, #tpu.memory_space<vmem>>, vector<1x128xf32>
    %55 = vector.broadcast %54 : vector<1x128xf32> to vector<2x128xf32>
    %56 = arith.addf %53, %55 : vector<2x128xf32>
    %cst_29 = arith.constant 0.000000e+00 : f32
    %57 = vector.broadcast %cst_29 : f32 to vector<2x128xf32>
    %58 = arith.maximumf %56, %57 : vector<2x128xf32>
    %c0_30 = arith.constant 0 : index
    %c0_31 = arith.constant 0 : index
    %59 = vector.load %arg2[%c0_30, %c0_31] : memref<2x128xf32, #tpu.memory_space<vmem>>, vector<2x128xf32>
    %c1_32 = arith.constant 1 : index
    %c0_33 = arith.constant 0 : index
    %c0_34 = arith.constant 0 : index
    %60 = vector.load %arg5[%c1_32, %c0_33, %c0_34] : memref<6x128x128xf32, #tpu.memory_space<vmem>>, vector<1x128x128xf32>
    %61 = vector.shape_cast %60 : vector<1x128x128xf32> to vector<128x128xf32>
    %cst_35 = arith.constant dense<0.000000e+00> : vector<2x128xf32>
    %62 = tpu.matmul %59, %61, %cst_35 {dimension_numbers = #tpu.dot_dimension_numbers<[1], [0], [0], [1], [0, 0, 1, 1], [], []>} : vector<2x128xf32>, vector<128x128xf32>, vector<2x128xf32> -> vector<2x128xf32>
    %c1_36 = arith.constant 1 : index
    %c0_37 = arith.constant 0 : index
    %63 = vector.load %arg6[%c1_36, %c0_37] : memref<8x128xf32, #tpu.memory_space<vmem>>, vector<1x128xf32>
    %64 = vector.broadcast %63 : vector<1x128xf32> to vector<2x128xf32>
    %65 = arith.addf %62, %64 : vector<2x128xf32>
    %cst_38 = arith.constant 0.000000e+00 : f32
    %66 = vector.broadcast %cst_38 : f32 to vector<2x128xf32>
    %67 = arith.maximumf %65, %66 : vector<2x128xf32>
    %c2_39 = arith.constant 2 : index
    %c0_40 = arith.constant 0 : index
    %c0_41 = arith.constant 0 : index
    %68 = vector.load %arg5[%c2_39, %c0_40, %c0_41] : memref<6x128x128xf32, #tpu.memory_space<vmem>>, vector<1x128x128xf32>
    %69 = vector.shape_cast %68 : vector<1x128x128xf32> to vector<128x128xf32>
    %cst_42 = arith.constant dense<0.000000e+00> : vector<2x128xf32>
    %70 = tpu.matmul %67, %69, %cst_42 {dimension_numbers = #tpu.dot_dimension_numbers<[1], [0], [0], [1], [0, 0, 1, 1], [], []>} : vector<2x128xf32>, vector<128x128xf32>, vector<2x128xf32> -> vector<2x128xf32>
    %c2_43 = arith.constant 2 : index
    %c0_44 = arith.constant 0 : index
    %71 = vector.load %arg6[%c2_43, %c0_44] : memref<8x128xf32, #tpu.memory_space<vmem>>, vector<1x128xf32>
    %72 = vector.broadcast %71 : vector<1x128xf32> to vector<2x128xf32>
    %73 = arith.addf %70, %72 : vector<2x128xf32>
    %cst_45 = arith.constant 0.000000e+00 : f32
    %74 = vector.broadcast %cst_45 : f32 to vector<2x128xf32>
    %75 = arith.maximumf %73, %74 : vector<2x128xf32>
    %c3_46 = arith.constant 3 : index
    %c0_47 = arith.constant 0 : index
    %c0_48 = arith.constant 0 : index
    %76 = vector.load %arg5[%c3_46, %c0_47, %c0_48] : memref<6x128x128xf32, #tpu.memory_space<vmem>>, vector<1x128x128xf32>
    %77 = vector.shape_cast %76 : vector<1x128x128xf32> to vector<128x128xf32>
    %cst_49 = arith.constant dense<0.000000e+00> : vector<2x128xf32>
    %78 = tpu.matmul %75, %77, %cst_49 {dimension_numbers = #tpu.dot_dimension_numbers<[1], [0], [0], [1], [0, 0, 1, 1], [], []>} : vector<2x128xf32>, vector<128x128xf32>, vector<2x128xf32> -> vector<2x128xf32>
    %c3_50 = arith.constant 3 : index
    %c0_51 = arith.constant 0 : index
    %79 = vector.load %arg6[%c3_50, %c0_51] : memref<8x128xf32, #tpu.memory_space<vmem>>, vector<1x128xf32>
    %80 = vector.broadcast %79 : vector<1x128xf32> to vector<2x128xf32>
    %81 = arith.addf %78, %80 : vector<2x128xf32>
    %cst_52 = arith.constant 0.000000e+00 : f32
    %82 = vector.broadcast %cst_52 : f32 to vector<2x128xf32>
    %83 = arith.maximumf %81, %82 : vector<2x128xf32>
    %84 = tpu.iota {dimensions = array<i32: 1>} : vector<1x128xi32>
    %c32_i32 = arith.constant 32 : i32
    %85 = vector.broadcast %c32_i32 : i32 to vector<1x128xi32>
    %86 = arith.cmpi slt, %84, %85 : vector<1x128xi32>
    %c16_i32 = arith.constant 16 : i32
    %87 = vector.broadcast %c16_i32 : i32 to vector<1x128xi32>
    %88 = arith.cmpi slt, %84, %87 : vector<1x128xi32>
    %cst_53 = arith.constant 0.000000e+00 : f32
    %89 = vector.shape_cast %86 : vector<1x128xi1> to vector<1x128xi1>
    %90 = vector.broadcast %89 : vector<1x128xi1> to vector<2x128xi1>
    %91 = vector.broadcast %cst_53 : f32 to vector<2x128xf32>
    %92 = arith.select %90, %83, %91 : vector<2x128xi1>, vector<2x128xf32>
    %cst_54 = arith.constant dense<0xFF800000> : vector<2xf32>
    %93 = vector.multi_reduction <maximumf>, %92, %cst_54 [1] : vector<2x128xf32> to vector<2xf32>
    %94 = vector.shape_cast %93 : vector<2xf32> to vector<2x1xf32>
    %cst_55 = arith.constant 0.000000e+00 : f32
    %95 = vector.shape_cast %88 : vector<1x128xi1> to vector<1x128xi1>
    %96 = vector.broadcast %95 : vector<1x128xi1> to vector<2x128xi1>
    %97 = vector.broadcast %cst_55 : f32 to vector<2x128xf32>
    %98 = arith.select %96, %58, %97 : vector<2x128xi1>, vector<2x128xf32>
    %cst_56 = arith.constant dense<0xFF800000> : vector<2xf32>
    %99 = vector.multi_reduction <maximumf>, %98, %cst_56 [1] : vector<2x128xf32> to vector<2xf32>
    %100 = vector.shape_cast %99 : vector<2xf32> to vector<2x1xf32>
    %101 = arith.maximumf %94, %100 : vector<2x1xf32>
    %102 = vector.broadcast %101 : vector<2x1xf32> to vector<2x128xf32>
    %103 = arith.subf %83, %102 : vector<2x128xf32>
    %104 = math.exp %103 : vector<2x128xf32>
    %cst_57 = arith.constant 0.000000e+00 : f32
    %105 = vector.shape_cast %86 : vector<1x128xi1> to vector<1x128xi1>
    %106 = vector.broadcast %105 : vector<1x128xi1> to vector<2x128xi1>
    %107 = vector.broadcast %cst_57 : f32 to vector<2x128xf32>
    %108 = arith.select %106, %104, %107 : vector<2x128xi1>, vector<2x128xf32>
    %109 = vector.broadcast %101 : vector<2x1xf32> to vector<2x128xf32>
    %110 = arith.subf %58, %109 : vector<2x128xf32>
    %111 = math.exp %110 : vector<2x128xf32>
    %cst_58 = arith.constant 0.000000e+00 : f32
    %112 = vector.shape_cast %88 : vector<1x128xi1> to vector<1x128xi1>
    %113 = vector.broadcast %112 : vector<1x128xi1> to vector<2x128xi1>
    %114 = vector.broadcast %cst_58 : f32 to vector<2x128xf32>
    %115 = arith.select %113, %111, %114 : vector<2x128xi1>, vector<2x128xf32>
    %cst_59 = arith.constant dense<0.000000e+00> : vector<2xf32>
    %116 = vector.multi_reduction <add>, %108, %cst_59 [1] : vector<2x128xf32> to vector<2xf32>
    %117 = vector.shape_cast %116 : vector<2xf32> to vector<2x1xf32>
    %cst_60 = arith.constant dense<0.000000e+00> : vector<2xf32>
    %118 = vector.multi_reduction <add>, %115, %cst_60 [1] : vector<2x128xf32> to vector<2xf32>
    %119 = vector.shape_cast %118 : vector<2xf32> to vector<2x1xf32>
    %120 = arith.addf %117, %119 : vector<2x1xf32>
    %c4 = arith.constant 4 : index
    %c0_61 = arith.constant 0 : index
    %c0_62 = arith.constant 0 : index
    %121 = vector.load %arg5[%c4, %c0_61, %c0_62] : memref<6x128x128xf32, #tpu.memory_space<vmem>>, vector<1x128x128xf32>
    %122 = vector.shape_cast %121 : vector<1x128x128xf32> to vector<128x128xf32>
    %cst_63 = arith.constant dense<0.000000e+00> : vector<2x128xf32>
    %123 = tpu.matmul %108, %122, %cst_63 {dimension_numbers = #tpu.dot_dimension_numbers<[1], [0], [0], [1], [0, 0, 1, 1], [], []>} : vector<2x128xf32>, vector<128x128xf32>, vector<2x128xf32> -> vector<2x128xf32>
    %c5 = arith.constant 5 : index
    %c0_64 = arith.constant 0 : index
    %c0_65 = arith.constant 0 : index
    %124 = vector.load %arg5[%c5, %c0_64, %c0_65] : memref<6x128x128xf32, #tpu.memory_space<vmem>>, vector<1x128x128xf32>
    %125 = vector.shape_cast %124 : vector<1x128x128xf32> to vector<128x128xf32>
    %cst_66 = arith.constant dense<0.000000e+00> : vector<2x128xf32>
    %126 = tpu.matmul %115, %125, %cst_66 {dimension_numbers = #tpu.dot_dimension_numbers<[1], [0], [0], [1], [0, 0, 1, 1], [], []>} : vector<2x128xf32>, vector<128x128xf32>, vector<2x128xf32> -> vector<2x128xf32>
    %127 = arith.addf %123, %126 : vector<2x128xf32>
    %128 = tpu.reciprocal %120 : vector<2x1xf32> -> vector<2x1xf32>
    %129 = vector.broadcast %128 : vector<2x1xf32> to vector<2x128xf32>
    %130 = arith.mulf %127, %129 : vector<2x128xf32>
    %c4_67 = arith.constant 4 : index
    %c0_68 = arith.constant 0 : index
    %131 = vector.load %arg6[%c4_67, %c0_68] : memref<8x128xf32, #tpu.memory_space<vmem>>, vector<1x128xf32>
    %132 = vector.broadcast %131 : vector<1x128xf32> to vector<2x128xf32>
    %133 = arith.addf %130, %132 : vector<2x128xf32>
    %c0_69 = arith.constant 0 : index
    %c0_70 = arith.constant 0 : index
    %134 = vector.load %arg7[%c0_69, %c0_70] : memref<2x128xf32, #tpu.memory_space<vmem>>, vector<2x128xf32>
    tpu.vector_store %arg7[%c0_69, %c0_70], %133 {strides = array<i32>} : memref<2x128xf32, #tpu.memory_space<vmem>>, vector<2x128xf32>,
    return
  }
  func.func @transform_0(%arg0: i32) -> (i32, i32, i32) {
    %c0_i32 = arith.constant 0 : i32
    %c0_i32_0 = arith.constant 0 : i32
    %c0_i32_1 = arith.constant 0 : i32
    return %c0_i32, %arg0, %c0_i32_0 : i32, i32, i32
  }
  func.func @transform_1(%arg0: i32) -> (i32, i32) {
    %c0_i32 = arith.constant 0 : i32
    %c0_i32_0 = arith.constant 0 : i32
    return %arg0, %c0_i32 : i32, i32
  }
  func.func @transform_2(%arg0: i32) -> (i32, i32) {
    %c0_i32 = arith.constant 0 : i32
    %c0_i32_0 = arith.constant 0 : i32
    %c0_i32_1 = arith.constant 0 : i32
    return %c0_i32, %c0_i32_0 : i32, i32
  }
  func.func @transform_3(%arg0: i32) -> (i32, i32) {
    %c0_i32 = arith.constant 0 : i32
    %c0_i32_0 = arith.constant 0 : i32
    %c0_i32_1 = arith.constant 0 : i32
    return %c0_i32, %c0_i32_0 : i32, i32
  }
  func.func @transform_4(%arg0: i32) -> (i32, i32, i32) {
    %c0_i32 = arith.constant 0 : i32
    %c0_i32_0 = arith.constant 0 : i32
    %c0_i32_1 = arith.constant 0 : i32
    %c0_i32_2 = arith.constant 0 : i32
    return %c0_i32, %c0_i32_0, %c0_i32_1 : i32, i32, i32
  }
  func.func @transform_5(%arg0: i32) -> (i32, i32) {
    %c0_i32 = arith.constant 0 : i32
    %c0_i32_0 = arith.constant 0 : i32
    %c0_i32_1 = arith.constant 0 : i32
    return %c0_i32, %c0_i32_0 : i32, i32
  }
  func.func @transform_6(%arg0: i32) -> (i32, i32) {
    %c0_i32 = arith.constant 0 : i32
    %c0_i32_0 = arith.constant 0 : i32
    return %arg0, %c0_i32 : i32, i32
  }
}

</mosaic_0001>

<llo_original>
// kernel: classifier_forward.3
$region0: #{classifier_forward.3}
  #allocation0 [shape = 'u32[]', space=smem, size = 0x4, offset = 0x4, fixed_abs, tag = 'smem constant byte address 0x4 - core index']
  #allocation1 [shape = 'u32[144,128]{1,0:T(1,128)}', space=vmem, size = 0x12000, scoped, tag = 'internal scratch']
  %s0 = inlined_call_operand.vmem [shape: bf16[4,512,128], index: 0, kind: input, shape index: {}]
  %s1 = inlined_call_operand.vmem [shape: bf16[128,128], index: 1, kind: input, shape index: {}]
  %s2 = inlined_call_operand.vmem [shape: f32[3,128], index: 2, kind: input, shape index: {}]
  %s3 = inlined_call_operand.vmem [shape: bf16[512,128], index: 3, kind: output, shape index: {}]
  %s4 = sld [smem:[#allocation0]]
  $region22: #{classifier_forward.3} parent=0
    _
  %s6 = ssub.s32 1, %s4
  %s7 = scalar_select 0, %s6, %s4
  // Predicated region
  $region2: #{classifier_forward.3} parent=0 // pred_check
    _
  $region3: #{classifier_forward.3} parent=0 // pred_check_branch
    %9 = sbr.rel (0) target = $region5
  $region4: #{classifier_forward.3} parent=0 // pred_region
    _
  $region5: #{classifier_forward.3} parent=0 // pred_fallthru
    _
  // Predicated region
  $region6: #{classifier_forward.3} parent=0 // pred_check
    _
  $region7: #{classifier_forward.3} parent=0 // pred_check_branch
    %11 = sbr.rel (0) target = $region9
  $region8: #{classifier_forward.3} parent=0 // pred_region
    _
  $region9: #{classifier_forward.3} parent=0 // pred_fallthru
    _
  // Predicated region
  $region10: #{classifier_forward.3} parent=0 // pred_check
    _
  $region11: #{classifier_forward.3} parent=0 // pred_check_branch
    %13 = sbr.rel (0) target = $region13
  $region12: #{classifier_forward.3} parent=0 // pred_region
    _
  $region13: #{classifier_forward.3} parent=0 // pred_fallthru
    _
  %v15 = vld [vmem:[%s1] sm:$0xf]
  %v16 = vld [vmem:[%s1 + $0x4] sm:$0xf]
  %v17 = vld [vmem:[%s1 + $0x8] sm:$0xf]
  %v18 = vld [vmem:[%s1 + $0xc] sm:$0xf]
  %v19 = vld [vmem:[%s1 + $0x10] sm:$0xf]
  %v20 = vld [vmem:[%s1 + $0x14] sm:$0xf]
  %v21 = vld [vmem:[%s1 + $0x18] sm:$0xf]
  %v22 = vld [vmem:[%s1 + $0x1c] sm:$0xf]
  %v23 = vld [vmem:[%s1 + $0x20] sm:$0xf]
  %v24 = vld [vmem:[%s1 + $0x24] sm:$0xf]
  %v25 = vld [vmem:[%s1 + $0x28] sm:$0xf]
  %v26 = vld [vmem:[%s1 + $0x2c] sm:$0xf]
  %v27 = vld [vmem:[%s1 + $0x30] sm:$0xf]
  %v28 = vld [vmem:[%s1 + $0x34] sm:$0xf]
  %v29 = vld [vmem:[%s1 + $0x38] sm:$0xf]
  %v30 = vld [vmem:[%s1 + $0x3c] sm:$0xf]
  %v31 = vld [vmem:[%s2] sm:$0x1]
  %v32 = vld [vmem:[%s2 + $0x1] sm:$0x1]
  %v33 = vld [vmem:[%s2 + $0x2] sm:$0x1]
  %v34 = vld [vmem:[%s0] sm:$0xf]
  %v35 = vld [vmem:[%s0 + $0x4] sm:$0xf]
  %v36 = vld [vmem:[%s0 + $0x8] sm:$0xf]
  %v37 = vld [vmem:[%s0 + $0xc] sm:$0xf]
  %v38 = vld [vmem:[%s0 + $0x10] sm:$0xf]
  %v39 = vld [vmem:[%s0 + $0x14] sm:$0xf]
  %v40 = vld [vmem:[%s0 + $0x18] sm:$0xf]
  %v41 = vld [vmem:[%s0 + $0x1c] sm:$0xf]
  %v42 = vld [vmem:[%s0 + $0x20] sm:$0xf]
  %v43 = vld [vmem:[%s0 + $0x24] sm:$0xf]
  %v44 = vld [vmem:[%s0 + $0x28] sm:$0xf]
  %v45 = vld [vmem:[%s0 + $0x2c] sm:$0xf]
  %v46 = vld [vmem:[%s0 + $0x30] sm:$0xf]
  %v47 = vld [vmem:[%s0 + $0x34] sm:$0xf]
  %v48 = vld [vmem:[%s0 + $0x38] sm:$0xf]
  %v49 = vld [vmem:[%s0 + $0x3c] sm:$0xf]
  %v50 = vld [vmem:[%s0 + $0x40] sm:$0xf]
  %v51 = vld [vmem:[%s0 + $0x44] sm:$0xf]
  %v52 = vld [vmem:[%s0 + $0x48] sm:$0xf]
  %v53 = vld [vmem:[%s0 + $0x4c] sm:$0xf]
  %v54 = vld [vmem:[%s0 + $0x50] sm:$0xf]
  %v55 = vld [vmem:[%s0 + $0x54] sm:$0xf]
  %v56 = vld [vmem:[%s0 + $0x58] sm:$0xf]
  %v57 = vld [vmem:[%s0 + $0x5c] sm:$0xf]
  %v58 = vld [vmem:[%s0 + $0x60] sm:$0xf]
  %v59 = vld [vmem:[%s0 + $0x64] sm:$0xf]
  %v60 = vld [vmem:[%s0 + $0x68] sm:$0xf]
  %v61 = vld [vmem:[%s0 + $0x6c] sm:$0xf]
  %v62 = vld [vmem:[%s0 + $0x70] sm:$0xf]
  %v63 = vld [vmem:[%s0 + $0x74] sm:$0xf]
  %v64 = vld [vmem:[%s0 + $0x78] sm:$0xf]
  %v65 = vld [vmem:[%s0 + $0x7c] sm:$0xf]
  %v66 = vld [vmem:[%s0 + $0x80] sm:$0xf]
  %v67 = vld [vmem:[%s0 + $0x84] sm:$0xf]
  %v68 = vld [vmem:[%s0 + $0x88] sm:$0xf]
  %v69 = vld [vmem:[%s0 + $0x8c] sm:$0xf]
  %v70 = vld [vmem:[%s0 + $0x90] sm:$0xf]
  %v71 = vld [vmem:[%s0 + $0x94] sm:$0xf]
  %v72 = vld [vmem:[%s0 + $0x98] sm:$0xf]
  %v73 = vld [vmem:[%s0 + $0x9c] sm:$0xf]
  %v74 = vld [vmem:[%s0 + $0xa0] sm:$0xf]
  %v75 = vld [vmem:[%s0 + $0xa4] sm:$0xf]
  %v76 = vld [vmem:[%s0 + $0xa8] sm:$0xf]
  %v77 = vld [vmem:[%s0 + $0xac] sm:$0xf]
  %v78 = vld [vmem:[%s0 + $0xb0] sm:$0xf]
  %v79 = vld [vmem:[%s0 + $0xb4] sm:$0xf]
  %v80 = vld [vmem:[%s0 + $0xb8] sm:$0xf]
  %v81 = vld [vmem:[%s0 + $0xbc] sm:$0xf]
  %v82 = vld [vmem:[%s0 + $0xc0] sm:$0xf]
  %v83 = vld [vmem:[%s0 + $0xc4] sm:$0xf]
  %v84 = vld [vmem:[%s0 + $0xc8] sm:$0xf]
  %v85 = vld [vmem:[%s0 + $0xcc] sm:$0xf]
  %v86 = vld [vmem:[%s0 + $0xd0] sm:$0xf]
  %v87 = vld [vmem:[%s0 + $0xd4] sm:$0xf]
  %v88 = vld [vmem:[%s0 + $0xd8] sm:$0xf]
  %v89 = vld [vmem:[%s0 + $0xdc] sm:$0xf]
  %v90 = vld [vmem:[%s0 + $0xe0] sm:$0xf]
  %v91 = vld [vmem:[%s0 + $0xe4] sm:$0xf]
  %v92 = vld [vmem:[%s0 + $0xe8] sm:$0xf]
  %v93 = vld [vmem:[%s0 + $0xec] sm:$0xf]
  %v94 = vld [vmem:[%s0 + $0xf0] sm:$0xf]
  %v95 = vld [vmem:[%s0 + $0xf4] sm:$0xf]
  %v96 = vld [vmem:[%s0 + $0xf8] sm:$0xf]
  %v97 = vld [vmem:[%s0 + $0xfc] sm:$0xf]
  %v98 = vlaneseq
  %v99 = vshrl.u32 %v98, 7
  %v100 = vsub.s32 0, %v99
  %v101 = vrot.slane %v31, %v100
  %v166 = vunpack.c.l.b16 %v34
  %v167 = vunpack.c.l.b16 %v35
  %v168 = vunpack.c.l.b16 %v36
  %v169 = vunpack.c.l.b16 %v37
  %v170 = vunpack.c.l.b16 %v38
  %v171 = vunpack.c.l.b16 %v39
  %v172 = vunpack.c.l.b16 %v40
  %v173 = vunpack.c.l.b16 %v41
  %v174 = vunpack.c.l.b16 %v42
  %v175 = vunpack.c.l.b16 %v43
  %v176 = vunpack.c.l.b16 %v44
  %v177 = vunpack.c.l.b16 %v45
  %v178 = vunpack.c.l.b16 %v46
  %v179 = vunpack.c.l.b16 %v47
  %v180 = vunpack.c.l.b16 %v48
  %v181 = vunpack.c.l.b16 %v49
  %v182 = vunpack.c.l.b16 %v50
  %v183 = vunpack.c.l.b16 %v51
  %v184 = vunpack.c.l.b16 %v52
  %v185 = vunpack.c.l.b16 %v53
  %v186 = vunpack.c.l.b16 %v54
  %v187 = vunpack.c.l.b16 %v55
  %v188 = vunpack.c.l.b16 %v56
  %v189 = vunpack.c.l.b16 %v57
  %v190 = vunpack.c.l.b16 %v58
  %v191 = vunpack.c.l.b16 %v59
  %v192 = vunpack.c.l.b16 %v60
  %v193 = vunpack.c.l.b16 %v61
  %v194 = vunpack.c.l.b16 %v62
  %v195 = vunpack.c.l.b16 %v63
  %v196 = vunpack.c.l.b16 %v64
  %v197 = vunpack.c.l.b16 %v65
  %v198 = vunpack.c.l.b16 %v66
  %v199 = vunpack.c.l.b16 %v67
  %v200 = vunpack.c.l.b16 %v68
  %v201 = vunpack.c.l.b16 %v69
  %v202 = vunpack.c.l.b16 %v70
  %v203 = vunpack.c.l.b16 %v71
  %v204 = vunpack.c.l.b16 %v72
  %v205 = vunpack.c.l.b16 %v73
  %v206 = vunpack.c.l.b16 %v74
  %v207 = vunpack.c.l.b16 %v75
  %v208 = vunpack.c.l.b16 %v76
  %v209 = vunpack.c.l.b16 %v77
  %v210 = vunpack.c.l.b16 %v78
  %v211 = vunpack.c.l.b16 %v79
  %v212 = vunpack.c.l.b16 %v80
  %v213 = vunpack.c.l.b16 %v81
  %v214 = vunpack.c.l.b16 %v82
  %v215 = vunpack.c.l.b16 %v83
  %v216 = vunpack.c.l.b16 %v84
  %v217 = vunpack.c.l.b16 %v85
  %v218 = vunpack.c.l.b16 %v86
  %v219 = vunpack.c.l.b16 %v87
  %v220 = vunpack.c.l.b16 %v88
  %v221 = vunpack.c.l.b16 %v89
  %v222 = vunpack.c.l.b16 %v90
  %v223 = vunpack.c.l.b16 %v91
  %v224 = vunpack.c.l.b16 %v92
  %v225 = vunpack.c.l.b16 %v93
  %v226 = vunpack.c.l.b16 %v94
  %v227 = vunpack.c.l.b16 %v95
  %v228 = vunpack.c.l.b16 %v96
  %v229 = vunpack.c.l.b16 %v97
  %v230 = vpack.c.b16 %v167, %v166
  %v231 = vpack.c.b16 %v169, %v168
  %v232 = vpack.c.b16 %v171, %v170
  %v233 = vpack.c.b16 %v173, %v172
  %v234 = vpack.c.b16 %v175, %v174
  %v235 = vpack.c.b16 %v177, %v176
  %v236 = vpack.c.b16 %v179, %v178
  %v237 = vpack.c.b16 %v181, %v180
  %v238 = vpack.c.b16 %v183, %v182
  %v239 = vpack.c.b16 %v185, %v184
  %v240 = vpack.c.b16 %v187, %v186
  %v241 = vpack.c.b16 %v189, %v188
  %v242 = vpack.c.b16 %v191, %v190
  %v243 = vpack.c.b16 %v193, %v192
  %v244 = vpack.c.b16 %v195, %v194
  %v245 = vpack.c.b16 %v197, %v196
  %v246 = vpack.c.b16 %v199, %v198
  %v247 = vpack.c.b16 %v201, %v200
  %v248 = vpack.c.b16 %v203, %v202
  %v249 = vpack.c.b16 %v205, %v204
  %v250 = vpack.c.b16 %v207, %v206
  %v251 = vpack.c.b16 %v209, %v208
  %v252 = vpack.c.b16 %v211, %v210
  %v253 = vpack.c.b16 %v213, %v212
  %v254 = vpack.c.b16 %v215, %v214
  %v255 = vpack.c.b16 %v217, %v216
  %v256 = vpack.c.b16 %v219, %v218
  %v257 = vpack.c.b16 %v221, %v220
  %v258 = vpack.c.b16 %v223, %v222
  %v259 = vpack.c.b16 %v225, %v224
  %v260 = vpack.c.b16 %v227, %v226
  %v261 = vpack.c.b16 %v229, %v228
  %v310 = vunpack.c.l.b16 %v15
  %v311 = vunpack.c.l.b16 %v16
  %v312 = vunpack.c.l.b16 %v17
  %v313 = vunpack.c.l.b16 %v18
  %v314 = vunpack.c.l.b16 %v19
  %v315 = vunpack.c.l.b16 %v20
  %v316 = vunpack.c.l.b16 %v21
  %v317 = vunpack.c.l.b16 %v22
  %v318 = vunpack.c.l.b16 %v23
  %v319 = vunpack.c.l.b16 %v24
  %v320 = vunpack.c.l.b16 %v25
  %v321 = vunpack.c.l.b16 %v26
  %v322 = vunpack.c.l.b16 %v27
  %v323 = vunpack.c.l.b16 %v28
  %v324 = vunpack.c.l.b16 %v29
  %v325 = vunpack.c.l.b16 %v30
  %v326 = vpack.c.b16 %v311, %v310
  %v327 = vpack.c.b16 %v313, %v312
  %v328 = vpack.c.b16 %v315, %v314
  %v329 = vpack.c.b16 %v317, %v316
  %v330 = vpack.c.b16 %v319, %v318
  %v331 = vpack.c.b16 %v321, %v320
  %v332 = vpack.c.b16 %v323, %v322
  %v333 = vpack.c.b16 %v325, %v324
  %342 = vmatprep.subr.bf16.mxu0 0
  %343 = vmatpush1.bf16.msra.mxu0 %v333
  %344 = vmatprep.subr.bf16.mxu0 0
  %345 = vmatpush1.bf16.msra.mxu0 %v332
  %346 = vmatprep.subr.bf16.mxu0 0
  %347 = vmatpush1.bf16.msra.mxu0 %v331
  %348 = vmatprep.subr.bf16.mxu0 0
  %349 = vmatpush1.bf16.msra.mxu0 %v330
  %350 = vmatprep.subr.bf16.mxu0 0
  %351 = vmatpush1.bf16.msra.mxu0 %v329
  %352 = vmatprep.subr.bf16.mxu0 0
  %353 = vmatpush1.bf16.msra.mxu0 %v328
  %354 = vmatprep.subr.bf16.mxu0 0
  %355 = vmatpush1.bf16.msra.mxu0 %v327
  %356 = vmatprep.subr.bf16.mxu0 0
  %357 = vmatpush1.bf16.msra.mxu0 %v326
  %358 = vmatprep.subr.bf16.mxu0 0
  %359 = vmatpush2.bf16.msra.mxu0 0
  %360 = vmatprep.subr.bf16.mxu0 0
  %361 = vmatpush2.bf16.msra.mxu0 0
  %362 = vmatprep.subr.bf16.mxu0 0
  %363 = vmatpush2.bf16.msra.mxu0 0
  %364 = vmatprep.subr.bf16.mxu0 0
  %365 = vmatpush2.bf16.msra.mxu0 0
  %366 = vmatprep.subr.bf16.mxu0 0
  %367 = vmatpush2.bf16.msra.mxu0 0
  %368 = vmatprep.subr.bf16.mxu0 0
  %369 = vmatpush2.bf16.msra.mxu0 0
  %370 = vmatprep.subr.bf16.mxu0 0
  %371 = vmatpush2.bf16.msra.mxu0 0
  %372 = vmatprep.subr.bf16.mxu0 0
  %373 = vmatpush2.bf16.msra.mxu0 0
  %374 = vmatprep.mubr.bf16.mxu0 0
  %375 = vmatmul.mubr.bf16.gmra.mxu0 %v230
  %v376 = vpop.f32.mrf.mxu0
  %v377 = vadd.f32 %v101, %v376
  %v378 = vpop.f32.mrf.mxu0
  %v379 = vpop.f32.mrf.mxu0
  %v380 = vadd.f32 %v101, %v379
  %v381 = vpop.f32.mrf.mxu0
  %382 = vmatprep.mubr.bf16.mxu0 0
  %383 = vmatmul.mubr.bf16.gmra.mxu0 %v231
  %v384 = vpop.f32.mrf.mxu0
  %v385 = vadd.f32 %v101, %v384
  %v386 = vpop.f32.mrf.mxu0
  %v387 = vpop.f32.mrf.mxu0
  %v388 = vadd.f32 %v101, %v387
  %v389 = vpop.f32.mrf.mxu0
  %390 = vmatprep.mubr.bf16.mxu0 0
  %391 = vmatmul.mubr.bf16.gmra.mxu0 %v232
  %v392 = vpop.f32.mrf.mxu0
  %v393 = vadd.f32 %v101, %v392
  %v394 = vpop.f32.mrf.mxu0
  %v395 = vpop.f32.mrf.mxu0
  %v396 = vadd.f32 %v101, %v395
  %v397 = vpop.f32.mrf.mxu0
  %398 = vmatprep.mubr.bf16.mxu0 0
  %399 = vmatmul.mubr.bf16.gmra.mxu0 %v233
  %v400 = vpop.f32.mrf.mxu0
  %v401 = vadd.f32 %v101, %v400
  %v402 = vpop.f32.mrf.mxu0
  %v403 = vpop.f32.mrf.mxu0
  %v404 = vadd.f32 %v101, %v403
  %v405 = vpop.f32.mrf.mxu0
  %406 = vmatprep.mubr.bf16.mxu0 0
  %407 = vmatmul.mubr.bf16.gmra.mxu0 %v234
  %v408 = vpop.f32.mrf.mxu0
  %v409 = vadd.f32 %v101, %v408
  %v410 = vpop.f32.mrf.mxu0
  %v411 = vpop.f32.mrf.mxu0
  %v412 = vadd.f32 %v101, %v411
  %v413 = vpop.f32.mrf.mxu0
  %414 = vmatprep.mubr.bf16.mxu0 0
  %415 = vmatmul.mubr.bf16.gmra.mxu0 %v235
  %v416 = vpop.f32.mrf.mxu0
  %v417 = vadd.f32 %v101, %v416
  %v418 = vpop.f32.mrf.mxu0
  %v419 = vpop.f32.mrf.mxu0
  %v420 = vadd.f32 %v101, %v419
  %v421 = vpop.f32.mrf.mxu0
  %422 = vmatprep.mubr.bf16.mxu0 0
  %423 = vmatmul.mubr.bf16.gmra.mxu0 %v236
  %v424 = vpop.f32.mrf.mxu0
  %v425 = vadd.f32 %v101, %v424
  %v426 = vpop.f32.mrf.mxu0
  %v427 = vpop.f32.mrf.mxu0
  %v428 = vadd.f32 %v101, %v427
  %v429 = vpop.f32.mrf.mxu0
  %430 = vmatprep.mubr.bf16.mxu0 0
  %431 = vmatmul.mubr.bf16.gmra.mxu0 %v237
  %v432 = vpop.f32.mrf.mxu0
  %v433 = vadd.f32 %v101, %v432
  %v434 = vpop.f32.mrf.mxu0
  %v435 = vpop.f32.mrf.mxu0
  %v436 = vadd.f32 %v101, %v435
  %v437 = vpop.f32.mrf.mxu0
  %438 = vmatprep.mubr.bf16.mxu0 0
  %439 = vmatmul.mubr.bf16.gmra.mxu0 %v238
  %v440 = vpop.f32.mrf.mxu0
  %v441 = vadd.f32 %v101, %v440
  %v442 = vpop.f32.mrf.mxu0
  %v443 = vpop.f32.mrf.mxu0
  %v444 = vadd.f32 %v101, %v443
  %v445 = vpop.f32.mrf.mxu0
  %446 = vmatprep.mubr.bf16.mxu0 0
  %447 = vmatmul.mubr.bf16.gmra.mxu0 %v239
  %v448 = vpop.f32.mrf.mxu0
  %v449 = vadd.f32 %v101, %v448
  %v450 = vpop.f32.mrf.mxu0
  %v451 = vpop.f32.mrf.mxu0
  %v452 = vadd.f32 %v101, %v451
  %v453 = vpop.f32.mrf.mxu0
  %454 = vmatprep.mubr.bf16.mxu0 0
  %455 = vmatmul.mubr.bf16.gmra.mxu0 %v240
  %v456 = vpop.f32.mrf.mxu0
  %v457 = vadd.f32 %v101, %v456
  %v458 = vpop.f32.mrf.mxu0
  %v459 = vpop.f32.mrf.mxu0
  %v460 = vadd.f32 %v101, %v459
  %v461 = vpop.f32.mrf.mxu0
  %462 = vmatprep.mubr.bf16.mxu0 0
  %463 = vmatmul.mubr.bf16.gmra.mxu0 %v241
  %v464 = vpop.f32.mrf.mxu0
  %v465 = vadd.f32 %v101, %v464
  %v466 = vpop.f32.mrf.mxu0
  %v467 = vpop.f32.mrf.mxu0
  %v468 = vadd.f32 %v101, %v467
  %v469 = vpop.f32.mrf.mxu0
  %470 = vmatprep.mubr.bf16.mxu0 0
  %471 = vmatmul.mubr.bf16.gmra.mxu0 %v242
  %v472 = vpop.f32.mrf.mxu0
  %v473 = vadd.f32 %v101, %v472
  %v474 = vpop.f32.mrf.mxu0
  %v475 = vpop.f32.mrf.mxu0
  %v476 = vadd.f32 %v101, %v475
  %v477 = vpop.f32.mrf.mxu0
  %478 = vmatprep.mubr.bf16.mxu0 0
  %479 = vmatmul.mubr.bf16.gmra.mxu0 %v243
  %v480 = vpop.f32.mrf.mxu0
  %v481 = vadd.f32 %v101, %v480
  %v482 = vpop.f32.mrf.mxu0
  %v483 = vpop.f32.mrf.mxu0
  %v484 = vadd.f32 %v101, %v483
  %v485 = vpop.f32.mrf.mxu0
  %486 = vmatprep.mubr.bf16.mxu0 0
  %487 = vmatmul.mubr.bf16.gmra.mxu0 %v244
  %v488 = vpop.f32.mrf.mxu0
  %v489 = vadd.f32 %v101, %v488
  %v490 = vpop.f32.mrf.mxu0
  %v491 = vpop.f32.mrf.mxu0
  %v492 = vadd.f32 %v101, %v491
  %v493 = vpop.f32.mrf.mxu0
  %494 = vmatprep.mubr.bf16.mxu0 0
  %495 = vmatmul.mubr.bf16.gmra.mxu0 %v245
  %v496 = vpop.f32.mrf.mxu0
  %v497 = vadd.f32 %v101, %v496
  %v498 = vpop.f32.mrf.mxu0
  %v499 = vpop.f32.mrf.mxu0
  %v500 = vadd.f32 %v101, %v499
  %v501 = vpop.f32.mrf.mxu0
  %502 = vmatprep.mubr.bf16.mxu0 0
  %503 = vmatmul.mubr.bf16.gmra.mxu0 %v246
  %v504 = vpop.f32.mrf.mxu0
  %v505 = vadd.f32 %v101, %v504
  %v506 = vpop.f32.mrf.mxu0
  %v507 = vpop.f32.mrf.mxu0
  %v508 = vadd.f32 %v101, %v507
  %v509 = vpop.f32.mrf.mxu0
  %510 = vmatprep.mubr.bf16.mxu0 0
  %511 = vmatmul.mubr.bf16.gmra.mxu0 %v247
  %v512 = vpop.f32.mrf.mxu0
  %v513 = vadd.f32 %v101, %v512
  %v514 = vpop.f32.mrf.mxu0
  %v515 = vpop.f32.mrf.mxu0
  %v516 = vadd.f32 %v101, %v515
  %v517 = vpop.f32.mrf.mxu0
  %518 = vmatprep.mubr.bf16.mxu0 0
  %519 = vmatmul.mubr.bf16.gmra.mxu0 %v248
  %v520 = vpop.f32.mrf.mxu0
  %v521 = vadd.f32 %v101, %v520
  %v522 = vpop.f32.mrf.mxu0
  %v523 = vpop.f32.mrf.mxu0
  %v524 = vadd.f32 %v101, %v523
  %v525 = vpop.f32.mrf.mxu0
  %526 = vmatprep.mubr.bf16.mxu0 0
  %527 = vmatmul.mubr.bf16.gmra.mxu0 %v249
  %v528 = vpop.f32.mrf.mxu0
  %v529 = vadd.f32 %v101, %v528
  %v530 = vpop.f32.mrf.mxu0
  %v531 = vpop.f32.mrf.mxu0
  %v532 = vadd.f32 %v101, %v531
  %v533 = vpop.f32.mrf.mxu0
  %534 = vmatprep.mubr.bf16.mxu0 0
  %535 = vmatmul.mubr.bf16.gmra.mxu0 %v250
  %v536 = vpop.f32.mrf.mxu0
  %v537 = vadd.f32 %v101, %v536
  %v538 = vpop.f32.mrf.mxu0
  %v539 = vpop.f32.mrf.mxu0
  %v540 = vadd.f32 %v101, %v539
  %v541 = vpop.f32.mrf.mxu0
  %542 = vmatprep.mubr.bf16.mxu0 0
  %543 = vmatmul.mubr.bf16.gmra.mxu0 %v251
  %v544 = vpop.f32.mrf.mxu0
  %v545 = vadd.f32 %v101, %v544
  %v546 = vpop.f32.mrf.mxu0
  %v547 = vpop.f32.mrf.mxu0
  %v548 = vadd.f32 %v101, %v547
  %v549 = vpop.f32.mrf.mxu0
  %550 = vmatprep.mubr.bf16.mxu0 0
  %551 = vmatmul.mubr.bf16.gmra.mxu0 %v252
  %v552 = vpop.f32.mrf.mxu0
  %v553 = vadd.f32 %v101, %v552
  %v554 = vpop.f32.mrf.mxu0
  %v555 = vpop.f32.mrf.mxu0
  %v556 = vadd.f32 %v101, %v555
  %v557 = vpop.f32.mrf.mxu0
  %558 = vmatprep.mubr.bf16.mxu0 0
  %559 = vmatmul.mubr.bf16.gmra.mxu0 %v253
  %v560 = vpop.f32.mrf.mxu0
  %v561 = vadd.f32 %v101, %v560
  %v562 = vpop.f32.mrf.mxu0
  %v563 = vpop.f32.mrf.mxu0
  %v564 = vadd.f32 %v101, %v563
  %v565 = vpop.f32.mrf.mxu0
  %566 = vmatprep.mubr.bf16.mxu0 0
  %567 = vmatmul.mubr.bf16.gmra.mxu0 %v254
  %v568 = vpop.f32.mrf.mxu0
  %v569 = vadd.f32 %v101, %v568
  %v570 = vpop.f32.mrf.mxu0
  %v571 = vpop.f32.mrf.mxu0
  %v572 = vadd.f32 %v101, %v571
  %v573 = vpop.f32.mrf.mxu0
  %574 = vmatprep.mubr.bf16.mxu0 0
  %575 = vmatmul.mubr.bf16.gmra.mxu0 %v255
  %v576 = vpop.f32.mrf.mxu0
  %v577 = vadd.f32 %v101, %v576
  %v578 = vpop.f32.mrf.mxu0
  %v579 = vpop.f32.mrf.mxu0
  %v580 = vadd.f32 %v101, %v579
  %v581 = vpop.f32.mrf.mxu0
  %582 = vmatprep.mubr.bf16.mxu0 0
  %583 = vmatmul.mubr.bf16.gmra.mxu0 %v256
  %v584 = vpop.f32.mrf.mxu0
  %v585 = vadd.f32 %v101, %v584
  %v586 = vpop.f32.mrf.mxu0
  %v587 = vpop.f32.mrf.mxu0
  %v588 = vadd.f32 %v101, %v587
  %v589 = vpop.f32.mrf.mxu0
  %590 = vmatprep.mubr.bf16.mxu0 0
  %591 = vmatmul.mubr.bf16.gmra.mxu0 %v257
  %v592 = vpop.f32.mrf.mxu0
  %v593 = vadd.f32 %v101, %v592
  %v594 = vpop.f32.mrf.mxu0
  %v595 = vpop.f32.mrf.mxu0
  %v596 = vadd.f32 %v101, %v595
  %v597 = vpop.f32.mrf.mxu0
  %598 = vmatprep.mubr.bf16.mxu0 0
  %599 = vmatmul.mubr.bf16.gmra.mxu0 %v258
  %v600 = vpop.f32.mrf.mxu0
  %v601 = vadd.f32 %v101, %v600
  %v602 = vpop.f32.mrf.mxu0
  %v603 = vpop.f32.mrf.mxu0
  %v604 = vadd.f32 %v101, %v603
  %v605 = vpop.f32.mrf.mxu0
  %606 = vmatprep.mubr.bf16.mxu0 0
  %607 = vmatmul.mubr.bf16.gmra.mxu0 %v259
  %v608 = vpop.f32.mrf.mxu0
  %v609 = vadd.f32 %v101, %v608
  %v610 = vpop.f32.mrf.mxu0
  %v611 = vpop.f32.mrf.mxu0
  %v612 = vadd.f32 %v101, %v611
  %v613 = vpop.f32.mrf.mxu0
  %614 = vmatprep.mubr.bf16.mxu0 0
  %615 = vmatmul.mubr.bf16.gmra.mxu0 %v260
  %v616 = vpop.f32.mrf.mxu0
  %v617 = vadd.f32 %v101, %v616
  %v618 = vpop.f32.mrf.mxu0
  %v619 = vpop.f32.mrf.mxu0
  %v620 = vadd.f32 %v101, %v619
  %v621 = vpop.f32.mrf.mxu0
  %622 = vmatprep.mubr.bf16.mxu0 0
  %623 = vmatmul.mubr.bf16.gmra.mxu0 %v261
  %v624 = vpop.f32.mrf.mxu0
  %v625 = vadd.f32 %v101, %v624
  %v626 = vpop.f32.mrf.mxu0
  %v627 = vpop.f32.mrf.mxu0
  %v628 = vadd.f32 %v101, %v627
  %v629 = vpop.f32.mrf.mxu0
  %630 = vdwg.mxu0
  %v631 = vmax.f32 %v377, 0.0
  %v632 = vmax.f32 %v380, 0.0
  %v633 = vmax.f32 %v385, 0.0
  %v634 = vmax.f32 %v388, 0.0
  %v635 = vmax.f32 %v393, 0.0
  %v636 = vmax.f32 %v396, 0.0
  %v637 = vmax.f32 %v401, 0.0
  %v638 = vmax.f32 %v404, 0.0
  %v639 = vmax.f32 %v409, 0.0
  %v640 = vmax.f32 %v412, 0.0
  %v641 = vmax.f32 %v417, 0.0
  %v642 = vmax.f32 %v420, 0.0
  %v643 = vmax.f32 %v425, 0.0
  %v644 = vmax.f32 %v428, 0.0
  %v645 = vmax.f32 %v433, 0.0
  %v646 = vmax.f32 %v436, 0.0
  %v647 = vmax.f32 %v441, 0.0
  %v648 = vmax.f32 %v444, 0.0
  %v649 = vmax.f32 %v449, 0.0
  %v650 = vmax.f32 %v452, 0.0
  %v651 = vmax.f32 %v457, 0.0
  %v652 = vmax.f32 %v460, 0.0
  %v653 = vmax.f32 %v465, 0.0
  %v654 = vmax.f32 %v468, 0.0
  %v655 = vmax.f32 %v473, 0.0
  %v656 = vmax.f32 %v476, 0.0
  %v657 = vmax.f32 %v481, 0.0
  %v658 = vmax.f32 %v484, 0.0
  %v659 = vmax.f32 %v489, 0.0
  %v660 = vmax.f32 %v492, 0.0
  %v661 = vmax.f32 %v497, 0.0
  %v662 = vmax.f32 %v500, 0.0
  %v663 = vmax.f32 %v505, 0.0
  %v664 = vmax.f32 %v508, 0.0
  %v665 = vmax.f32 %v513, 0.0
  %v666 = vmax.f32 %v516, 0.0
  %v667 = vmax.f32 %v521, 0.0
  %v668 = vmax.f32 %v524, 0.0
  %v669 = vmax.f32 %v529, 0.0
  %v670 = vmax.f32 %v532, 0.0
  %v671 = vmax.f32 %v537, 0.0
  %v672 = vmax.f32 %v540, 0.0
  %v673 = vmax.f32 %v545, 0.0
  %v674 = vmax.f32 %v548, 0.0
  %v675 = vmax.f32 %v553, 0.0
  %v676 = vmax.f32 %v556, 0.0
  %v677 = vmax.f32 %v561, 0.0
  %v678 = vmax.f32 %v564, 0.0
  %v679 = vmax.f32 %v569, 0.0
  %v680 = vmax.f32 %v572, 0.0
  %v681 = vmax.f32 %v577, 0.0
  %v682 = vmax.f32 %v580, 0.0
  %v683 = vmax.f32 %v585, 0.0
  %v684 = vmax.f32 %v588, 0.0
  %v685 = vmax.f32 %v593, 0.0
  %v686 = vmax.f32 %v596, 0.0
  %v687 = vmax.f32 %v601, 0.0
  %v688 = vmax.f32 %v604, 0.0
  %v689 = vmax.f32 %v609, 0.0
  %v690 = vmax.f32 %v612, 0.0
  %v691 = vmax.f32 %v617, 0.0
  %v692 = vmax.f32 %v620, 0.0
  %v693 = vmax.f32 %v625, 0.0
  %v694 = vmax.f32 %v628, 0.0
  %v695 = vlaneseq
  %v696 = vshrl.u32 %v695, 7
  %v697 = vsub.s32 0, %v696
  %v698 = vrot.slane %v32, %v697
  %v699 = vmul.f32 %v631, %v698
  %v700 = vmul.f32 %v632, %v698
  %v701 = vmul.f32 %v633, %v698
  %v702 = vmul.f32 %v634, %v698
  %v703 = vmul.f32 %v635, %v698
  %v704 = vmul.f32 %v636, %v698
  %v705 = vmul.f32 %v637, %v698
  %v706 = vmul.f32 %v638, %v698
  %v707 = vmul.f32 %v639, %v698
  %v708 = vmul.f32 %v640, %v698
  %v709 = vmul.f32 %v641, %v698
  %v710 = vmul.f32 %v642, %v698
  %v711 = vmul.f32 %v643, %v698
  %v712 = vmul.f32 %v644, %v698
  %v713 = vmul.f32 %v645, %v698
  %v714 = vmul.f32 %v646, %v698
  %v715 = vmul.f32 %v647, %v698
  %v716 = vmul.f32 %v648, %v698
  %v717 = vmul.f32 %v649, %v698
  %v718 = vmul.f32 %v650, %v698
  %v719 = vmul.f32 %v651, %v698
  %v720 = vmul.f32 %v652, %v698
  %v721 = vmul.f32 %v653, %v698
  %v722 = vmul.f32 %v654, %v698
  %v723 = vmul.f32 %v655, %v698
  %v724 = vmul.f32 %v656, %v698
  %v725 = vmul.f32 %v657, %v698
  %v726 = vmul.f32 %v658, %v698
  %v727 = vmul.f32 %v659, %v698
  %v728 = vmul.f32 %v660, %v698
  %v729 = vmul.f32 %v661, %v698
  %v730 = vmul.f32 %v662, %v698
  %v731 = vmul.f32 %v663, %v698
  %v732 = vmul.f32 %v664, %v698
  %v733 = vmul.f32 %v665, %v698
  %v734 = vmul.f32 %v666, %v698
  %v735 = vmul.f32 %v667, %v698
  %v736 = vmul.f32 %v668, %v698
  %v737 = vmul.f32 %v669, %v698
  %v738 = vmul.f32 %v670, %v698
  %v739 = vmul.f32 %v671, %v698
  %v740 = vmul.f32 %v672, %v698
  %v741 = vmul.f32 %v673, %v698
  %v742 = vmul.f32 %v674, %v698
  %v743 = vmul.f32 %v675, %v698
  %v744 = vmul.f32 %v676, %v698
  %v745 = vmul.f32 %v677, %v698
  %v746 = vmul.f32 %v678, %v698
  %v747 = vmul.f32 %v679, %v698
  %v748 = vmul.f32 %v680, %v698
  %v749 = vmul.f32 %v681, %v698
  %v750 = vmul.f32 %v682, %v698
  %v751 = vmul.f32 %v683, %v698
  %v752 = vmul.f32 %v684, %v698
  %v753 = vmul.f32 %v685, %v698
  %v754 = vmul.f32 %v686, %v698
  %v755 = vmul.f32 %v687, %v698
  %v756 = vmul.f32 %v688, %v698
  %v757 = vmul.f32 %v689, %v698
  %v758 = vmul.f32 %v690, %v698
  %v759 = vmul.f32 %v691, %v698
  %v760 = vmul.f32 %v692, %v698
  %v761 = vmul.f32 %v693, %v698
  %v762 = vmul.f32 %v694, %v698
  %v763 = vlaneseq
  %v764 = vshrl.u32 %v763, 7
  %v765 = vsub.s32 0, %v764
  %v766 = vrot.slane %v33, %v765
  %v767 = vadd.f32 %v699, %v766
  %v768 = vadd.f32 %v700, %v766
  %v769 = vadd.f32 %v701, %v766
  %v770 = vadd.f32 %v702, %v766
  %v771 = vadd.f32 %v703, %v766
  %v772 = vadd.f32 %v704, %v766
  %v773 = vadd.f32 %v705, %v766
  %v774 = vadd.f32 %v706, %v766
  %v775 = vadd.f32 %v707, %v766
  %v776 = vadd.f32 %v708, %v766
  %v777 = vadd.f32 %v709, %v766
  %v778 = vadd.f32 %v710, %v766
  %v779 = vadd.f32 %v711, %v766
  %v780 = vadd.f32 %v712, %v766
  %v781 = vadd.f32 %v713, %v766
  %v782 = vadd.f32 %v714, %v766
  %v783 = vadd.f32 %v715, %v766
  %v784 = vadd.f32 %v716, %v766
  %v785 = vadd.f32 %v717, %v766
  %v786 = vadd.f32 %v718, %v766
  %v787 = vadd.f32 %v719, %v766
  %v788 = vadd.f32 %v720, %v766
  %v789 = vadd.f32 %v721, %v766
  %v790 = vadd.f32 %v722, %v766
  %v791 = vadd.f32 %v723, %v766
  %v792 = vadd.f32 %v724, %v766
  %v793 = vadd.f32 %v725, %v766
  %v794 = vadd.f32 %v726, %v766
  %v795 = vadd.f32 %v727, %v766
  %v796 = vadd.f32 %v728, %v766
  %v797 = vadd.f32 %v729, %v766
  %v798 = vadd.f32 %v730, %v766
  %v799 = vadd.f32 %v731, %v766
  %v800 = vadd.f32 %v732, %v766
  %v801 = vadd.f32 %v733, %v766
  %v802 = vadd.f32 %v734, %v766
  %v803 = vadd.f32 %v735, %v766
  %v804 = vadd.f32 %v736, %v766
  %v805 = vadd.f32 %v737, %v766
  %v806 = vadd.f32 %v738, %v766
  %v807 = vadd.f32 %v739, %v766
  %v808 = vadd.f32 %v740, %v766
  %v809 = vadd.f32 %v741, %v766
  %v810 = vadd.f32 %v742, %v766
  %v811 = vadd.f32 %v743, %v766
  %v812 = vadd.f32 %v744, %v766
  %v813 = vadd.f32 %v745, %v766
  %v814 = vadd.f32 %v746, %v766
  %v815 = vadd.f32 %v747, %v766
  %v816 = vadd.f32 %v748, %v766
  %v817 = vadd.f32 %v749, %v766
  %v818 = vadd.f32 %v750, %v766
  %v819 = vadd.f32 %v751, %v766
  %v820 = vadd.f32 %v752, %v766
  %v821 = vadd.f32 %v753, %v766
  %v822 = vadd.f32 %v754, %v766
  %v823 = vadd.f32 %v755, %v766
  %v824 = vadd.f32 %v756, %v766
  %v825 = vadd.f32 %v757, %v766
  %v826 = vadd.f32 %v758, %v766
  %v827 = vadd.f32 %v759, %v766
  %v828 = vadd.f32 %v760, %v766
  %v829 = vadd.f32 %v761, %v766
  %v830 = vadd.f32 %v762, %v766
  %s831 = scalar_lea.vmem %s0, 256
  %v832 = vld [vmem:[%s831] sm:$0xf]
  %v833 = vld [vmem:[%s831 + $0x4] sm:$0xf]
  %v834 = vld [vmem:[%s831 + $0x8] sm:$0xf]
  %v835 = vld [vmem:[%s831 + $0xc] sm:$0xf]
  %v836 = vld [vmem:[%s831 + $0x10] sm:$0xf]
  %v837 = vld [vmem:[%s831 + $0x14] sm:$0xf]
  %v838 = vld [vmem:[%s831 + $0x18] sm:$0xf]
  %v839 = vld [vmem:[%s831 + $0x1c] sm:$0xf]
  %v840 = vld [vmem:[%s831 + $0x20] sm:$0xf]
  %v841 = vld [vmem:[%s831 + $0x24] sm:$0xf]
  %v842 = vld [vmem:[%s831 + $0x28] sm:$0xf]
  %v843 = vld [vmem:[%s831 + $0x2c] sm:$0xf]
  %v844 = vld [vmem:[%s831 + $0x30] sm:$0xf]
  %v845 = vld [vmem:[%s831 + $0x34] sm:$0xf]
  %v846 = vld [vmem:[%s831 + $0x38] sm:$0xf]
  %v847 = vld [vmem:[%s831 + $0x3c] sm:$0xf]
  %v848 = vld [vmem:[%s831 + $0x40] sm:$0xf]
  %v849 = vld [vmem:[%s831 + $0x44] sm:$0xf]
  %v850 = vld [vmem:[%s831 + $0x48] sm:$0xf]
  %v851 = vld [vmem:[%s831 + $0x4c] sm:$0xf]
  %v852 = vld [vmem:[%s831 + $0x50] sm:$0xf]
  %v853 = vld [vmem:[%s831 + $0x54] sm:$0xf]
  %v854 = vld [vmem:[%s831 + $0x58] sm:$0xf]
  %v855 = vld [vmem:[%s831 + $0x5c] sm:$0xf]
  %v856 = vld [vmem:[%s831 + $0x60] sm:$0xf]
  %v857 = vld [vmem:[%s831 + $0x64] sm:$0xf]
  %v858 = vld [vmem:[%s831 + $0x68] sm:$0xf]
  %v859 = vld [vmem:[%s831 + $0x6c] sm:$0xf]
  %v860 = vld [vmem:[%s831 + $0x70] sm:$0xf]
  %v861 = vld [vmem:[%s831 + $0x74] sm:$0xf]
  %v862 = vld [vmem:[%s831 + $0x78] sm:$0xf]
  %v863 = vld [vmem:[%s831 + $0x7c] sm:$0xf]
  %v864 = vld [vmem:[%s831 + $0x80] sm:$0xf]
  %v865 = vld [vmem:[%s831 + $0x84] sm:$0xf]
  %v866 = vld [vmem:[%s831 + $0x88] sm:$0xf]
  %v867 = vld [vmem:[%s831 + $0x8c] sm:$0xf]
  %v868 = vld [vmem:[%s831 + $0x90] sm:$0xf]
  %v869 = vld [vmem:[%s831 + $0x94] sm:$0xf]
  %v870 = vld [vmem:[%s831 + $0x98] sm:$0xf]
  %v871 = vld [vmem:[%s831 + $0x9c] sm:$0xf]
  %v872 = vld [vmem:[%s831 + $0xa0] sm:$0xf]
  %v873 = vld [vmem:[%s831 + $0xa4] sm:$0xf]
  %v874 = vld [vmem:[%s831 + $0xa8] sm:$0xf]
  %v875 = vld [vmem:[%s831 + $0xac] sm:$0xf]
  %v876 = vld [vmem:[%s831 + $0xb0] sm:$0xf]
  %v877 = vld [vmem:[%s831 + $0xb4] sm:$0xf]
  %v878 = vld [vmem:[%s831 + $0xb8] sm:$0xf]
  %v879 = vld [vmem:[%s831 + $0xbc] sm:$0xf]
  %v880 = vld [vmem:[%s831 + $0xc0] sm:$0xf]
  %v881 = vld [vmem:[%s831 + $0xc4] sm:$0xf]
  %v882 = vld [vmem:[%s831 + $0xc8] sm:$0xf]
  %v883 = vld [vmem:[%s831 + $0xcc] sm:$0xf]
  %v884 = vld [vmem:[%s831 + $0xd0] sm:$0xf]
  %v885 = vld [vmem:[%s831 + $0xd4] sm:$0xf]
  %v886 = vld [vmem:[%s831 + $0xd8] sm:$0xf]
  %v887 = vld [vmem:[%s831 + $0xdc] sm:$0xf]
  %v888 = vld [vmem:[%s831 + $0xe0] sm:$0xf]
  %v889 = vld [vmem:[%s831 + $0xe4] sm:$0xf]
  %v890 = vld [vmem:[%s831 + $0xe8] sm:$0xf]
  %v891 = vld [vmem:[%s831 + $0xec] sm:$0xf]
  %v892 = vld [vmem:[%s831 + $0xf0] sm:$0xf]
  %v893 = vld [vmem:[%s831 + $0xf4] sm:$0xf]
  %v894 = vld [vmem:[%s831 + $0xf8] sm:$0xf]
  %v895 = vld [vmem:[%s831 + $0xfc] sm:$0xf]
  %v960 = vunpack.c.l.b16 %v832
  %v961 = vunpack.c.l.b16 %v833
  %v962 = vunpack.c.l.b16 %v834
  %v963 = vunpack.c.l.b16 %v835
  %v964 = vunpack.c.l.b16 %v836
  %v965 = vunpack.c.l.b16 %v837
  %v966 = vunpack.c.l.b16 %v838
  %v967 = vunpack.c.l.b16 %v839
  %v968 = vunpack.c.l.b16 %v840
  %v969 = vunpack.c.l.b16 %v841
  %v970 = vunpack.c.l.b16 %v842
  %v971 = vunpack.c.l.b16 %v843
  %v972 = vunpack.c.l.b16 %v844
  %v973 = vunpack.c.l.b16 %v845
  %v974 = vunpack.c.l.b16 %v846
  %v975 = vunpack.c.l.b16 %v847
  %v976 = vunpack.c.l.b16 %v848
  %v977 = vunpack.c.l.b16 %v849
  %v978 = vunpack.c.l.b16 %v850
  %v979 = vunpack.c.l.b16 %v851
  %v980 = vunpack.c.l.b16 %v852
  %v981 = vunpack.c.l.b16 %v853
  %v982 = vunpack.c.l.b16 %v854
  %v983 = vunpack.c.l.b16 %v855
  %v984 = vunpack.c.l.b16 %v856
  %v985 = vunpack.c.l.b16 %v857
  %v986 = vunpack.c.l.b16 %v858
  %v987 = vunpack.c.l.b16 %v859
  %v988 = vunpack.c.l.b16 %v860
  %v989 = vunpack.c.l.b16 %v861
  %v990 = vunpack.c.l.b16 %v862
  %v991 = vunpack.c.l.b16 %v863
  %v992 = vunpack.c.l.b16 %v864
  %v993 = vunpack.c.l.b16 %v865
  %v994 = vunpack.c.l.b16 %v866
  %v995 = vunpack.c.l.b16 %v867
  %v996 = vunpack.c.l.b16 %v868
  %v997 = vunpack.c.l.b16 %v869
  %v998 = vunpack.c.l.b16 %v870
  %v999 = vunpack.c.l.b16 %v871
  %v1000 = vunpack.c.l.b16 %v872
  %v1001 = vunpack.c.l.b16 %v873
  %v1002 = vunpack.c.l.b16 %v874
  %v1003 = vunpack.c.l.b16 %v875
  %v1004 = vunpack.c.l.b16 %v876
  %v1005 = vunpack.c.l.b16 %v877
  %v1006 = vunpack.c.l.b16 %v878
  %v1007 = vunpack.c.l.b16 %v879
  %v1008 = vunpack.c.l.b16 %v880
  %v1009 = vunpack.c.l.b16 %v881
  %v1010 = vunpack.c.l.b16 %v882
  %v1011 = vunpack.c.l.b16 %v883
  %v1012 = vunpack.c.l.b16 %v884
  %v1013 = vunpack.c.l.b16 %v885
  %v1014 = vunpack.c.l.b16 %v886
  %v1015 = vunpack.c.l.b16 %v887
  %v1016 = vunpack.c.l.b16 %v888
  %v1017 = vunpack.c.l.b16 %v889
  %v1018 = vunpack.c.l.b16 %v890
  %v1019 = vunpack.c.l.b16 %v891
  %v1020 = vunpack.c.l.b16 %v892
  %v1021 = vunpack.c.l.b16 %v893
  %v1022 = vunpack.c.l.b16 %v894
  %v1023 = vunpack.c.l.b16 %v895
  %v1024 = vpack.c.b16 %v961, %v960
  %v1025 = vpack.c.b16 %v963, %v962
  %v1026 = vpack.c.b16 %v965, %v964
  %v1027 = vpack.c.b16 %v967, %v966
  %v1028 = vpack.c.b16 %v969, %v968
  %v1029 = vpack.c.b16 %v971, %v970
  %v1030 = vpack.c.b16 %v973, %v972
  %v1031 = vpack.c.b16 %v975, %v974
  %v1032 = vpack.c.b16 %v977, %v976
  %v1033 = vpack.c.b16 %v979, %v978
  %v1034 = vpack.c.b16 %v981, %v980
  %v1035 = vpack.c.b16 %v983, %v982
  %v1036 = vpack.c.b16 %v985, %v984
  %v1037 = vpack.c.b16 %v987, %v986
  %v1038 = vpack.c.b16 %v989, %v988
  %v1039 = vpack.c.b16 %v991, %v990
  %v1040 = vpack.c.b16 %v993, %v992
  %v1041 = vpack.c.b16 %v995, %v994
  %v1042 = vpack.c.b16 %v997, %v996
  %v1043 = vpack.c.b16 %v999, %v998
  %v1044 = vpack.c.b16 %v1001, %v1000
  %v1045 = vpack.c.b16 %v1003, %v1002
  %v1046 = vpack.c.b16 %v1005, %v1004
  %v1047 = vpack.c.b16 %v1007, %v1006
  %v1048 = vpack.c.b16 %v1009, %v1008
  %v1049 = vpack.c.b16 %v1011, %v1010
  %v1050 = vpack.c.b16 %v1013, %v1012
  %v1051 = vpack.c.b16 %v1015, %v1014
  %v1052 = vpack.c.b16 %v1017, %v1016
  %v1053 = vpack.c.b16 %v1019, %v1018
  %v1054 = vpack.c.b16 %v1021, %v1020
  %v1055 = vpack.c.b16 %v1023, %v1022
  %1088 = vmatprep.subr.bf16.mxu0 0
  %1089 = vmatpush1.bf16.msra.mxu0 %v333
  %1090 = vmatprep.subr.bf16.mxu0 0
  %1091 = vmatpush1.bf16.msra.mxu0 %v332
  %1092 = vmatprep.subr.bf16.mxu0 0
  %1093 = vmatpush1.bf16.msra.mxu0 %v331
  %1094 = vmatprep.subr.bf16.mxu0 0
  %1095 = vmatpush1.bf16.msra.mxu0 %v330
  %1096 = vmatprep.subr.bf16.mxu0 0
  %1097 = vmatpush1.bf16.msra.mxu0 %v329
  %1098 = vmatprep.subr.bf16.mxu0 0
  %1099 = vmatpush1.bf16.msra.mxu0 %v328
  %1100 = vmatprep.subr.bf16.mxu0 0
  %1101 = vmatpush1.bf16.msra.mxu0 %v327
  %1102 = vmatprep.subr.bf16.mxu0 0
  %1103 = vmatpush1.bf16.msra.mxu0 %v326
  %1104 = vmatprep.subr.bf16.mxu0 0
  %1105 = vmatpush2.bf16.msra.mxu0 0
  %1106 = vmatprep.subr.bf16.mxu0 0
  %1107 = vmatpush2.bf16.msra.mxu0 0
  %1108 = vmatprep.subr.bf16.mxu0 0
  %1109 = vmatpush2.bf16.msra.mxu0 0
  %1110 = vmatprep.subr.bf16.mxu0 0
  %1111 = vmatpush2.bf16.msra.mxu0 0
  %1112 = vmatprep.subr.bf16.mxu0 0
  %1113 = vmatpush2.bf16.msra.mxu0 0
  %1114 = vmatprep.subr.bf16.mxu0 0
  %1115 = vmatpush2.bf16.msra.mxu0 0
  %1116 = vmatprep.subr.bf16.mxu0 0
  %1117 = vmatpush2.bf16.msra.mxu0 0
  %1118 = vmatprep.subr.bf16.mxu0 0
  %1119 = vmatpush2.bf16.msra.mxu0 0
  %1120 = vmatprep.mubr.bf16.mxu0 0
  %1121 = vmatmul.mubr.bf16.gmra.mxu0 %v1024
  %v1122 = vpop.f32.mrf.mxu0
  %v1123 = vadd.f32 %v101, %v1122
  %v1124 = vpop.f32.mrf.mxu0
  %v1125 = vpop.f32.mrf.mxu0
  %v1126 = vadd.f32 %v101, %v1125
  %v1127 = vpop.f32.mrf.mxu0
  %1128 = vmatprep.mubr.bf16.mxu0 0
  %1129 = vmatmul.mubr.bf16.gmra.mxu0 %v1025
  %v1130 = vpop.f32.mrf.mxu0
  %v1131 = vadd.f32 %v101, %v1130
  %v1132 = vpop.f32.mrf.mxu0
  %v1133 = vpop.f32.mrf.mxu0
  %v1134 = vadd.f32 %v101, %v1133
  %v1135 = vpop.f32.mrf.mxu0
  %1136 = vmatprep.mubr.bf16.mxu0 0
  %1137 = vmatmul.mubr.bf16.gmra.mxu0 %v1026
  %v1138 = vpop.f32.mrf.mxu0
  %v1139 = vadd.f32 %v101, %v1138
  %v1140 = vpop.f32.mrf.mxu0
  %v1141 = vpop.f32.mrf.mxu0
  %v1142 = vadd.f32 %v101, %v1141
  %v1143 = vpop.f32.mrf.mxu0
  %1144 = vmatprep.mubr.bf16.mxu0 0
  %1145 = vmatmul.mubr.bf16.gmra.mxu0 %v1027
  %v1146 = vpop.f32.mrf.mxu0
  %v1147 = vadd.f32 %v101, %v1146
  %v1148 = vpop.f32.mrf.mxu0
  %v1149 = vpop.f32.mrf.mxu0
  %v1150 = vadd.f32 %v101, %v1149
  %v1151 = vpop.f32.mrf.mxu0
  %1152 = vmatprep.mubr.bf16.mxu0 0
  %1153 = vmatmul.mubr.bf16.gmra.mxu0 %v1028
  %v1154 = vpop.f32.mrf.mxu0
  %v1155 = vadd.f32 %v101, %v1154
  %v1156 = vpop.f32.mrf.mxu0
  %v1157 = vpop.f32.mrf.mxu0
  %v1158 = vadd.f32 %v101, %v1157
  %v1159 = vpop.f32.mrf.mxu0
  %1160 = vmatprep.mubr.bf16.mxu0 0
  %1161 = vmatmul.mubr.bf16.gmra.mxu0 %v1029
  %v1162 = vpop.f32.mrf.mxu0
  %v1163 = vadd.f32 %v101, %v1162
  %v1164 = vpop.f32.mrf.mxu0
  %v1165 = vpop.f32.mrf.mxu0
  %v1166 = vadd.f32 %v101, %v1165
  %v1167 = vpop.f32.mrf.mxu0
  %1168 = vmatprep.mubr.bf16.mxu0 0
  %1169 = vmatmul.mubr.bf16.gmra.mxu0 %v1030
  %v1170 = vpop.f32.mrf.mxu0
  %v1171 = vadd.f32 %v101, %v1170
  %v1172 = vpop.f32.mrf.mxu0
  %v1173 = vpop.f32.mrf.mxu0
  %v1174 = vadd.f32 %v101, %v1173
  %v1175 = vpop.f32.mrf.mxu0
  %1176 = vmatprep.mubr.bf16.mxu0 0
  %1177 = vmatmul.mubr.bf16.gmra.mxu0 %v1031
  %v1178 = vpop.f32.mrf.mxu0
  %v1179 = vadd.f32 %v101, %v1178
  %v1180 = vpop.f32.mrf.mxu0
  %v1181 = vpop.f32.mrf.mxu0
  %v1182 = vadd.f32 %v101, %v1181
  %v1183 = vpop.f32.mrf.mxu0
  %1184 = vmatprep.mubr.bf16.mxu0 0
  %1185 = vmatmul.mubr.bf16.gmra.mxu0 %v1032
  %v1186 = vpop.f32.mrf.mxu0
  %v1187 = vadd.f32 %v101, %v1186
  %v1188 = vpop.f32.mrf.mxu0
  %v1189 = vpop.f32.mrf.mxu0
  %v1190 = vadd.f32 %v101, %v1189
  %v1191 = vpop.f32.mrf.mxu0
  %1192 = vmatprep.mubr.bf16.mxu0 0
  %1193 = vmatmul.mubr.bf16.gmra.mxu0 %v1033
  %v1194 = vpop.f32.mrf.mxu0
  %v1195 = vadd.f32 %v101, %v1194
  %v1196 = vpop.f32.mrf.mxu0
  %v1197 = vpop.f32.mrf.mxu0
  %v1198 = vadd.f32 %v101, %v1197
  %v1199 = vpop.f32.mrf.mxu0
  %1200 = vmatprep.mubr.bf16.mxu0 0
  %1201 = vmatmul.mubr.bf16.gmra.mxu0 %v1034
  %v1202 = vpop.f32.mrf.mxu0
  %v1203 = vadd.f32 %v101, %v1202
  %v1204 = vpop.f32.mrf.mxu0
  %v1205 = vpop.f32.mrf.mxu0
  %v1206 = vadd.f32 %v101, %v1205
  %v1207 = vpop.f32.mrf.mxu0
  %1208 = vmatprep.mubr.bf16.mxu0 0
  %1209 = vmatmul.mubr.bf16.gmra.mxu0 %v1035
  %v1210 = vpop.f32.mrf.mxu0
  %v1211 = vadd.f32 %v101, %v1210
  %v1212 = vpop.f32.mrf.mxu0
  %v1213 = vpop.f32.mrf.mxu0
  %v1214 = vadd.f32 %v101, %v1213
  %v1215 = vpop.f32.mrf.mxu0
  %1216 = vmatprep.mubr.bf16.mxu0 0
  %1217 = vmatmul.mubr.bf16.gmra.mxu0 %v1036
  %v1218 = vpop.f32.mrf.mxu0
  %v1219 = vadd.f32 %v101, %v1218
  %v1220 = vpop.f32.mrf.mxu0
  %v1221 = vpop.f32.mrf.mxu0
  %v1222 = vadd.f32 %v101, %v1221
  %v1223 = vpop.f32.mrf.mxu0
  %1224 = vmatprep.mubr.bf16.mxu0 0
  %1225 = vmatmul.mubr.bf16.gmra.mxu0 %v1037
  %v1226 = vpop.f32.mrf.mxu0
  %v1227 = vadd.f32 %v101, %v1226
  %v1228 = vpop.f32.mrf.mxu0
  %v1229 = vpop.f32.mrf.mxu0
  %v1230 = vadd.f32 %v101, %v1229
  %v1231 = vpop.f32.mrf.mxu0
  %1232 = vmatprep.mubr.bf16.mxu0 0
  %1233 = vmatmul.mubr.bf16.gmra.mxu0 %v1038
  %v1234 = vpop.f32.mrf.mxu0
  %v1235 = vadd.f32 %v101, %v1234
  %v1236 = vpop.f32.mrf.mxu0
  %v1237 = vpop.f32.mrf.mxu0
  %v1238 = vadd.f32 %v101, %v1237
  %v1239 = vpop.f32.mrf.mxu0
  %1240 = vmatprep.mubr.bf16.mxu0 0
  %1241 = vmatmul.mubr.bf16.gmra.mxu0 %v1039
  %v1242 = vpop.f32.mrf.mxu0
  %v1243 = vadd.f32 %v101, %v1242
  %v1244 = vpop.f32.mrf.mxu0
  %v1245 = vpop.f32.mrf.mxu0
  %v1246 = vadd.f32 %v101, %v1245
  %v1247 = vpop.f32.mrf.mxu0
  %1248 = vmatprep.mubr.bf16.mxu0 0
  %1249 = vmatmul.mubr.bf16.gmra.mxu0 %v1040
  %v1250 = vpop.f32.mrf.mxu0
  %v1251 = vadd.f32 %v101, %v1250
  %v1252 = vpop.f32.mrf.mxu0
  %v1253 = vpop.f32.mrf.mxu0
  %v1254 = vadd.f32 %v101, %v1253
  %v1255 = vpop.f32.mrf.mxu0
  %1256 = vmatprep.mubr.bf16.mxu0 0
  %1257 = vmatmul.mubr.bf16.gmra.mxu0 %v1041
  %v1258 = vpop.f32.mrf.mxu0
  %v1259 = vadd.f32 %v101, %v1258
  %v1260 = vpop.f32.mrf.mxu0
  %v1261 = vpop.f32.mrf.mxu0
  %v1262 = vadd.f32 %v101, %v1261
  %v1263 = vpop.f32.mrf.mxu0
  %1264 = vmatprep.mubr.bf16.mxu0 0
  %1265 = vmatmul.mubr.bf16.gmra.mxu0 %v1042
  %v1266 = vpop.f32.mrf.mxu0
  %v1267 = vadd.f32 %v101, %v1266
  %v1268 = vpop.f32.mrf.mxu0
  %v1269 = vpop.f32.mrf.mxu0
  %v1270 = vadd.f32 %v101, %v1269
  %v1271 = vpop.f32.mrf.mxu0
  %1272 = vmatprep.mubr.bf16.mxu0 0
  %1273 = vmatmul.mubr.bf16.gmra.mxu0 %v1043
  %v1274 = vpop.f32.mrf.mxu0
  %v1275 = vadd.f32 %v101, %v1274
  %v1276 = vpop.f32.mrf.mxu0
  %v1277 = vpop.f32.mrf.mxu0
  %v1278 = vadd.f32 %v101, %v1277
  %v1279 = vpop.f32.mrf.mxu0
  %1280 = vmatprep.mubr.bf16.mxu0 0
  %1281 = vmatmul.mubr.bf16.gmra.mxu0 %v1044
  %v1282 = vpop.f32.mrf.mxu0
  %v1283 = vadd.f32 %v101, %v1282
  %v1284 = vpop.f32.mrf.mxu0
  %v1285 = vpop.f32.mrf.mxu0
  %v1286 = vadd.f32 %v101, %v1285
  %v1287 = vpop.f32.mrf.mxu0
  %1288 = vmatprep.mubr.bf16.mxu0 0
  %1289 = vmatmul.mubr.bf16.gmra.mxu0 %v1045
  %v1290 = vpop.f32.mrf.mxu0
  %v1291 = vadd.f32 %v101, %v1290
  %v1292 = vpop.f32.mrf.mxu0
  %v1293 = vpop.f32.mrf.mxu0
  %v1294 = vadd.f32 %v101, %v1293
  %v1295 = vpop.f32.mrf.mxu0
  %1296 = vmatprep.mubr.bf16.mxu0 0
  %1297 = vmatmul.mubr.bf16.gmra.mxu0 %v1046
  %v1298 = vpop.f32.mrf.mxu0
  %v1299 = vadd.f32 %v101, %v1298
  %v1300 = vpop.f32.mrf.mxu0
  %v1301 = vpop.f32.mrf.mxu0
  %v1302 = vadd.f32 %v101, %v1301
  %v1303 = vpop.f32.mrf.mxu0
  %1304 = vmatprep.mubr.bf16.mxu0 0
  %1305 = vmatmul.mubr.bf16.gmra.mxu0 %v1047
  %v1306 = vpop.f32.mrf.mxu0
  %v1307 = vadd.f32 %v101, %v1306
  %v1308 = vpop.f32.mrf.mxu0
  %v1309 = vpop.f32.mrf.mxu0
  %v1310 = vadd.f32 %v101, %v1309
  %v1311 = vpop.f32.mrf.mxu0
  %1312 = vmatprep.mubr.bf16.mxu0 0
  %1313 = vmatmul.mubr.bf16.gmra.mxu0 %v1048
  %v1314 = vpop.f32.mrf.mxu0
  %v1315 = vadd.f32 %v101, %v1314
  %v1316 = vpop.f32.mrf.mxu0
  %v1317 = vpop.f32.mrf.mxu0
  %v1318 = vadd.f32 %v101, %v1317
  %v1319 = vpop.f32.mrf.mxu0
  %1320 = vmatprep.mubr.bf16.mxu0 0
  %1321 = vmatmul.mubr.bf16.gmra.mxu0 %v1049
  %v1322 = vpop.f32.mrf.mxu0
  %v1323 = vadd.f32 %v101, %v1322
  %v1324 = vpop.f32.mrf.mxu0
  %v1325 = vpop.f32.mrf.mxu0
  %v1326 = vadd.f32 %v101, %v1325
  %v1327 = vpop.f32.mrf.mxu0
  %1328 = vmatprep.mubr.bf16.mxu0 0
  %1329 = vmatmul.mubr.bf16.gmra.mxu0 %v1050
  %v1330 = vpop.f32.mrf.mxu0
  %v1331 = vadd.f32 %v101, %v1330
  %v1332 = vpop.f32.mrf.mxu0
  %v1333 = vpop.f32.mrf.mxu0
  %v1334 = vadd.f32 %v101, %v1333
  %v1335 = vpop.f32.mrf.mxu0
  %1336 = vmatprep.mubr.bf16.mxu0 0
  %1337 = vmatmul.mubr.bf16.gmra.mxu0 %v1051
  %v1338 = vpop.f32.mrf.mxu0
  %v1339 = vadd.f32 %v101, %v1338
  %v1340 = vpop.f32.mrf.mxu0
  %v1341 = vpop.f32.mrf.mxu0
  %v1342 = vadd.f32 %v101, %v1341
  %v1343 = vpop.f32.mrf.mxu0
  %1344 = vmatprep.mubr.bf16.mxu0 0
  %1345 = vmatmul.mubr.bf16.gmra.mxu0 %v1052
  %v1346 = vpop.f32.mrf.mxu0
  %v1347 = vadd.f32 %v101, %v1346
  %v1348 = vpop.f32.mrf.mxu0
  %v1349 = vpop.f32.mrf.mxu0
  %v1350 = vadd.f32 %v101, %v1349
  %v1351 = vpop.f32.mrf.mxu0
  %1352 = vmatprep.mubr.bf16.mxu0 0
  %1353 = vmatmul.mubr.bf16.gmra.mxu0 %v1053
  %v1354 = vpop.f32.mrf.mxu0
  %v1355 = vadd.f32 %v101, %v1354
  %v1356 = vpop.f32.mrf.mxu0
  %v1357 = vpop.f32.mrf.mxu0
  %v1358 = vadd.f32 %v101, %v1357
  %v1359 = vpop.f32.mrf.mxu0
  %1360 = vmatprep.mubr.bf16.mxu0 0
  %1361 = vmatmul.mubr.bf16.gmra.mxu0 %v1054
  %v1362 = vpop.f32.mrf.mxu0
  %v1363 = vadd.f32 %v101, %v1362
  %v1364 = vpop.f32.mrf.mxu0
  %v1365 = vpop.f32.mrf.mxu0
  %v1366 = vadd.f32 %v101, %v1365
  %v1367 = vpop.f32.mrf.mxu0
  %1368 = vmatprep.mubr.bf16.mxu0 0
  %1369 = vmatmul.mubr.bf16.gmra.mxu0 %v1055
  %v1370 = vpop.f32.mrf.mxu0
  %v1371 = vadd.f32 %v101, %v1370
  %v1372 = vpop.f32.mrf.mxu0
  %v1373 = vpop.f32.mrf.mxu0
  %v1374 = vadd.f32 %v101, %v1373
  %v1375 = vpop.f32.mrf.mxu0
  %1376 = vdwg.mxu0
  %v1377 = vmax.f32 %v1123, 0.0
  %v1378 = vmax.f32 %v1126, 0.0
  %v1379 = vmax.f32 %v1131, 0.0
  %v1380 = vmax.f32 %v1134, 0.0
  %v1381 = vmax.f32 %v1139, 0.0
  %v1382 = vmax.f32 %v1142, 0.0
  %v1383 = vmax.f32 %v1147, 0.0
  %v1384 = vmax.f32 %v1150, 0.0
  %v1385 = vmax.f32 %v1155, 0.0
  %v1386 = vmax.f32 %v1158, 0.0
  %v1387 = vmax.f32 %v1163, 0.0
  %v1388 = vmax.f32 %v1166, 0.0
  %v1389 = vmax.f32 %v1171, 0.0
  %v1390 = vmax.f32 %v1174, 0.0
  %v1391 = vmax.f32 %v1179, 0.0
  %v1392 = vmax.f32 %v1182, 0.0
  %v1393 = vmax.f32 %v1187, 0.0
  %v1394 = vmax.f32 %v1190, 0.0
  %v1395 = vmax.f32 %v1195, 0.0
  %v1396 = vmax.f32 %v1198, 0.0
  %v1397 = vmax.f32 %v1203, 0.0
  %v1398 = vmax.f32 %v1206, 0.0
  %v1399 = vmax.f32 %v1211, 0.0
  %v1400 = vmax.f32 %v1214, 0.0
  %v1401 = vmax.f32 %v1219, 0.0
  %v1402 = vmax.f32 %v1222, 0.0
  %v1403 = vmax.f32 %v1227, 0.0
  %v1404 = vmax.f32 %v1230, 0.0
  %v1405 = vmax.f32 %v1235, 0.0
  %v1406 = vmax.f32 %v1238, 0.0
  %v1407 = vmax.f32 %v1243, 0.0
  %v1408 = vmax.f32 %v1246, 0.0
  %v1409 = vmax.f32 %v1251, 0.0
  %v1410 = vmax.f32 %v1254, 0.0
  %v1411 = vmax.f32 %v1259, 0.0
  %v1412 = vmax.f32 %v1262, 0.0
  %v1413 = vmax.f32 %v1267, 0.0
  %v1414 = vmax.f32 %v1270, 0.0
  %v1415 = vmax.f32 %v1275, 0.0
  %v1416 = vmax.f32 %v1278, 0.0
  %v1417 = vmax.f32 %v1283, 0.0
  %v1418 = vmax.f32 %v1286, 0.0
  %v1419 = vmax.f32 %v1291, 0.0
  %v1420 = vmax.f32 %v1294, 0.0
  %v1421 = vmax.f32 %v1299, 0.0
  %v1422 = vmax.f32 %v1302, 0.0
  %v1423 = vmax.f32 %v1307, 0.0
  %v1424 = vmax.f32 %v1310, 0.0
  %v1425 = vmax.f32 %v1315, 0.0
  %v1426 = vmax.f32 %v1318, 0.0
  %v1427 = vmax.f32 %v1323, 0.0
  %v1428 = vmax.f32 %v1326, 0.0
  %v1429 = vmax.f32 %v1331, 0.0
  %v1430 = vmax.f32 %v1334, 0.0
  %v1431 = vmax.f32 %v1339, 0.0
  %v1432 = vmax.f32 %v1342, 0.0
  %v1433 = vmax.f32 %v1347, 0.0
  %v1434 = vmax.f32 %v1350, 0.0
  %v1435 = vmax.f32 %v1355, 0.0
  %v1436 = vmax.f32 %v1358, 0.0
  %v1437 = vmax.f32 %v1363, 0.0
  %v1438 = vmax.f32 %v1366, 0.0
  %v1439 = vmax.f32 %v1371, 0.0
  %v1440 = vmax.f32 %v1374, 0.0
  %v1441 = vmul.f32 %v1377, %v698
  %v1442 = vmul.f32 %v1378, %v698
  %v1443 = vmul.f32 %v1379, %v698
  %v1444 = vmul.f32 %v1380, %v698
  %v1445 = vmul.f32 %v1381, %v698
  %v1446 = vmul.f32 %v1382, %v698
  %v1447 = vmul.f32 %v1383, %v698
  %v1448 = vmul.f32 %v1384, %v698
  %v1449 = vmul.f32 %v1385, %v698
  %v1450 = vmul.f32 %v1386, %v698
  %v1451 = vmul.f32 %v1387, %v698
  %v1452 = vmul.f32 %v1388, %v698
  %v1453 = vmul.f32 %v1389, %v698
  %v1454 = vmul.f32 %v1390, %v698
  %v1455 = vmul.f32 %v1391, %v698
  %v1456 = vmul.f32 %v1392, %v698
  %v1457 = vmul.f32 %v1393, %v698
  %v1458 = vmul.f32 %v1394, %v698
  %v1459 = vmul.f32 %v1395, %v698
  %v1460 = vmul.f32 %v1396, %v698
  %v1461 = vmul.f32 %v1397, %v698
  %v1462 = vmul.f32 %v1398, %v698
  %v1463 = vmul.f32 %v1399, %v698
  %v1464 = vmul.f32 %v1400, %v698
  %v1465 = vmul.f32 %v1401, %v698
  %v1466 = vmul.f32 %v1402, %v698
  %v1467 = vmul.f32 %v1403, %v698
  %v1468 = vmul.f32 %v1404, %v698
  %v1469 = vmul.f32 %v1405, %v698
  %v1470 = vmul.f32 %v1406, %v698
  %v1471 = vmul.f32 %v1407, %v698
  %v1472 = vmul.f32 %v1408, %v698
  %v1473 = vmul.f32 %v1409, %v698
  %v1474 = vmul.f32 %v1410, %v698
  %v1475 = vmul.f32 %v1411, %v698
  %v1476 = vmul.f32 %v1412, %v698
  %v1477 = vmul.f32 %v1413, %v698
  %v1478 = vmul.f32 %v1414, %v698
  %v1479 = vmul.f32 %v1415, %v698
  %v1480 = vmul.f32 %v1416, %v698
  %v1481 = vmul.f32 %v1417, %v698
  %v1482 = vmul.f32 %v1418, %v698
  %v1483 = vmul.f32 %v1419, %v698
  %v1484 = vmul.f32 %v1420, %v698
  %v1485 = vmul.f32 %v1421, %v698
  %v1486 = vmul.f32 %v1422, %v698
  %v1487 = vmul.f32 %v1423, %v698
  %v1488 = vmul.f32 %v1424, %v698
  %v1489 = vmul.f32 %v1425, %v698
  %v1490 = vmul.f32 %v1426, %v698
  %v1491 = vmul.f32 %v1427, %v698
  %v1492 = vmul.f32 %v1428, %v698
  %v1493 = vmul.f32 %v1429, %v698
  %v1494 = vmul.f32 %v1430, %v698
  %v1495 = vmul.f32 %v1431, %v698
  %v1496 = vmul.f32 %v1432, %v698
  %v1497 = vmul.f32 %v1433, %v698
  %v1498 = vmul.f32 %v1434, %v698
  %v1499 = vmul.f32 %v1435, %v698
  %v1500 = vmul.f32 %v1436, %v698
  %v1501 = vmul.f32 %v1437, %v698
  %v1502 = vmul.f32 %v1438, %v698
  %v1503 = vmul.f32 %v1439, %v698
  %v1504 = vmul.f32 %v1440, %v698
  %v1505 = vadd.f32 %v1441, %v766
  %v1506 = vadd.f32 %v1442, %v766
  %v1507 = vadd.f32 %v1443, %v766
  %v1508 = vadd.f32 %v1444, %v766
  %v1509 = vadd.f32 %v1445, %v766
  %v1510 = vadd.f32 %v1446, %v766
  %v1511 = vadd.f32 %v1447, %v766
  %v1512 = vadd.f32 %v1448, %v766
  %v1513 = vadd.f32 %v1449, %v766
  %v1514 = vadd.f32 %v1450, %v766
  %v1515 = vadd.f32 %v1451, %v766
  %v1516 = vadd.f32 %v1452, %v766
  %v1517 = vadd.f32 %v1453, %v766
  %v1518 = vadd.f32 %v1454, %v766
  %v1519 = vadd.f32 %v1455, %v766
  %v1520 = vadd.f32 %v1456, %v766
  %v1521 = vadd.f32 %v1457, %v766
  %v1522 = vadd.f32 %v1458, %v766
  %v1523 = vadd.f32 %v1459, %v766
  %v1524 = vadd.f32 %v1460, %v766
  %v1525 = vadd.f32 %v1461, %v766
  %v1526 = vadd.f32 %v1462, %v766
  %v1527 = vadd.f32 %v1463, %v766
  %v1528 = vadd.f32 %v1464, %v766
  %v1529 = vadd.f32 %v1465, %v766
  %v1530 = vadd.f32 %v1466, %v766
  %v1531 = vadd.f32 %v1467, %v766
  %v1532 = vadd.f32 %v1468, %v766
  %v1533 = vadd.f32 %v1469, %v766
  %v1534 = vadd.f32 %v1470, %v766
  %v1535 = vadd.f32 %v1471, %v766
  %v1536 = vadd.f32 %v1472, %v766
  %v1537 = vadd.f32 %v1473, %v766
  %v1538 = vadd.f32 %v1474, %v766
  %v1539 = vadd.f32 %v1475, %v766
  %v1540 = vadd.f32 %v1476, %v766
  %v1541 = vadd.f32 %v1477, %v766
  %v1542 = vadd.f32 %v1478, %v766
  %v1543 = vadd.f32 %v1479, %v766
  %v1544 = vadd.f32 %v1480, %v766
  %v1545 = vadd.f32 %v1481, %v766
  %v1546 = vadd.f32 %v1482, %v766
  %v1547 = vadd.f32 %v1483, %v766
  %v1548 = vadd.f32 %v1484, %v766
  %v1549 = vadd.f32 %v1485, %v766
  %v1550 = vadd.f32 %v1486, %v766
  %v1551 = vadd.f32 %v1487, %v766
  %v1552 = vadd.f32 %v1488, %v766
  %v1553 = vadd.f32 %v1489, %v766
  %v1554 = vadd.f32 %v1490, %v766
  %v1555 = vadd.f32 %v1491, %v766
  %v1556 = vadd.f32 %v1492, %v766
  %v1557 = vadd.f32 %v1493, %v766
  %v1558 = vadd.f32 %v1494, %v766
  %v1559 = vadd.f32 %v1495, %v766
  %v1560 = vadd.f32 %v1496, %v766
  %v1561 = vadd.f32 %v1497, %v766
  %v1562 = vadd.f32 %v1498, %v766
  %v1563 = vadd.f32 %v1499, %v766
  %v1564 = vadd.f32 %v1500, %v766
  %v1565 = vadd.f32 %v1501, %v766
  %v1566 = vadd.f32 %v1502, %v766
  %v1567 = vadd.f32 %v1503, %v766
  %v1568 = vadd.f32 %v1504, %v766
  %v1569 = vmax.f32 %v767, %v1505
  %v1570 = vmax.f32 %v768, %v1506
  %v1571 = vmax.f32 %v769, %v1507
  %v1572 = vmax.f32 %v770, %v1508
  %v1573 = vmax.f32 %v771, %v1509
  %v1574 = vmax.f32 %v772, %v1510
  %v1575 = vmax.f32 %v773, %v1511
  %v1576 = vmax.f32 %v774, %v1512
  %v1577 = vmax.f32 %v775, %v1513
  %v1578 = vmax.f32 %v776, %v1514
  %v1579 = vmax.f32 %v777, %v1515
  %v1580 = vmax.f32 %v778, %v1516
  %v1581 = vmax.f32 %v779, %v1517
  %v1582 = vmax.f32 %v780, %v1518
  %v1583 = vmax.f32 %v781, %v1519
  %v1584 = vmax.f32 %v782, %v1520
  %v1585 = vmax.f32 %v783, %v1521
  %v1586 = vmax.f32 %v784, %v1522
  %v1587 = vmax.f32 %v785, %v1523
  %v1588 = vmax.f32 %v786, %v1524
  %v1589 = vmax.f32 %v787, %v1525
  %v1590 = vmax.f32 %v788, %v1526
  %v1591 = vmax.f32 %v789, %v1527
  %v1592 = vmax.f32 %v790, %v1528
  %v1593 = vmax.f32 %v791, %v1529
  %v1594 = vmax.f32 %v792, %v1530
  %v1595 = vmax.f32 %v793, %v1531
  %v1596 = vmax.f32 %v794, %v1532
  %v1597 = vmax.f32 %v795, %v1533
  %v1598 = vmax.f32 %v796, %v1534
  %v1599 = vmax.f32 %v797, %v1535
  %v1600 = vmax.f32 %v798, %v1536
  %v1601 = vmax.f32 %v799, %v1537
  %v1602 = vmax.f32 %v800, %v1538
  %v1603 = vmax.f32 %v801, %v1539
  %v1604 = vmax.f32 %v802, %v1540
  %v1605 = vmax.f32 %v803, %v1541
  %v1606 = vmax.f32 %v804, %v1542
  %v1607 = vmax.f32 %v805, %v1543
  %v1608 = vmax.f32 %v806, %v1544
  %v1609 = vmax.f32 %v807, %v1545
  %v1610 = vmax.f32 %v808, %v1546
  %v1611 = vmax.f32 %v809, %v1547
  %v1612 = vmax.f32 %v810, %v1548
  %v1613 = vmax.f32 %v811, %v1549
  %v1614 = vmax.f32 %v812, %v1550
  %v1615 = vmax.f32 %v813, %v1551
  %v1616 = vmax.f32 %v814, %v1552
  %v1617 = vmax.f32 %v815, %v1553
  %v1618 = vmax.f32 %v816, %v1554
  %v1619 = vmax.f32 %v817, %v1555
  %v1620 = vmax.f32 %v818, %v1556
  %v1621 = vmax.f32 %v819, %v1557
  %v1622 = vmax.f32 %v820, %v1558
  %v1623 = vmax.f32 %v821, %v1559
  %v1624 = vmax.f32 %v822, %v1560
  %v1625 = vmax.f32 %v823, %v1561
  %v1626 = vmax.f32 %v824, %v1562
  %v1627 = vmax.f32 %v825, %v1563
  %v1628 = vmax.f32 %v826, %v1564
  %v1629 = vmax.f32 %v827, %v1565
  %v1630 = vmax.f32 %v828, %v1566
  %v1631 = vmax.f32 %v829, %v1567
  %v1632 = vmax.f32 %v830, %v1568
  %s1633 = scalar_lea.vmem %s0, 512
  %v1634 = vld [vmem:[%s1633] sm:$0xf]
  %v1635 = vld [vmem:[%s1633 + $0x4] sm:$0xf]
  %v1636 = vld [vmem:[%s1633 + $0x8] sm:$0xf]
  %v1637 = vld [vmem:[%s1633 + $0xc] sm:$0xf]
  %v1638 = vld [vmem:[%s1633 + $0x10] sm:$0xf]
  %v1639 = vld [vmem:[%s1633 + $0x14] sm:$0xf]
  %v1640 = vld [vmem:[%s1633 + $0x18] sm:$0xf]
  %v1641 = vld [vmem:[%s1633 + $0x1c] sm:$0xf]
  %v1642 = vld [vmem:[%s1633 + $0x20] sm:$0xf]
  %v1643 = vld [vmem:[%s1633 + $0x24] sm:$0xf]
  %v1644 = vld [vmem:[%s1633 + $0x28] sm:$0xf]
  %v1645 = vld [vmem:[%s1633 + $0x2c] sm:$0xf]
  %v1646 = vld [vmem:[%s1633 + $0x30] sm:$0xf]
  %v1647 = vld [vmem:[%s1633 + $0x34] sm:$0xf]
  %v1648 = vld [vmem:[%s1633 + $0x38] sm:$0xf]
  %v1649 = vld [vmem:[%s1633 + $0x3c] sm:$0xf]
  %v1650 = vld [vmem:[%s1633 + $0x40] sm:$0xf]
  %v1651 = vld [vmem:[%s1633 + $0x44] sm:$0xf]
  %v1652 = vld [vmem:[%s1633 + $0x48] sm:$0xf]
  %v1653 = vld [vmem:[%s1633 + $0x4c] sm:$0xf]
  %v1654 = vld [vmem:[%s1633 + $0x50] sm:$0xf]
  %v1655 = vld [vmem:[%s1633 + $0x54] sm:$0xf]
  %v1656 = vld [vmem:[%s1633 + $0x58] sm:$0xf]
  %v1657 = vld [vmem:[%s1633 + $0x5c] sm:$0xf]
  %v1658 = vld [vmem:[%s1633 + $0x60] sm:$0xf]
  %v1659 = vld [vmem:[%s1633 + $0x64] sm:$0xf]
  %v1660 = vld [vmem:[%s1633 + $0x68] sm:$0xf]
  %v1661 = vld [vmem:[%s1633 + $0x6c] sm:$0xf]
  %v1662 = vld [vmem:[%s1633 + $0x70] sm:$0xf]
  %v1663 = vld [vmem:[%s1633 + $0x74] sm:$0xf]
  %v1664 = vld [vmem:[%s1633 + $0x78] sm:$0xf]
  %v1665 = vld [vmem:[%s1633 + $0x7c] sm:$0xf]
  %v1666 = vld [vmem:[%s1633 + $0x80] sm:$0xf]
  %v1667 = vld [vmem:[%s1633 + $0x84] sm:$0xf]
  %v1668 = vld [vmem:[%s1633 + $0x88] sm:$0xf]
  %v1669 = vld [vmem:[%s1633 + $0x8c] sm:$0xf]
  %v1670 = vld [vmem:[%s1633 + $0x90] sm:$0xf]
  %v1671 = vld [vmem:[%s1633 + $0x94] sm:$0xf]
  %v1672 = vld [vmem:[%s1633 + $0x98] sm:$0xf]
  %v1673 = vld [vmem:[%s1633 + $0x9c] sm:$0xf]
  %v1674 = vld [vmem:[%s1633 + $0xa0] sm:$0xf]
  %v1675 = vld [vmem:[%s1633 + $0xa4] sm:$0xf]
  %v1676 = vld [vmem:[%s1633 + $0xa8] sm:$0xf]
  %v1677 = vld [vmem:[%s1633 + $0xac] sm:$0xf]
  %v1678 = vld [vmem:[%s1633 + $0xb0] sm:$0xf]
  %v1679 = vld [vmem:[%s1633 + $0xb4] sm:$0xf]
  %v1680 = vld [vmem:[%s1633 + $0xb8] sm:$0xf]
  %v1681 = vld [vmem:[%s1633 + $0xbc] sm:$0xf]
  %v1682 = vld [vmem:[%s1633 + $0xc0] sm:$0xf]
  %v1683 = vld [vmem:[%s1633 + $0xc4] sm:$0xf]
  %v1684 = vld [vmem:[%s1633 + $0xc8] sm:$0xf]
  %v1685 = vld [vmem:[%s1633 + $0xcc] sm:$0xf]
  %v1686 = vld [vmem:[%s1633 + $0xd0] sm:$0xf]
  %v1687 = vld [vmem:[%s1633 + $0xd4] sm:$0xf]
  %v1688 = vld [vmem:[%s1633 + $0xd8] sm:$0xf]
  %v1689 = vld [vmem:[%s1633 + $0xdc] sm:$0xf]
  %v1690 = vld [vmem:[%s1633 + $0xe0] sm:$0xf]
  %v1691 = vld [vmem:[%s1633 + $0xe4] sm:$0xf]
  %v1692 = vld [vmem:[%s1633 + $0xe8] sm:$0xf]
  %v1693 = vld [vmem:[%s1633 + $0xec] sm:$0xf]
  %v1694 = vld [vmem:[%s1633 + $0xf0] sm:$0xf]
  %v1695 = vld [vmem:[%s1633 + $0xf4] sm:$0xf]
  %v1696 = vld [vmem:[%s1633 + $0xf8] sm:$0xf]
  %v1697 = vld [vmem:[%s1633 + $0xfc] sm:$0xf]
  %v1762 = vunpack.c.l.b16 %v1634
  %v1763 = vunpack.c.l.b16 %v1635
  %v1764 = vunpack.c.l.b16 %v1636
  %v1765 = vunpack.c.l.b16 %v1637
  %v1766 = vunpack.c.l.b16 %v1638
  %v1767 = vunpack.c.l.b16 %v1639
  %v1768 = vunpack.c.l.b16 %v1640
  %v1769 = vunpack.c.l.b16 %v1641
  %v1770 = vunpack.c.l.b16 %v1642
  %v1771 = vunpack.c.l.b16 %v1643
  %v1772 = vunpack.c.l.b16 %v1644
  %v1773 = vunpack.c.l.b16 %v1645
  %v1774 = vunpack.c.l.b16 %v1646
  %v1775 = vunpack.c.l.b16 %v1647
  %v1776 = vunpack.c.l.b16 %v1648
  %v1777 = vunpack.c.l.b16 %v1649
  %v1778 = vunpack.c.l.b16 %v1650
  %v1779 = vunpack.c.l.b16 %v1651
  %v1780 = vunpack.c.l.b16 %v1652
  %v1781 = vunpack.c.l.b16 %v1653
  %v1782 = vunpack.c.l.b16 %v1654
  %v1783 = vunpack.c.l.b16 %v1655
  %v1784 = vunpack.c.l.b16 %v1656
  %v1785 = vunpack.c.l.b16 %v1657
  %v1786 = vunpack.c.l.b16 %v1658
  %v1787 = vunpack.c.l.b16 %v1659
  %v1788 = vunpack.c.l.b16 %v1660
  %v1789 = vunpack.c.l.b16 %v1661
  %v1790 = vunpack.c.l.b16 %v1662
  %v1791 = vunpack.c.l.b16 %v1663
  %v1792 = vunpack.c.l.b16 %v1664
  %v1793 = vunpack.c.l.b16 %v1665
  %v1794 = vunpack.c.l.b16 %v1666
  %v1795 = vunpack.c.l.b16 %v1667
  %v1796 = vunpack.c.l.b16 %v1668
  %v1797 = vunpack.c.l.b16 %v1669
  %v1798 = vunpack.c.l.b16 %v1670
  %v1799 = vunpack.c.l.b16 %v1671
  %v1800 = vunpack.c.l.b16 %v1672
  %v1801 = vunpack.c.l.b16 %v1673
  %v1802 = vunpack.c.l.b16 %v1674
  %v1803 = vunpack.c.l.b16 %v1675
  %v1804 = vunpack.c.l.b16 %v1676
  %v1805 = vunpack.c.l.b16 %v1677
  %v1806 = vunpack.c.l.b16 %v1678
  %v1807 = vunpack.c.l.b16 %v1679
  %v1808 = vunpack.c.l.b16 %v1680
  %v1809 = vunpack.c.l.b16 %v1681
  %v1810 = vunpack.c.l.b16 %v1682
  %v1811 = vunpack.c.l.b16 %v1683
  %v1812 = vunpack.c.l.b16 %v1684
  %v1813 = vunpack.c.l.b16 %v1685
  %v1814 = vunpack.c.l.b16 %v1686
  %v1815 = vunpack.c.l.b16 %v1687
  %v1816 = vunpack.c.l.b16 %v1688
  %v1817 = vunpack.c.l.b16 %v1689
  %v1818 = vunpack.c.l.b16 %v1690
  %v1819 = vunpack.c.l.b16 %v1691
  %v1820 = vunpack.c.l.b16 %v1692
  %v1821 = vunpack.c.l.b16 %v1693
  %v1822 = vunpack.c.l.b16 %v1694
  %v1823 = vunpack.c.l.b16 %v1695
  %v1824 = vunpack.c.l.b16 %v1696
  %v1825 = vunpack.c.l.b16 %v1697
  %v1826 = vpack.c.b16 %v1763, %v1762
  %v1827 = vpack.c.b16 %v1765, %v1764
  %v1828 = vpack.c.b16 %v1767, %v1766
  %v1829 = vpack.c.b16 %v1769, %v1768
  %v1830 = vpack.c.b16 %v1771, %v1770
  %v1831 = vpack.c.b16 %v1773, %v1772
  %v1832 = vpack.c.b16 %v1775, %v1774
  %v1833 = vpack.c.b16 %v1777, %v1776
  %v1834 = vpack.c.b16 %v1779, %v1778
  %v1835 = vpack.c.b16 %v1781, %v1780
  %v1836 = vpack.c.b16 %v1783, %v1782
  %v1837 = vpack.c.b16 %v1785, %v1784
  %v1838 = vpack.c.b16 %v1787, %v1786
  %v1839 = vpack.c.b16 %v1789, %v1788
  %v1840 = vpack.c.b16 %v1791, %v1790
  %v1841 = vpack.c.b16 %v1793, %v1792
  %v1842 = vpack.c.b16 %v1795, %v1794
  %v1843 = vpack.c.b16 %v1797, %v1796
  %v1844 = vpack.c.b16 %v1799, %v1798
  %v1845 = vpack.c.b16 %v1801, %v1800
  %v1846 = vpack.c.b16 %v1803, %v1802
  %v1847 = vpack.c.b16 %v1805, %v1804
  %v1848 = vpack.c.b16 %v1807, %v1806
  %v1849 = vpack.c.b16 %v1809, %v1808
  %v1850 = vpack.c.b16 %v1811, %v1810
  %v1851 = vpack.c.b16 %v1813, %v1812
  %v1852 = vpack.c.b16 %v1815, %v1814
  %v1853 = vpack.c.b16 %v1817, %v1816
  %v1854 = vpack.c.b16 %v1819, %v1818
  %v1855 = vpack.c.b16 %v1821, %v1820
  %v1856 = vpack.c.b16 %v1823, %v1822
  %v1857 = vpack.c.b16 %v1825, %v1824
  %1890 = vmatprep.subr.bf16.mxu0 0
  %1891 = vmatpush1.bf16.msra.mxu0 %v333
  %1892 = vmatprep.subr.bf16.mxu0 0
  %1893 = vmatpush1.bf16.msra.mxu0 %v332
  %1894 = vmatprep.subr.bf16.mxu0 0
  %1895 = vmatpush1.bf16.msra.mxu0 %v331
  %1896 = vmatprep.subr.bf16.mxu0 0
  %1897 = vmatpush1.bf16.msra.mxu0 %v330
  %1898 = vmatprep.subr.bf16.mxu0 0
  %1899 = vmatpush1.bf16.msra.mxu0 %v329
  %1900 = vmatprep.subr.bf16.mxu0 0
  %1901 = vmatpush1.bf16.msra.mxu0 %v328
  %1902 = vmatprep.subr.bf16.mxu0 0
  %1903 = vmatpush1.bf16.msra.mxu0 %v327
  %1904 = vmatprep.subr.bf16.mxu0 0
  %1905 = vmatpush1.bf16.msra.mxu0 %v326
  %1906 = vmatprep.subr.bf16.mxu0 0
  %1907 = vmatpush2.bf16.msra.mxu0 0
  %1908 = vmatprep.subr.bf16.mxu0 0
  %1909 = vmatpush2.bf16.msra.mxu0 0
  %1910 = vmatprep.subr.bf16.mxu0 0
  %1911 = vmatpush2.bf16.msra.mxu0 0
  %1912 = vmatprep.subr.bf16.mxu0 0
  %1913 = vmatpush2.bf16.msra.mxu0 0
  %1914 = vmatprep.subr.bf16.mxu0 0
  %1915 = vmatpush2.bf16.msra.mxu0 0
  %1916 = vmatprep.subr.bf16.mxu0 0
  %1917 = vmatpush2.bf16.msra.mxu0 0
  %1918 = vmatprep.subr.bf16.mxu0 0
  %1919 = vmatpush2.bf16.msra.mxu0 0
  %1920 = vmatprep.subr.bf16.mxu0 0
  %1921 = vmatpush2.bf16.msra.mxu0 0
  %1922 = vmatprep.mubr.bf16.mxu0 0
  %1923 = vmatmul.mubr.bf16.gmra.mxu0 %v1826
  %v1924 = vpop.f32.mrf.mxu0
  %v1925 = vadd.f32 %v101, %v1924
  %v1926 = vpop.f32.mrf.mxu0
  %v1927 = vpop.f32.mrf.mxu0
  %v1928 = vadd.f32 %v101, %v1927
  %v1929 = vpop.f32.mrf.mxu0
  %1930 = vmatprep.mubr.bf16.mxu0 0
  %1931 = vmatmul.mubr.bf16.gmra.mxu0 %v1827
  %v1932 = vpop.f32.mrf.mxu0
  %v1933 = vadd.f32 %v101, %v1932
  %v1934 = vpop.f32.mrf.mxu0
  %v1935 = vpop.f32.mrf.mxu0
  %v1936 = vadd.f32 %v101, %v1935
  %v1937 = vpop.f32.mrf.mxu0
  %1938 = vmatprep.mubr.bf16.mxu0 0
  %1939 = vmatmul.mubr.bf16.gmra.mxu0 %v1828
  %v1940 = vpop.f32.mrf.mxu0
  %v1941 = vadd.f32 %v101, %v1940
  %v1942 = vpop.f32.mrf.mxu0
  %v1943 = vpop.f32.mrf.mxu0
  %v1944 = vadd.f32 %v101, %v1943
  %v1945 = vpop.f32.mrf.mxu0
  %1946 = vmatprep.mubr.bf16.mxu0 0
  %1947 = vmatmul.mubr.bf16.gmra.mxu0 %v1829
  %v1948 = vpop.f32.mrf.mxu0
  %v1949 = vadd.f32 %v101, %v1948
  %v1950 = vpop.f32.mrf.mxu0
  %v1951 = vpop.f32.mrf.mxu0
  %v1952 = vadd.f32 %v101, %v1951
  %v1953 = vpop.f32.mrf.mxu0
  %1954 = vmatprep.mubr.bf16.mxu0 0
  %1955 = vmatmul.mubr.bf16.gmra.mxu0 %v1830
  %v1956 = vpop.f32.mrf.mxu0
  %v1957 = vadd.f32 %v101, %v1956
  %v1958 = vpop.f32.mrf.mxu0
  %v1959 = vpop.f32.mrf.mxu0
  %v1960 = vadd.f32 %v101, %v1959
  %v1961 = vpop.f32.mrf.mxu0
  %1962 = vmatprep.mubr.bf16.mxu0 0
  %1963 = vmatmul.mubr.bf16.gmra.mxu0 %v1831
  %v1964 = vpop.f32.mrf.mxu0
  %v1965 = vadd.f32 %v101, %v1964
  %v1966 = vpop.f32.mrf.mxu0
  %v1967 = vpop.f32.mrf.mxu0
  %v1968 = vadd.f32 %v101, %v1967
  %v1969 = vpop.f32.mrf.mxu0
  %1970 = vmatprep.mubr.bf16.mxu0 0
  %1971 = vmatmul.mubr.bf16.gmra.mxu0 %v1832
  %v1972 = vpop.f32.mrf.mxu0
  %v1973 = vadd.f32 %v101, %v1972
  %v1974 = vpop.f32.mrf.mxu0
  %v1975 = vpop.f32.mrf.mxu0
  %v1976 = vadd.f32 %v101, %v1975
  %v1977 = vpop.f32.mrf.mxu0
  %1978 = vmatprep.mubr.bf16.mxu0 0
  %1979 = vmatmul.mubr.bf16.gmra.mxu0 %v1833
  %v1980 = vpop.f32.mrf.mxu0
  %v1981 = vadd.f32 %v101, %v1980
  %v1982 = vpop.f32.mrf.mxu0
  %v1983 = vpop.f32.mrf.mxu0
  %v1984 = vadd.f32 %v101, %v1983
  %v1985 = vpop.f32.mrf.mxu0
  %1986 = vmatprep.mubr.bf16.mxu0 0
  %1987 = vmatmul.mubr.bf16.gmra.mxu0 %v1834
  %v1988 = vpop.f32.mrf.mxu0
  %v1989 = vadd.f32 %v101, %v1988
  %v1990 = vpop.f32.mrf.mxu0
  %v1991 = vpop.f32.mrf.mxu0
  %v1992 = vadd.f32 %v101, %v1991
  %v1993 = vpop.f32.mrf.mxu0
  %1994 = vmatprep.mubr.bf16.mxu0 0
  %1995 = vmatmul.mubr.bf16.gmra.mxu0 %v1835
  %v1996 = vpop.f32.mrf.mxu0
  %v1997 = vadd.f32 %v101, %v1996
  %v1998 = vpop.f32.mrf.mxu0
  %v1999 = vpop.f32.mrf.mxu0
  %v2000 = vadd.f32 %v101, %v1999
  %v2001 = vpop.f32.mrf.mxu0
  %2002 = vmatprep.mubr.bf16.mxu0 0
  %2003 = vmatmul.mubr.bf16.gmra.mxu0 %v1836
  %v2004 = vpop.f32.mrf.mxu0
  %v2005 = vadd.f32 %v101, %v2004
  %v2006 = vpop.f32.mrf.mxu0
  %v2007 = vpop.f32.mrf.mxu0
  %v2008 = vadd.f32 %v101, %v2007
  %v2009 = vpop.f32.mrf.mxu0
  %2010 = vmatprep.mubr.bf16.mxu0 0
  %2011 = vmatmul.mubr.bf16.gmra.mxu0 %v1837
  %v2012 = vpop.f32.mrf.mxu0
  %v2013 = vadd.f32 %v101, %v2012
  %v2014 = vpop.f32.mrf.mxu0
  %v2015 = vpop.f32.mrf.mxu0
  %v2016 = vadd.f32 %v101, %v2015
  %v2017 = vpop.f32.mrf.mxu0
  %2018 = vmatprep.mubr.bf16.mxu0 0
  %2019 = vmatmul.mubr.bf16.gmra.mxu0 %v1838
  %v2020 = vpop.f32.mrf.mxu0
  %v2021 = vadd.f32 %v101, %v2020
  %v2022 = vpop.f32.mrf.mxu0
  %v2023 = vpop.f32.mrf.mxu0
  %v2024 = vadd.f32 %v101, %v2023
  %v2025 = vpop.f32.mrf.mxu0
  %2026 = vmatprep.mubr.bf16.mxu0 0
  %2027 = vmatmul.mubr.bf16.gmra.mxu0 %v1839
  %v2028 = vpop.f32.mrf.mxu0
  %v2029 = vadd.f32 %v101, %v2028
  %v2030 = vpop.f32.mrf.mxu0
  %v2031 = vpop.f32.mrf.mxu0
  %v2032 = vadd.f32 %v101, %v2031
  %v2033 = vpop.f32.mrf.mxu0
  %2034 = vmatprep.mubr.bf16.mxu0 0
  %2035 = vmatmul.mubr.bf16.gmra.mxu0 %v1840
  %v2036 = vpop.f32.mrf.mxu0
  %v2037 = vadd.f32 %v101, %v2036
  %v2038 = vpop.f32.mrf.mxu0
  %v2039 = vpop.f32.mrf.mxu0
  %v2040 = vadd.f32 %v101, %v2039
  %v2041 = vpop.f32.mrf.mxu0
  %2042 = vmatprep.mubr.bf16.mxu0 0
  %2043 = vmatmul.mubr.bf16.gmra.mxu0 %v1841
  %v2044 = vpop.f32.mrf.mxu0
  %v2045 = vadd.f32 %v101, %v2044
  %v2046 = vpop.f32.mrf.mxu0
  %v2047 = vpop.f32.mrf.mxu0
  %v2048 = vadd.f32 %v101, %v2047
  %v2049 = vpop.f32.mrf.mxu0
  %2050 = vmatprep.mubr.bf16.mxu0 0
  %2051 = vmatmul.mubr.bf16.gmra.mxu0 %v1842
  %v2052 = vpop.f32.mrf.mxu0
  %v2053 = vadd.f32 %v101, %v2052
  %v2054 = vpop.f32.mrf.mxu0
  %v2055 = vpop.f32.mrf.mxu0
  %v2056 = vadd.f32 %v101, %v2055
  %v2057 = vpop.f32.mrf.mxu0
  %2058 = vmatprep.mubr.bf16.mxu0 0
  %2059 = vmatmul.mubr.bf16.gmra.mxu0 %v1843
  %v2060 = vpop.f32.mrf.mxu0
  %v2061 = vadd.f32 %v101, %v2060
  %v2062 = vpop.f32.mrf.mxu0
  %v2063 = vpop.f32.mrf.mxu0
  %v2064 = vadd.f32 %v101, %v2063
  %v2065 = vpop.f32.mrf.mxu0
  %2066 = vmatprep.mubr.bf16.mxu0 0
  %2067 = vmatmul.mubr.bf16.gmra.mxu0 %v1844
  %v2068 = vpop.f32.mrf.mxu0
  %v2069 = vadd.f32 %v101, %v2068
  %v2070 = vpop.f32.mrf.mxu0
  %v2071 = vpop.f32.mrf.mxu0
  %v2072 = vadd.f32 %v101, %v2071
  %v2073 = vpop.f32.mrf.mxu0
  %2074 = vmatprep.mubr.bf16.mxu0 0
  %2075 = vmatmul.mubr.bf16.gmra.mxu0 %v1845
  %v2076 = vpop.f32.mrf.mxu0
  %v2077 = vadd.f32 %v101, %v2076
  %v2078 = vpop.f32.mrf.mxu0
  %v2079 = vpop.f32.mrf.mxu0
  %v2080 = vadd.f32 %v101, %v2079
  %v2081 = vpop.f32.mrf.mxu0
  %2082 = vmatprep.mubr.bf16.mxu0 0
  %2083 = vmatmul.mubr.bf16.gmra.mxu0 %v1846
  %v2084 = vpop.f32.mrf.mxu0
  %v2085 = vadd.f32 %v101, %v2084
  %v2086 = vpop.f32.mrf.mxu0
  %v2087 = vpop.f32.mrf.mxu0
  %v2088 = vadd.f32 %v101, %v2087
  %v2089 = vpop.f32.mrf.mxu0
  %2090 = vmatprep.mubr.bf16.mxu0 0
  %2091 = vmatmul.mubr.bf16.gmra.mxu0 %v1847
  %v2092 = vpop.f32.mrf.mxu0
  %v2093 = vadd.f32 %v101, %v2092
  %v2094 = vpop.f32.mrf.mxu0
  %v2095 = vpop.f32.mrf.mxu0
  %v2096 = vadd.f32 %v101, %v2095
  %v2097 = vpop.f32.mrf.mxu0
  %2098 = vmatprep.mubr.bf16.mxu0 0
  %2099 = vmatmul.mubr.bf16.gmra.mxu0 %v1848
  %v2100 = vpop.f32.mrf.mxu0
  %v2101 = vadd.f32 %v101, %v2100
  %v2102 = vpop.f32.mrf.mxu0
  %v2103 = vpop.f32.mrf.mxu0
  %v2104 = vadd.f32 %v101, %v2103
  %v2105 = vpop.f32.mrf.mxu0
  %2106 = vmatprep.mubr.bf16.mxu0 0
  %2107 = vmatmul.mubr.bf16.gmra.mxu0 %v1849
  %v2108 = vpop.f32.mrf.mxu0
  %v2109 = vadd.f32 %v101, %v2108
  %v2110 = vpop.f32.mrf.mxu0
  %v2111 = vpop.f32.mrf.mxu0
  %v2112 = vadd.f32 %v101, %v2111
  %v2113 = vpop.f32.mrf.mxu0
  %2114 = vmatprep.mubr.bf16.mxu0 0
  %2115 = vmatmul.mubr.bf16.gmra.mxu0 %v1850
  %v2116 = vpop.f32.mrf.mxu0
  %v2117 = vadd.f32 %v101, %v2116
  %v2118 = vpop.f32.mrf.mxu0
  %v2119 = vpop.f32.mrf.mxu0
  %v2120 = vadd.f32 %v101, %v2119
  %v2121 = vpop.f32.mrf.mxu0
  %2122 = vmatprep.mubr.bf16.mxu0 0
  %2123 = vmatmul.mubr.bf16.gmra.mxu0 %v1851
  %v2124 = vpop.f32.mrf.mxu0
  %v2125 = vadd.f32 %v101, %v2124
  %v2126 = vpop.f32.mrf.mxu0
  %v2127 = vpop.f32.mrf.mxu0
  %v2128 = vadd.f32 %v101, %v2127
  %v2129 = vpop.f32.mrf.mxu0
  %2130 = vmatprep.mubr.bf16.mxu0 0
  %2131 = vmatmul.mubr.bf16.gmra.mxu0 %v1852
  %v2132 = vpop.f32.mrf.mxu0
  %v2133 = vadd.f32 %v101, %v2132
  %v2134 = vpop.f32.mrf.mxu0
  %v2135 = vpop.f32.mrf.mxu0
  %v2136 = vadd.f32 %v101, %v2135
  %v2137 = vpop.f32.mrf.mxu0
  %2138 = vmatprep.mubr.bf16.mxu0 0
  %2139 = vmatmul.mubr.bf16.gmra.mxu0 %v1853
  %v2140 = vpop.f32.mrf.mxu0
  %v2141 = vadd.f32 %v101, %v2140
  %v2142 = vpop.f32.mrf.mxu0
  %v2143 = vpop.f32.mrf.mxu0
  %v2144 = vadd.f32 %v101, %v2143
  %v2145 = vpop.f32.mrf.mxu0
  %2146 = vmatprep.mubr.bf16.mxu0 0
  %2147 = vmatmul.mubr.bf16.gmra.mxu0 %v1854
  %v2148 = vpop.f32.mrf.mxu0
  %v2149 = vadd.f32 %v101, %v2148
  %v2150 = vpop.f32.mrf.mxu0
  %v2151 = vpop.f32.mrf.mxu0
  %v2152 = vadd.f32 %v101, %v2151
  %v2153 = vpop.f32.mrf.mxu0
  %2154 = vmatprep.mubr.bf16.mxu0 0
  %2155 = vmatmul.mubr.bf16.gmra.mxu0 %v1855
  %v2156 = vpop.f32.mrf.mxu0
  %v2157 = vadd.f32 %v101, %v2156
  %v2158 = vpop.f32.mrf.mxu0
  %v2159 = vpop.f32.mrf.mxu0
  %v2160 = vadd.f32 %v101, %v2159
  %v2161 = vpop.f32.mrf.mxu0
  %2162 = vmatprep.mubr.bf16.mxu0 0
  %2163 = vmatmul.mubr.bf16.gmra.mxu0 %v1856
  %v2164 = vpop.f32.mrf.mxu0
  %v2165 = vadd.f32 %v101, %v2164
  %v2166 = vpop.f32.mrf.mxu0
  %v2167 = vpop.f32.mrf.mxu0
  %v2168 = vadd.f32 %v101, %v2167
  %v2169 = vpop.f32.mrf.mxu0
  %2170 = vmatprep.mubr.bf16.mxu0 0
  %2171 = vmatmul.mubr.bf16.gmra.mxu0 %v1857
  %v2172 = vpop.f32.mrf.mxu0
  %v2173 = vadd.f32 %v101, %v2172
  %v2174 = vpop.f32.mrf.mxu0
  %v2175 = vpop.f32.mrf.mxu0
  %v2176 = vadd.f32 %v101, %v2175
  %v2177 = vpop.f32.mrf.mxu0
  %2178 = vdwg.mxu0
  %v2179 = vmax.f32 %v1925, 0.0
  %v2180 = vmax.f32 %v1928, 0.0
  %v2181 = vmax.f32 %v1933, 0.0
  %v2182 = vmax.f32 %v1936, 0.0
  %v2183 = vmax.f32 %v1941, 0.0
  %v2184 = vmax.f32 %v1944, 0.0
  %v2185 = vmax.f32 %v1949, 0.0
  %v2186 = vmax.f32 %v1952, 0.0
  %v2187 = vmax.f32 %v1957, 0.0
  %v2188 = vmax.f32 %v1960, 0.0
  %v2189 = vmax.f32 %v1965, 0.0
  %v2190 = vmax.f32 %v1968, 0.0
  %v2191 = vmax.f32 %v1973, 0.0
  %v2192 = vmax.f32 %v1976, 0.0
  %v2193 = vmax.f32 %v1981, 0.0
  %v2194 = vmax.f32 %v1984, 0.0
  %v2195 = vmax.f32 %v1989, 0.0
  %v2196 = vmax.f32 %v1992, 0.0
  %v2197 = vmax.f32 %v1997, 0.0
  %v2198 = vmax.f32 %v2000, 0.0
  %v2199 = vmax.f32 %v2005, 0.0
  %v2200 = vmax.f32 %v2008, 0.0
  %v2201 = vmax.f32 %v2013, 0.0
  %v2202 = vmax.f32 %v2016, 0.0
  %v2203 = vmax.f32 %v2021, 0.0
  %v2204 = vmax.f32 %v2024, 0.0
  %v2205 = vmax.f32 %v2029, 0.0
  %v2206 = vmax.f32 %v2032, 0.0
  %v2207 = vmax.f32 %v2037, 0.0
  %v2208 = vmax.f32 %v2040, 0.0
  %v2209 = vmax.f32 %v2045, 0.0
  %v2210 = vmax.f32 %v2048, 0.0
  %v2211 = vmax.f32 %v2053, 0.0
  %v2212 = vmax.f32 %v2056, 0.0
  %v2213 = vmax.f32 %v2061, 0.0
  %v2214 = vmax.f32 %v2064, 0.0
  %v2215 = vmax.f32 %v2069, 0.0
  %v2216 = vmax.f32 %v2072, 0.0
  %v2217 = vmax.f32 %v2077, 0.0
  %v2218 = vmax.f32 %v2080, 0.0
  %v2219 = vmax.f32 %v2085, 0.0
  %v2220 = vmax.f32 %v2088, 0.0
  %v2221 = vmax.f32 %v2093, 0.0
  %v2222 = vmax.f32 %v2096, 0.0
  %v2223 = vmax.f32 %v2101, 0.0
  %v2224 = vmax.f32 %v2104, 0.0
  %v2225 = vmax.f32 %v2109, 0.0
  %v2226 = vmax.f32 %v2112, 0.0
  %v2227 = vmax.f32 %v2117, 0.0
  %v2228 = vmax.f32 %v2120, 0.0
  %v2229 = vmax.f32 %v2125, 0.0
  %v2230 = vmax.f32 %v2128, 0.0
  %v2231 = vmax.f32 %v2133, 0.0
  %v2232 = vmax.f32 %v2136, 0.0
  %v2233 = vmax.f32 %v2141, 0.0
  %v2234 = vmax.f32 %v2144, 0.0
  %v2235 = vmax.f32 %v2149, 0.0
  %v2236 = vmax.f32 %v2152, 0.0
  %v2237 = vmax.f32 %v2157, 0.0
  %v2238 = vmax.f32 %v2160, 0.0
  %v2239 = vmax.f32 %v2165, 0.0
  %v2240 = vmax.f32 %v2168, 0.0
  %v2241 = vmax.f32 %v2173, 0.0
  %v2242 = vmax.f32 %v2176, 0.0
  %v2243 = vmul.f32 %v2179, %v698
  %v2244 = vmul.f32 %v2180, %v698
  %v2245 = vmul.f32 %v2181, %v698
  %v2246 = vmul.f32 %v2182, %v698
  %v2247 = vmul.f32 %v2183, %v698
  %v2248 = vmul.f32 %v2184, %v698
  %v2249 = vmul.f32 %v2185, %v698
  %v2250 = vmul.f32 %v2186, %v698
  %v2251 = vmul.f32 %v2187, %v698
  %v2252 = vmul.f32 %v2188, %v698
  %v2253 = vmul.f32 %v2189, %v698
  %v2254 = vmul.f32 %v2190, %v698
  %v2255 = vmul.f32 %v2191, %v698
  %v2256 = vmul.f32 %v2192, %v698
  %v2257 = vmul.f32 %v2193, %v698
  %v2258 = vmul.f32 %v2194, %v698
  %v2259 = vmul.f32 %v2195, %v698
  %v2260 = vmul.f32 %v2196, %v698
  %v2261 = vmul.f32 %v2197, %v698
  %v2262 = vmul.f32 %v2198, %v698
  %v2263 = vmul.f32 %v2199, %v698
  %v2264 = vmul.f32 %v2200, %v698
  %v2265 = vmul.f32 %v2201, %v698
  %v2266 = vmul.f32 %v2202, %v698
  %v2267 = vmul.f32 %v2203, %v698
  %v2268 = vmul.f32 %v2204, %v698
  %v2269 = vmul.f32 %v2205, %v698
  %v2270 = vmul.f32 %v2206, %v698
  %v2271 = vmul.f32 %v2207, %v698
  %v2272 = vmul.f32 %v2208, %v698
  %v2273 = vmul.f32 %v2209, %v698
  %v2274 = vmul.f32 %v2210, %v698
  %v2275 = vmul.f32 %v2211, %v698
  %v2276 = vmul.f32 %v2212, %v698
  %v2277 = vmul.f32 %v2213, %v698
  %v2278 = vmul.f32 %v2214, %v698
  %v2279 = vmul.f32 %v2215, %v698
  %v2280 = vmul.f32 %v2216, %v698
  %v2281 = vmul.f32 %v2217, %v698
  %v2282 = vmul.f32 %v2218, %v698
  %v2283 = vmul.f32 %v2219, %v698
  %v2284 = vmul.f32 %v2220, %v698
  %v2285 = vmul.f32 %v2221, %v698
  %v2286 = vmul.f32 %v2222, %v698
  %v2287 = vmul.f32 %v2223, %v698
  %v2288 = vmul.f32 %v2224, %v698
  %v2289 = vmul.f32 %v2225, %v698
  %v2290 = vmul.f32 %v2226, %v698
  %v2291 = vmul.f32 %v2227, %v698
  %v2292 = vmul.f32 %v2228, %v698
  %v2293 = vmul.f32 %v2229, %v698
  %v2294 = vmul.f32 %v2230, %v698
  %v2295 = vmul.f32 %v2231, %v698
  %v2296 = vmul.f32 %v2232, %v698
  %v2297 = vmul.f32 %v2233, %v698
  %v2298 = vmul.f32 %v2234, %v698
  %v2299 = vmul.f32 %v2235, %v698
  %v2300 = vmul.f32 %v2236, %v698
  %v2301 = vmul.f32 %v2237, %v698
  %v2302 = vmul.f32 %v2238, %v698
  %v2303 = vmul.f32 %v2239, %v698
  %v2304 = vmul.f32 %v2240, %v698
  %v2305 = vmul.f32 %v2241, %v698
  %v2306 = vmul.f32 %v2242, %v698
  %v2307 = vadd.f32 %v2243, %v766
  %v2308 = vadd.f32 %v2244, %v766
  %v2309 = vadd.f32 %v2245, %v766
  %v2310 = vadd.f32 %v2246, %v766
  %v2311 = vadd.f32 %v2247, %v766
  %v2312 = vadd.f32 %v2248, %v766
  %v2313 = vadd.f32 %v2249, %v766
  %v2314 = vadd.f32 %v2250, %v766
  %v2315 = vadd.f32 %v2251, %v766
  %v2316 = vadd.f32 %v2252, %v766
  %v2317 = vadd.f32 %v2253, %v766
  %v2318 = vadd.f32 %v2254, %v766
  %v2319 = vadd.f32 %v2255, %v766
  %v2320 = vadd.f32 %v2256, %v766
  %v2321 = vadd.f32 %v2257, %v766
  %v2322 = vadd.f32 %v2258, %v766
  %v2323 = vadd.f32 %v2259, %v766
  %v2324 = vadd.f32 %v2260, %v766
  %v2325 = vadd.f32 %v2261, %v766
  %v2326 = vadd.f32 %v2262, %v766
  %v2327 = vadd.f32 %v2263, %v766
  %v2328 = vadd.f32 %v2264, %v766
  %v2329 = vadd.f32 %v2265, %v766
  %v2330 = vadd.f32 %v2266, %v766
  %v2331 = vadd.f32 %v2267, %v766
  %v2332 = vadd.f32 %v2268, %v766
  %v2333 = vadd.f32 %v2269, %v766
  %v2334 = vadd.f32 %v2270, %v766
  %v2335 = vadd.f32 %v2271, %v766
  %v2336 = vadd.f32 %v2272, %v766
  %v2337 = vadd.f32 %v2273, %v766
  %v2338 = vadd.f32 %v2274, %v766
  %v2339 = vadd.f32 %v2275, %v766
  %v2340 = vadd.f32 %v2276, %v766
  %v2341 = vadd.f32 %v2277, %v766
  %v2342 = vadd.f32 %v2278, %v766
  %v2343 = vadd.f32 %v2279, %v766
  %v2344 = vadd.f32 %v2280, %v766
  %v2345 = vadd.f32 %v2281, %v766
  %v2346 = vadd.f32 %v2282, %v766
  %v2347 = vadd.f32 %v2283, %v766
  %v2348 = vadd.f32 %v2284, %v766
  %v2349 = vadd.f32 %v2285, %v766
  %v2350 = vadd.f32 %v2286, %v766
  %v2351 = vadd.f32 %v2287, %v766
  %v2352 = vadd.f32 %v2288, %v766
  %v2353 = vadd.f32 %v2289, %v766
  %v2354 = vadd.f32 %v2290, %v766
  %v2355 = vadd.f32 %v2291, %v766
  %v2356 = vadd.f32 %v2292, %v766
  %v2357 = vadd.f32 %v2293, %v766
  %v2358 = vadd.f32 %v2294, %v766
  %v2359 = vadd.f32 %v2295, %v766
  %v2360 = vadd.f32 %v2296, %v766
  %v2361 = vadd.f32 %v2297, %v766
  %v2362 = vadd.f32 %v2298, %v766
  %v2363 = vadd.f32 %v2299, %v766
  %v2364 = vadd.f32 %v2300, %v766
  %v2365 = vadd.f32 %v2301, %v766
  %v2366 = vadd.f32 %v2302, %v766
  %v2367 = vadd.f32 %v2303, %v766
  %v2368 = vadd.f32 %v2304, %v766
  %v2369 = vadd.f32 %v2305, %v766
  %v2370 = vadd.f32 %v2306, %v766
  %s2371 = scalar_lea.vmem %s0, 768
  %v2372 = vld [vmem:[%s2371] sm:$0xf]
  %v2373 = vld [vmem:[%s2371 + $0x4] sm:$0xf]
  %v2374 = vld [vmem:[%s2371 + $0x8] sm:$0xf]
  %v2375 = vld [vmem:[%s2371 + $0xc] sm:$0xf]
  %v2376 = vld [vmem:[%s2371 + $0x10] sm:$0xf]
  %v2377 = vld [vmem:[%s2371 + $0x14] sm:$0xf]
  %v2378 = vld [vmem:[%s2371 + $0x18] sm:$0xf]
  %v2379 = vld [vmem:[%s2371 + $0x1c] sm:$0xf]
  %v2380 = vld [vmem:[%s2371 + $0x20] sm:$0xf]
  %v2381 = vld [vmem:[%s2371 + $0x24] sm:$0xf]
  %v2382 = vld [vmem:[%s2371 + $0x28] sm:$0xf]
  %v2383 = vld [vmem:[%s2371 + $0x2c] sm:$0xf]
  %v2384 = vld [vmem:[%s2371 + $0x30] sm:$0xf]
  %v2385 = vld [vmem:[%s2371 + $0x34] sm:$0xf]
  %v2386 = vld [vmem:[%s2371 + $0x38] sm:$0xf]
  %v2387 = vld [vmem:[%s2371 + $0x3c] sm:$0xf]
  %v2388 = vld [vmem:[%s2371 + $0x40] sm:$0xf]
  %v2389 = vld [vmem:[%s2371 + $0x44] sm:$0xf]
  %v2390 = vld [vmem:[%s2371 + $0x48] sm:$0xf]
  %v2391 = vld [vmem:[%s2371 + $0x4c] sm:$0xf]
  %v2392 = vld [vmem:[%s2371 + $0x50] sm:$0xf]
  %v2393 = vld [vmem:[%s2371 + $0x54] sm:$0xf]
  %v2394 = vld [vmem:[%s2371 + $0x58] sm:$0xf]
  %v2395 = vld [vmem:[%s2371 + $0x5c] sm:$0xf]
  %v2396 = vld [vmem:[%s2371 + $0x60] sm:$0xf]
  %v2397 = vld [vmem:[%s2371 + $0x64] sm:$0xf]
  %v2398 = vld [vmem:[%s2371 + $0x68] sm:$0xf]
  %v2399 = vld [vmem:[%s2371 + $0x6c] sm:$0xf]
  %v2400 = vld [vmem:[%s2371 + $0x70] sm:$0xf]
  %v2401 = vld [vmem:[%s2371 + $0x74] sm:$0xf]
  %v2402 = vld [vmem:[%s2371 + $0x78] sm:$0xf]
  %v2403 = vld [vmem:[%s2371 + $0x7c] sm:$0xf]
  %v2404 = vld [vmem:[%s2371 + $0x80] sm:$0xf]
  %v2405 = vld [vmem:[%s2371 + $0x84] sm:$0xf]
  %v2406 = vld [vmem:[%s2371 + $0x88] sm:$0xf]
  %v2407 = vld [vmem:[%s2371 + $0x8c] sm:$0xf]
  %v2408 = vld [vmem:[%s2371 + $0x90] sm:$0xf]
  %v2409 = vld [vmem:[%s2371 + $0x94] sm:$0xf]
  %v2410 = vld [vmem:[%s2371 + $0x98] sm:$0xf]
  %v2411 = vld [vmem:[%s2371 + $0x9c] sm:$0xf]
  %v2412 = vld [vmem:[%s2371 + $0xa0] sm:$0xf]
  %v2413 = vld [vmem:[%s2371 + $0xa4] sm:$0xf]
  %v2414 = vld [vmem:[%s2371 + $0xa8] sm:$0xf]
  %v2415 = vld [vmem:[%s2371 + $0xac] sm:$0xf]
  %v2416 = vld [vmem:[%s2371 + $0xb0] sm:$0xf]
  %v2417 = vld [vmem:[%s2371 + $0xb4] sm:$0xf]
  %v2418 = vld [vmem:[%s2371 + $0xb8] sm:$0xf]
  %v2419 = vld [vmem:[%s2371 + $0xbc] sm:$0xf]
  %v2420 = vld [vmem:[%s2371 + $0xc0] sm:$0xf]
  %v2421 = vld [vmem:[%s2371 + $0xc4] sm:$0xf]
  %v2422 = vld [vmem:[%s2371 + $0xc8] sm:$0xf]
  %v2423 = vld [vmem:[%s2371 + $0xcc] sm:$0xf]
  %v2424 = vld [vmem:[%s2371 + $0xd0] sm:$0xf]
  %v2425 = vld [vmem:[%s2371 + $0xd4] sm:$0xf]
  %v2426 = vld [vmem:[%s2371 + $0xd8] sm:$0xf]
  %v2427 = vld [vmem:[%s2371 + $0xdc] sm:$0xf]
  %v2428 = vld [vmem:[%s2371 + $0xe0] sm:$0xf]
  %v2429 = vld [vmem:[%s2371 + $0xe4] sm:$0xf]
  %v2430 = vld [vmem:[%s2371 + $0xe8] sm:$0xf]
  %v2431 = vld [vmem:[%s2371 + $0xec] sm:$0xf]
  %v2432 = vld [vmem:[%s2371 + $0xf0] sm:$0xf]
  %v2433 = vld [vmem:[%s2371 + $0xf4] sm:$0xf]
  %v2434 = vld [vmem:[%s2371 + $0xf8] sm:$0xf]
  %v2435 = vld [vmem:[%s2371 + $0xfc] sm:$0xf]
  %v2500 = vunpack.c.l.b16 %v2372
  %v2501 = vunpack.c.l.b16 %v2373
  %v2502 = vunpack.c.l.b16 %v2374
  %v2503 = vunpack.c.l.b16 %v2375
  %v2504 = vunpack.c.l.b16 %v2376
  %v2505 = vunpack.c.l.b16 %v2377
  %v2506 = vunpack.c.l.b16 %v2378
  %v2507 = vunpack.c.l.b16 %v2379
  %v2508 = vunpack.c.l.b16 %v2380
  %v2509 = vunpack.c.l.b16 %v2381
  %v2510 = vunpack.c.l.b16 %v2382
  %v2511 = vunpack.c.l.b16 %v2383
  %v2512 = vunpack.c.l.b16 %v2384
  %v2513 = vunpack.c.l.b16 %v2385
  %v2514 = vunpack.c.l.b16 %v2386
  %v2515 = vunpack.c.l.b16 %v2387
  %v2516 = vunpack.c.l.b16 %v2388
  %v2517 = vunpack.c.l.b16 %v2389
  %v2518 = vunpack.c.l.b16 %v2390
  %v2519 = vunpack.c.l.b16 %v2391
  %v2520 = vunpack.c.l.b16 %v2392
  %v2521 = vunpack.c.l.b16 %v2393
  %v2522 = vunpack.c.l.b16 %v2394
  %v2523 = vunpack.c.l.b16 %v2395
  %v2524 = vunpack.c.l.b16 %v2396
  %v2525 = vunpack.c.l.b16 %v2397
  %v2526 = vunpack.c.l.b16 %v2398
  %v2527 = vunpack.c.l.b16 %v2399
  %v2528 = vunpack.c.l.b16 %v2400
  %v2529 = vunpack.c.l.b16 %v2401
  %v2530 = vunpack.c.l.b16 %v2402
  %v2531 = vunpack.c.l.b16 %v2403
  %v2532 = vunpack.c.l.b16 %v2404
  %v2533 = vunpack.c.l.b16 %v2405
  %v2534 = vunpack.c.l.b16 %v2406
  %v2535 = vunpack.c.l.b16 %v2407
  %v2536 = vunpack.c.l.b16 %v2408
  %v2537 = vunpack.c.l.b16 %v2409
  %v2538 = vunpack.c.l.b16 %v2410
  %v2539 = vunpack.c.l.b16 %v2411
  %v2540 = vunpack.c.l.b16 %v2412
  %v2541 = vunpack.c.l.b16 %v2413
  %v2542 = vunpack.c.l.b16 %v2414
  %v2543 = vunpack.c.l.b16 %v2415
  %v2544 = vunpack.c.l.b16 %v2416
  %v2545 = vunpack.c.l.b16 %v2417
  %v2546 = vunpack.c.l.b16 %v2418
  %v2547 = vunpack.c.l.b16 %v2419
  %v2548 = vunpack.c.l.b16 %v2420
  %v2549 = vunpack.c.l.b16 %v2421
  %v2550 = vunpack.c.l.b16 %v2422
  %v2551 = vunpack.c.l.b16 %v2423
  %v2552 = vunpack.c.l.b16 %v2424
  %v2553 = vunpack.c.l.b16 %v2425
  %v2554 = vunpack.c.l.b16 %v2426
  %v2555 = vunpack.c.l.b16 %v2427
  %v2556 = vunpack.c.l.b16 %v2428
  %v2557 = vunpack.c.l.b16 %v2429
  %v2558 = vunpack.c.l.b16 %v2430
  %v2559 = vunpack.c.l.b16 %v2431
  %v2560 = vunpack.c.l.b16 %v2432
  %v2561 = vunpack.c.l.b16 %v2433
  %v2562 = vunpack.c.l.b16 %v2434
  %v2563 = vunpack.c.l.b16 %v2435
  %v2564 = vpack.c.b16 %v2501, %v2500
  %v2565 = vpack.c.b16 %v2503, %v2502
  %v2566 = vpack.c.b16 %v2505, %v2504
  %v2567 = vpack.c.b16 %v2507, %v2506
  %v2568 = vpack.c.b16 %v2509, %v2508
  %v2569 = vpack.c.b16 %v2511, %v2510
  %v2570 = vpack.c.b16 %v2513, %v2512
  %v2571 = vpack.c.b16 %v2515, %v2514
  %v2572 = vpack.c.b16 %v2517, %v2516
  %v2573 = vpack.c.b16 %v2519, %v2518
  %v2574 = vpack.c.b16 %v2521, %v2520
  %v2575 = vpack.c.b16 %v2523, %v2522
  %v2576 = vpack.c.b16 %v2525, %v2524
  %v2577 = vpack.c.b16 %v2527, %v2526
  %v2578 = vpack.c.b16 %v2529, %v2528
  %v2579 = vpack.c.b16 %v2531, %v2530
  %v2580 = vpack.c.b16 %v2533, %v2532
  %v2581 = vpack.c.b16 %v2535, %v2534
  %v2582 = vpack.c.b16 %v2537, %v2536
  %v2583 = vpack.c.b16 %v2539, %v2538
  %v2584 = vpack.c.b16 %v2541, %v2540
  %v2585 = vpack.c.b16 %v2543, %v2542
  %v2586 = vpack.c.b16 %v2545, %v2544
  %v2587 = vpack.c.b16 %v2547, %v2546
  %v2588 = vpack.c.b16 %v2549, %v2548
  %v2589 = vpack.c.b16 %v2551, %v2550
  %v2590 = vpack.c.b16 %v2553, %v2552
  %v2591 = vpack.c.b16 %v2555, %v2554
  %v2592 = vpack.c.b16 %v2557, %v2556
  %v2593 = vpack.c.b16 %v2559, %v2558
  %v2594 = vpack.c.b16 %v2561, %v2560
  %v2595 = vpack.c.b16 %v2563, %v2562
  %2628 = vmatprep.subr.bf16.mxu0 0
  %2629 = vmatpush1.bf16.msra.mxu0 %v333
  %2630 = vmatprep.subr.bf16.mxu0 0
  %2631 = vmatpush1.bf16.msra.mxu0 %v332
  %2632 = vmatprep.subr.bf16.mxu0 0
  %2633 = vmatpush1.bf16.msra.mxu0 %v331
  %2634 = vmatprep.subr.bf16.mxu0 0
  %2635 = vmatpush1.bf16.msra.mxu0 %v330
  %2636 = vmatprep.subr.bf16.mxu0 0
  %2637 = vmatpush1.bf16.msra.mxu0 %v329
  %2638 = vmatprep.subr.bf16.mxu0 0
  %2639 = vmatpush1.bf16.msra.mxu0 %v328
  %2640 = vmatprep.subr.bf16.mxu0 0
  %2641 = vmatpush1.bf16.msra.mxu0 %v327
  %2642 = vmatprep.subr.bf16.mxu0 0
  %2643 = vmatpush1.bf16.msra.mxu0 %v326
  %2644 = vmatprep.subr.bf16.mxu0 0
  %2645 = vmatpush2.bf16.msra.mxu0 0
  %2646 = vmatprep.subr.bf16.mxu0 0
  %2647 = vmatpush2.bf16.msra.mxu0 0
  %2648 = vmatprep.subr.bf16.mxu0 0
  %2649 = vmatpush2.bf16.msra.mxu0 0
  %2650 = vmatprep.subr.bf16.mxu0 0
  %2651 = vmatpush2.bf16.msra.mxu0 0
  %2652 = vmatprep.subr.bf16.mxu0 0
  %2653 = vmatpush2.bf16.msra.mxu0 0
  %2654 = vmatprep.subr.bf16.mxu0 0
  %2655 = vmatpush2.bf16.msra.mxu0 0
  %2656 = vmatprep.subr.bf16.mxu0 0
  %2657 = vmatpush2.bf16.msra.mxu0 0
  %2658 = vmatprep.subr.bf16.mxu0 0
  %2659 = vmatpush2.bf16.msra.mxu0 0
  %2660 = vmatprep.mubr.bf16.mxu0 0
  %2661 = vmatmul.mubr.bf16.gmra.mxu0 %v2564
  %v2662 = vpop.f32.mrf.mxu0
  %v2663 = vadd.f32 %v101, %v2662
  %v2664 = vpop.f32.mrf.mxu0
  %v2665 = vpop.f32.mrf.mxu0
  %v2666 = vadd.f32 %v101, %v2665
  %v2667 = vpop.f32.mrf.mxu0
  %2668 = vmatprep.mubr.bf16.mxu0 0
  %2669 = vmatmul.mubr.bf16.gmra.mxu0 %v2565
  %v2670 = vpop.f32.mrf.mxu0
  %v2671 = vadd.f32 %v101, %v2670
  %v2672 = vpop.f32.mrf.mxu0
  %v2673 = vpop.f32.mrf.mxu0
  %v2674 = vadd.f32 %v101, %v2673
  %v2675 = vpop.f32.mrf.mxu0
  %2676 = vmatprep.mubr.bf16.mxu0 0
  %2677 = vmatmul.mubr.bf16.gmra.mxu0 %v2566
  %v2678 = vpop.f32.mrf.mxu0
  %v2679 = vadd.f32 %v101, %v2678
  %v2680 = vpop.f32.mrf.mxu0
  %v2681 = vpop.f32.mrf.mxu0
  %v2682 = vadd.f32 %v101, %v2681
  %v2683 = vpop.f32.mrf.mxu0
  %2684 = vmatprep.mubr.bf16.mxu0 0
  %2685 = vmatmul.mubr.bf16.gmra.mxu0 %v2567
  %v2686 = vpop.f32.mrf.mxu0
  %v2687 = vadd.f32 %v101, %v2686
  %v2688 = vpop.f32.mrf.mxu0
  %v2689 = vpop.f32.mrf.mxu0
  %v2690 = vadd.f32 %v101, %v2689
  %v2691 = vpop.f32.mrf.mxu0
  %2692 = vmatprep.mubr.bf16.mxu0 0
  %2693 = vmatmul.mubr.bf16.gmra.mxu0 %v2568
  %v2694 = vpop.f32.mrf.mxu0
  %v2695 = vadd.f32 %v101, %v2694
  %v2696 = vpop.f32.mrf.mxu0
  %v2697 = vpop.f32.mrf.mxu0
  %v2698 = vadd.f32 %v101, %v2697
  %v2699 = vpop.f32.mrf.mxu0
  %2700 = vmatprep.mubr.bf16.mxu0 0
  %2701 = vmatmul.mubr.bf16.gmra.mxu0 %v2569
  %v2702 = vpop.f32.mrf.mxu0
  %v2703 = vadd.f32 %v101, %v2702
  %v2704 = vpop.f32.mrf.mxu0
  %v2705 = vpop.f32.mrf.mxu0
  %v2706 = vadd.f32 %v101, %v2705
  %v2707 = vpop.f32.mrf.mxu0
  %2708 = vmatprep.mubr.bf16.mxu0 0
  %2709 = vmatmul.mubr.bf16.gmra.mxu0 %v2570
  %v2710 = vpop.f32.mrf.mxu0
  %v2711 = vadd.f32 %v101, %v2710
  %v2712 = vpop.f32.mrf.mxu0
  %v2713 = vpop.f32.mrf.mxu0
  %v2714 = vadd.f32 %v101, %v2713
  %v2715 = vpop.f32.mrf.mxu0
  %2716 = vmatprep.mubr.bf16.mxu0 0
  %2717 = vmatmul.mubr.bf16.gmra.mxu0 %v2571
  %v2718 = vpop.f32.mrf.mxu0
  %v2719 = vadd.f32 %v101, %v2718
  %v2720 = vpop.f32.mrf.mxu0
  %v2721 = vpop.f32.mrf.mxu0
  %v2722 = vadd.f32 %v101, %v2721
  %v2723 = vpop.f32.mrf.mxu0
  %2724 = vmatprep.mubr.bf16.mxu0 0
  %2725 = vmatmul.mubr.bf16.gmra.mxu0 %v2572
  %v2726 = vpop.f32.mrf.mxu0
  %v2727 = vadd.f32 %v101, %v2726
  %v2728 = vpop.f32.mrf.mxu0
  %v2729 = vpop.f32.mrf.mxu0
  %v2730 = vadd.f32 %v101, %v2729
  %v2731 = vpop.f32.mrf.mxu0
  %2732 = vmatprep.mubr.bf16.mxu0 0
  %2733 = vmatmul.mubr.bf16.gmra.mxu0 %v2573
  %v2734 = vpop.f32.mrf.mxu0
  %v2735 = vadd.f32 %v101, %v2734
  %v2736 = vpop.f32.mrf.mxu0
  %v2737 = vpop.f32.mrf.mxu0
  %v2738 = vadd.f32 %v101, %v2737
  %v2739 = vpop.f32.mrf.mxu0
  %2740 = vmatprep.mubr.bf16.mxu0 0
  %2741 = vmatmul.mubr.bf16.gmra.mxu0 %v2574
  %v2742 = vpop.f32.mrf.mxu0
  %v2743 = vadd.f32 %v101, %v2742
  %v2744 = vpop.f32.mrf.mxu0
  %v2745 = vpop.f32.mrf.mxu0
  %v2746 = vadd.f32 %v101, %v2745
  %v2747 = vpop.f32.mrf.mxu0
  %2748 = vmatprep.mubr.bf16.mxu0 0
  %2749 = vmatmul.mubr.bf16.gmra.mxu0 %v2575
  %v2750 = vpop.f32.mrf.mxu0
  %v2751 = vadd.f32 %v101, %v2750
  %v2752 = vpop.f32.mrf.mxu0
  %v2753 = vpop.f32.mrf.mxu0
  %v2754 = vadd.f32 %v101, %v2753
  %v2755 = vpop.f32.mrf.mxu0
  %2756 = vmatprep.mubr.bf16.mxu0 0
  %2757 = vmatmul.mubr.bf16.gmra.mxu0 %v2576
  %v2758 = vpop.f32.mrf.mxu0
  %v2759 = vadd.f32 %v101, %v2758
  %v2760 = vpop.f32.mrf.mxu0
  %v2761 = vpop.f32.mrf.mxu0
  %v2762 = vadd.f32 %v101, %v2761
  %v2763 = vpop.f32.mrf.mxu0
  %2764 = vmatprep.mubr.bf16.mxu0 0
  %2765 = vmatmul.mubr.bf16.gmra.mxu0 %v2577
  %v2766 = vpop.f32.mrf.mxu0
  %v2767 = vadd.f32 %v101, %v2766
  %v2768 = vpop.f32.mrf.mxu0
  %v2769 = vpop.f32.mrf.mxu0
  %v2770 = vadd.f32 %v101, %v2769
  %v2771 = vpop.f32.mrf.mxu0
  %2772 = vmatprep.mubr.bf16.mxu0 0
  %2773 = vmatmul.mubr.bf16.gmra.mxu0 %v2578
  %v2774 = vpop.f32.mrf.mxu0
  %v2775 = vadd.f32 %v101, %v2774
  %v2776 = vpop.f32.mrf.mxu0
  %v2777 = vpop.f32.mrf.mxu0
  %v2778 = vadd.f32 %v101, %v2777
  %v2779 = vpop.f32.mrf.mxu0
  %2780 = vmatprep.mubr.bf16.mxu0 0
  %2781 = vmatmul.mubr.bf16.gmra.mxu0 %v2579
  %v2782 = vpop.f32.mrf.mxu0
  %v2783 = vadd.f32 %v101, %v2782
  %v2784 = vpop.f32.mrf.mxu0
  %v2785 = vpop.f32.mrf.mxu0
  %v2786 = vadd.f32 %v101, %v2785
  %v2787 = vpop.f32.mrf.mxu0
  %2788 = vmatprep.mubr.bf16.mxu0 0
  %2789 = vmatmul.mubr.bf16.gmra.mxu0 %v2580
  %v2790 = vpop.f32.mrf.mxu0
  %v2791 = vadd.f32 %v101, %v2790
  %v2792 = vpop.f32.mrf.mxu0
  %v2793 = vpop.f32.mrf.mxu0
  %v2794 = vadd.f32 %v101, %v2793
  %v2795 = vpop.f32.mrf.mxu0
  %2796 = vmatprep.mubr.bf16.mxu0 0
  %2797 = vmatmul.mubr.bf16.gmra.mxu0 %v2581
  %v2798 = vpop.f32.mrf.mxu0
  %v2799 = vadd.f32 %v101, %v2798
  %v2800 = vpop.f32.mrf.mxu0
  %v2801 = vpop.f32.mrf.mxu0
  %v2802 = vadd.f32 %v101, %v2801
  %v2803 = vpop.f32.mrf.mxu0
  %2804 = vmatprep.mubr.bf16.mxu0 0
  %2805 = vmatmul.mubr.bf16.gmra.mxu0 %v2582
  %v2806 = vpop.f32.mrf.mxu0
  %v2807 = vadd.f32 %v101, %v2806
  %v2808 = vpop.f32.mrf.mxu0
  %v2809 = vpop.f32.mrf.mxu0
  %v2810 = vadd.f32 %v101, %v2809
  %v2811 = vpop.f32.mrf.mxu0
  %2812 = vmatprep.mubr.bf16.mxu0 0
  %2813 = vmatmul.mubr.bf16.gmra.mxu0 %v2583
  %v2814 = vpop.f32.mrf.mxu0
  %v2815 = vadd.f32 %v101, %v2814
  %v2816 = vpop.f32.mrf.mxu0
  %v2817 = vpop.f32.mrf.mxu0
  %v2818 = vadd.f32 %v101, %v2817
  %v2819 = vpop.f32.mrf.mxu0
  %2820 = vmatprep.mubr.bf16.mxu0 0
  %2821 = vmatmul.mubr.bf16.gmra.mxu0 %v2584
  %v2822 = vpop.f32.mrf.mxu0
  %v2823 = vadd.f32 %v101, %v2822
  %v2824 = vpop.f32.mrf.mxu0
  %v2825 = vpop.f32.mrf.mxu0
  %v2826 = vadd.f32 %v101, %v2825
  %v2827 = vpop.f32.mrf.mxu0
  %2828 = vmatprep.mubr.bf16.mxu0 0
  %2829 = vmatmul.mubr.bf16.gmra.mxu0 %v2585
  %v2830 = vpop.f32.mrf.mxu0
  %v2831 = vadd.f32 %v101, %v2830
  %v2832 = vpop.f32.mrf.mxu0
  %v2833 = vpop.f32.mrf.mxu0
  %v2834 = vadd.f32 %v101, %v2833
  %v2835 = vpop.f32.mrf.mxu0
  %2836 = vmatprep.mubr.bf16.mxu0 0
  %2837 = vmatmul.mubr.bf16.gmra.mxu0 %v2586
  %v2838 = vpop.f32.mrf.mxu0
  %v2839 = vadd.f32 %v101, %v2838
  %v2840 = vpop.f32.mrf.mxu0
  %v2841 = vpop.f32.mrf.mxu0
  %v2842 = vadd.f32 %v101, %v2841
  %v2843 = vpop.f32.mrf.mxu0
  %2844 = vmatprep.mubr.bf16.mxu0 0
  %2845 = vmatmul.mubr.bf16.gmra.mxu0 %v2587
  %v2846 = vpop.f32.mrf.mxu0
  %v2847 = vadd.f32 %v101, %v2846
  %v2848 = vpop.f32.mrf.mxu0
  %v2849 = vpop.f32.mrf.mxu0
  %v2850 = vadd.f32 %v101, %v2849
  %v2851 = vpop.f32.mrf.mxu0
  %2852 = vmatprep.mubr.bf16.mxu0 0
  %2853 = vmatmul.mubr.bf16.gmra.mxu0 %v2588
  %v2854 = vpop.f32.mrf.mxu0
  %v2855 = vadd.f32 %v101, %v2854
  %v2856 = vpop.f32.mrf.mxu0
  %v2857 = vpop.f32.mrf.mxu0
  %v2858 = vadd.f32 %v101, %v2857
  %v2859 = vpop.f32.mrf.mxu0
  %2860 = vmatprep.mubr.bf16.mxu0 0
  %2861 = vmatmul.mubr.bf16.gmra.mxu0 %v2589
  %v2862 = vpop.f32.mrf.mxu0
  %v2863 = vadd.f32 %v101, %v2862
  %v2864 = vpop.f32.mrf.mxu0
  %v2865 = vpop.f32.mrf.mxu0
  %v2866 = vadd.f32 %v101, %v2865
  %v2867 = vpop.f32.mrf.mxu0
  %2868 = vmatprep.mubr.bf16.mxu0 0
  %2869 = vmatmul.mubr.bf16.gmra.mxu0 %v2590
  %v2870 = vpop.f32.mrf.mxu0
  %v2871 = vadd.f32 %v101, %v2870
  %v2872 = vpop.f32.mrf.mxu0
  %v2873 = vpop.f32.mrf.mxu0
  %v2874 = vadd.f32 %v101, %v2873
  %v2875 = vpop.f32.mrf.mxu0
  %2876 = vmatprep.mubr.bf16.mxu0 0
  %2877 = vmatmul.mubr.bf16.gmra.mxu0 %v2591
  %v2878 = vpop.f32.mrf.mxu0
  %v2879 = vadd.f32 %v101, %v2878
  %v2880 = vpop.f32.mrf.mxu0
  %v2881 = vpop.f32.mrf.mxu0
  %v2882 = vadd.f32 %v101, %v2881
  %v2883 = vpop.f32.mrf.mxu0
  %2884 = vmatprep.mubr.bf16.mxu0 0
  %2885 = vmatmul.mubr.bf16.gmra.mxu0 %v2592
  %v2886 = vpop.f32.mrf.mxu0
  %v2887 = vadd.f32 %v101, %v2886
  %v2888 = vpop.f32.mrf.mxu0
  %v2889 = vpop.f32.mrf.mxu0
  %v2890 = vadd.f32 %v101, %v2889
  %v2891 = vpop.f32.mrf.mxu0
  %2892 = vmatprep.mubr.bf16.mxu0 0
  %2893 = vmatmul.mubr.bf16.gmra.mxu0 %v2593
  %v2894 = vpop.f32.mrf.mxu0
  %v2895 = vadd.f32 %v101, %v2894
  %v2896 = vpop.f32.mrf.mxu0
  %v2897 = vpop.f32.mrf.mxu0
  %v2898 = vadd.f32 %v101, %v2897
  %v2899 = vpop.f32.mrf.mxu0
  %2900 = vmatprep.mubr.bf16.mxu0 0
  %2901 = vmatmul.mubr.bf16.gmra.mxu0 %v2594
  %v2902 = vpop.f32.mrf.mxu0
  %v2903 = vadd.f32 %v101, %v2902
  %v2904 = vpop.f32.mrf.mxu0
  %v2905 = vpop.f32.mrf.mxu0
  %v2906 = vadd.f32 %v101, %v2905
  %v2907 = vpop.f32.mrf.mxu0
  %2908 = vmatprep.mubr.bf16.mxu0 0
  %2909 = vmatmul.mubr.bf16.gmra.mxu0 %v2595
  %v2910 = vpop.f32.mrf.mxu0
  %v2911 = vadd.f32 %v101, %v2910
  %v2912 = vpop.f32.mrf.mxu0
  %v2913 = vpop.f32.mrf.mxu0
  %v2914 = vadd.f32 %v101, %v2913
  %v2915 = vpop.f32.mrf.mxu0
  %2916 = vdwg.mxu0
  %v2917 = vmax.f32 %v2663, 0.0
  %v2918 = vmax.f32 %v2666, 0.0
  %v2919 = vmax.f32 %v2671, 0.0
  %v2920 = vmax.f32 %v2674, 0.0
  %v2921 = vmax.f32 %v2679, 0.0
  %v2922 = vmax.f32 %v2682, 0.0
  %v2923 = vmax.f32 %v2687, 0.0
  %v2924 = vmax.f32 %v2690, 0.0
  %v2925 = vmax.f32 %v2695, 0.0
  %v2926 = vmax.f32 %v2698, 0.0
  %v2927 = vmax.f32 %v2703, 0.0
  %v2928 = vmax.f32 %v2706, 0.0
  %v2929 = vmax.f32 %v2711, 0.0
  %v2930 = vmax.f32 %v2714, 0.0
  %v2931 = vmax.f32 %v2719, 0.0
  %v2932 = vmax.f32 %v2722, 0.0
  %v2933 = vmax.f32 %v2727, 0.0
  %v2934 = vmax.f32 %v2730, 0.0
  %v2935 = vmax.f32 %v2735, 0.0
  %v2936 = vmax.f32 %v2738, 0.0
  %v2937 = vmax.f32 %v2743, 0.0
  %v2938 = vmax.f32 %v2746, 0.0
  %v2939 = vmax.f32 %v2751, 0.0
  %v2940 = vmax.f32 %v2754, 0.0
  %v2941 = vmax.f32 %v2759, 0.0
  %v2942 = vmax.f32 %v2762, 0.0
  %v2943 = vmax.f32 %v2767, 0.0
  %v2944 = vmax.f32 %v2770, 0.0
  %v2945 = vmax.f32 %v2775, 0.0
  %v2946 = vmax.f32 %v2778, 0.0
  %v2947 = vmax.f32 %v2783, 0.0
  %v2948 = vmax.f32 %v2786, 0.0
  %v2949 = vmax.f32 %v2791, 0.0
  %v2950 = vmax.f32 %v2794, 0.0
  %v2951 = vmax.f32 %v2799, 0.0
  %v2952 = vmax.f32 %v2802, 0.0
  %v2953 = vmax.f32 %v2807, 0.0
  %v2954 = vmax.f32 %v2810, 0.0
  %v2955 = vmax.f32 %v2815, 0.0
  %v2956 = vmax.f32 %v2818, 0.0
  %v2957 = vmax.f32 %v2823, 0.0
  %v2958 = vmax.f32 %v2826, 0.0
  %v2959 = vmax.f32 %v2831, 0.0
  %v2960 = vmax.f32 %v2834, 0.0
  %v2961 = vmax.f32 %v2839, 0.0
  %v2962 = vmax.f32 %v2842, 0.0
  %v2963 = vmax.f32 %v2847, 0.0
  %v2964 = vmax.f32 %v2850, 0.0
  %v2965 = vmax.f32 %v2855, 0.0
  %v2966 = vmax.f32 %v2858, 0.0
  %v2967 = vmax.f32 %v2863, 0.0
  %v2968 = vmax.f32 %v2866, 0.0
  %v2969 = vmax.f32 %v2871, 0.0
  %v2970 = vmax.f32 %v2874, 0.0
  %v2971 = vmax.f32 %v2879, 0.0
  %v2972 = vmax.f32 %v2882, 0.0
  %v2973 = vmax.f32 %v2887, 0.0
  %v2974 = vmax.f32 %v2890, 0.0
  %v2975 = vmax.f32 %v2895, 0.0
  %v2976 = vmax.f32 %v2898, 0.0
  %v2977 = vmax.f32 %v2903, 0.0
  %v2978 = vmax.f32 %v2906, 0.0
  %v2979 = vmax.f32 %v2911, 0.0
  %v2980 = vmax.f32 %v2914, 0.0
  %v2981 = vmul.f32 %v2917, %v698
  %v2982 = vmul.f32 %v2918, %v698
  %v2983 = vmul.f32 %v2919, %v698
  %v2984 = vmul.f32 %v2920, %v698
  %v2985 = vmul.f32 %v2921, %v698
  %v2986 = vmul.f32 %v2922, %v698
  %v2987 = vmul.f32 %v2923, %v698
  %v2988 = vmul.f32 %v2924, %v698
  %v2989 = vmul.f32 %v2925, %v698
  %v2990 = vmul.f32 %v2926, %v698
  %v2991 = vmul.f32 %v2927, %v698
  %v2992 = vmul.f32 %v2928, %v698
  %v2993 = vmul.f32 %v2929, %v698
  %v2994 = vmul.f32 %v2930, %v698
  %v2995 = vmul.f32 %v2931, %v698
  %v2996 = vmul.f32 %v2932, %v698
  %v2997 = vmul.f32 %v2933, %v698
  %v2998 = vmul.f32 %v2934, %v698
  %v2999 = vmul.f32 %v2935, %v698
  %v3000 = vmul.f32 %v2936, %v698
  %v3001 = vmul.f32 %v2937, %v698
  %v3002 = vmul.f32 %v2938, %v698
  %v3003 = vmul.f32 %v2939, %v698
  %v3004 = vmul.f32 %v2940, %v698
  %v3005 = vmul.f32 %v2941, %v698
  %v3006 = vmul.f32 %v2942, %v698
  %v3007 = vmul.f32 %v2943, %v698
  %v3008 = vmul.f32 %v2944, %v698
  %v3009 = vmul.f32 %v2945, %v698
  %v3010 = vmul.f32 %v2946, %v698
  %v3011 = vmul.f32 %v2947, %v698
  %v3012 = vmul.f32 %v2948, %v698
  %v3013 = vmul.f32 %v2949, %v698
  %v3014 = vmul.f32 %v2950, %v698
  %v3015 = vmul.f32 %v2951, %v698
  %v3016 = vmul.f32 %v2952, %v698
  %v3017 = vmul.f32 %v2953, %v698
  %v3018 = vmul.f32 %v2954, %v698
  %v3019 = vmul.f32 %v2955, %v698
  %v3020 = vmul.f32 %v2956, %v698
  %v3021 = vmul.f32 %v2957, %v698
  %v3022 = vmul.f32 %v2958, %v698
  %v3023 = vmul.f32 %v2959, %v698
  %v3024 = vmul.f32 %v2960, %v698
  %v3025 = vmul.f32 %v2961, %v698
  %v3026 = vmul.f32 %v2962, %v698
  %v3027 = vmul.f32 %v2963, %v698
  %v3028 = vmul.f32 %v2964, %v698
  %v3029 = vmul.f32 %v2965, %v698
  %v3030 = vmul.f32 %v2966, %v698
  %v3031 = vmul.f32 %v2967, %v698
  %v3032 = vmul.f32 %v2968, %v698
  %v3033 = vmul.f32 %v2969, %v698
  %v3034 = vmul.f32 %v2970, %v698
  %v3035 = vmul.f32 %v2971, %v698
  %v3036 = vmul.f32 %v2972, %v698
  %v3037 = vmul.f32 %v2973, %v698
  %v3038 = vmul.f32 %v2974, %v698
  %v3039 = vmul.f32 %v2975, %v698
  %v3040 = vmul.f32 %v2976, %v698
  %v3041 = vmul.f32 %v2977, %v698
  %v3042 = vmul.f32 %v2978, %v698
  %v3043 = vmul.f32 %v2979, %v698
  %v3044 = vmul.f32 %v2980, %v698
  %v3045 = vadd.f32 %v2981, %v766
  %v3046 = vadd.f32 %v2982, %v766
  %v3047 = vadd.f32 %v2983, %v766
  %v3048 = vadd.f32 %v2984, %v766
  %v3049 = vadd.f32 %v2985, %v766
  %v3050 = vadd.f32 %v2986, %v766
  %v3051 = vadd.f32 %v2987, %v766
  %v3052 = vadd.f32 %v2988, %v766
  %v3053 = vadd.f32 %v2989, %v766
  %v3054 = vadd.f32 %v2990, %v766
  %v3055 = vadd.f32 %v2991, %v766
  %v3056 = vadd.f32 %v2992, %v766
  %v3057 = vadd.f32 %v2993, %v766
  %v3058 = vadd.f32 %v2994, %v766
  %v3059 = vadd.f32 %v2995, %v766
  %v3060 = vadd.f32 %v2996, %v766
  %v3061 = vadd.f32 %v2997, %v766
  %v3062 = vadd.f32 %v2998, %v766
  %v3063 = vadd.f32 %v2999, %v766
  %v3064 = vadd.f32 %v3000, %v766
  %v3065 = vadd.f32 %v3001, %v766
  %v3066 = vadd.f32 %v3002, %v766
  %v3067 = vadd.f32 %v3003, %v766
  %v3068 = vadd.f32 %v3004, %v766
  %v3069 = vadd.f32 %v3005, %v766
  %v3070 = vadd.f32 %v3006, %v766
  %v3071 = vadd.f32 %v3007, %v766
  %v3072 = vadd.f32 %v3008, %v766
  %v3073 = vadd.f32 %v3009, %v766
  %v3074 = vadd.f32 %v3010, %v766
  %v3075 = vadd.f32 %v3011, %v766
  %v3076 = vadd.f32 %v3012, %v766
  %v3077 = vadd.f32 %v3013, %v766
  %v3078 = vadd.f32 %v3014, %v766
  %v3079 = vadd.f32 %v3015, %v766
  %v3080 = vadd.f32 %v3016, %v766
  %v3081 = vadd.f32 %v3017, %v766
  %v3082 = vadd.f32 %v3018, %v766
  %v3083 = vadd.f32 %v3019, %v766
  %v3084 = vadd.f32 %v3020, %v766
  %v3085 = vadd.f32 %v3021, %v766
  %v3086 = vadd.f32 %v3022, %v766
  %v3087 = vadd.f32 %v3023, %v766
  %v3088 = vadd.f32 %v3024, %v766
  %v3089 = vadd.f32 %v3025, %v766
  %v3090 = vadd.f32 %v3026, %v766
  %v3091 = vadd.f32 %v3027, %v766
  %v3092 = vadd.f32 %v3028, %v766
  %v3093 = vadd.f32 %v3029, %v766
  %v3094 = vadd.f32 %v3030, %v766
  %v3095 = vadd.f32 %v3031, %v766
  %v3096 = vadd.f32 %v3032, %v766
  %v3097 = vadd.f32 %v3033, %v766
  %v3098 = vadd.f32 %v3034, %v766
  %v3099 = vadd.f32 %v3035, %v766
  %v3100 = vadd.f32 %v3036, %v766
  %v3101 = vadd.f32 %v3037, %v766
  %v3102 = vadd.f32 %v3038, %v766
  %v3103 = vadd.f32 %v3039, %v766
  %v3104 = vadd.f32 %v3040, %v766
  %v3105 = vadd.f32 %v3041, %v766
  %v3106 = vadd.f32 %v3042, %v766
  %v3107 = vadd.f32 %v3043, %v766
  %v3108 = vadd.f32 %v3044, %v766
  %v3109 = vmax.f32 %v2307, %v3045
  %v3110 = vmax.f32 %v2308, %v3046
  %v3111 = vmax.f32 %v2309, %v3047
  %v3112 = vmax.f32 %v2310, %v3048
  %v3113 = vmax.f32 %v2311, %v3049
  %v3114 = vmax.f32 %v2312, %v3050
  %v3115 = vmax.f32 %v2313, %v3051
  %v3116 = vmax.f32 %v2314, %v3052
  %v3117 = vmax.f32 %v2315, %v3053
  %v3118 = vmax.f32 %v2316, %v3054
  %v3119 = vmax.f32 %v2317, %v3055
  %v3120 = vmax.f32 %v2318, %v3056
  %v3121 = vmax.f32 %v2319, %v3057
  %v3122 = vmax.f32 %v2320, %v3058
  %v3123 = vmax.f32 %v2321, %v3059
  %v3124 = vmax.f32 %v2322, %v3060
  %v3125 = vmax.f32 %v2323, %v3061
  %v3126 = vmax.f32 %v2324, %v3062
  %v3127 = vmax.f32 %v2325, %v3063
  %v3128 = vmax.f32 %v2326, %v3064
  %v3129 = vmax.f32 %v2327, %v3065
  %v3130 = vmax.f32 %v2328, %v3066
  %v3131 = vmax.f32 %v2329, %v3067
  %v3132 = vmax.f32 %v2330, %v3068
  %v3133 = vmax.f32 %v2331, %v3069
  %v3134 = vmax.f32 %v2332, %v3070
  %v3135 = vmax.f32 %v2333, %v3071
  %v3136 = vmax.f32 %v2334, %v3072
  %v3137 = vmax.f32 %v2335, %v3073
  %v3138 = vmax.f32 %v2336, %v3074
  %v3139 = vmax.f32 %v2337, %v3075
  %v3140 = vmax.f32 %v2338, %v3076
  %v3141 = vmax.f32 %v2339, %v3077
  %v3142 = vmax.f32 %v2340, %v3078
  %v3143 = vmax.f32 %v2341, %v3079
  %v3144 = vmax.f32 %v2342, %v3080
  %v3145 = vmax.f32 %v2343, %v3081
  %v3146 = vmax.f32 %v2344, %v3082
  %v3147 = vmax.f32 %v2345, %v3083
  %v3148 = vmax.f32 %v2346, %v3084
  %v3149 = vmax.f32 %v2347, %v3085
  %v3150 = vmax.f32 %v2348, %v3086
  %v3151 = vmax.f32 %v2349, %v3087
  %v3152 = vmax.f32 %v2350, %v3088
  %v3153 = vmax.f32 %v2351, %v3089
  %v3154 = vmax.f32 %v2352, %v3090
  %v3155 = vmax.f32 %v2353, %v3091
  %v3156 = vmax.f32 %v2354, %v3092
  %v3157 = vmax.f32 %v2355, %v3093
  %v3158 = vmax.f32 %v2356, %v3094
  %v3159 = vmax.f32 %v2357, %v3095
  %v3160 = vmax.f32 %v2358, %v3096
  %v3161 = vmax.f32 %v2359, %v3097
  %v3162 = vmax.f32 %v2360, %v3098
  %v3163 = vmax.f32 %v2361, %v3099
  %v3164 = vmax.f32 %v2362, %v3100
  %v3165 = vmax.f32 %v2363, %v3101
  %v3166 = vmax.f32 %v2364, %v3102
  %v3167 = vmax.f32 %v2365, %v3103
  %v3168 = vmax.f32 %v2366, %v3104
  %v3169 = vmax.f32 %v2367, %v3105
  %v3170 = vmax.f32 %v2368, %v3106
  %v3171 = vmax.f32 %v2369, %v3107
  %v3172 = vmax.f32 %v2370, %v3108
  %v3173 = vmax.f32 %v1569, %v3109
  %v3174 = vmax.f32 %v1570, %v3110
  %v3175 = vmax.f32 %v1571, %v3111
  %v3176 = vmax.f32 %v1572, %v3112
  %v3177 = vmax.f32 %v1573, %v3113
  %v3178 = vmax.f32 %v1574, %v3114
  %v3179 = vmax.f32 %v1575, %v3115
  %v3180 = vmax.f32 %v1576, %v3116
  %v3181 = vmax.f32 %v1577, %v3117
  %v3182 = vmax.f32 %v1578, %v3118
  %v3183 = vmax.f32 %v1579, %v3119
  %v3184 = vmax.f32 %v1580, %v3120
  %v3185 = vmax.f32 %v1581, %v3121
  %v3186 = vmax.f32 %v1582, %v3122
  %v3187 = vmax.f32 %v1583, %v3123
  %v3188 = vmax.f32 %v1584, %v3124
  %v3189 = vmax.f32 %v1585, %v3125
  %v3190 = vmax.f32 %v1586, %v3126
  %v3191 = vmax.f32 %v1587, %v3127
  %v3192 = vmax.f32 %v1588, %v3128
  %v3193 = vmax.f32 %v1589, %v3129
  %v3194 = vmax.f32 %v1590, %v3130
  %v3195 = vmax.f32 %v1591, %v3131
  %v3196 = vmax.f32 %v1592, %v3132
  %v3197 = vmax.f32 %v1593, %v3133
  %v3198 = vmax.f32 %v1594, %v3134
  %v3199 = vmax.f32 %v1595, %v3135
  %v3200 = vmax.f32 %v1596, %v3136
  %v3201 = vmax.f32 %v1597, %v3137
  %v3202 = vmax.f32 %v1598, %v3138
  %v3203 = vmax.f32 %v1599, %v3139
  %v3204 = vmax.f32 %v1600, %v3140
  %v3205 = vmax.f32 %v1601, %v3141
  %v3206 = vmax.f32 %v1602, %v3142
  %v3207 = vmax.f32 %v1603, %v3143
  %v3208 = vmax.f32 %v1604, %v3144
  %v3209 = vmax.f32 %v1605, %v3145
  %v3210 = vmax.f32 %v1606, %v3146
  %v3211 = vmax.f32 %v1607, %v3147
  %v3212 = vmax.f32 %v1608, %v3148
  %v3213 = vmax.f32 %v1609, %v3149
  %v3214 = vmax.f32 %v1610, %v3150
  %v3215 = vmax.f32 %v1611, %v3151
  %v3216 = vmax.f32 %v1612, %v3152
  %v3217 = vmax.f32 %v1613, %v3153
  %v3218 = vmax.f32 %v1614, %v3154
  %v3219 = vmax.f32 %v1615, %v3155
  %v3220 = vmax.f32 %v1616, %v3156
  %v3221 = vmax.f32 %v1617, %v3157
  %v3222 = vmax.f32 %v1618, %v3158
  %v3223 = vmax.f32 %v1619, %v3159
  %v3224 = vmax.f32 %v1620, %v3160
  %v3225 = vmax.f32 %v1621, %v3161
  %v3226 = vmax.f32 %v1622, %v3162
  %v3227 = vmax.f32 %v1623, %v3163
  %v3228 = vmax.f32 %v1624, %v3164
  %v3229 = vmax.f32 %v1625, %v3165
  %v3230 = vmax.f32 %v1626, %v3166
  %v3231 = vmax.f32 %v1627, %v3167
  %v3232 = vmax.f32 %v1628, %v3168
  %v3233 = vmax.f32 %v1629, %v3169
  %v3234 = vmax.f32 %v1630, %v3170
  %v3235 = vmax.f32 %v1631, %v3171
  %v3236 = vmax.f32 %v1632, %v3172
  %v3237 = vpack.c.bf16 %v3174, %v3173
  %v3238 = vpack.c.bf16 %v3176, %v3175
  %v3239 = vpack.c.bf16 %v3178, %v3177
  %v3240 = vpack.c.bf16 %v3180, %v3179
  %v3241 = vpack.c.bf16 %v3182, %v3181
  %v3242 = vpack.c.bf16 %v3184, %v3183
  %v3243 = vpack.c.bf16 %v3186, %v3185
  %v3244 = vpack.c.bf16 %v3188, %v3187
  %v3245 = vpack.c.bf16 %v3190, %v3189
  %v3246 = vpack.c.bf16 %v3192, %v3191
  %v3247 = vpack.c.bf16 %v3194, %v3193
  %v3248 = vpack.c.bf16 %v3196, %v3195
  %v3249 = vpack.c.bf16 %v3198, %v3197
  %v3250 = vpack.c.bf16 %v3200, %v3199
  %v3251 = vpack.c.bf16 %v3202, %v3201
  %v3252 = vpack.c.bf16 %v3204, %v3203
  %v3253 = vpack.c.bf16 %v3206, %v3205
  %v3254 = vpack.c.bf16 %v3208, %v3207
  %v3255 = vpack.c.bf16 %v3210, %v3209
  %v3256 = vpack.c.bf16 %v3212, %v3211
  %v3257 = vpack.c.bf16 %v3214, %v3213
  %v3258 = vpack.c.bf16 %v3216, %v3215
  %v3259 = vpack.c.bf16 %v3218, %v3217
  %v3260 = vpack.c.bf16 %v3220, %v3219
  %v3261 = vpack.c.bf16 %v3222, %v3221
  %v3262 = vpack.c.bf16 %v3224, %v3223
  %v3263 = vpack.c.bf16 %v3226, %v3225
  %v3264 = vpack.c.bf16 %v3228, %v3227
  %v3265 = vpack.c.bf16 %v3230, %v3229
  %v3266 = vpack.c.bf16 %v3232, %v3231
  %v3267 = vpack.c.bf16 %v3234, %v3233
  %v3268 = vpack.c.bf16 %v3236, %v3235
  %v3301 = vunpack.c.l.b16 %v3237
  %v3302 = vunpack.c.h.b16 %v3237
  %v3303 = vunpack.c.l.b16 %v3238
  %v3304 = vunpack.c.h.b16 %v3238
  %v3305 = vunpack.c.l.b16 %v3239
  %v3306 = vunpack.c.h.b16 %v3239
  %v3307 = vunpack.c.l.b16 %v3240
  %v3308 = vunpack.c.h.b16 %v3240
  %v3309 = vunpack.c.l.b16 %v3241
  %v3310 = vunpack.c.h.b16 %v3241
  %v3311 = vunpack.c.l.b16 %v3242
  %v3312 = vunpack.c.h.b16 %v3242
  %v3313 = vunpack.c.l.b16 %v3243
  %v3314 = vunpack.c.h.b16 %v3243
  %v3315 = vunpack.c.l.b16 %v3244
  %v3316 = vunpack.c.h.b16 %v3244
  %v3317 = vunpack.c.l.b16 %v3245
  %v3318 = vunpack.c.h.b16 %v3245
  %v3319 = vunpack.c.l.b16 %v3246
  %v3320 = vunpack.c.h.b16 %v3246
  %v3321 = vunpack.c.l.b16 %v3247
  %v3322 = vunpack.c.h.b16 %v3247
  %v3323 = vunpack.c.l.b16 %v3248
  %v3324 = vunpack.c.h.b16 %v3248
  %v3325 = vunpack.c.l.b16 %v3249
  %v3326 = vunpack.c.h.b16 %v3249
  %v3327 = vunpack.c.l.b16 %v3250
  %v3328 = vunpack.c.h.b16 %v3250
  %v3329 = vunpack.c.l.b16 %v3251
  %v3330 = vunpack.c.h.b16 %v3251
  %v3331 = vunpack.c.l.b16 %v3252
  %v3332 = vunpack.c.h.b16 %v3252
  %v3333 = vunpack.c.l.b16 %v3253
  %v3334 = vunpack.c.h.b16 %v3253
  %v3335 = vunpack.c.l.b16 %v3254
  %v3336 = vunpack.c.h.b16 %v3254
  %v3337 = vunpack.c.l.b16 %v3255
  %v3338 = vunpack.c.h.b16 %v3255
  %v3339 = vunpack.c.l.b16 %v3256
  %v3340 = vunpack.c.h.b16 %v3256
  %v3341 = vunpack.c.l.b16 %v3257
  %v3342 = vunpack.c.h.b16 %v3257
  %v3343 = vunpack.c.l.b16 %v3258
  %v3344 = vunpack.c.h.b16 %v3258
  %v3345 = vunpack.c.l.b16 %v3259
  %v3346 = vunpack.c.h.b16 %v3259
  %v3347 = vunpack.c.l.b16 %v3260
  %v3348 = vunpack.c.h.b16 %v3260
  %v3349 = vunpack.c.l.b16 %v3261
  %v3350 = vunpack.c.h.b16 %v3261
  %v3351 = vunpack.c.l.b16 %v3262
  %v3352 = vunpack.c.h.b16 %v3262
  %v3353 = vunpack.c.l.b16 %v3263
  %v3354 = vunpack.c.h.b16 %v3263
  %v3355 = vunpack.c.l.b16 %v3264
  %v3356 = vunpack.c.h.b16 %v3264
  %v3357 = vunpack.c.l.b16 %v3265
  %v3358 = vunpack.c.h.b16 %v3265
  %v3359 = vunpack.c.l.b16 %v3266
  %v3360 = vunpack.c.h.b16 %v3266
  %v3361 = vunpack.c.l.b16 %v3267
  %v3362 = vunpack.c.h.b16 %v3267
  %v3363 = vunpack.c.l.b16 %v3268
  %v3364 = vunpack.c.h.b16 %v3268
  %v3365 = vpack.c.b16 %v3301, %v3301
  %v3366 = vpack.c.b16 %v3302, %v3302
  %v3367 = vpack.c.b16 %v3303, %v3303
  %v3368 = vpack.c.b16 %v3304, %v3304
  %v3369 = vpack.c.b16 %v3305, %v3305
  %v3370 = vpack.c.b16 %v3306, %v3306
  %v3371 = vpack.c.b16 %v3307, %v3307
  %v3372 = vpack.c.b16 %v3308, %v3308
  %v3373 = vpack.c.b16 %v3309, %v3309
  %v3374 = vpack.c.b16 %v3310, %v3310
  %v3375 = vpack.c.b16 %v3311, %v3311
  %v3376 = vpack.c.b16 %v3312, %v3312
  %v3377 = vpack.c.b16 %v3313, %v3313
  %v3378 = vpack.c.b16 %v3314, %v3314
  %v3379 = vpack.c.b16 %v3315, %v3315
  %v3380 = vpack.c.b16 %v3316, %v3316
  %v3381 = vpack.c.b16 %v3317, %v3317
  %v3382 = vpack.c.b16 %v3318, %v3318
  %v3383 = vpack.c.b16 %v3319, %v3319
  %v3384 = vpack.c.b16 %v3320, %v3320
  %v3385 = vpack.c.b16 %v3321, %v3321
  %v3386 = vpack.c.b16 %v3322, %v3322
  %v3387 = vpack.c.b16 %v3323, %v3323
  %v3388 = vpack.c.b16 %v3324, %v3324
  %v3389 = vpack.c.b16 %v3325, %v3325
  %v3390 = vpack.c.b16 %v3326, %v3326
  %v3391 = vpack.c.b16 %v3327, %v3327
  %v3392 = vpack.c.b16 %v3328, %v3328
  %v3393 = vpack.c.b16 %v3329, %v3329
  %v3394 = vpack.c.b16 %v3330, %v3330
  %v3395 = vpack.c.b16 %v3331, %v3331
  %v3396 = vpack.c.b16 %v3332, %v3332
  %v3397 = vpack.c.b16 %v3333, %v3333
  %v3398 = vpack.c.b16 %v3334, %v3334
  %v3399 = vpack.c.b16 %v3335, %v3335
  %v3400 = vpack.c.b16 %v3336, %v3336
  %v3401 = vpack.c.b16 %v3337, %v3337
  %v3402 = vpack.c.b16 %v3338, %v3338
  %v3403 = vpack.c.b16 %v3339, %v3339
  %v3404 = vpack.c.b16 %v3340, %v3340
  %v3405 = vpack.c.b16 %v3341, %v3341
  %v3406 = vpack.c.b16 %v3342, %v3342
  %v3407 = vpack.c.b16 %v3343, %v3343
  %v3408 = vpack.c.b16 %v3344, %v3344
  %v3409 = vpack.c.b16 %v3345, %v3345
  %v3410 = vpack.c.b16 %v3346, %v3346
  %v3411 = vpack.c.b16 %v3347, %v3347
  %v3412 = vpack.c.b16 %v3348, %v3348
  %v3413 = vpack.c.b16 %v3349, %v3349
  %v3414 = vpack.c.b16 %v3350, %v3350
  %v3415 = vpack.c.b16 %v3351, %v3351
  %v3416 = vpack.c.b16 %v3352, %v3352
  %v3417 = vpack.c.b16 %v3353, %v3353
  %v3418 = vpack.c.b16 %v3354, %v3354
  %v3419 = vpack.c.b16 %v3355, %v3355
  %v3420 = vpack.c.b16 %v3356, %v3356
  %v3421 = vpack.c.b16 %v3357, %v3357
  %v3422 = vpack.c.b16 %v3358, %v3358
  %v3423 = vpack.c.b16 %v3359, %v3359
  %v3424 = vpack.c.b16 %v3360, %v3360
  %v3425 = vpack.c.b16 %v3361, %v3361
  %v3426 = vpack.c.b16 %v3362, %v3362
  %v3427 = vpack.c.b16 %v3363, %v3363
  %v3428 = vpack.c.b16 %v3364, %v3364
  %3493 = vst [vmem:[%s3] sm:$0xf] %v3365
  %3494 = vst [vmem:[%s3 + $0x4] sm:$0xf] %v3366
  %3495 = vst [vmem:[%s3 + $0x8] sm:$0xf] %v3367
  %3496 = vst [vmem:[%s3 + $0xc] sm:$0xf] %v3368
  %3497 = vst [vmem:[%s3 + $0x10] sm:$0xf] %v3369
  %3498 = vst [vmem:[%s3 + $0x14] sm:$0xf] %v3370
  %3499 = vst [vmem:[%s3 + $0x18] sm:$0xf] %v3371
  %3500 = vst [vmem:[%s3 + $0x1c] sm:$0xf] %v3372
  %3501 = vst [vmem:[%s3 + $0x20] sm:$0xf] %v3373
  %3502 = vst [vmem:[%s3 + $0x24] sm:$0xf] %v3374
  %3503 = vst [vmem:[%s3 + $0x28] sm:$0xf] %v3375
  %3504 = vst [vmem:[%s3 + $0x2c] sm:$0xf] %v3376
  %3505 = vst [vmem:[%s3 + $0x30] sm:$0xf] %v3377
  %3506 = vst [vmem:[%s3 + $0x34] sm:$0xf] %v3378
  %3507 = vst [vmem:[%s3 + $0x38] sm:$0xf] %v3379
  %3508 = vst [vmem:[%s3 + $0x3c] sm:$0xf] %v3380
  %3509 = vst [vmem:[%s3 + $0x40] sm:$0xf] %v3381
  %3510 = vst [vmem:[%s3 + $0x44] sm:$0xf] %v3382
  %3511 = vst [vmem:[%s3 + $0x48] sm:$0xf] %v3383
  %3512 = vst [vmem:[%s3 + $0x4c] sm:$0xf] %v3384
  %3513 = vst [vmem:[%s3 + $0x50] sm:$0xf] %v3385
  %3514 = vst [vmem:[%s3 + $0x54] sm:$0xf] %v3386
  %3515 = vst [vmem:[%s3 + $0x58] sm:$0xf] %v3387
  %3516 = vst [vmem:[%s3 + $0x5c] sm:$0xf] %v3388
  %3517 = vst [vmem:[%s3 + $0x60] sm:$0xf] %v3389
  %3518 = vst [vmem:[%s3 + $0x64] sm:$0xf] %v3390
  %3519 = vst [vmem:[%s3 + $0x68] sm:$0xf] %v3391
  %3520 = vst [vmem:[%s3 + $0x6c] sm:$0xf] %v3392
  %3521 = vst [vmem:[%s3 + $0x70] sm:$0xf] %v3393
  %3522 = vst [vmem:[%s3 + $0x74] sm:$0xf] %v3394
  %3523 = vst [vmem:[%s3 + $0x78] sm:$0xf] %v3395
  %3524 = vst [vmem:[%s3 + $0x7c] sm:$0xf] %v3396
  %3525 = vst [vmem:[%s3 + $0x80] sm:$0xf] %v3397
  %3526 = vst [vmem:[%s3 + $0x84] sm:$0xf] %v3398
  %3527 = vst [vmem:[%s3 + $0x88] sm:$0xf] %v3399
  %3528 = vst [vmem:[%s3 + $0x8c] sm:$0xf] %v3400
  %3529 = vst [vmem:[%s3 + $0x90] sm:$0xf] %v3401
  %3530 = vst [vmem:[%s3 + $0x94] sm:$0xf] %v3402
  %3531 = vst [vmem:[%s3 + $0x98] sm:$0xf] %v3403
  %3532 = vst [vmem:[%s3 + $0x9c] sm:$0xf] %v3404
  %3533 = vst [vmem:[%s3 + $0xa0] sm:$0xf] %v3405
  %3534 = vst [vmem:[%s3 + $0xa4] sm:$0xf] %v3406
  %3535 = vst [vmem:[%s3 + $0xa8] sm:$0xf] %v3407
  %3536 = vst [vmem:[%s3 + $0xac] sm:$0xf] %v3408
  %3537 = vst [vmem:[%s3 + $0xb0] sm:$0xf] %v3409
  %3538 = vst [vmem:[%s3 + $0xb4] sm:$0xf] %v3410
  %3539 = vst [vmem:[%s3 + $0xb8] sm:$0xf] %v3411
  %3540 = vst [vmem:[%s3 + $0xbc] sm:$0xf] %v3412
  %3541 = vst [vmem:[%s3 + $0xc0] sm:$0xf] %v3413
  %3542 = vst [vmem:[%s3 + $0xc4] sm:$0xf] %v3414
  %3543 = vst [vmem:[%s3 + $0xc8] sm:$0xf] %v3415
  %3544 = vst [vmem:[%s3 + $0xcc] sm:$0xf] %v3416
  %3545 = vst [vmem:[%s3 + $0xd0] sm:$0xf] %v3417
  %3546 = vst [vmem:[%s3 + $0xd4] sm:$0xf] %v3418
  %3547 = vst [vmem:[%s3 + $0xd8] sm:$0xf] %v3419
  %3548 = vst [vmem:[%s3 + $0xdc] sm:$0xf] %v3420
  %3549 = vst [vmem:[%s3 + $0xe0] sm:$0xf] %v3421
  %3550 = vst [vmem:[%s3 + $0xe4] sm:$0xf] %v3422
  %3551 = vst [vmem:[%s3 + $0xe8] sm:$0xf] %v3423
  %3552 = vst [vmem:[%s3 + $0xec] sm:$0xf] %v3424
  %3553 = vst [vmem:[%s3 + $0xf0] sm:$0xf] %v3425
  %3554 = vst [vmem:[%s3 + $0xf4] sm:$0xf] %v3426
  %3555 = vst [vmem:[%s3 + $0xf8] sm:$0xf] %v3427
  %3556 = vst [vmem:[%s3 + $0xfc] sm:$0xf] %v3428
  // Predicated region
  $region14: #{classifier_forward.3} parent=0 // pred_check
    _
  $region15: #{classifier_forward.3} parent=0 // pred_check_branch
    %3558 = sbr.rel (0) target = $region17
  $region16: #{classifier_forward.3} parent=0 // pred_region
    _
  $region17: #{classifier_forward.3} parent=0 // pred_fallthru
    _
  // Predicated region
  $region18: #{classifier_forward.3} parent=0 // pred_check
    _
  $region19: #{classifier_forward.3} parent=0 // pred_check_branch
    %3560 = sbr.rel (0) target = $region21
  $region20: #{classifier_forward.3} parent=0 // pred_region
    _
  $region21: #{classifier_forward.3} parent=0 // pred_fallthru
    _

// kernel: classifier_forward.4
$region0: #{classifier_forward.4}
  #allocation0 [shape = 'u32[]', space=smem, size = 0x4, offset = 0x4, fixed_abs, tag = 'smem constant byte address 0x4 - core index']
  #allocation1 [shape = 'u32[144,128]{1,0:T(1,128)}', space=vmem, size = 0x12000, scoped, tag = 'internal scratch']
  %s0 = inlined_call_operand.vmem [shape: bf16[4,72,512], index: 0, kind: input, shape index: {}]
  %s1 = inlined_call_operand.vmem [shape: bf16[512,128], index: 1, kind: input, shape index: {}]
  %s2 = inlined_call_operand.vmem [shape: f32[3,128], index: 2, kind: input, shape index: {}]
  %s3 = inlined_call_operand.vmem [shape: bf16[72,128], index: 3, kind: output, shape index: {}]
  %s4 = sld [smem:[#allocation0]]
  $region22: #{classifier_forward.4} parent=0
    _
  %s6 = ssub.s32 1, %s4
  %s7 = scalar_select 0, %s6, %s4
  // Predicated region
  $region2: #{classifier_forward.4} parent=0 // pred_check
    _
  $region3: #{classifier_forward.4} parent=0 // pred_check_branch
    %9 = sbr.rel (0) target = $region5
  $region4: #{classifier_forward.4} parent=0 // pred_region
    _
  $region5: #{classifier_forward.4} parent=0 // pred_fallthru
    _
  // Predicated region
  $region6: #{classifier_forward.4} parent=0 // pred_check
    _
  $region7: #{classifier_forward.4} parent=0 // pred_check_branch
    %11 = sbr.rel (0) target = $region9
  $region8: #{classifier_forward.4} parent=0 // pred_region
    _
  $region9: #{classifier_forward.4} parent=0 // pred_fallthru
    _
  // Predicated region
  $region10: #{classifier_forward.4} parent=0 // pred_check
    _
  $region11: #{classifier_forward.4} parent=0 // pred_check_branch
    %13 = sbr.rel (0) target = $region13
  $region12: #{classifier_forward.4} parent=0 // pred_region
    _
  $region13: #{classifier_forward.4} parent=0 // pred_fallthru
    _
  %v15 = vld [vmem:[%s1] sm:$0xf]
  %v16 = vld [vmem:[%s1 + $0x4] sm:$0xf]
  %v17 = vld [vmem:[%s1 + $0x8] sm:$0xf]
  %v18 = vld [vmem:[%s1 + $0xc] sm:$0xf]
  %v19 = vld [vmem:[%s1 + $0x10] sm:$0xf]
  %v20 = vld [vmem:[%s1 + $0x14] sm:$0xf]
  %v21 = vld [vmem:[%s1 + $0x18] sm:$0xf]
  %v22 = vld [vmem:[%s1 + $0x1c] sm:$0xf]
  %v23 = vld [vmem:[%s1 + $0x20] sm:$0xf]
  %v24 = vld [vmem:[%s1 + $0x24] sm:$0xf]
  %v25 = vld [vmem:[%s1 + $0x28] sm:$0xf]
  %v26 = vld [vmem:[%s1 + $0x2c] sm:$0xf]
  %v27 = vld [vmem:[%s1 + $0x30] sm:$0xf]
  %v28 = vld [vmem:[%s1 + $0x34] sm:$0xf]
  %v29 = vld [vmem:[%s1 + $0x38] sm:$0xf]
  %v30 = vld [vmem:[%s1 + $0x3c] sm:$0xf]
  %v31 = vld [vmem:[%s1 + $0x40] sm:$0xf]
  %v32 = vld [vmem:[%s1 + $0x44] sm:$0xf]
  %v33 = vld [vmem:[%s1 + $0x48] sm:$0xf]
  %v34 = vld [vmem:[%s1 + $0x4c] sm:$0xf]
  %v35 = vld [vmem:[%s1 + $0x50] sm:$0xf]
  %v36 = vld [vmem:[%s1 + $0x54] sm:$0xf]
  %v37 = vld [vmem:[%s1 + $0x58] sm:$0xf]
  %v38 = vld [vmem:[%s1 + $0x5c] sm:$0xf]
  %v39 = vld [vmem:[%s1 + $0x60] sm:$0xf]
  %v40 = vld [vmem:[%s1 + $0x64] sm:$0xf]
  %v41 = vld [vmem:[%s1 + $0x68] sm:$0xf]
  %v42 = vld [vmem:[%s1 + $0x6c] sm:$0xf]
  %v43 = vld [vmem:[%s1 + $0x70] sm:$0xf]
  %v44 = vld [vmem:[%s1 + $0x74] sm:$0xf]
  %v45 = vld [vmem:[%s1 + $0x78] sm:$0xf]
  %v46 = vld [vmem:[%s1 + $0x7c] sm:$0xf]
  %v47 = vld [vmem:[%s1 + $0x80] sm:$0xf]
  %v48 = vld [vmem:[%s1 + $0x84] sm:$0xf]
  %v49 = vld [vmem:[%s1 + $0x88] sm:$0xf]
  %v50 = vld [vmem:[%s1 + $0x8c] sm:$0xf]
  %v51 = vld [vmem:[%s1 + $0x90] sm:$0xf]
  %v52 = vld [vmem:[%s1 + $0x94] sm:$0xf]
  %v53 = vld [vmem:[%s1 + $0x98] sm:$0xf]
  %v54 = vld [vmem:[%s1 + $0x9c] sm:$0xf]
  %v55 = vld [vmem:[%s1 + $0xa0] sm:$0xf]
  %v56 = vld [vmem:[%s1 + $0xa4] sm:$0xf]
  %v57 = vld [vmem:[%s1 + $0xa8] sm:$0xf]
  %v58 = vld [vmem:[%s1 + $0xac] sm:$0xf]
  %v59 = vld [vmem:[%s1 + $0xb0] sm:$0xf]
  %v60 = vld [vmem:[%s1 + $0xb4] sm:$0xf]
  %v61 = vld [vmem:[%s1 + $0xb8] sm:$0xf]
  %v62 = vld [vmem:[%s1 + $0xbc] sm:$0xf]
  %v63 = vld [vmem:[%s1 + $0xc0] sm:$0xf]
  %v64 = vld [vmem:[%s1 + $0xc4] sm:$0xf]
  %v65 = vld [vmem:[%s1 + $0xc8] sm:$0xf]
  %v66 = vld [vmem:[%s1 + $0xcc] sm:$0xf]
  %v67 = vld [vmem:[%s1 + $0xd0] sm:$0xf]
  %v68 = vld [vmem:[%s1 + $0xd4] sm:$0xf]
  %v69 = vld [vmem:[%s1 + $0xd8] sm:$0xf]
  %v70 = vld [vmem:[%s1 + $0xdc] sm:$0xf]
  %v71 = vld [vmem:[%s1 + $0xe0] sm:$0xf]
  %v72 = vld [vmem:[%s1 + $0xe4] sm:$0xf]
  %v73 = vld [vmem:[%s1 + $0xe8] sm:$0xf]
  %v74 = vld [vmem:[%s1 + $0xec] sm:$0xf]
  %v75 = vld [vmem:[%s1 + $0xf0] sm:$0xf]
  %v76 = vld [vmem:[%s1 + $0xf4] sm:$0xf]
  %v77 = vld [vmem:[%s1 + $0xf8] sm:$0xf]
  %v78 = vld [vmem:[%s1 + $0xfc] sm:$0xf]
  %v79 = vld [vmem:[%s2] sm:$0x1]
  %v80 = vld [vmem:[%s2 + $0x1] sm:$0x1]
  %v81 = vld [vmem:[%s2 + $0x2] sm:$0x1]
  %v82 = vld [vmem:[%s0] sm:$0xff]
  %v83 = vld [vmem:[%s0 + $0x8] sm:$0xff]
  %v84 = vld [vmem:[%s0 + $0x10] sm:$0xff]
  %v85 = vld [vmem:[%s0 + $0x18] sm:$0xff]
  %v86 = vld [vmem:[%s0 + $0x20] sm:$0xff]
  %v87 = vld [vmem:[%s0 + $0x28] sm:$0xff]
  %v88 = vld [vmem:[%s0 + $0x30] sm:$0xff]
  %v89 = vld [vmem:[%s0 + $0x38] sm:$0xff]
  %v90 = vld [vmem:[%s0 + $0x40] sm:$0xff]
  %v91 = vld [vmem:[%s0 + $0x48] sm:$0xff]
  %v92 = vld [vmem:[%s0 + $0x50] sm:$0xff]
  %v93 = vld [vmem:[%s0 + $0x58] sm:$0xff]
  %v94 = vld [vmem:[%s0 + $0x60] sm:$0xff]
  %v95 = vld [vmem:[%s0 + $0x68] sm:$0xff]
  %v96 = vld [vmem:[%s0 + $0x70] sm:$0xff]
  %v97 = vld [vmem:[%s0 + $0x78] sm:$0xff]
  %v98 = vld [vmem:[%s0 + $0x80] sm:$0xff]
  %v99 = vld [vmem:[%s0 + $0x88] sm:$0xff]
  %v100 = vlaneseq
  %v101 = vshrl.u32 %v100, 7
  %v102 = vsub.s32 0, %v101
  %v103 = vrot.slane %v79, %v102
  %v122 = vunpack.c.l.b16 %v82
  %v123 = vunpack.c.h.b16 %v82
  %v124 = vunpack.c.l.b16 %v83
  %v125 = vunpack.c.h.b16 %v83
  %v126 = vunpack.c.l.b16 %v84
  %v127 = vunpack.c.h.b16 %v84
  %v128 = vunpack.c.l.b16 %v85
  %v129 = vunpack.c.h.b16 %v85
  %v130 = vunpack.c.l.b16 %v86
  %v131 = vunpack.c.h.b16 %v86
  %v132 = vunpack.c.l.b16 %v87
  %v133 = vunpack.c.h.b16 %v87
  %v134 = vunpack.c.l.b16 %v88
  %v135 = vunpack.c.h.b16 %v88
  %v136 = vunpack.c.l.b16 %v89
  %v137 = vunpack.c.h.b16 %v89
  %v138 = vunpack.c.l.b16 %v90
  %v139 = vunpack.c.h.b16 %v90
  %v140 = vunpack.c.l.b16 %v91
  %v141 = vunpack.c.h.b16 %v91
  %v142 = vunpack.c.l.b16 %v92
  %v143 = vunpack.c.h.b16 %v92
  %v144 = vunpack.c.l.b16 %v93
  %v145 = vunpack.c.h.b16 %v93
  %v146 = vunpack.c.l.b16 %v94
  %v147 = vunpack.c.h.b16 %v94
  %v148 = vunpack.c.l.b16 %v95
  %v149 = vunpack.c.h.b16 %v95
  %v150 = vunpack.c.l.b16 %v96
  %v151 = vunpack.c.h.b16 %v96
  %v152 = vunpack.c.l.b16 %v97
  %v153 = vunpack.c.h.b16 %v97
  %v154 = vunpack.c.l.b16 %v98
  %v155 = vunpack.c.h.b16 %v98
  %v156 = vunpack.c.l.b16 %v99
  %v157 = vunpack.c.h.b16 %v99
  %v158 = vpack.c.b16 %v126, %v122
  %v159 = vpack.c.b16 %v127, %v123
  %v160 = vpack.c.b16 %v128, %v124
  %v161 = vpack.c.b16 %v129, %v125
  %v162 = vpack.c.b16 %v134, %v130
  %v163 = vpack.c.b16 %v135, %v131
  %v164 = vpack.c.b16 %v136, %v132
  %v165 = vpack.c.b16 %v137, %v133
  %v166 = vpack.c.b16 %v142, %v138
  %v167 = vpack.c.b16 %v143, %v139
  %v168 = vpack.c.b16 %v144, %v140
  %v169 = vpack.c.b16 %v145, %v141
  %v170 = vpack.c.b16 %v150, %v146
  %v171 = vpack.c.b16 %v151, %v147
  %v172 = vpack.c.b16 %v152, %v148
  %v173 = vpack.c.b16 %v153, %v149
  %v174 = vpack.c.b16 %v154, %v154
  %v175 = vpack.c.b16 %v155, %v155
  %v176 = vpack.c.b16 %v156, %v156
  %v177 = vpack.c.b16 %v157, %v157
  %v262 = vunpack.c.l.b16 %v15
  %v263 = vunpack.c.l.b16 %v16
  %v264 = vunpack.c.l.b16 %v17
  %v265 = vunpack.c.l.b16 %v18
  %v266 = vunpack.c.l.b16 %v19
  %v267 = vunpack.c.l.b16 %v20
  %v268 = vunpack.c.l.b16 %v21
  %v269 = vunpack.c.l.b16 %v22
  %v270 = vunpack.c.l.b16 %v23
  %v271 = vunpack.c.l.b16 %v24
  %v272 = vunpack.c.l.b16 %v25
  %v273 = vunpack.c.l.b16 %v26
  %v274 = vunpack.c.l.b16 %v27
  %v275 = vunpack.c.l.b16 %v28
  %v276 = vunpack.c.l.b16 %v29
  %v277 = vunpack.c.l.b16 %v30
  %v278 = vunpack.c.l.b16 %v31
  %v279 = vunpack.c.l.b16 %v32
  %v280 = vunpack.c.l.b16 %v33
  %v281 = vunpack.c.l.b16 %v34
  %v282 = vunpack.c.l.b16 %v35
  %v283 = vunpack.c.l.b16 %v36
  %v284 = vunpack.c.l.b16 %v37
  %v285 = vunpack.c.l.b16 %v38
  %v286 = vunpack.c.l.b16 %v39
  %v287 = vunpack.c.l.b16 %v40
  %v288 = vunpack.c.l.b16 %v41
  %v289 = vunpack.c.l.b16 %v42
  %v290 = vunpack.c.l.b16 %v43
  %v291 = vunpack.c.l.b16 %v44
  %v292 = vunpack.c.l.b16 %v45
  %v293 = vunpack.c.l.b16 %v46
  %v294 = vunpack.c.l.b16 %v47
  %v295 = vunpack.c.l.b16 %v48
  %v296 = vunpack.c.l.b16 %v49
  %v297 = vunpack.c.l.b16 %v50
  %v298 = vunpack.c.l.b16 %v51
  %v299 = vunpack.c.l.b16 %v52
  %v300 = vunpack.c.l.b16 %v53
  %v301 = vunpack.c.l.b16 %v54
  %v302 = vunpack.c.l.b16 %v55
  %v303 = vunpack.c.l.b16 %v56
  %v304 = vunpack.c.l.b16 %v57
  %v305 = vunpack.c.l.b16 %v58
  %v306 = vunpack.c.l.b16 %v59
  %v307 = vunpack.c.l.b16 %v60
  %v308 = vunpack.c.l.b16 %v61
  %v309 = vunpack.c.l.b16 %v62
  %v310 = vunpack.c.l.b16 %v63
  %v311 = vunpack.c.l.b16 %v64
  %v312 = vunpack.c.l.b16 %v65
  %v313 = vunpack.c.l.b16 %v66
  %v314 = vunpack.c.l.b16 %v67
  %v315 = vunpack.c.l.b16 %v68
  %v316 = vunpack.c.l.b16 %v69
  %v317 = vunpack.c.l.b16 %v70
  %v318 = vunpack.c.l.b16 %v71
  %v319 = vunpack.c.l.b16 %v72
  %v320 = vunpack.c.l.b16 %v73
  %v321 = vunpack.c.l.b16 %v74
  %v322 = vunpack.c.l.b16 %v75
  %v323 = vunpack.c.l.b16 %v76
  %v324 = vunpack.c.l.b16 %v77
  %v325 = vunpack.c.l.b16 %v78
  %v326 = vpack.c.b16 %v263, %v262
  %v327 = vpack.c.b16 %v265, %v264
  %v328 = vpack.c.b16 %v267, %v266
  %v329 = vpack.c.b16 %v269, %v268
  %v330 = vpack.c.b16 %v271, %v270
  %v331 = vpack.c.b16 %v273, %v272
  %v332 = vpack.c.b16 %v275, %v274
  %v333 = vpack.c.b16 %v277, %v276
  %v334 = vpack.c.b16 %v279, %v278
  %v335 = vpack.c.b16 %v281, %v280
  %v336 = vpack.c.b16 %v283, %v282
  %v337 = vpack.c.b16 %v285, %v284
  %v338 = vpack.c.b16 %v287, %v286
  %v339 = vpack.c.b16 %v289, %v288
  %v340 = vpack.c.b16 %v291, %v290
  %v341 = vpack.c.b16 %v293, %v292
  %v342 = vpack.c.b16 %v295, %v294
  %v343 = vpack.c.b16 %v297, %v296
  %v344 = vpack.c.b16 %v299, %v298
  %v345 = vpack.c.b16 %v301, %v300
  %v346 = vpack.c.b16 %v303, %v302
  %v347 = vpack.c.b16 %v305, %v304
  %v348 = vpack.c.b16 %v307, %v306
  %v349 = vpack.c.b16 %v309, %v308
  %v350 = vpack.c.b16 %v311, %v310
  %v351 = vpack.c.b16 %v313, %v312
  %v352 = vpack.c.b16 %v315, %v314
  %v353 = vpack.c.b16 %v317, %v316
  %v354 = vpack.c.b16 %v319, %v318
  %v355 = vpack.c.b16 %v321, %v320
  %v356 = vpack.c.b16 %v323, %v322
  %v357 = vpack.c.b16 %v325, %v324
  %390 = vmatprep.subr.bf16.mxu0 0
  %391 = vmatpush1.bf16.msra.mxu0 %v333
  %392 = vmatprep.subr.bf16.mxu0 0
  %393 = vmatpush1.bf16.msra.mxu0 %v332
  %394 = vmatprep.subr.bf16.mxu0 0
  %395 = vmatpush1.bf16.msra.mxu0 %v331
  %396 = vmatprep.subr.bf16.mxu0 0
  %397 = vmatpush1.bf16.msra.mxu0 %v330
  %398 = vmatprep.subr.bf16.mxu0 0
  %399 = vmatpush1.bf16.msra.mxu0 %v329
  %400 = vmatprep.subr.bf16.mxu0 0
  %401 = vmatpush1.bf16.msra.mxu0 %v328
  %402 = vmatprep.subr.bf16.mxu0 0
  %403 = vmatpush1.bf16.msra.mxu0 %v327
  %404 = vmatprep.subr.bf16.mxu0 0
  %405 = vmatpush1.bf16.msra.mxu0 %v326
  %406 = vmatprep.subr.bf16.mxu0 0
  %407 = vmatpush2.bf16.msra.mxu0 %v341
  %408 = vmatprep.subr.bf16.mxu0 0
  %409 = vmatpush2.bf16.msra.mxu0 %v340
  %410 = vmatprep.subr.bf16.mxu0 0
  %411 = vmatpush2.bf16.msra.mxu0 %v339
  %412 = vmatprep.subr.bf16.mxu0 0
  %413 = vmatpush2.bf16.msra.mxu0 %v338
  %414 = vmatprep.subr.bf16.mxu0 0
  %415 = vmatpush2.bf16.msra.mxu0 %v337
  %416 = vmatprep.subr.bf16.mxu0 0
  %417 = vmatpush2.bf16.msra.mxu0 %v336
  %418 = vmatprep.subr.bf16.mxu0 0
  %419 = vmatpush2.bf16.msra.mxu0 %v335
  %420 = vmatprep.subr.bf16.mxu0 0
  %421 = vmatpush2.bf16.msra.mxu0 %v334
  %422 = vmatprep.mubr.bf16.mxu0 %v159
  %423 = vmatmul.mubr.bf16.gmra.mxu0 %v158
  %v424 = vpop.f32.mrf.mxu0
  %v425 = vadd.f32 %v103, %v424
  %v426 = vpop.f32.mrf.mxu0
  %v427 = vpop.f32.mrf.mxu0
  %v428 = vadd.f32 %v103, %v427
  %v429 = vpop.f32.mrf.mxu0
  %430 = vmatprep.mubr.bf16.mxu0 %v163
  %431 = vmatmul.mubr.bf16.gmra.mxu0 %v162
  %v432 = vpop.f32.mrf.mxu0
  %v433 = vadd.f32 %v103, %v432
  %v434 = vpop.f32.mrf.mxu0
  %v435 = vpop.f32.mrf.mxu0
  %v436 = vadd.f32 %v103, %v435
  %v437 = vpop.f32.mrf.mxu0
  %438 = vmatprep.mubr.bf16.mxu0 %v167
  %439 = vmatmul.mubr.bf16.gmra.mxu0 %v166
  %v440 = vpop.f32.mrf.mxu0
  %v441 = vadd.f32 %v103, %v440
  %v442 = vpop.f32.mrf.mxu0
  %v443 = vpop.f32.mrf.mxu0
  %v444 = vadd.f32 %v103, %v443
  %v445 = vpop.f32.mrf.mxu0
  %446 = vmatprep.mubr.bf16.mxu0 %v171
  %447 = vmatmul.mubr.bf16.gmra.mxu0 %v170
  %v448 = vpop.f32.mrf.mxu0
  %v449 = vadd.f32 %v103, %v448
  %v450 = vpop.f32.mrf.mxu0
  %v451 = vpop.f32.mrf.mxu0
  %v452 = vadd.f32 %v103, %v451
  %v453 = vpop.f32.mrf.mxu0
  %454 = vmatprep.mubr.bf16.mxu0 %v175
  %455 = vmatmul.mubr.bf16.gmra.mxu0 %v174
  %v456 = vpop.f32.mrf.mxu0
  %v457 = vadd.f32 %v103, %v456
  %v458 = vpop.f32.mrf.mxu0
  %v459 = vpop.f32.mrf.mxu0
  %v460 = vpop.f32.mrf.mxu0
  %461 = vdwg.mxu0
  %462 = vmatprep.subr.bf16.mxu0 0
  %463 = vmatpush1.bf16.msra.mxu0 %v349
  %464 = vmatprep.subr.bf16.mxu0 0
  %465 = vmatpush1.bf16.msra.mxu0 %v348
  %466 = vmatprep.subr.bf16.mxu0 0
  %467 = vmatpush1.bf16.msra.mxu0 %v347
  %468 = vmatprep.subr.bf16.mxu0 0
  %469 = vmatpush1.bf16.msra.mxu0 %v346
  %470 = vmatprep.subr.bf16.mxu0 0
  %471 = vmatpush1.bf16.msra.mxu0 %v345
  %472 = vmatprep.subr.bf16.mxu0 0
  %473 = vmatpush1.bf16.msra.mxu0 %v344
  %474 = vmatprep.subr.bf16.mxu0 0
  %475 = vmatpush1.bf16.msra.mxu0 %v343
  %476 = vmatprep.subr.bf16.mxu0 0
  %477 = vmatpush1.bf16.msra.mxu0 %v342
  %478 = vmatprep.subr.bf16.mxu0 0
  %479 = vmatpush2.bf16.msra.mxu0 %v357
  %480 = vmatprep.subr.bf16.mxu0 0
  %481 = vmatpush2.bf16.msra.mxu0 %v356
  %482 = vmatprep.subr.bf16.mxu0 0
  %483 = vmatpush2.bf16.msra.mxu0 %v355
  %484 = vmatprep.subr.bf16.mxu0 0
  %485 = vmatpush2.bf16.msra.mxu0 %v354
  %486 = vmatprep.subr.bf16.mxu0 0
  %487 = vmatpush2.bf16.msra.mxu0 %v353
  %488 = vmatprep.subr.bf16.mxu0 0
  %489 = vmatpush2.bf16.msra.mxu0 %v352
  %490 = vmatprep.subr.bf16.mxu0 0
  %491 = vmatpush2.bf16.msra.mxu0 %v351
  %492 = vmatprep.subr.bf16.mxu0 0
  %493 = vmatpush2.bf16.msra.mxu0 %v350
  %494 = vmatprep.mubr.bf16.mxu0 %v161
  %495 = vmatmul.mubr.bf16.gmra.mxu0 %v160
  %v496 = vpop.f32.mrf.mxu0
  %v497 = vadd.f32 %v425, %v496
  %v498 = vpop.f32.mrf.mxu0
  %v499 = vpop.f32.mrf.mxu0
  %v500 = vadd.f32 %v428, %v499
  %v501 = vpop.f32.mrf.mxu0
  %502 = vmatprep.mubr.bf16.mxu0 %v165
  %503 = vmatmul.mubr.bf16.gmra.mxu0 %v164
  %v504 = vpop.f32.mrf.mxu0
  %v505 = vadd.f32 %v433, %v504
  %v506 = vpop.f32.mrf.mxu0
  %v507 = vpop.f32.mrf.mxu0
  %v508 = vadd.f32 %v436, %v507
  %v509 = vpop.f32.mrf.mxu0
  %510 = vmatprep.mubr.bf16.mxu0 %v169
  %511 = vmatmul.mubr.bf16.gmra.mxu0 %v168
  %v512 = vpop.f32.mrf.mxu0
  %v513 = vadd.f32 %v441, %v512
  %v514 = vpop.f32.mrf.mxu0
  %v515 = vpop.f32.mrf.mxu0
  %v516 = vadd.f32 %v444, %v515
  %v517 = vpop.f32.mrf.mxu0
  %518 = vmatprep.mubr.bf16.mxu0 %v173
  %519 = vmatmul.mubr.bf16.gmra.mxu0 %v172
  %v520 = vpop.f32.mrf.mxu0
  %v521 = vadd.f32 %v449, %v520
  %v522 = vpop.f32.mrf.mxu0
  %v523 = vpop.f32.mrf.mxu0
  %v524 = vadd.f32 %v452, %v523
  %v525 = vpop.f32.mrf.mxu0
  %526 = vmatprep.mubr.bf16.mxu0 %v177
  %527 = vmatmul.mubr.bf16.gmra.mxu0 %v176
  %v528 = vpop.f32.mrf.mxu0
  %v529 = vadd.f32 %v457, %v528
  %v530 = vpop.f32.mrf.mxu0
  %v531 = vpop.f32.mrf.mxu0
  %v532 = vpop.f32.mrf.mxu0
  %533 = vdwg.mxu0
  %v534 = vmax.f32 %v497, 0.0
  %v535 = vmax.f32 %v500, 0.0
  %v536 = vmax.f32 %v505, 0.0
  %v537 = vmax.f32 %v508, 0.0
  %v538 = vmax.f32 %v513, 0.0
  %v539 = vmax.f32 %v516, 0.0
  %v540 = vmax.f32 %v521, 0.0
  %v541 = vmax.f32 %v524, 0.0
  %v542 = vmax.f32 %v529, 0.0
  %v543 = vlaneseq
  %v544 = vshrl.u32 %v543, 7
  %v545 = vsub.s32 0, %v544
  %v546 = vrot.slane %v80, %v545
  %v547 = vmul.f32 %v534, %v546
  %v548 = vmul.f32 %v535, %v546
  %v549 = vmul.f32 %v536, %v546
  %v550 = vmul.f32 %v537, %v546
  %v551 = vmul.f32 %v538, %v546
  %v552 = vmul.f32 %v539, %v546
  %v553 = vmul.f32 %v540, %v546
  %v554 = vmul.f32 %v541, %v546
  %v555 = vmul.f32 %v542, %v546
  %v556 = vlaneseq
  %v557 = vshrl.u32 %v556, 7
  %v558 = vsub.s32 0, %v557
  %v559 = vrot.slane %v81, %v558
  %v560 = vadd.f32 %v547, %v559
  %v561 = vadd.f32 %v548, %v559
  %v562 = vadd.f32 %v549, %v559
  %v563 = vadd.f32 %v550, %v559
  %v564 = vadd.f32 %v551, %v559
  %v565 = vadd.f32 %v552, %v559
  %v566 = vadd.f32 %v553, %v559
  %v567 = vadd.f32 %v554, %v559
  %v568 = vadd.f32 %v555, %v559
  %s569 = scalar_lea.vmem %s0, 144
  %v570 = vld [vmem:[%s569] sm:$0xff]
  %v571 = vld [vmem:[%s569 + $0x8] sm:$0xff]
  %v572 = vld [vmem:[%s569 + $0x10] sm:$0xff]
  %v573 = vld [vmem:[%s569 + $0x18] sm:$0xff]
  %v574 = vld [vmem:[%s569 + $0x20] sm:$0xff]
  %v575 = vld [vmem:[%s569 + $0x28] sm:$0xff]
  %v576 = vld [vmem:[%s569 + $0x30] sm:$0xff]
  %v577 = vld [vmem:[%s569 + $0x38] sm:$0xff]
  %v578 = vld [vmem:[%s569 + $0x40] sm:$0xff]
  %v579 = vld [vmem:[%s569 + $0x48] sm:$0xff]
  %v580 = vld [vmem:[%s569 + $0x50] sm:$0xff]
  %v581 = vld [vmem:[%s569 + $0x58] sm:$0xff]
  %v582 = vld [vmem:[%s569 + $0x60] sm:$0xff]
  %v583 = vld [vmem:[%s569 + $0x68] sm:$0xff]
  %v584 = vld [vmem:[%s569 + $0x70] sm:$0xff]
  %v585 = vld [vmem:[%s569 + $0x78] sm:$0xff]
  %v586 = vld [vmem:[%s569 + $0x80] sm:$0xff]
  %v587 = vld [vmem:[%s569 + $0x88] sm:$0xff]
  %v606 = vunpack.c.l.b16 %v570
  %v607 = vunpack.c.h.b16 %v570
  %v608 = vunpack.c.l.b16 %v571
  %v609 = vunpack.c.h.b16 %v571
  %v610 = vunpack.c.l.b16 %v572
  %v611 = vunpack.c.h.b16 %v572
  %v612 = vunpack.c.l.b16 %v573
  %v613 = vunpack.c.h.b16 %v573
  %v614 = vunpack.c.l.b16 %v574
  %v615 = vunpack.c.h.b16 %v574
  %v616 = vunpack.c.l.b16 %v575
  %v617 = vunpack.c.h.b16 %v575
  %v618 = vunpack.c.l.b16 %v576
  %v619 = vunpack.c.h.b16 %v576
  %v620 = vunpack.c.l.b16 %v577
  %v621 = vunpack.c.h.b16 %v577
  %v622 = vunpack.c.l.b16 %v578
  %v623 = vunpack.c.h.b16 %v578
  %v624 = vunpack.c.l.b16 %v579
  %v625 = vunpack.c.h.b16 %v579
  %v626 = vunpack.c.l.b16 %v580
  %v627 = vunpack.c.h.b16 %v580
  %v628 = vunpack.c.l.b16 %v581
  %v629 = vunpack.c.h.b16 %v581
  %v630 = vunpack.c.l.b16 %v582
  %v631 = vunpack.c.h.b16 %v582
  %v632 = vunpack.c.l.b16 %v583
  %v633 = vunpack.c.h.b16 %v583
  %v634 = vunpack.c.l.b16 %v584
  %v635 = vunpack.c.h.b16 %v584
  %v636 = vunpack.c.l.b16 %v585
  %v637 = vunpack.c.h.b16 %v585
  %v638 = vunpack.c.l.b16 %v586
  %v639 = vunpack.c.h.b16 %v586
  %v640 = vunpack.c.l.b16 %v587
  %v641 = vunpack.c.h.b16 %v587
  %v642 = vpack.c.b16 %v610, %v606
  %v643 = vpack.c.b16 %v611, %v607
  %v644 = vpack.c.b16 %v612, %v608
  %v645 = vpack.c.b16 %v613, %v609
  %v646 = vpack.c.b16 %v618, %v614
  %v647 = vpack.c.b16 %v619, %v615
  %v648 = vpack.c.b16 %v620, %v616
  %v649 = vpack.c.b16 %v621, %v617
  %v650 = vpack.c.b16 %v626, %v622
  %v651 = vpack.c.b16 %v627, %v623
  %v652 = vpack.c.b16 %v628, %v624
  %v653 = vpack.c.b16 %v629, %v625
  %v654 = vpack.c.b16 %v634, %v630
  %v655 = vpack.c.b16 %v635, %v631
  %v656 = vpack.c.b16 %v636, %v632
  %v657 = vpack.c.b16 %v637, %v633
  %v658 = vpack.c.b16 %v638, %v638
  %v659 = vpack.c.b16 %v639, %v639
  %v660 = vpack.c.b16 %v640, %v640
  %v661 = vpack.c.b16 %v641, %v641
  %682 = vmatprep.subr.bf16.mxu0 0
  %683 = vmatpush1.bf16.msra.mxu0 %v333
  %684 = vmatprep.subr.bf16.mxu0 0
  %685 = vmatpush1.bf16.msra.mxu0 %v332
  %686 = vmatprep.subr.bf16.mxu0 0
  %687 = vmatpush1.bf16.msra.mxu0 %v331
  %688 = vmatprep.subr.bf16.mxu0 0
  %689 = vmatpush1.bf16.msra.mxu0 %v330
  %690 = vmatprep.subr.bf16.mxu0 0
  %691 = vmatpush1.bf16.msra.mxu0 %v329
  %692 = vmatprep.subr.bf16.mxu0 0
  %693 = vmatpush1.bf16.msra.mxu0 %v328
  %694 = vmatprep.subr.bf16.mxu0 0
  %695 = vmatpush1.bf16.msra.mxu0 %v327
  %696 = vmatprep.subr.bf16.mxu0 0
  %697 = vmatpush1.bf16.msra.mxu0 %v326
  %698 = vmatprep.subr.bf16.mxu0 0
  %699 = vmatpush2.bf16.msra.mxu0 %v341
  %700 = vmatprep.subr.bf16.mxu0 0
  %701 = vmatpush2.bf16.msra.mxu0 %v340
  %702 = vmatprep.subr.bf16.mxu0 0
  %703 = vmatpush2.bf16.msra.mxu0 %v339
  %704 = vmatprep.subr.bf16.mxu0 0
  %705 = vmatpush2.bf16.msra.mxu0 %v338
  %706 = vmatprep.subr.bf16.mxu0 0
  %707 = vmatpush2.bf16.msra.mxu0 %v337
  %708 = vmatprep.subr.bf16.mxu0 0
  %709 = vmatpush2.bf16.msra.mxu0 %v336
  %710 = vmatprep.subr.bf16.mxu0 0
  %711 = vmatpush2.bf16.msra.mxu0 %v335
  %712 = vmatprep.subr.bf16.mxu0 0
  %713 = vmatpush2.bf16.msra.mxu0 %v334
  %714 = vmatprep.mubr.bf16.mxu0 %v643
  %715 = vmatmul.mubr.bf16.gmra.mxu0 %v642
  %v716 = vpop.f32.mrf.mxu0
  %v717 = vadd.f32 %v103, %v716
  %v718 = vpop.f32.mrf.mxu0
  %v719 = vpop.f32.mrf.mxu0
  %v720 = vadd.f32 %v103, %v719
  %v721 = vpop.f32.mrf.mxu0
  %722 = vmatprep.mubr.bf16.mxu0 %v647
  %723 = vmatmul.mubr.bf16.gmra.mxu0 %v646
  %v724 = vpop.f32.mrf.mxu0
  %v725 = vadd.f32 %v103, %v724
  %v726 = vpop.f32.mrf.mxu0
  %v727 = vpop.f32.mrf.mxu0
  %v728 = vadd.f32 %v103, %v727
  %v729 = vpop.f32.mrf.mxu0
  %730 = vmatprep.mubr.bf16.mxu0 %v651
  %731 = vmatmul.mubr.bf16.gmra.mxu0 %v650
  %v732 = vpop.f32.mrf.mxu0
  %v733 = vadd.f32 %v103, %v732
  %v734 = vpop.f32.mrf.mxu0
  %v735 = vpop.f32.mrf.mxu0
  %v736 = vadd.f32 %v103, %v735
  %v737 = vpop.f32.mrf.mxu0
  %738 = vmatprep.mubr.bf16.mxu0 %v655
  %739 = vmatmul.mubr.bf16.gmra.mxu0 %v654
  %v740 = vpop.f32.mrf.mxu0
  %v741 = vadd.f32 %v103, %v740
  %v742 = vpop.f32.mrf.mxu0
  %v743 = vpop.f32.mrf.mxu0
  %v744 = vadd.f32 %v103, %v743
  %v745 = vpop.f32.mrf.mxu0
  %746 = vmatprep.mubr.bf16.mxu0 %v659
  %747 = vmatmul.mubr.bf16.gmra.mxu0 %v658
  %v748 = vpop.f32.mrf.mxu0
  %v749 = vadd.f32 %v103, %v748
  %v750 = vpop.f32.mrf.mxu0
  %v751 = vpop.f32.mrf.mxu0
  %v752 = vpop.f32.mrf.mxu0
  %753 = vdwg.mxu0
  %754 = vmatprep.subr.bf16.mxu0 0
  %755 = vmatpush1.bf16.msra.mxu0 %v349
  %756 = vmatprep.subr.bf16.mxu0 0
  %757 = vmatpush1.bf16.msra.mxu0 %v348
  %758 = vmatprep.subr.bf16.mxu0 0
  %759 = vmatpush1.bf16.msra.mxu0 %v347
  %760 = vmatprep.subr.bf16.mxu0 0
  %761 = vmatpush1.bf16.msra.mxu0 %v346
  %762 = vmatprep.subr.bf16.mxu0 0
  %763 = vmatpush1.bf16.msra.mxu0 %v345
  %764 = vmatprep.subr.bf16.mxu0 0
  %765 = vmatpush1.bf16.msra.mxu0 %v344
  %766 = vmatprep.subr.bf16.mxu0 0
  %767 = vmatpush1.bf16.msra.mxu0 %v343
  %768 = vmatprep.subr.bf16.mxu0 0
  %769 = vmatpush1.bf16.msra.mxu0 %v342
  %770 = vmatprep.subr.bf16.mxu0 0
  %771 = vmatpush2.bf16.msra.mxu0 %v357
  %772 = vmatprep.subr.bf16.mxu0 0
  %773 = vmatpush2.bf16.msra.mxu0 %v356
  %774 = vmatprep.subr.bf16.mxu0 0
  %775 = vmatpush2.bf16.msra.mxu0 %v355
  %776 = vmatprep.subr.bf16.mxu0 0
  %777 = vmatpush2.bf16.msra.mxu0 %v354
  %778 = vmatprep.subr.bf16.mxu0 0
  %779 = vmatpush2.bf16.msra.mxu0 %v353
  %780 = vmatprep.subr.bf16.mxu0 0
  %781 = vmatpush2.bf16.msra.mxu0 %v352
  %782 = vmatprep.subr.bf16.mxu0 0
  %783 = vmatpush2.bf16.msra.mxu0 %v351
  %784 = vmatprep.subr.bf16.mxu0 0
  %785 = vmatpush2.bf16.msra.mxu0 %v350
  %786 = vmatprep.mubr.bf16.mxu0 %v645
  %787 = vmatmul.mubr.bf16.gmra.mxu0 %v644
  %v788 = vpop.f32.mrf.mxu0
  %v789 = vadd.f32 %v717, %v788
  %v790 = vpop.f32.mrf.mxu0
  %v791 = vpop.f32.mrf.mxu0
  %v792 = vadd.f32 %v720, %v791
  %v793 = vpop.f32.mrf.mxu0
  %794 = vmatprep.mubr.bf16.mxu0 %v649
  %795 = vmatmul.mubr.bf16.gmra.mxu0 %v648
  %v796 = vpop.f32.mrf.mxu0
  %v797 = vadd.f32 %v725, %v796
  %v798 = vpop.f32.mrf.mxu0
  %v799 = vpop.f32.mrf.mxu0
  %v800 = vadd.f32 %v728, %v799
  %v801 = vpop.f32.mrf.mxu0
  %802 = vmatprep.mubr.bf16.mxu0 %v653
  %803 = vmatmul.mubr.bf16.gmra.mxu0 %v652
  %v804 = vpop.f32.mrf.mxu0
  %v805 = vadd.f32 %v733, %v804
  %v806 = vpop.f32.mrf.mxu0
  %v807 = vpop.f32.mrf.mxu0
  %v808 = vadd.f32 %v736, %v807
  %v809 = vpop.f32.mrf.mxu0
  %810 = vmatprep.mubr.bf16.mxu0 %v657
  %811 = vmatmul.mubr.bf16.gmra.mxu0 %v656
  %v812 = vpop.f32.mrf.mxu0
  %v813 = vadd.f32 %v741, %v812
  %v814 = vpop.f32.mrf.mxu0
  %v815 = vpop.f32.mrf.mxu0
  %v816 = vadd.f32 %v744, %v815
  %v817 = vpop.f32.mrf.mxu0
  %818 = vmatprep.mubr.bf16.mxu0 %v661
  %819 = vmatmul.mubr.bf16.gmra.mxu0 %v660
  %v820 = vpop.f32.mrf.mxu0
  %v821 = vadd.f32 %v749, %v820
  %v822 = vpop.f32.mrf.mxu0
  %v823 = vpop.f32.mrf.mxu0
  %v824 = vpop.f32.mrf.mxu0
  %825 = vdwg.mxu0
  %v826 = vmax.f32 %v789, 0.0
  %v827 = vmax.f32 %v792, 0.0
  %v828 = vmax.f32 %v797, 0.0
  %v829 = vmax.f32 %v800, 0.0
  %v830 = vmax.f32 %v805, 0.0
  %v831 = vmax.f32 %v808, 0.0
  %v832 = vmax.f32 %v813, 0.0
  %v833 = vmax.f32 %v816, 0.0
  %v834 = vmax.f32 %v821, 0.0
  %v835 = vmul.f32 %v826, %v546
  %v836 = vmul.f32 %v827, %v546
  %v837 = vmul.f32 %v828, %v546
  %v838 = vmul.f32 %v829, %v546
  %v839 = vmul.f32 %v830, %v546
  %v840 = vmul.f32 %v831, %v546
  %v841 = vmul.f32 %v832, %v546
  %v842 = vmul.f32 %v833, %v546
  %v843 = vmul.f32 %v834, %v546
  %v844 = vadd.f32 %v835, %v559
  %v845 = vadd.f32 %v836, %v559
  %v846 = vadd.f32 %v837, %v559
  %v847 = vadd.f32 %v838, %v559
  %v848 = vadd.f32 %v839, %v559
  %v849 = vadd.f32 %v840, %v559
  %v850 = vadd.f32 %v841, %v559
  %v851 = vadd.f32 %v842, %v559
  %v852 = vadd.f32 %v843, %v559
  %v853 = vmax.f32 %v560, %v844
  %v854 = vmax.f32 %v561, %v845
  %v855 = vmax.f32 %v562, %v846
  %v856 = vmax.f32 %v563, %v847
  %v857 = vmax.f32 %v564, %v848
  %v858 = vmax.f32 %v565, %v849
  %v859 = vmax.f32 %v566, %v850
  %v860 = vmax.f32 %v567, %v851
  %v861 = vmax.f32 %v568, %v852
  %s862 = scalar_lea.vmem %s0, 288
  %v863 = vld [vmem:[%s862] sm:$0xff]
  %v864 = vld [vmem:[%s862 + $0x8] sm:$0xff]
  %v865 = vld [vmem:[%s862 + $0x10] sm:$0xff]
  %v866 = vld [vmem:[%s862 + $0x18] sm:$0xff]
  %v867 = vld [vmem:[%s862 + $0x20] sm:$0xff]
  %v868 = vld [vmem:[%s862 + $0x28] sm:$0xff]
  %v869 = vld [vmem:[%s862 + $0x30] sm:$0xff]
  %v870 = vld [vmem:[%s862 + $0x38] sm:$0xff]
  %v871 = vld [vmem:[%s862 + $0x40] sm:$0xff]
  %v872 = vld [vmem:[%s862 + $0x48] sm:$0xff]
  %v873 = vld [vmem:[%s862 + $0x50] sm:$0xff]
  %v874 = vld [vmem:[%s862 + $0x58] sm:$0xff]
  %v875 = vld [vmem:[%s862 + $0x60] sm:$0xff]
  %v876 = vld [vmem:[%s862 + $0x68] sm:$0xff]
  %v877 = vld [vmem:[%s862 + $0x70] sm:$0xff]
  %v878 = vld [vmem:[%s862 + $0x78] sm:$0xff]
  %v879 = vld [vmem:[%s862 + $0x80] sm:$0xff]
  %v880 = vld [vmem:[%s862 + $0x88] sm:$0xff]
  %v899 = vunpack.c.l.b16 %v863
  %v900 = vunpack.c.h.b16 %v863
  %v901 = vunpack.c.l.b16 %v864
  %v902 = vunpack.c.h.b16 %v864
  %v903 = vunpack.c.l.b16 %v865
  %v904 = vunpack.c.h.b16 %v865
  %v905 = vunpack.c.l.b16 %v866
  %v906 = vunpack.c.h.b16 %v866
  %v907 = vunpack.c.l.b16 %v867
  %v908 = vunpack.c.h.b16 %v867
  %v909 = vunpack.c.l.b16 %v868
  %v910 = vunpack.c.h.b16 %v868
  %v911 = vunpack.c.l.b16 %v869
  %v912 = vunpack.c.h.b16 %v869
  %v913 = vunpack.c.l.b16 %v870
  %v914 = vunpack.c.h.b16 %v870
  %v915 = vunpack.c.l.b16 %v871
  %v916 = vunpack.c.h.b16 %v871
  %v917 = vunpack.c.l.b16 %v872
  %v918 = vunpack.c.h.b16 %v872
  %v919 = vunpack.c.l.b16 %v873
  %v920 = vunpack.c.h.b16 %v873
  %v921 = vunpack.c.l.b16 %v874
  %v922 = vunpack.c.h.b16 %v874
  %v923 = vunpack.c.l.b16 %v875
  %v924 = vunpack.c.h.b16 %v875
  %v925 = vunpack.c.l.b16 %v876
  %v926 = vunpack.c.h.b16 %v876
  %v927 = vunpack.c.l.b16 %v877
  %v928 = vunpack.c.h.b16 %v877
  %v929 = vunpack.c.l.b16 %v878
  %v930 = vunpack.c.h.b16 %v878
  %v931 = vunpack.c.l.b16 %v879
  %v932 = vunpack.c.h.b16 %v879
  %v933 = vunpack.c.l.b16 %v880
  %v934 = vunpack.c.h.b16 %v880
  %v935 = vpack.c.b16 %v903, %v899
  %v936 = vpack.c.b16 %v904, %v900
  %v937 = vpack.c.b16 %v905, %v901
  %v938 = vpack.c.b16 %v906, %v902
  %v939 = vpack.c.b16 %v911, %v907
  %v940 = vpack.c.b16 %v912, %v908
  %v941 = vpack.c.b16 %v913, %v909
  %v942 = vpack.c.b16 %v914, %v910
  %v943 = vpack.c.b16 %v919, %v915
  %v944 = vpack.c.b16 %v920, %v916
  %v945 = vpack.c.b16 %v921, %v917
  %v946 = vpack.c.b16 %v922, %v918
  %v947 = vpack.c.b16 %v927, %v923
  %v948 = vpack.c.b16 %v928, %v924
  %v949 = vpack.c.b16 %v929, %v925
  %v950 = vpack.c.b16 %v930, %v926
  %v951 = vpack.c.b16 %v931, %v931
  %v952 = vpack.c.b16 %v932, %v932
  %v953 = vpack.c.b16 %v933, %v933
  %v954 = vpack.c.b16 %v934, %v934
  %975 = vmatprep.subr.bf16.mxu0 0
  %976 = vmatpush1.bf16.msra.mxu0 %v333
  %977 = vmatprep.subr.bf16.mxu0 0
  %978 = vmatpush1.bf16.msra.mxu0 %v332
  %979 = vmatprep.subr.bf16.mxu0 0
  %980 = vmatpush1.bf16.msra.mxu0 %v331
  %981 = vmatprep.subr.bf16.mxu0 0
  %982 = vmatpush1.bf16.msra.mxu0 %v330
  %983 = vmatprep.subr.bf16.mxu0 0
  %984 = vmatpush1.bf16.msra.mxu0 %v329
  %985 = vmatprep.subr.bf16.mxu0 0
  %986 = vmatpush1.bf16.msra.mxu0 %v328
  %987 = vmatprep.subr.bf16.mxu0 0
  %988 = vmatpush1.bf16.msra.mxu0 %v327
  %989 = vmatprep.subr.bf16.mxu0 0
  %990 = vmatpush1.bf16.msra.mxu0 %v326
  %991 = vmatprep.subr.bf16.mxu0 0
  %992 = vmatpush2.bf16.msra.mxu0 %v341
  %993 = vmatprep.subr.bf16.mxu0 0
  %994 = vmatpush2.bf16.msra.mxu0 %v340
  %995 = vmatprep.subr.bf16.mxu0 0
  %996 = vmatpush2.bf16.msra.mxu0 %v339
  %997 = vmatprep.subr.bf16.mxu0 0
  %998 = vmatpush2.bf16.msra.mxu0 %v338
  %999 = vmatprep.subr.bf16.mxu0 0
  %1000 = vmatpush2.bf16.msra.mxu0 %v337
  %1001 = vmatprep.subr.bf16.mxu0 0
  %1002 = vmatpush2.bf16.msra.mxu0 %v336
  %1003 = vmatprep.subr.bf16.mxu0 0
  %1004 = vmatpush2.bf16.msra.mxu0 %v335
  %1005 = vmatprep.subr.bf16.mxu0 0
  %1006 = vmatpush2.bf16.msra.mxu0 %v334
  %1007 = vmatprep.mubr.bf16.mxu0 %v936
  %1008 = vmatmul.mubr.bf16.gmra.mxu0 %v935
  %v1009 = vpop.f32.mrf.mxu0
  %v1010 = vadd.f32 %v103, %v1009
  %v1011 = vpop.f32.mrf.mxu0
  %v1012 = vpop.f32.mrf.mxu0
  %v1013 = vadd.f32 %v103, %v1012
  %v1014 = vpop.f32.mrf.mxu0
  %1015 = vmatprep.mubr.bf16.mxu0 %v940
  %1016 = vmatmul.mubr.bf16.gmra.mxu0 %v939
  %v1017 = vpop.f32.mrf.mxu0
  %v1018 = vadd.f32 %v103, %v1017
  %v1019 = vpop.f32.mrf.mxu0
  %v1020 = vpop.f32.mrf.mxu0
  %v1021 = vadd.f32 %v103, %v1020
  %v1022 = vpop.f32.mrf.mxu0
  %1023 = vmatprep.mubr.bf16.mxu0 %v944
  %1024 = vmatmul.mubr.bf16.gmra.mxu0 %v943
  %v1025 = vpop.f32.mrf.mxu0
  %v1026 = vadd.f32 %v103, %v1025
  %v1027 = vpop.f32.mrf.mxu0
  %v1028 = vpop.f32.mrf.mxu0
  %v1029 = vadd.f32 %v103, %v1028
  %v1030 = vpop.f32.mrf.mxu0
  %1031 = vmatprep.mubr.bf16.mxu0 %v948
  %1032 = vmatmul.mubr.bf16.gmra.mxu0 %v947
  %v1033 = vpop.f32.mrf.mxu0
  %v1034 = vadd.f32 %v103, %v1033
  %v1035 = vpop.f32.mrf.mxu0
  %v1036 = vpop.f32.mrf.mxu0
  %v1037 = vadd.f32 %v103, %v1036
  %v1038 = vpop.f32.mrf.mxu0
  %1039 = vmatprep.mubr.bf16.mxu0 %v952
  %1040 = vmatmul.mubr.bf16.gmra.mxu0 %v951
  %v1041 = vpop.f32.mrf.mxu0
  %v1042 = vadd.f32 %v103, %v1041
  %v1043 = vpop.f32.mrf.mxu0
  %v1044 = vpop.f32.mrf.mxu0
  %v1045 = vpop.f32.mrf.mxu0
  %1046 = vdwg.mxu0
  %1047 = vmatprep.subr.bf16.mxu0 0
  %1048 = vmatpush1.bf16.msra.mxu0 %v349
  %1049 = vmatprep.subr.bf16.mxu0 0
  %1050 = vmatpush1.bf16.msra.mxu0 %v348
  %1051 = vmatprep.subr.bf16.mxu0 0
  %1052 = vmatpush1.bf16.msra.mxu0 %v347
  %1053 = vmatprep.subr.bf16.mxu0 0
  %1054 = vmatpush1.bf16.msra.mxu0 %v346
  %1055 = vmatprep.subr.bf16.mxu0 0
  %1056 = vmatpush1.bf16.msra.mxu0 %v345
  %1057 = vmatprep.subr.bf16.mxu0 0
  %1058 = vmatpush1.bf16.msra.mxu0 %v344
  %1059 = vmatprep.subr.bf16.mxu0 0
  %1060 = vmatpush1.bf16.msra.mxu0 %v343
  %1061 = vmatprep.subr.bf16.mxu0 0
  %1062 = vmatpush1.bf16.msra.mxu0 %v342
  %1063 = vmatprep.subr.bf16.mxu0 0
  %1064 = vmatpush2.bf16.msra.mxu0 %v357
  %1065 = vmatprep.subr.bf16.mxu0 0
  %1066 = vmatpush2.bf16.msra.mxu0 %v356
  %1067 = vmatprep.subr.bf16.mxu0 0
  %1068 = vmatpush2.bf16.msra.mxu0 %v355
  %1069 = vmatprep.subr.bf16.mxu0 0
  %1070 = vmatpush2.bf16.msra.mxu0 %v354
  %1071 = vmatprep.subr.bf16.mxu0 0
  %1072 = vmatpush2.bf16.msra.mxu0 %v353
  %1073 = vmatprep.subr.bf16.mxu0 0
  %1074 = vmatpush2.bf16.msra.mxu0 %v352
  %1075 = vmatprep.subr.bf16.mxu0 0
  %1076 = vmatpush2.bf16.msra.mxu0 %v351
  %1077 = vmatprep.subr.bf16.mxu0 0
  %1078 = vmatpush2.bf16.msra.mxu0 %v350
  %1079 = vmatprep.mubr.bf16.mxu0 %v938
  %1080 = vmatmul.mubr.bf16.gmra.mxu0 %v937
  %v1081 = vpop.f32.mrf.mxu0
  %v1082 = vadd.f32 %v1010, %v1081
  %v1083 = vpop.f32.mrf.mxu0
  %v1084 = vpop.f32.mrf.mxu0
  %v1085 = vadd.f32 %v1013, %v1084
  %v1086 = vpop.f32.mrf.mxu0
  %1087 = vmatprep.mubr.bf16.mxu0 %v942
  %1088 = vmatmul.mubr.bf16.gmra.mxu0 %v941
  %v1089 = vpop.f32.mrf.mxu0
  %v1090 = vadd.f32 %v1018, %v1089
  %v1091 = vpop.f32.mrf.mxu0
  %v1092 = vpop.f32.mrf.mxu0
  %v1093 = vadd.f32 %v1021, %v1092
  %v1094 = vpop.f32.mrf.mxu0
  %1095 = vmatprep.mubr.bf16.mxu0 %v946
  %1096 = vmatmul.mubr.bf16.gmra.mxu0 %v945
  %v1097 = vpop.f32.mrf.mxu0
  %v1098 = vadd.f32 %v1026, %v1097
  %v1099 = vpop.f32.mrf.mxu0
  %v1100 = vpop.f32.mrf.mxu0
  %v1101 = vadd.f32 %v1029, %v1100
  %v1102 = vpop.f32.mrf.mxu0
  %1103 = vmatprep.mubr.bf16.mxu0 %v950
  %1104 = vmatmul.mubr.bf16.gmra.mxu0 %v949
  %v1105 = vpop.f32.mrf.mxu0
  %v1106 = vadd.f32 %v1034, %v1105
  %v1107 = vpop.f32.mrf.mxu0
  %v1108 = vpop.f32.mrf.mxu0
  %v1109 = vadd.f32 %v1037, %v1108
  %v1110 = vpop.f32.mrf.mxu0
  %1111 = vmatprep.mubr.bf16.mxu0 %v954
  %1112 = vmatmul.mubr.bf16.gmra.mxu0 %v953
  %v1113 = vpop.f32.mrf.mxu0
  %v1114 = vadd.f32 %v1042, %v1113
  %v1115 = vpop.f32.mrf.mxu0
  %v1116 = vpop.f32.mrf.mxu0
  %v1117 = vpop.f32.mrf.mxu0
  %1118 = vdwg.mxu0
  %v1119 = vmax.f32 %v1082, 0.0
  %v1120 = vmax.f32 %v1085, 0.0
  %v1121 = vmax.f32 %v1090, 0.0
  %v1122 = vmax.f32 %v1093, 0.0
  %v1123 = vmax.f32 %v1098, 0.0
  %v1124 = vmax.f32 %v1101, 0.0
  %v1125 = vmax.f32 %v1106, 0.0
  %v1126 = vmax.f32 %v1109, 0.0
  %v1127 = vmax.f32 %v1114, 0.0
  %v1128 = vmul.f32 %v1119, %v546
  %v1129 = vmul.f32 %v1120, %v546
  %v1130 = vmul.f32 %v1121, %v546
  %v1131 = vmul.f32 %v1122, %v546
  %v1132 = vmul.f32 %v1123, %v546
  %v1133 = vmul.f32 %v1124, %v546
  %v1134 = vmul.f32 %v1125, %v546
  %v1135 = vmul.f32 %v1126, %v546
  %v1136 = vmul.f32 %v1127, %v546
  %v1137 = vadd.f32 %v1128, %v559
  %v1138 = vadd.f32 %v1129, %v559
  %v1139 = vadd.f32 %v1130, %v559
  %v1140 = vadd.f32 %v1131, %v559
  %v1141 = vadd.f32 %v1132, %v559
  %v1142 = vadd.f32 %v1133, %v559
  %v1143 = vadd.f32 %v1134, %v559
  %v1144 = vadd.f32 %v1135, %v559
  %v1145 = vadd.f32 %v1136, %v559
  %s1146 = scalar_lea.vmem %s0, 432
  %v1147 = vld [vmem:[%s1146] sm:$0xff]
  %v1148 = vld [vmem:[%s1146 + $0x8] sm:$0xff]
  %v1149 = vld [vmem:[%s1146 + $0x10] sm:$0xff]
  %v1150 = vld [vmem:[%s1146 + $0x18] sm:$0xff]
  %v1151 = vld [vmem:[%s1146 + $0x20] sm:$0xff]
  %v1152 = vld [vmem:[%s1146 + $0x28] sm:$0xff]
  %v1153 = vld [vmem:[%s1146 + $0x30] sm:$0xff]
  %v1154 = vld [vmem:[%s1146 + $0x38] sm:$0xff]
  %v1155 = vld [vmem:[%s1146 + $0x40] sm:$0xff]
  %v1156 = vld [vmem:[%s1146 + $0x48] sm:$0xff]
  %v1157 = vld [vmem:[%s1146 + $0x50] sm:$0xff]
  %v1158 = vld [vmem:[%s1146 + $0x58] sm:$0xff]
  %v1159 = vld [vmem:[%s1146 + $0x60] sm:$0xff]
  %v1160 = vld [vmem:[%s1146 + $0x68] sm:$0xff]
  %v1161 = vld [vmem:[%s1146 + $0x70] sm:$0xff]
  %v1162 = vld [vmem:[%s1146 + $0x78] sm:$0xff]
  %v1163 = vld [vmem:[%s1146 + $0x80] sm:$0xff]
  %v1164 = vld [vmem:[%s1146 + $0x88] sm:$0xff]
  %v1183 = vunpack.c.l.b16 %v1147
  %v1184 = vunpack.c.h.b16 %v1147
  %v1185 = vunpack.c.l.b16 %v1148
  %v1186 = vunpack.c.h.b16 %v1148
  %v1187 = vunpack.c.l.b16 %v1149
  %v1188 = vunpack.c.h.b16 %v1149
  %v1189 = vunpack.c.l.b16 %v1150
  %v1190 = vunpack.c.h.b16 %v1150
  %v1191 = vunpack.c.l.b16 %v1151
  %v1192 = vunpack.c.h.b16 %v1151
  %v1193 = vunpack.c.l.b16 %v1152
  %v1194 = vunpack.c.h.b16 %v1152
  %v1195 = vunpack.c.l.b16 %v1153
  %v1196 = vunpack.c.h.b16 %v1153
  %v1197 = vunpack.c.l.b16 %v1154
  %v1198 = vunpack.c.h.b16 %v1154
  %v1199 = vunpack.c.l.b16 %v1155
  %v1200 = vunpack.c.h.b16 %v1155
  %v1201 = vunpack.c.l.b16 %v1156
  %v1202 = vunpack.c.h.b16 %v1156
  %v1203 = vunpack.c.l.b16 %v1157
  %v1204 = vunpack.c.h.b16 %v1157
  %v1205 = vunpack.c.l.b16 %v1158
  %v1206 = vunpack.c.h.b16 %v1158
  %v1207 = vunpack.c.l.b16 %v1159
  %v1208 = vunpack.c.h.b16 %v1159
  %v1209 = vunpack.c.l.b16 %v1160
  %v1210 = vunpack.c.h.b16 %v1160
  %v1211 = vunpack.c.l.b16 %v1161
  %v1212 = vunpack.c.h.b16 %v1161
  %v1213 = vunpack.c.l.b16 %v1162
  %v1214 = vunpack.c.h.b16 %v1162
  %v1215 = vunpack.c.l.b16 %v1163
  %v1216 = vunpack.c.h.b16 %v1163
  %v1217 = vunpack.c.l.b16 %v1164
  %v1218 = vunpack.c.h.b16 %v1164
  %v1219 = vpack.c.b16 %v1187, %v1183
  %v1220 = vpack.c.b16 %v1188, %v1184
  %v1221 = vpack.c.b16 %v1189, %v1185
  %v1222 = vpack.c.b16 %v1190, %v1186
  %v1223 = vpack.c.b16 %v1195, %v1191
  %v1224 = vpack.c.b16 %v1196, %v1192
  %v1225 = vpack.c.b16 %v1197, %v1193
  %v1226 = vpack.c.b16 %v1198, %v1194
  %v1227 = vpack.c.b16 %v1203, %v1199
  %v1228 = vpack.c.b16 %v1204, %v1200
  %v1229 = vpack.c.b16 %v1205, %v1201
  %v1230 = vpack.c.b16 %v1206, %v1202
  %v1231 = vpack.c.b16 %v1211, %v1207
  %v1232 = vpack.c.b16 %v1212, %v1208
  %v1233 = vpack.c.b16 %v1213, %v1209
  %v1234 = vpack.c.b16 %v1214, %v1210
  %v1235 = vpack.c.b16 %v1215, %v1215
  %v1236 = vpack.c.b16 %v1216, %v1216
  %v1237 = vpack.c.b16 %v1217, %v1217
  %v1238 = vpack.c.b16 %v1218, %v1218
  %1259 = vmatprep.subr.bf16.mxu0 0
  %1260 = vmatpush1.bf16.msra.mxu0 %v333
  %1261 = vmatprep.subr.bf16.mxu0 0
  %1262 = vmatpush1.bf16.msra.mxu0 %v332
  %1263 = vmatprep.subr.bf16.mxu0 0
  %1264 = vmatpush1.bf16.msra.mxu0 %v331
  %1265 = vmatprep.subr.bf16.mxu0 0
  %1266 = vmatpush1.bf16.msra.mxu0 %v330
  %1267 = vmatprep.subr.bf16.mxu0 0
  %1268 = vmatpush1.bf16.msra.mxu0 %v329
  %1269 = vmatprep.subr.bf16.mxu0 0
  %1270 = vmatpush1.bf16.msra.mxu0 %v328
  %1271 = vmatprep.subr.bf16.mxu0 0
  %1272 = vmatpush1.bf16.msra.mxu0 %v327
  %1273 = vmatprep.subr.bf16.mxu0 0
  %1274 = vmatpush1.bf16.msra.mxu0 %v326
  %1275 = vmatprep.subr.bf16.mxu0 0
  %1276 = vmatpush2.bf16.msra.mxu0 %v341
  %1277 = vmatprep.subr.bf16.mxu0 0
  %1278 = vmatpush2.bf16.msra.mxu0 %v340
  %1279 = vmatprep.subr.bf16.mxu0 0
  %1280 = vmatpush2.bf16.msra.mxu0 %v339
  %1281 = vmatprep.subr.bf16.mxu0 0
  %1282 = vmatpush2.bf16.msra.mxu0 %v338
  %1283 = vmatprep.subr.bf16.mxu0 0
  %1284 = vmatpush2.bf16.msra.mxu0 %v337
  %1285 = vmatprep.subr.bf16.mxu0 0
  %1286 = vmatpush2.bf16.msra.mxu0 %v336
  %1287 = vmatprep.subr.bf16.mxu0 0
  %1288 = vmatpush2.bf16.msra.mxu0 %v335
  %1289 = vmatprep.subr.bf16.mxu0 0
  %1290 = vmatpush2.bf16.msra.mxu0 %v334
  %1291 = vmatprep.mubr.bf16.mxu0 %v1220
  %1292 = vmatmul.mubr.bf16.gmra.mxu0 %v1219
  %v1293 = vpop.f32.mrf.mxu0
  %v1294 = vadd.f32 %v103, %v1293
  %v1295 = vpop.f32.mrf.mxu0
  %v1296 = vpop.f32.mrf.mxu0
  %v1297 = vadd.f32 %v103, %v1296
  %v1298 = vpop.f32.mrf.mxu0
  %1299 = vmatprep.mubr.bf16.mxu0 %v1224
  %1300 = vmatmul.mubr.bf16.gmra.mxu0 %v1223
  %v1301 = vpop.f32.mrf.mxu0
  %v1302 = vadd.f32 %v103, %v1301
  %v1303 = vpop.f32.mrf.mxu0
  %v1304 = vpop.f32.mrf.mxu0
  %v1305 = vadd.f32 %v103, %v1304
  %v1306 = vpop.f32.mrf.mxu0
  %1307 = vmatprep.mubr.bf16.mxu0 %v1228
  %1308 = vmatmul.mubr.bf16.gmra.mxu0 %v1227
  %v1309 = vpop.f32.mrf.mxu0
  %v1310 = vadd.f32 %v103, %v1309
  %v1311 = vpop.f32.mrf.mxu0
  %v1312 = vpop.f32.mrf.mxu0
  %v1313 = vadd.f32 %v103, %v1312
  %v1314 = vpop.f32.mrf.mxu0
  %1315 = vmatprep.mubr.bf16.mxu0 %v1232
  %1316 = vmatmul.mubr.bf16.gmra.mxu0 %v1231
  %v1317 = vpop.f32.mrf.mxu0
  %v1318 = vadd.f32 %v103, %v1317
  %v1319 = vpop.f32.mrf.mxu0
  %v1320 = vpop.f32.mrf.mxu0
  %v1321 = vadd.f32 %v103, %v1320
  %v1322 = vpop.f32.mrf.mxu0
  %1323 = vmatprep.mubr.bf16.mxu0 %v1236
  %1324 = vmatmul.mubr.bf16.gmra.mxu0 %v1235
  %v1325 = vpop.f32.mrf.mxu0
  %v1326 = vadd.f32 %v103, %v1325
  %v1327 = vpop.f32.mrf.mxu0
  %v1328 = vpop.f32.mrf.mxu0
  %v1329 = vpop.f32.mrf.mxu0
  %1330 = vdwg.mxu0
  %1331 = vmatprep.subr.bf16.mxu0 0
  %1332 = vmatpush1.bf16.msra.mxu0 %v349
  %1333 = vmatprep.subr.bf16.mxu0 0
  %1334 = vmatpush1.bf16.msra.mxu0 %v348
  %1335 = vmatprep.subr.bf16.mxu0 0
  %1336 = vmatpush1.bf16.msra.mxu0 %v347
  %1337 = vmatprep.subr.bf16.mxu0 0
  %1338 = vmatpush1.bf16.msra.mxu0 %v346
  %1339 = vmatprep.subr.bf16.mxu0 0
  %1340 = vmatpush1.bf16.msra.mxu0 %v345
  %1341 = vmatprep.subr.bf16.mxu0 0
  %1342 = vmatpush1.bf16.msra.mxu0 %v344
  %1343 = vmatprep.subr.bf16.mxu0 0
  %1344 = vmatpush1.bf16.msra.mxu0 %v343
  %1345 = vmatprep.subr.bf16.mxu0 0
  %1346 = vmatpush1.bf16.msra.mxu0 %v342
  %1347 = vmatprep.subr.bf16.mxu0 0
  %1348 = vmatpush2.bf16.msra.mxu0 %v357
  %1349 = vmatprep.subr.bf16.mxu0 0
  %1350 = vmatpush2.bf16.msra.mxu0 %v356
  %1351 = vmatprep.subr.bf16.mxu0 0
  %1352 = vmatpush2.bf16.msra.mxu0 %v355
  %1353 = vmatprep.subr.bf16.mxu0 0
  %1354 = vmatpush2.bf16.msra.mxu0 %v354
  %1355 = vmatprep.subr.bf16.mxu0 0
  %1356 = vmatpush2.bf16.msra.mxu0 %v353
  %1357 = vmatprep.subr.bf16.mxu0 0
  %1358 = vmatpush2.bf16.msra.mxu0 %v352
  %1359 = vmatprep.subr.bf16.mxu0 0
  %1360 = vmatpush2.bf16.msra.mxu0 %v351
  %1361 = vmatprep.subr.bf16.mxu0 0
  %1362 = vmatpush2.bf16.msra.mxu0 %v350
  %1363 = vmatprep.mubr.bf16.mxu0 %v1222
  %1364 = vmatmul.mubr.bf16.gmra.mxu0 %v1221
  %v1365 = vpop.f32.mrf.mxu0
  %v1366 = vadd.f32 %v1294, %v1365
  %v1367 = vpop.f32.mrf.mxu0
  %v1368 = vpop.f32.mrf.mxu0
  %v1369 = vadd.f32 %v1297, %v1368
  %v1370 = vpop.f32.mrf.mxu0
  %1371 = vmatprep.mubr.bf16.mxu0 %v1226
  %1372 = vmatmul.mubr.bf16.gmra.mxu0 %v1225
  %v1373 = vpop.f32.mrf.mxu0
  %v1374 = vadd.f32 %v1302, %v1373
  %v1375 = vpop.f32.mrf.mxu0
  %v1376 = vpop.f32.mrf.mxu0
  %v1377 = vadd.f32 %v1305, %v1376
  %v1378 = vpop.f32.mrf.mxu0
  %1379 = vmatprep.mubr.bf16.mxu0 %v1230
  %1380 = vmatmul.mubr.bf16.gmra.mxu0 %v1229
  %v1381 = vpop.f32.mrf.mxu0
  %v1382 = vadd.f32 %v1310, %v1381
  %v1383 = vpop.f32.mrf.mxu0
  %v1384 = vpop.f32.mrf.mxu0
  %v1385 = vadd.f32 %v1313, %v1384
  %v1386 = vpop.f32.mrf.mxu0
  %1387 = vmatprep.mubr.bf16.mxu0 %v1234
  %1388 = vmatmul.mubr.bf16.gmra.mxu0 %v1233
  %v1389 = vpop.f32.mrf.mxu0
  %v1390 = vadd.f32 %v1318, %v1389
  %v1391 = vpop.f32.mrf.mxu0
  %v1392 = vpop.f32.mrf.mxu0
  %v1393 = vadd.f32 %v1321, %v1392
  %v1394 = vpop.f32.mrf.mxu0
  %1395 = vmatprep.mubr.bf16.mxu0 %v1238
  %1396 = vmatmul.mubr.bf16.gmra.mxu0 %v1237
  %v1397 = vpop.f32.mrf.mxu0
  %v1398 = vadd.f32 %v1326, %v1397
  %v1399 = vpop.f32.mrf.mxu0
  %v1400 = vpop.f32.mrf.mxu0
  %v1401 = vpop.f32.mrf.mxu0
  %1402 = vdwg.mxu0
  %v1403 = vmax.f32 %v1366, 0.0
  %v1404 = vmax.f32 %v1369, 0.0
  %v1405 = vmax.f32 %v1374, 0.0
  %v1406 = vmax.f32 %v1377, 0.0
  %v1407 = vmax.f32 %v1382, 0.0
  %v1408 = vmax.f32 %v1385, 0.0
  %v1409 = vmax.f32 %v1390, 0.0
  %v1410 = vmax.f32 %v1393, 0.0
  %v1411 = vmax.f32 %v1398, 0.0
  %v1412 = vmul.f32 %v1403, %v546
  %v1413 = vmul.f32 %v1404, %v546
  %v1414 = vmul.f32 %v1405, %v546
  %v1415 = vmul.f32 %v1406, %v546
  %v1416 = vmul.f32 %v1407, %v546
  %v1417 = vmul.f32 %v1408, %v546
  %v1418 = vmul.f32 %v1409, %v546
  %v1419 = vmul.f32 %v1410, %v546
  %v1420 = vmul.f32 %v1411, %v546
  %v1421 = vadd.f32 %v1412, %v559
  %v1422 = vadd.f32 %v1413, %v559
  %v1423 = vadd.f32 %v1414, %v559
  %v1424 = vadd.f32 %v1415, %v559
  %v1425 = vadd.f32 %v1416, %v559
  %v1426 = vadd.f32 %v1417, %v559
  %v1427 = vadd.f32 %v1418, %v559
  %v1428 = vadd.f32 %v1419, %v559
  %v1429 = vadd.f32 %v1420, %v559
  %v1430 = vmax.f32 %v1137, %v1421
  %v1431 = vmax.f32 %v1138, %v1422
  %v1432 = vmax.f32 %v1139, %v1423
  %v1433 = vmax.f32 %v1140, %v1424
  %v1434 = vmax.f32 %v1141, %v1425
  %v1435 = vmax.f32 %v1142, %v1426
  %v1436 = vmax.f32 %v1143, %v1427
  %v1437 = vmax.f32 %v1144, %v1428
  %v1438 = vmax.f32 %v1145, %v1429
  %v1439 = vmax.f32 %v853, %v1430
  %v1440 = vmax.f32 %v854, %v1431
  %v1441 = vmax.f32 %v855, %v1432
  %v1442 = vmax.f32 %v856, %v1433
  %v1443 = vmax.f32 %v857, %v1434
  %v1444 = vmax.f32 %v858, %v1435
  %v1445 = vmax.f32 %v859, %v1436
  %v1446 = vmax.f32 %v860, %v1437
  %v1447 = vmax.f32 %v861, %v1438
  %v1448 = vpack.c.bf16 %v1440, %v1439
  %v1449 = vpack.c.bf16 %v1442, %v1441
  %v1450 = vpack.c.bf16 %v1444, %v1443
  %v1451 = vpack.c.bf16 %v1446, %v1445
  %v1452 = vpack.c.bf16 %v1447, %v1447
  %v1458 = vunpack.c.l.b16 %v1448
  %v1459 = vunpack.c.h.b16 %v1448
  %v1460 = vunpack.c.l.b16 %v1449
  %v1461 = vunpack.c.h.b16 %v1449
  %v1462 = vunpack.c.l.b16 %v1450
  %v1463 = vunpack.c.h.b16 %v1450
  %v1464 = vunpack.c.l.b16 %v1451
  %v1465 = vunpack.c.h.b16 %v1451
  %v1466 = vunpack.c.l.b16 %v1452
  %v1467 = vpack.c.b16 %v1458, %v1458
  %v1468 = vpack.c.b16 %v1459, %v1459
  %v1469 = vpack.c.b16 %v1460, %v1460
  %v1470 = vpack.c.b16 %v1461, %v1461
  %v1471 = vpack.c.b16 %v1462, %v1462
  %v1472 = vpack.c.b16 %v1463, %v1463
  %v1473 = vpack.c.b16 %v1464, %v1464
  %v1474 = vpack.c.b16 %v1465, %v1465
  %v1475 = vpack.c.b16 %v1466, %v1466
  %1485 = vst [vmem:[%s3] sm:$0xf] %v1467
  %1486 = vst [vmem:[%s3 + $0x4] sm:$0xf] %v1468
  %1487 = vst [vmem:[%s3 + $0x8] sm:$0xf] %v1469
  %1488 = vst [vmem:[%s3 + $0xc] sm:$0xf] %v1470
  %1489 = vst [vmem:[%s3 + $0x10] sm:$0xf] %v1471
  %1490 = vst [vmem:[%s3 + $0x14] sm:$0xf] %v1472
  %1491 = vst [vmem:[%s3 + $0x18] sm:$0xf] %v1473
  %1492 = vst [vmem:[%s3 + $0x1c] sm:$0xf] %v1474
  %1493 = vst [vmem:[%s3 + $0x20] sm:$0xf] %v1475
  // Predicated region
  $region14: #{classifier_forward.4} parent=0 // pred_check
    _
  $region15: #{classifier_forward.4} parent=0 // pred_check_branch
    %1495 = sbr.rel (0) target = $region17
  $region16: #{classifier_forward.4} parent=0 // pred_region
    _
  $region17: #{classifier_forward.4} parent=0 // pred_fallthru
    _
  // Predicated region
  $region18: #{classifier_forward.4} parent=0 // pred_check
    _
  $region19: #{classifier_forward.4} parent=0 // pred_check_branch
    %1497 = sbr.rel (0) target = $region21
  $region20: #{classifier_forward.4} parent=0 // pred_region
    _
  $region21: #{classifier_forward.4} parent=0 // pred_fallthru
    _

// kernel: classifier_forward.5
$region0: #{classifier_forward.5}
  #allocation0 [shape = 'u32[]', space=smem, size = 0x4, offset = 0x4, fixed_abs, tag = 'smem constant byte address 0x4 - core index']
  #allocation1 [shape = 'u32[144,128]{1,0:T(1,128)}', space=vmem, size = 0x12000, scoped, tag = 'internal scratch']
  %s0 = inlined_call_operand.vmem [shape: bf16[4,2,896], index: 0, kind: input, shape index: {}]
  %s1 = inlined_call_operand.vmem [shape: f32[2,128], index: 1, kind: input, shape index: {}]
  %s2 = inlined_call_operand.vmem [shape: bf16[896,128], index: 2, kind: input, shape index: {}]
  %s3 = inlined_call_operand.vmem [shape: f32[3,128], index: 3, kind: input, shape index: {}]
  %s4 = inlined_call_operand.vmem [shape: f32[6,128,128], index: 4, kind: input, shape index: {}]
  %s5 = inlined_call_operand.vmem [shape: f32[8,128], index: 5, kind: input, shape index: {}]
  %s6 = inlined_call_operand.hbm [shape: f32[2,128], index: 6, kind: output, shape index: {}]
  %s7 = sld [smem:[#allocation0]]
  $region34: #{classifier_forward.5} parent=0
    _
  %s9 = ssub.s32 1, %s7
  %s10 = scalar_select 0, %s9, %s7
  $region1: #{classifier_forward.5} parent=0
    #allocation2 [shape = 'u8[1024]{0}', space=vmem, size = 0x400, scoped, tag = 'output window, operand 0, single buffered']
    #allocation3 [shape = 's32[1]{0}', space=sflag, size = 0x4, scoped, tag = 'scoped memory for classifier_forward.5']
    %11 = vsyncpa [#allocation3], 0
    // Predicated region
    $region2: #{classifier_forward.5} parent=1 // pred_check
      _
    $region3: #{classifier_forward.5} parent=1 // pred_check_branch
      %13 = sbr.rel (0) target = $region5
    $region4: #{classifier_forward.5} parent=1 // pred_region
      _
    $region5: #{classifier_forward.5} parent=1 // pred_fallthru
      _
    // Predicated region
    $region6: #{classifier_forward.5} parent=1 // pred_check
      _
    $region7: #{classifier_forward.5} parent=1 // pred_check_branch
      %15 = sbr.rel (0) target = $region9
    $region8: #{classifier_forward.5} parent=1 // pred_region
      _
    $region9: #{classifier_forward.5} parent=1 // pred_fallthru
      _
    // Predicated region
    $region10: #{classifier_forward.5} parent=1 // pred_check
      _
    $region11: #{classifier_forward.5} parent=1 // pred_check_branch
      %17 = sbr.rel (0) target = $region13
    $region12: #{classifier_forward.5} parent=1 // pred_region
      _
    $region13: #{classifier_forward.5} parent=1 // pred_fallthru
      _
    // Predicated region
    $region14: #{classifier_forward.5} parent=1 // pred_check
      _
    $region15: #{classifier_forward.5} parent=1 // pred_check_branch
      %19 = sbr.rel (0) target = $region17
    $region16: #{classifier_forward.5} parent=1 // pred_region
      _
    $region17: #{classifier_forward.5} parent=1 // pred_fallthru
      _
    // Predicated region
    $region18: #{classifier_forward.5} parent=1 // pred_check
      _
    $region19: #{classifier_forward.5} parent=1 // pred_check_branch
      %21 = sbr.rel (0) target = $region21
    $region20: #{classifier_forward.5} parent=1 // pred_region
      _
    $region21: #{classifier_forward.5} parent=1 // pred_fallthru
      _
    // Predicated region
    $region22: #{classifier_forward.5} parent=1 // pred_check
      _
    $region23: #{classifier_forward.5} parent=1 // pred_check_branch
      %23 = sbr.rel (0) target = $region25
    $region24: #{classifier_forward.5} parent=1 // pred_region
      _
    $region25: #{classifier_forward.5} parent=1 // pred_fallthru
      _
    %v25 = vld [vmem:[%s2] sm:$0xf]
    %v26 = vld [vmem:[%s2 + $0x4] sm:$0xf]
    %v27 = vld [vmem:[%s2 + $0x8] sm:$0xf]
    %v28 = vld [vmem:[%s2 + $0xc] sm:$0xf]
    %v29 = vld [vmem:[%s2 + $0x10] sm:$0xf]
    %v30 = vld [vmem:[%s2 + $0x14] sm:$0xf]
    %v31 = vld [vmem:[%s2 + $0x18] sm:$0xf]
    %v32 = vld [vmem:[%s2 + $0x1c] sm:$0xf]
    %v33 = vld [vmem:[%s2 + $0x20] sm:$0xf]
    %v34 = vld [vmem:[%s2 + $0x24] sm:$0xf]
    %v35 = vld [vmem:[%s2 + $0x28] sm:$0xf]
    %v36 = vld [vmem:[%s2 + $0x2c] sm:$0xf]
    %v37 = vld [vmem:[%s2 + $0x30] sm:$0xf]
    %v38 = vld [vmem:[%s2 + $0x34] sm:$0xf]
    %v39 = vld [vmem:[%s2 + $0x38] sm:$0xf]
    %v40 = vld [vmem:[%s2 + $0x3c] sm:$0xf]
    %v41 = vld [vmem:[%s2 + $0x40] sm:$0xf]
    %v42 = vld [vmem:[%s2 + $0x44] sm:$0xf]
    %v43 = vld [vmem:[%s2 + $0x48] sm:$0xf]
    %v44 = vld [vmem:[%s2 + $0x4c] sm:$0xf]
    %v45 = vld [vmem:[%s2 + $0x50] sm:$0xf]
    %v46 = vld [vmem:[%s2 + $0x54] sm:$0xf]
    %v47 = vld [vmem:[%s2 + $0x58] sm:$0xf]
    %v48 = vld [vmem:[%s2 + $0x5c] sm:$0xf]
    %v49 = vld [vmem:[%s2 + $0x60] sm:$0xf]
    %v50 = vld [vmem:[%s2 + $0x64] sm:$0xf]
    %v51 = vld [vmem:[%s2 + $0x68] sm:$0xf]
    %v52 = vld [vmem:[%s2 + $0x6c] sm:$0xf]
    %v53 = vld [vmem:[%s2 + $0x70] sm:$0xf]
    %v54 = vld [vmem:[%s2 + $0x74] sm:$0xf]
    %v55 = vld [vmem:[%s2 + $0x78] sm:$0xf]
    %v56 = vld [vmem:[%s2 + $0x7c] sm:$0xf]
    %v57 = vld [vmem:[%s2 + $0x80] sm:$0xf]
    %v58 = vld [vmem:[%s2 + $0x84] sm:$0xf]
    %v59 = vld [vmem:[%s2 + $0x88] sm:$0xf]
    %v60 = vld [vmem:[%s2 + $0x8c] sm:$0xf]
    %v61 = vld [vmem:[%s2 + $0x90] sm:$0xf]
    %v62 = vld [vmem:[%s2 + $0x94] sm:$0xf]
    %v63 = vld [vmem:[%s2 + $0x98] sm:$0xf]
    %v64 = vld [vmem:[%s2 + $0x9c] sm:$0xf]
    %v65 = vld [vmem:[%s2 + $0xa0] sm:$0xf]
    %v66 = vld [vmem:[%s2 + $0xa4] sm:$0xf]
    %v67 = vld [vmem:[%s2 + $0xa8] sm:$0xf]
    %v68 = vld [vmem:[%s2 + $0xac] sm:$0xf]
    %v69 = vld [vmem:[%s2 + $0xb0] sm:$0xf]
    %v70 = vld [vmem:[%s2 + $0xb4] sm:$0xf]
    %v71 = vld [vmem:[%s2 + $0xb8] sm:$0xf]
    %v72 = vld [vmem:[%s2 + $0xbc] sm:$0xf]
    %v73 = vld [vmem:[%s2 + $0xc0] sm:$0xf]
    %v74 = vld [vmem:[%s2 + $0xc4] sm:$0xf]
    %v75 = vld [vmem:[%s2 + $0xc8] sm:$0xf]
    %v76 = vld [vmem:[%s2 + $0xcc] sm:$0xf]
    %v77 = vld [vmem:[%s2 + $0xd0] sm:$0xf]
    %v78 = vld [vmem:[%s2 + $0xd4] sm:$0xf]
    %v79 = vld [vmem:[%s2 + $0xd8] sm:$0xf]
    %v80 = vld [vmem:[%s2 + $0xdc] sm:$0xf]
    %v81 = vld [vmem:[%s2 + $0xe0] sm:$0xf]
    %v82 = vld [vmem:[%s2 + $0xe4] sm:$0xf]
    %v83 = vld [vmem:[%s2 + $0xe8] sm:$0xf]
    %v84 = vld [vmem:[%s2 + $0xec] sm:$0xf]
    %v85 = vld [vmem:[%s2 + $0xf0] sm:$0xf]
    %v86 = vld [vmem:[%s2 + $0xf4] sm:$0xf]
    %v87 = vld [vmem:[%s2 + $0xf8] sm:$0xf]
    %v88 = vld [vmem:[%s2 + $0xfc] sm:$0xf]
    %v89 = vld [vmem:[%s2 + $0x100] sm:$0xf]
    %v90 = vld [vmem:[%s2 + $0x104] sm:$0xf]
    %v91 = vld [vmem:[%s2 + $0x108] sm:$0xf]
    %v92 = vld [vmem:[%s2 + $0x10c] sm:$0xf]
    %v93 = vld [vmem:[%s2 + $0x110] sm:$0xf]
    %v94 = vld [vmem:[%s2 + $0x114] sm:$0xf]
    %v95 = vld [vmem:[%s2 + $0x118] sm:$0xf]
    %v96 = vld [vmem:[%s2 + $0x11c] sm:$0xf]
    %v97 = vld [vmem:[%s2 + $0x120] sm:$0xf]
    %v98 = vld [vmem:[%s2 + $0x124] sm:$0xf]
    %v99 = vld [vmem:[%s2 + $0x128] sm:$0xf]
    %v100 = vld [vmem:[%s2 + $0x12c] sm:$0xf]
    %v101 = vld [vmem:[%s2 + $0x130] sm:$0xf]
    %v102 = vld [vmem:[%s2 + $0x134] sm:$0xf]
    %v103 = vld [vmem:[%s2 + $0x138] sm:$0xf]
    %v104 = vld [vmem:[%s2 + $0x13c] sm:$0xf]
    %v105 = vld [vmem:[%s2 + $0x140] sm:$0xf]
    %v106 = vld [vmem:[%s2 + $0x144] sm:$0xf]
    %v107 = vld [vmem:[%s2 + $0x148] sm:$0xf]
    %v108 = vld [vmem:[%s2 + $0x14c] sm:$0xf]
    %v109 = vld [vmem:[%s2 + $0x150] sm:$0xf]
    %v110 = vld [vmem:[%s2 + $0x154] sm:$0xf]
    %v111 = vld [vmem:[%s2 + $0x158] sm:$0xf]
    %v112 = vld [vmem:[%s2 + $0x15c] sm:$0xf]
    %v113 = vld [vmem:[%s2 + $0x160] sm:$0xf]
    %v114 = vld [vmem:[%s2 + $0x164] sm:$0xf]
    %v115 = vld [vmem:[%s2 + $0x168] sm:$0xf]
    %v116 = vld [vmem:[%s2 + $0x16c] sm:$0xf]
    %v117 = vld [vmem:[%s2 + $0x170] sm:$0xf]
    %v118 = vld [vmem:[%s2 + $0x174] sm:$0xf]
    %v119 = vld [vmem:[%s2 + $0x178] sm:$0xf]
    %v120 = vld [vmem:[%s2 + $0x17c] sm:$0xf]
    %v121 = vld [vmem:[%s2 + $0x180] sm:$0xf]
    %v122 = vld [vmem:[%s2 + $0x184] sm:$0xf]
    %v123 = vld [vmem:[%s2 + $0x188] sm:$0xf]
    %v124 = vld [vmem:[%s2 + $0x18c] sm:$0xf]
    %v125 = vld [vmem:[%s2 + $0x190] sm:$0xf]
    %v126 = vld [vmem:[%s2 + $0x194] sm:$0xf]
    %v127 = vld [vmem:[%s2 + $0x198] sm:$0xf]
    %v128 = vld [vmem:[%s2 + $0x19c] sm:$0xf]
    %v129 = vld [vmem:[%s2 + $0x1a0] sm:$0xf]
    %v130 = vld [vmem:[%s2 + $0x1a4] sm:$0xf]
    %v131 = vld [vmem:[%s2 + $0x1a8] sm:$0xf]
    %v132 = vld [vmem:[%s2 + $0x1ac] sm:$0xf]
    %v133 = vld [vmem:[%s2 + $0x1b0] sm:$0xf]
    %v134 = vld [vmem:[%s2 + $0x1b4] sm:$0xf]
    %v135 = vld [vmem:[%s2 + $0x1b8] sm:$0xf]
    %v136 = vld [vmem:[%s2 + $0x1bc] sm:$0xf]
    %v137 = vld [vmem:[%s3] sm:$0x1]
    %v138 = vld [vmem:[%s3 + $0x1] sm:$0x1]
    %v139 = vld [vmem:[%s3 + $0x2] sm:$0x1]
    %v140 = vld [vmem:[%s0] sm:$0x7f]
    %v141 = vlaneseq
    %v142 = vshrl.u32 %v141, 7
    %v143 = vsub.s32 0, %v142
    %v144 = vrot.slane %v137, %v143
    %v146 = vcombine.high %v140, %v140
    %v148 = vunpack.c.l.s4 1966171168
    %v149 = vunpack.c.0.s8 %v148
    %v150 = vlaneseq
    %v151 = vshrl.u32 %v150, 7
    %v152 = vsub.s32 %v149, %v151
    %v153 = vrot.slane %v140, %v152
    %v155 = vunpack.c.l.s4 1966171168
    %v156 = vunpack.c.0.s8 %v155
    %v157 = vlaneseq
    %v158 = vshrl.u32 %v157, 7
    %v159 = vsub.s32 %v156, %v158
    %v160 = vrot.slane %v146, %v159
    %v161 = vcombine.high %v153, %v153
    %v162 = vcombine.high %v160, %v160
    %v164 = vunpack.c.l.s4 1966171168
    %v165 = vunpack.c.0.s8 %v164
    %v166 = vlaneseq
    %v167 = vshrl.u32 %v166, 7
    %v168 = vsub.s32 %v165, %v167
    %v169 = vrot.slane %v153, %v168
    %v171 = vunpack.c.l.s4 1966171168
    %v172 = vunpack.c.0.s8 %v171
    %v173 = vlaneseq
    %v174 = vshrl.u32 %v173, 7
    %v175 = vsub.s32 %v172, %v174
    %v176 = vrot.slane %v160, %v175
    %v178 = vunpack.c.l.s4 1966171168
    %v179 = vunpack.c.0.s8 %v178
    %v180 = vlaneseq
    %v181 = vshrl.u32 %v180, 7
    %v182 = vsub.s32 %v179, %v181
    %v183 = vrot.slane %v161, %v182
    %v185 = vunpack.c.l.s4 1966171168
    %v186 = vunpack.c.0.s8 %v185
    %v187 = vlaneseq
    %v188 = vshrl.u32 %v187, 7
    %v189 = vsub.s32 %v186, %v188
    %v190 = vrot.slane %v162, %v189
    %v191 = vcombine.high %v169, %v169
    %v192 = vcombine.high %v176, %v176
    %v193 = vcombine.high %v183, %v183
    %v313 = vunpack.c.l.b16 %v25
    %v314 = vunpack.c.l.b16 %v26
    %v315 = vunpack.c.l.b16 %v27
    %v316 = vunpack.c.l.b16 %v28
    %v317 = vunpack.c.l.b16 %v29
    %v318 = vunpack.c.l.b16 %v30
    %v319 = vunpack.c.l.b16 %v31
    %v320 = vunpack.c.l.b16 %v32
    %v321 = vunpack.c.l.b16 %v33
    %v322 = vunpack.c.l.b16 %v34
    %v323 = vunpack.c.l.b16 %v35
    %v324 = vunpack.c.l.b16 %v36
    %v325 = vunpack.c.l.b16 %v37
    %v326 = vunpack.c.l.b16 %v38
    %v327 = vunpack.c.l.b16 %v39
    %v328 = vunpack.c.l.b16 %v40
    %v329 = vunpack.c.l.b16 %v41
    %v330 = vunpack.c.l.b16 %v42
    %v331 = vunpack.c.l.b16 %v43
    %v332 = vunpack.c.l.b16 %v44
    %v333 = vunpack.c.l.b16 %v45
    %v334 = vunpack.c.l.b16 %v46
    %v335 = vunpack.c.l.b16 %v47
    %v336 = vunpack.c.l.b16 %v48
    %v337 = vunpack.c.l.b16 %v49
    %v338 = vunpack.c.l.b16 %v50
    %v339 = vunpack.c.l.b16 %v51
    %v340 = vunpack.c.l.b16 %v52
    %v341 = vunpack.c.l.b16 %v53
    %v342 = vunpack.c.l.b16 %v54
    %v343 = vunpack.c.l.b16 %v55
    %v344 = vunpack.c.l.b16 %v56
    %v345 = vunpack.c.l.b16 %v57
    %v346 = vunpack.c.l.b16 %v58
    %v347 = vunpack.c.l.b16 %v59
    %v348 = vunpack.c.l.b16 %v60
    %v349 = vunpack.c.l.b16 %v61
    %v350 = vunpack.c.l.b16 %v62
    %v351 = vunpack.c.l.b16 %v63
    %v352 = vunpack.c.l.b16 %v64
    %v353 = vunpack.c.l.b16 %v65
    %v354 = vunpack.c.l.b16 %v66
    %v355 = vunpack.c.l.b16 %v67
    %v356 = vunpack.c.l.b16 %v68
    %v357 = vunpack.c.l.b16 %v69
    %v358 = vunpack.c.l.b16 %v70
    %v359 = vunpack.c.l.b16 %v71
    %v360 = vunpack.c.l.b16 %v72
    %v361 = vunpack.c.l.b16 %v73
    %v362 = vunpack.c.l.b16 %v74
    %v363 = vunpack.c.l.b16 %v75
    %v364 = vunpack.c.l.b16 %v76
    %v365 = vunpack.c.l.b16 %v77
    %v366 = vunpack.c.l.b16 %v78
    %v367 = vunpack.c.l.b16 %v79
    %v368 = vunpack.c.l.b16 %v80
    %v369 = vunpack.c.l.b16 %v81
    %v370 = vunpack.c.l.b16 %v82
    %v371 = vunpack.c.l.b16 %v83
    %v372 = vunpack.c.l.b16 %v84
    %v373 = vunpack.c.l.b16 %v85
    %v374 = vunpack.c.l.b16 %v86
    %v375 = vunpack.c.l.b16 %v87
    %v376 = vunpack.c.l.b16 %v88
    %v377 = vunpack.c.l.b16 %v89
    %v378 = vunpack.c.l.b16 %v90
    %v379 = vunpack.c.l.b16 %v91
    %v380 = vunpack.c.l.b16 %v92
    %v381 = vunpack.c.l.b16 %v93
    %v382 = vunpack.c.l.b16 %v94
    %v383 = vunpack.c.l.b16 %v95
    %v384 = vunpack.c.l.b16 %v96
    %v385 = vunpack.c.l.b16 %v97
    %v386 = vunpack.c.l.b16 %v98
    %v387 = vunpack.c.l.b16 %v99
    %v388 = vunpack.c.l.b16 %v100
    %v389 = vunpack.c.l.b16 %v101
    %v390 = vunpack.c.l.b16 %v102
    %v391 = vunpack.c.l.b16 %v103
    %v392 = vunpack.c.l.b16 %v104
    %v393 = vunpack.c.l.b16 %v105
    %v394 = vunpack.c.l.b16 %v106
    %v395 = vunpack.c.l.b16 %v107
    %v396 = vunpack.c.l.b16 %v108
    %v397 = vunpack.c.l.b16 %v109
    %v398 = vunpack.c.l.b16 %v110
    %v399 = vunpack.c.l.b16 %v111
    %v400 = vunpack.c.l.b16 %v112
    %v401 = vunpack.c.l.b16 %v113
    %v402 = vunpack.c.l.b16 %v114
    %v403 = vunpack.c.l.b16 %v115
    %v404 = vunpack.c.l.b16 %v116
    %v405 = vunpack.c.l.b16 %v117
    %v406 = vunpack.c.l.b16 %v118
    %v407 = vunpack.c.l.b16 %v119
    %v408 = vunpack.c.l.b16 %v120
    %v409 = vunpack.c.l.b16 %v121
    %v410 = vunpack.c.l.b16 %v122
    %v411 = vunpack.c.l.b16 %v123
    %v412 = vunpack.c.l.b16 %v124
    %v413 = vunpack.c.l.b16 %v125
    %v414 = vunpack.c.l.b16 %v126
    %v415 = vunpack.c.l.b16 %v127
    %v416 = vunpack.c.l.b16 %v128
    %v417 = vunpack.c.l.b16 %v129
    %v418 = vunpack.c.l.b16 %v130
    %v419 = vunpack.c.l.b16 %v131
    %v420 = vunpack.c.l.b16 %v132
    %v421 = vunpack.c.l.b16 %v133
    %v422 = vunpack.c.l.b16 %v134
    %v423 = vunpack.c.l.b16 %v135
    %v424 = vunpack.c.l.b16 %v136
    %v425 = vpack.c.b16 %v314, %v313
    %v426 = vpack.c.b16 %v316, %v315
    %v427 = vpack.c.b16 %v318, %v317
    %v428 = vpack.c.b16 %v320, %v319
    %v429 = vpack.c.b16 %v322, %v321
    %v430 = vpack.c.b16 %v324, %v323
    %v431 = vpack.c.b16 %v326, %v325
    %v432 = vpack.c.b16 %v328, %v327
    %v433 = vpack.c.b16 %v330, %v329
    %v434 = vpack.c.b16 %v332, %v331
    %v435 = vpack.c.b16 %v334, %v333
    %v436 = vpack.c.b16 %v336, %v335
    %v437 = vpack.c.b16 %v338, %v337
    %v438 = vpack.c.b16 %v340, %v339
    %v439 = vpack.c.b16 %v342, %v341
    %v440 = vpack.c.b16 %v344, %v343
    %v441 = vpack.c.b16 %v346, %v345
    %v442 = vpack.c.b16 %v348, %v347
    %v443 = vpack.c.b16 %v350, %v349
    %v444 = vpack.c.b16 %v352, %v351
    %v445 = vpack.c.b16 %v354, %v353
    %v446 = vpack.c.b16 %v356, %v355
    %v447 = vpack.c.b16 %v358, %v357
    %v448 = vpack.c.b16 %v360, %v359
    %v449 = vpack.c.b16 %v362, %v361
    %v450 = vpack.c.b16 %v364, %v363
    %v451 = vpack.c.b16 %v366, %v365
    %v452 = vpack.c.b16 %v368, %v367
    %v453 = vpack.c.b16 %v370, %v369
    %v454 = vpack.c.b16 %v372, %v371
    %v455 = vpack.c.b16 %v374, %v373
    %v456 = vpack.c.b16 %v376, %v375
    %v457 = vpack.c.b16 %v378, %v377
    %v458 = vpack.c.b16 %v380, %v379
    %v459 = vpack.c.b16 %v382, %v381
    %v460 = vpack.c.b16 %v384, %v383
    %v461 = vpack.c.b16 %v386, %v385
    %v462 = vpack.c.b16 %v388, %v387
    %v463 = vpack.c.b16 %v390, %v389
    %v464 = vpack.c.b16 %v392, %v391
    %v465 = vpack.c.b16 %v394, %v393
    %v466 = vpack.c.b16 %v396, %v395
    %v467 = vpack.c.b16 %v398, %v397
    %v468 = vpack.c.b16 %v400, %v399
    %v469 = vpack.c.b16 %v402, %v401
    %v470 = vpack.c.b16 %v404, %v403
    %v471 = vpack.c.b16 %v406, %v405
    %v472 = vpack.c.b16 %v408, %v407
    %v473 = vpack.c.b16 %v410, %v409
    %v474 = vpack.c.b16 %v412, %v411
    %v475 = vpack.c.b16 %v414, %v413
    %v476 = vpack.c.b16 %v416, %v415
    %v477 = vpack.c.b16 %v418, %v417
    %v478 = vpack.c.b16 %v420, %v419
    %v479 = vpack.c.b16 %v422, %v421
    %v480 = vpack.c.b16 %v424, %v423
    %537 = vmatprep.subr.bf16.mxu0 0
    %538 = vmatpush1.bf16.msra.mxu0 %v432
    %539 = vmatprep.subr.bf16.mxu0 0
    %540 = vmatpush1.bf16.msra.mxu0 %v431
    %541 = vmatprep.subr.bf16.mxu0 0
    %542 = vmatpush1.bf16.msra.mxu0 %v430
    %543 = vmatprep.subr.bf16.mxu0 0
    %544 = vmatpush1.bf16.msra.mxu0 %v429
    %545 = vmatprep.subr.bf16.mxu0 0
    %546 = vmatpush1.bf16.msra.mxu0 %v428
    %547 = vmatprep.subr.bf16.mxu0 0
    %548 = vmatpush1.bf16.msra.mxu0 %v427
    %549 = vmatprep.subr.bf16.mxu0 0
    %550 = vmatpush1.bf16.msra.mxu0 %v426
    %551 = vmatprep.subr.bf16.mxu0 0
    %552 = vmatpush1.bf16.msra.mxu0 %v425
    %553 = vmatprep.subr.bf16.mxu0 0
    %554 = vmatpush2.bf16.msra.mxu0 %v440
    %555 = vmatprep.subr.bf16.mxu0 0
    %556 = vmatpush2.bf16.msra.mxu0 %v439
    %557 = vmatprep.subr.bf16.mxu0 0
    %558 = vmatpush2.bf16.msra.mxu0 %v438
    %559 = vmatprep.subr.bf16.mxu0 0
    %560 = vmatpush2.bf16.msra.mxu0 %v437
    %561 = vmatprep.subr.bf16.mxu0 0
    %562 = vmatpush2.bf16.msra.mxu0 %v436
    %563 = vmatprep.subr.bf16.mxu0 0
    %564 = vmatpush2.bf16.msra.mxu0 %v435
    %565 = vmatprep.subr.bf16.mxu0 0
    %566 = vmatpush2.bf16.msra.mxu0 %v434
    %567 = vmatprep.subr.bf16.mxu0 0
    %568 = vmatpush2.bf16.msra.mxu0 %v433
    %569 = vmatprep.mubr.bf16.mxu0 %v183
    %570 = vmatmul.mubr.bf16.gmra.mxu0 %v169
    %v571 = vpop.f32.mrf.mxu0
    %v572 = vadd.f32 %v144, %v571
    %v573 = vpop.f32.mrf.mxu0
    %v574 = vpop.f32.mrf.mxu0
    %v575 = vpop.f32.mrf.mxu0
    %576 = vdwg.mxu0
    %577 = vmatprep.subr.bf16.mxu0 0
    %578 = vmatpush1.bf16.msra.mxu0 %v448
    %579 = vmatprep.subr.bf16.mxu0 0
    %580 = vmatpush1.bf16.msra.mxu0 %v447
    %581 = vmatprep.subr.bf16.mxu0 0
    %582 = vmatpush1.bf16.msra.mxu0 %v446
    %583 = vmatprep.subr.bf16.mxu0 0
    %584 = vmatpush1.bf16.msra.mxu0 %v445
    %585 = vmatprep.subr.bf16.mxu0 0
    %586 = vmatpush1.bf16.msra.mxu0 %v444
    %587 = vmatprep.subr.bf16.mxu0 0
    %588 = vmatpush1.bf16.msra.mxu0 %v443
    %589 = vmatprep.subr.bf16.mxu0 0
    %590 = vmatpush1.bf16.msra.mxu0 %v442
    %591 = vmatprep.subr.bf16.mxu0 0
    %592 = vmatpush1.bf16.msra.mxu0 %v441
    %593 = vmatprep.subr.bf16.mxu0 0
    %594 = vmatpush2.bf16.msra.mxu0 %v456
    %595 = vmatprep.subr.bf16.mxu0 0
    %596 = vmatpush2.bf16.msra.mxu0 %v455
    %597 = vmatprep.subr.bf16.mxu0 0
    %598 = vmatpush2.bf16.msra.mxu0 %v454
    %599 = vmatprep.subr.bf16.mxu0 0
    %600 = vmatpush2.bf16.msra.mxu0 %v453
    %601 = vmatprep.subr.bf16.mxu0 0
    %602 = vmatpush2.bf16.msra.mxu0 %v452
    %603 = vmatprep.subr.bf16.mxu0 0
    %604 = vmatpush2.bf16.msra.mxu0 %v451
    %605 = vmatprep.subr.bf16.mxu0 0
    %606 = vmatpush2.bf16.msra.mxu0 %v450
    %607 = vmatprep.subr.bf16.mxu0 0
    %608 = vmatpush2.bf16.msra.mxu0 %v449
    %609 = vmatprep.mubr.bf16.mxu0 %v193
    %610 = vmatmul.mubr.bf16.gmra.mxu0 %v191
    %v611 = vpop.f32.mrf.mxu0
    %v612 = vadd.f32 %v572, %v611
    %v613 = vpop.f32.mrf.mxu0
    %v614 = vpop.f32.mrf.mxu0
    %v615 = vpop.f32.mrf.mxu0
    %616 = vdwg.mxu0
    %617 = vmatprep.subr.bf16.mxu0 0
    %618 = vmatpush1.bf16.msra.mxu0 %v464
    %619 = vmatprep.subr.bf16.mxu0 0
    %620 = vmatpush1.bf16.msra.mxu0 %v463
    %621 = vmatprep.subr.bf16.mxu0 0
    %622 = vmatpush1.bf16.msra.mxu0 %v462
    %623 = vmatprep.subr.bf16.mxu0 0
    %624 = vmatpush1.bf16.msra.mxu0 %v461
    %625 = vmatprep.subr.bf16.mxu0 0
    %626 = vmatpush1.bf16.msra.mxu0 %v460
    %627 = vmatprep.subr.bf16.mxu0 0
    %628 = vmatpush1.bf16.msra.mxu0 %v459
    %629 = vmatprep.subr.bf16.mxu0 0
    %630 = vmatpush1.bf16.msra.mxu0 %v458
    %631 = vmatprep.subr.bf16.mxu0 0
    %632 = vmatpush1.bf16.msra.mxu0 %v457
    %633 = vmatprep.subr.bf16.mxu0 0
    %634 = vmatpush2.bf16.msra.mxu0 %v472
    %635 = vmatprep.subr.bf16.mxu0 0
    %636 = vmatpush2.bf16.msra.mxu0 %v471
    %637 = vmatprep.subr.bf16.mxu0 0
    %638 = vmatpush2.bf16.msra.mxu0 %v470
    %639 = vmatprep.subr.bf16.mxu0 0
    %640 = vmatpush2.bf16.msra.mxu0 %v469
    %641 = vmatprep.subr.bf16.mxu0 0
    %642 = vmatpush2.bf16.msra.mxu0 %v468
    %643 = vmatprep.subr.bf16.mxu0 0
    %644 = vmatpush2.bf16.msra.mxu0 %v467
    %645 = vmatprep.subr.bf16.mxu0 0
    %646 = vmatpush2.bf16.msra.mxu0 %v466
    %647 = vmatprep.subr.bf16.mxu0 0
    %648 = vmatpush2.bf16.msra.mxu0 %v465
    %649 = vmatprep.mubr.bf16.mxu0 %v190
    %650 = vmatmul.mubr.bf16.gmra.mxu0 %v176
    %v651 = vpop.f32.mrf.mxu0
    %v652 = vadd.f32 %v612, %v651
    %v653 = vpop.f32.mrf.mxu0
    %v654 = vpop.f32.mrf.mxu0
    %v655 = vpop.f32.mrf.mxu0
    %656 = vdwg.mxu0
    %657 = vmatprep.subr.bf16.mxu0 0
    %658 = vmatpush1.bf16.msra.mxu0 %v480
    %659 = vmatprep.subr.bf16.mxu0 0
    %660 = vmatpush1.bf16.msra.mxu0 %v479
    %661 = vmatprep.subr.bf16.mxu0 0
    %662 = vmatpush1.bf16.msra.mxu0 %v478
    %663 = vmatprep.subr.bf16.mxu0 0
    %664 = vmatpush1.bf16.msra.mxu0 %v477
    %665 = vmatprep.subr.bf16.mxu0 0
    %666 = vmatpush1.bf16.msra.mxu0 %v476
    %667 = vmatprep.subr.bf16.mxu0 0
    %668 = vmatpush1.bf16.msra.mxu0 %v475
    %669 = vmatprep.subr.bf16.mxu0 0
    %670 = vmatpush1.bf16.msra.mxu0 %v474
    %671 = vmatprep.subr.bf16.mxu0 0
    %672 = vmatpush1.bf16.msra.mxu0 %v473
    %673 = vmatprep.subr.bf16.mxu0 0
    %674 = vmatpush2.bf16.msra.mxu0 0
    %675 = vmatprep.subr.bf16.mxu0 0
    %676 = vmatpush2.bf16.msra.mxu0 0
    %677 = vmatprep.subr.bf16.mxu0 0
    %678 = vmatpush2.bf16.msra.mxu0 0
    %679 = vmatprep.subr.bf16.mxu0 0
    %680 = vmatpush2.bf16.msra.mxu0 0
    %681 = vmatprep.subr.bf16.mxu0 0
    %682 = vmatpush2.bf16.msra.mxu0 0
    %683 = vmatprep.subr.bf16.mxu0 0
    %684 = vmatpush2.bf16.msra.mxu0 0
    %685 = vmatprep.subr.bf16.mxu0 0
    %686 = vmatpush2.bf16.msra.mxu0 0
    %687 = vmatprep.subr.bf16.mxu0 0
    %688 = vmatpush2.bf16.msra.mxu0 0
    %689 = vmatprep.mubr.bf16.mxu0 0
    %690 = vmatmul.mubr.bf16.gmra.mxu0 %v192
    %v691 = vpop.f32.mrf.mxu0
    %v692 = vadd.f32 %v652, %v691
    %v693 = vpop.f32.mrf.mxu0
    %v694 = vpop.f32.mrf.mxu0
    %v695 = vpop.f32.mrf.mxu0
    %696 = vdwg.mxu0
    %v697 = vmax.f32 %v692, 0.0
    %v698 = vlaneseq
    %v699 = vshrl.u32 %v698, 7
    %v700 = vsub.s32 0, %v699
    %v701 = vrot.slane %v138, %v700
    %v702 = vmul.f32 %v697, %v701
    %v703 = vlaneseq
    %v704 = vshrl.u32 %v703, 7
    %v705 = vsub.s32 0, %v704
    %v706 = vrot.slane %v139, %v705
    %v707 = vadd.f32 %v702, %v706
    %s708 = scalar_lea.vmem %s0, 7
    %v709 = vld [vmem:[%s708] sm:$0x7f]
    %v711 = vcombine.high %v709, %v709
    %v713 = vunpack.c.l.s4 1966171168
    %v714 = vunpack.c.0.s8 %v713
    %v715 = vlaneseq
    %v716 = vshrl.u32 %v715, 7
    %v717 = vsub.s32 %v714, %v716
    %v718 = vrot.slane %v709, %v717
    %v720 = vunpack.c.l.s4 1966171168
    %v721 = vunpack.c.0.s8 %v720
    %v722 = vlaneseq
    %v723 = vshrl.u32 %v722, 7
    %v724 = vsub.s32 %v721, %v723
    %v725 = vrot.slane %v711, %v724
    %v726 = vcombine.high %v718, %v718
    %v727 = vcombine.high %v725, %v725
    %v729 = vunpack.c.l.s4 1966171168
    %v730 = vunpack.c.0.s8 %v729
    %v731 = vlaneseq
    %v732 = vshrl.u32 %v731, 7
    %v733 = vsub.s32 %v730, %v732
    %v734 = vrot.slane %v718, %v733
    %v736 = vunpack.c.l.s4 1966171168
    %v737 = vunpack.c.0.s8 %v736
    %v738 = vlaneseq
    %v739 = vshrl.u32 %v738, 7
    %v740 = vsub.s32 %v737, %v739
    %v741 = vrot.slane %v725, %v740
    %v743 = vunpack.c.l.s4 1966171168
    %v744 = vunpack.c.0.s8 %v743
    %v745 = vlaneseq
    %v746 = vshrl.u32 %v745, 7
    %v747 = vsub.s32 %v744, %v746
    %v748 = vrot.slane %v726, %v747
    %v750 = vunpack.c.l.s4 1966171168
    %v751 = vunpack.c.0.s8 %v750
    %v752 = vlaneseq
    %v753 = vshrl.u32 %v752, 7
    %v754 = vsub.s32 %v751, %v753
    %v755 = vrot.slane %v727, %v754
    %v756 = vcombine.high %v734, %v734
    %v757 = vcombine.high %v741, %v741
    %v758 = vcombine.high %v748, %v748
    %766 = vmatprep.subr.bf16.mxu0 0
    %767 = vmatpush1.bf16.msra.mxu0 %v432
    %768 = vmatprep.subr.bf16.mxu0 0
    %769 = vmatpush1.bf16.msra.mxu0 %v431
    %770 = vmatprep.subr.bf16.mxu0 0
    %771 = vmatpush1.bf16.msra.mxu0 %v430
    %772 = vmatprep.subr.bf16.mxu0 0
    %773 = vmatpush1.bf16.msra.mxu0 %v429
    %774 = vmatprep.subr.bf16.mxu0 0
    %775 = vmatpush1.bf16.msra.mxu0 %v428
    %776 = vmatprep.subr.bf16.mxu0 0
    %777 = vmatpush1.bf16.msra.mxu0 %v427
    %778 = vmatprep.subr.bf16.mxu0 0
    %779 = vmatpush1.bf16.msra.mxu0 %v426
    %780 = vmatprep.subr.bf16.mxu0 0
    %781 = vmatpush1.bf16.msra.mxu0 %v425
    %782 = vmatprep.subr.bf16.mxu0 0
    %783 = vmatpush2.bf16.msra.mxu0 %v440
    %784 = vmatprep.subr.bf16.mxu0 0
    %785 = vmatpush2.bf16.msra.mxu0 %v439
    %786 = vmatprep.subr.bf16.mxu0 0
    %787 = vmatpush2.bf16.msra.mxu0 %v438
    %788 = vmatprep.subr.bf16.mxu0 0
    %789 = vmatpush2.bf16.msra.mxu0 %v437
    %790 = vmatprep.subr.bf16.mxu0 0
    %791 = vmatpush2.bf16.msra.mxu0 %v436
    %792 = vmatprep.subr.bf16.mxu0 0
    %793 = vmatpush2.bf16.msra.mxu0 %v435
    %794 = vmatprep.subr.bf16.mxu0 0
    %795 = vmatpush2.bf16.msra.mxu0 %v434
    %796 = vmatprep.subr.bf16.mxu0 0
    %797 = vmatpush2.bf16.msra.mxu0 %v433
    %798 = vmatprep.mubr.bf16.mxu0 %v748
    %799 = vmatmul.mubr.bf16.gmra.mxu0 %v734
    %v800 = vpop.f32.mrf.mxu0
    %v801 = vadd.f32 %v144, %v800
    %v802 = vpop.f32.mrf.mxu0
    %v803 = vpop.f32.mrf.mxu0
    %v804 = vpop.f32.mrf.mxu0
    %805 = vdwg.mxu0
    %806 = vmatprep.subr.bf16.mxu0 0
    %807 = vmatpush1.bf16.msra.mxu0 %v448
    %808 = vmatprep.subr.bf16.mxu0 0
    %809 = vmatpush1.bf16.msra.mxu0 %v447
    %810 = vmatprep.subr.bf16.mxu0 0
    %811 = vmatpush1.bf16.msra.mxu0 %v446
    %812 = vmatprep.subr.bf16.mxu0 0
    %813 = vmatpush1.bf16.msra.mxu0 %v445
    %814 = vmatprep.subr.bf16.mxu0 0
    %815 = vmatpush1.bf16.msra.mxu0 %v444
    %816 = vmatprep.subr.bf16.mxu0 0
    %817 = vmatpush1.bf16.msra.mxu0 %v443
    %818 = vmatprep.subr.bf16.mxu0 0
    %819 = vmatpush1.bf16.msra.mxu0 %v442
    %820 = vmatprep.subr.bf16.mxu0 0
    %821 = vmatpush1.bf16.msra.mxu0 %v441
    %822 = vmatprep.subr.bf16.mxu0 0
    %823 = vmatpush2.bf16.msra.mxu0 %v456
    %824 = vmatprep.subr.bf16.mxu0 0
    %825 = vmatpush2.bf16.msra.mxu0 %v455
    %826 = vmatprep.subr.bf16.mxu0 0
    %827 = vmatpush2.bf16.msra.mxu0 %v454
    %828 = vmatprep.subr.bf16.mxu0 0
    %829 = vmatpush2.bf16.msra.mxu0 %v453
    %830 = vmatprep.subr.bf16.mxu0 0
    %831 = vmatpush2.bf16.msra.mxu0 %v452
    %832 = vmatprep.subr.bf16.mxu0 0
    %833 = vmatpush2.bf16.msra.mxu0 %v451
    %834 = vmatprep.subr.bf16.mxu0 0
    %835 = vmatpush2.bf16.msra.mxu0 %v450
    %836 = vmatprep.subr.bf16.mxu0 0
    %837 = vmatpush2.bf16.msra.mxu0 %v449
    %838 = vmatprep.mubr.bf16.mxu0 %v758
    %839 = vmatmul.mubr.bf16.gmra.mxu0 %v756
    %v840 = vpop.f32.mrf.mxu0
    %v841 = vadd.f32 %v801, %v840
    %v842 = vpop.f32.mrf.mxu0
    %v843 = vpop.f32.mrf.mxu0
    %v844 = vpop.f32.mrf.mxu0
    %845 = vdwg.mxu0
    %846 = vmatprep.subr.bf16.mxu0 0
    %847 = vmatpush1.bf16.msra.mxu0 %v464
    %848 = vmatprep.subr.bf16.mxu0 0
    %849 = vmatpush1.bf16.msra.mxu0 %v463
    %850 = vmatprep.subr.bf16.mxu0 0
    %851 = vmatpush1.bf16.msra.mxu0 %v462
    %852 = vmatprep.subr.bf16.mxu0 0
    %853 = vmatpush1.bf16.msra.mxu0 %v461
    %854 = vmatprep.subr.bf16.mxu0 0
    %855 = vmatpush1.bf16.msra.mxu0 %v460
    %856 = vmatprep.subr.bf16.mxu0 0
    %857 = vmatpush1.bf16.msra.mxu0 %v459
    %858 = vmatprep.subr.bf16.mxu0 0
    %859 = vmatpush1.bf16.msra.mxu0 %v458
    %860 = vmatprep.subr.bf16.mxu0 0
    %861 = vmatpush1.bf16.msra.mxu0 %v457
    %862 = vmatprep.subr.bf16.mxu0 0
    %863 = vmatpush2.bf16.msra.mxu0 %v472
    %864 = vmatprep.subr.bf16.mxu0 0
    %865 = vmatpush2.bf16.msra.mxu0 %v471
    %866 = vmatprep.subr.bf16.mxu0 0
    %867 = vmatpush2.bf16.msra.mxu0 %v470
    %868 = vmatprep.subr.bf16.mxu0 0
    %869 = vmatpush2.bf16.msra.mxu0 %v469
    %870 = vmatprep.subr.bf16.mxu0 0
    %871 = vmatpush2.bf16.msra.mxu0 %v468
    %872 = vmatprep.subr.bf16.mxu0 0
    %873 = vmatpush2.bf16.msra.mxu0 %v467
    %874 = vmatprep.subr.bf16.mxu0 0
    %875 = vmatpush2.bf16.msra.mxu0 %v466
    %876 = vmatprep.subr.bf16.mxu0 0
    %877 = vmatpush2.bf16.msra.mxu0 %v465
    %878 = vmatprep.mubr.bf16.mxu0 %v755
    %879 = vmatmul.mubr.bf16.gmra.mxu0 %v741
    %v880 = vpop.f32.mrf.mxu0
    %v881 = vadd.f32 %v841, %v880
    %v882 = vpop.f32.mrf.mxu0
    %v883 = vpop.f32.mrf.mxu0
    %v884 = vpop.f32.mrf.mxu0
    %885 = vdwg.mxu0
    %886 = vmatprep.subr.bf16.mxu0 0
    %887 = vmatpush1.bf16.msra.mxu0 %v480
    %888 = vmatprep.subr.bf16.mxu0 0
    %889 = vmatpush1.bf16.msra.mxu0 %v479
    %890 = vmatprep.subr.bf16.mxu0 0
    %891 = vmatpush1.bf16.msra.mxu0 %v478
    %892 = vmatprep.subr.bf16.mxu0 0
    %893 = vmatpush1.bf16.msra.mxu0 %v477
    %894 = vmatprep.subr.bf16.mxu0 0
    %895 = vmatpush1.bf16.msra.mxu0 %v476
    %896 = vmatprep.subr.bf16.mxu0 0
    %897 = vmatpush1.bf16.msra.mxu0 %v475
    %898 = vmatprep.subr.bf16.mxu0 0
    %899 = vmatpush1.bf16.msra.mxu0 %v474
    %900 = vmatprep.subr.bf16.mxu0 0
    %901 = vmatpush1.bf16.msra.mxu0 %v473
    %902 = vmatprep.subr.bf16.mxu0 0
    %903 = vmatpush2.bf16.msra.mxu0 0
    %904 = vmatprep.subr.bf16.mxu0 0
    %905 = vmatpush2.bf16.msra.mxu0 0
    %906 = vmatprep.subr.bf16.mxu0 0
    %907 = vmatpush2.bf16.msra.mxu0 0
    %908 = vmatprep.subr.bf16.mxu0 0
    %909 = vmatpush2.bf16.msra.mxu0 0
    %910 = vmatprep.subr.bf16.mxu0 0
    %911 = vmatpush2.bf16.msra.mxu0 0
    %912 = vmatprep.subr.bf16.mxu0 0
    %913 = vmatpush2.bf16.msra.mxu0 0
    %914 = vmatprep.subr.bf16.mxu0 0
    %915 = vmatpush2.bf16.msra.mxu0 0
    %916 = vmatprep.subr.bf16.mxu0 0
    %917 = vmatpush2.bf16.msra.mxu0 0
    %918 = vmatprep.mubr.bf16.mxu0 0
    %919 = vmatmul.mubr.bf16.gmra.mxu0 %v757
    %v920 = vpop.f32.mrf.mxu0
    %v921 = vadd.f32 %v881, %v920
    %v922 = vpop.f32.mrf.mxu0
    %v923 = vpop.f32.mrf.mxu0
    %v924 = vpop.f32.mrf.mxu0
    %925 = vdwg.mxu0
    %v926 = vmax.f32 %v921, 0.0
    %v927 = vmul.f32 %v926, %v701
    %v928 = vadd.f32 %v927, %v706
    %v929 = vmax.f32 %v707, %v928
    %s930 = scalar_lea.vmem %s0, 14
    %v931 = vld [vmem:[%s930] sm:$0x7f]
    %v933 = vcombine.high %v931, %v931
    %v935 = vunpack.c.l.s4 1966171168
    %v936 = vunpack.c.0.s8 %v935
    %v937 = vlaneseq
    %v938 = vshrl.u32 %v937, 7
    %v939 = vsub.s32 %v936, %v938
    %v940 = vrot.slane %v931, %v939
    %v942 = vunpack.c.l.s4 1966171168
    %v943 = vunpack.c.0.s8 %v942
    %v944 = vlaneseq
    %v945 = vshrl.u32 %v944, 7
    %v946 = vsub.s32 %v943, %v945
    %v947 = vrot.slane %v933, %v946
    %v948 = vcombine.high %v940, %v940
    %v949 = vcombine.high %v947, %v947
    %v951 = vunpack.c.l.s4 1966171168
    %v952 = vunpack.c.0.s8 %v951
    %v953 = vlaneseq
    %v954 = vshrl.u32 %v953, 7
    %v955 = vsub.s32 %v952, %v954
    %v956 = vrot.slane %v940, %v955
    %v958 = vunpack.c.l.s4 1966171168
    %v959 = vunpack.c.0.s8 %v958
    %v960 = vlaneseq
    %v961 = vshrl.u32 %v960, 7
    %v962 = vsub.s32 %v959, %v961
    %v963 = vrot.slane %v947, %v962
    %v965 = vunpack.c.l.s4 1966171168
    %v966 = vunpack.c.0.s8 %v965
    %v967 = vlaneseq
    %v968 = vshrl.u32 %v967, 7
    %v969 = vsub.s32 %v966, %v968
    %v970 = vrot.slane %v948, %v969
    %v972 = vunpack.c.l.s4 1966171168
    %v973 = vunpack.c.0.s8 %v972
    %v974 = vlaneseq
    %v975 = vshrl.u32 %v974, 7
    %v976 = vsub.s32 %v973, %v975
    %v977 = vrot.slane %v949, %v976
    %v978 = vcombine.high %v956, %v956
    %v979 = vcombine.high %v963, %v963
    %v980 = vcombine.high %v970, %v970
    %988 = vmatprep.subr.bf16.mxu0 0
    %989 = vmatpush1.bf16.msra.mxu0 %v432
    %990 = vmatprep.subr.bf16.mxu0 0
    %991 = vmatpush1.bf16.msra.mxu0 %v431
    %992 = vmatprep.subr.bf16.mxu0 0
    %993 = vmatpush1.bf16.msra.mxu0 %v430
    %994 = vmatprep.subr.bf16.mxu0 0
    %995 = vmatpush1.bf16.msra.mxu0 %v429
    %996 = vmatprep.subr.bf16.mxu0 0
    %997 = vmatpush1.bf16.msra.mxu0 %v428
    %998 = vmatprep.subr.bf16.mxu0 0
    %999 = vmatpush1.bf16.msra.mxu0 %v427
    %1000 = vmatprep.subr.bf16.mxu0 0
    %1001 = vmatpush1.bf16.msra.mxu0 %v426
    %1002 = vmatprep.subr.bf16.mxu0 0
    %1003 = vmatpush1.bf16.msra.mxu0 %v425
    %1004 = vmatprep.subr.bf16.mxu0 0
    %1005 = vmatpush2.bf16.msra.mxu0 %v440
    %1006 = vmatprep.subr.bf16.mxu0 0
    %1007 = vmatpush2.bf16.msra.mxu0 %v439
    %1008 = vmatprep.subr.bf16.mxu0 0
    %1009 = vmatpush2.bf16.msra.mxu0 %v438
    %1010 = vmatprep.subr.bf16.mxu0 0
    %1011 = vmatpush2.bf16.msra.mxu0 %v437
    %1012 = vmatprep.subr.bf16.mxu0 0
    %1013 = vmatpush2.bf16.msra.mxu0 %v436
    %1014 = vmatprep.subr.bf16.mxu0 0
    %1015 = vmatpush2.bf16.msra.mxu0 %v435
    %1016 = vmatprep.subr.bf16.mxu0 0
    %1017 = vmatpush2.bf16.msra.mxu0 %v434
    %1018 = vmatprep.subr.bf16.mxu0 0
    %1019 = vmatpush2.bf16.msra.mxu0 %v433
    %1020 = vmatprep.mubr.bf16.mxu0 %v970
    %1021 = vmatmul.mubr.bf16.gmra.mxu0 %v956
    %v1022 = vpop.f32.mrf.mxu0
    %v1023 = vadd.f32 %v144, %v1022
    %v1024 = vpop.f32.mrf.mxu0
    %v1025 = vpop.f32.mrf.mxu0
    %v1026 = vpop.f32.mrf.mxu0
    %1027 = vdwg.mxu0
    %1028 = vmatprep.subr.bf16.mxu0 0
    %1029 = vmatpush1.bf16.msra.mxu0 %v448
    %1030 = vmatprep.subr.bf16.mxu0 0
    %1031 = vmatpush1.bf16.msra.mxu0 %v447
    %1032 = vmatprep.subr.bf16.mxu0 0
    %1033 = vmatpush1.bf16.msra.mxu0 %v446
    %1034 = vmatprep.subr.bf16.mxu0 0
    %1035 = vmatpush1.bf16.msra.mxu0 %v445
    %1036 = vmatprep.subr.bf16.mxu0 0
    %1037 = vmatpush1.bf16.msra.mxu0 %v444
    %1038 = vmatprep.subr.bf16.mxu0 0
    %1039 = vmatpush1.bf16.msra.mxu0 %v443
    %1040 = vmatprep.subr.bf16.mxu0 0
    %1041 = vmatpush1.bf16.msra.mxu0 %v442
    %1042 = vmatprep.subr.bf16.mxu0 0
    %1043 = vmatpush1.bf16.msra.mxu0 %v441
    %1044 = vmatprep.subr.bf16.mxu0 0
    %1045 = vmatpush2.bf16.msra.mxu0 %v456
    %1046 = vmatprep.subr.bf16.mxu0 0
    %1047 = vmatpush2.bf16.msra.mxu0 %v455
    %1048 = vmatprep.subr.bf16.mxu0 0
    %1049 = vmatpush2.bf16.msra.mxu0 %v454
    %1050 = vmatprep.subr.bf16.mxu0 0
    %1051 = vmatpush2.bf16.msra.mxu0 %v453
    %1052 = vmatprep.subr.bf16.mxu0 0
    %1053 = vmatpush2.bf16.msra.mxu0 %v452
    %1054 = vmatprep.subr.bf16.mxu0 0
    %1055 = vmatpush2.bf16.msra.mxu0 %v451
    %1056 = vmatprep.subr.bf16.mxu0 0
    %1057 = vmatpush2.bf16.msra.mxu0 %v450
    %1058 = vmatprep.subr.bf16.mxu0 0
    %1059 = vmatpush2.bf16.msra.mxu0 %v449
    %1060 = vmatprep.mubr.bf16.mxu0 %v980
    %1061 = vmatmul.mubr.bf16.gmra.mxu0 %v978
    %v1062 = vpop.f32.mrf.mxu0
    %v1063 = vadd.f32 %v1023, %v1062
    %v1064 = vpop.f32.mrf.mxu0
    %v1065 = vpop.f32.mrf.mxu0
    %v1066 = vpop.f32.mrf.mxu0
    %1067 = vdwg.mxu0
    %1068 = vmatprep.subr.bf16.mxu0 0
    %1069 = vmatpush1.bf16.msra.mxu0 %v464
    %1070 = vmatprep.subr.bf16.mxu0 0
    %1071 = vmatpush1.bf16.msra.mxu0 %v463
    %1072 = vmatprep.subr.bf16.mxu0 0
    %1073 = vmatpush1.bf16.msra.mxu0 %v462
    %1074 = vmatprep.subr.bf16.mxu0 0
    %1075 = vmatpush1.bf16.msra.mxu0 %v461
    %1076 = vmatprep.subr.bf16.mxu0 0
    %1077 = vmatpush1.bf16.msra.mxu0 %v460
    %1078 = vmatprep.subr.bf16.mxu0 0
    %1079 = vmatpush1.bf16.msra.mxu0 %v459
    %1080 = vmatprep.subr.bf16.mxu0 0
    %1081 = vmatpush1.bf16.msra.mxu0 %v458
    %1082 = vmatprep.subr.bf16.mxu0 0
    %1083 = vmatpush1.bf16.msra.mxu0 %v457
    %1084 = vmatprep.subr.bf16.mxu0 0
    %1085 = vmatpush2.bf16.msra.mxu0 %v472
    %1086 = vmatprep.subr.bf16.mxu0 0
    %1087 = vmatpush2.bf16.msra.mxu0 %v471
    %1088 = vmatprep.subr.bf16.mxu0 0
    %1089 = vmatpush2.bf16.msra.mxu0 %v470
    %1090 = vmatprep.subr.bf16.mxu0 0
    %1091 = vmatpush2.bf16.msra.mxu0 %v469
    %1092 = vmatprep.subr.bf16.mxu0 0
    %1093 = vmatpush2.bf16.msra.mxu0 %v468
    %1094 = vmatprep.subr.bf16.mxu0 0
    %1095 = vmatpush2.bf16.msra.mxu0 %v467
    %1096 = vmatprep.subr.bf16.mxu0 0
    %1097 = vmatpush2.bf16.msra.mxu0 %v466
    %1098 = vmatprep.subr.bf16.mxu0 0
    %1099 = vmatpush2.bf16.msra.mxu0 %v465
    %1100 = vmatprep.mubr.bf16.mxu0 %v977
    %1101 = vmatmul.mubr.bf16.gmra.mxu0 %v963
    %v1102 = vpop.f32.mrf.mxu0
    %v1103 = vadd.f32 %v1063, %v1102
    %v1104 = vpop.f32.mrf.mxu0
    %v1105 = vpop.f32.mrf.mxu0
    %v1106 = vpop.f32.mrf.mxu0
    %1107 = vdwg.mxu0
    %1108 = vmatprep.subr.bf16.mxu0 0
    %1109 = vmatpush1.bf16.msra.mxu0 %v480
    %1110 = vmatprep.subr.bf16.mxu0 0
    %1111 = vmatpush1.bf16.msra.mxu0 %v479
    %1112 = vmatprep.subr.bf16.mxu0 0
    %1113 = vmatpush1.bf16.msra.mxu0 %v478
    %1114 = vmatprep.subr.bf16.mxu0 0
    %1115 = vmatpush1.bf16.msra.mxu0 %v477
    %1116 = vmatprep.subr.bf16.mxu0 0
    %1117 = vmatpush1.bf16.msra.mxu0 %v476
    %1118 = vmatprep.subr.bf16.mxu0 0
    %1119 = vmatpush1.bf16.msra.mxu0 %v475
    %1120 = vmatprep.subr.bf16.mxu0 0
    %1121 = vmatpush1.bf16.msra.mxu0 %v474
    %1122 = vmatprep.subr.bf16.mxu0 0
    %1123 = vmatpush1.bf16.msra.mxu0 %v473
    %1124 = vmatprep.subr.bf16.mxu0 0
    %1125 = vmatpush2.bf16.msra.mxu0 0
    %1126 = vmatprep.subr.bf16.mxu0 0
    %1127 = vmatpush2.bf16.msra.mxu0 0
    %1128 = vmatprep.subr.bf16.mxu0 0
    %1129 = vmatpush2.bf16.msra.mxu0 0
    %1130 = vmatprep.subr.bf16.mxu0 0
    %1131 = vmatpush2.bf16.msra.mxu0 0
    %1132 = vmatprep.subr.bf16.mxu0 0
    %1133 = vmatpush2.bf16.msra.mxu0 0
    %1134 = vmatprep.subr.bf16.mxu0 0
    %1135 = vmatpush2.bf16.msra.mxu0 0
    %1136 = vmatprep.subr.bf16.mxu0 0
    %1137 = vmatpush2.bf16.msra.mxu0 0
    %1138 = vmatprep.subr.bf16.mxu0 0
    %1139 = vmatpush2.bf16.msra.mxu0 0
    %1140 = vmatprep.mubr.bf16.mxu0 0
    %1141 = vmatmul.mubr.bf16.gmra.mxu0 %v979
    %v1142 = vpop.f32.mrf.mxu0
    %v1143 = vadd.f32 %v1103, %v1142
    %v1144 = vpop.f32.mrf.mxu0
    %v1145 = vpop.f32.mrf.mxu0
    %v1146 = vpop.f32.mrf.mxu0
    %1147 = vdwg.mxu0
    %v1148 = vmax.f32 %v1143, 0.0
    %v1149 = vmul.f32 %v1148, %v701
    %v1150 = vadd.f32 %v1149, %v706
    %s1151 = scalar_lea.vmem %s0, 21
    %v1152 = vld [vmem:[%s1151] sm:$0x7f]
    %v1154 = vcombine.high %v1152, %v1152
    %v1156 = vunpack.c.l.s4 1966171168
    %v1157 = vunpack.c.0.s8 %v1156
    %v1158 = vlaneseq
    %v1159 = vshrl.u32 %v1158, 7
    %v1160 = vsub.s32 %v1157, %v1159
    %v1161 = vrot.slane %v1152, %v1160
    %v1163 = vunpack.c.l.s4 1966171168
    %v1164 = vunpack.c.0.s8 %v1163
    %v1165 = vlaneseq
    %v1166 = vshrl.u32 %v1165, 7
    %v1167 = vsub.s32 %v1164, %v1166
    %v1168 = vrot.slane %v1154, %v1167
    %v1169 = vcombine.high %v1161, %v1161
    %v1170 = vcombine.high %v1168, %v1168
    %v1172 = vunpack.c.l.s4 1966171168
    %v1173 = vunpack.c.0.s8 %v1172
    %v1174 = vlaneseq
    %v1175 = vshrl.u32 %v1174, 7
    %v1176 = vsub.s32 %v1173, %v1175
    %v1177 = vrot.slane %v1161, %v1176
    %v1179 = vunpack.c.l.s4 1966171168
    %v1180 = vunpack.c.0.s8 %v1179
    %v1181 = vlaneseq
    %v1182 = vshrl.u32 %v1181, 7
    %v1183 = vsub.s32 %v1180, %v1182
    %v1184 = vrot.slane %v1168, %v1183
    %v1186 = vunpack.c.l.s4 1966171168
    %v1187 = vunpack.c.0.s8 %v1186
    %v1188 = vlaneseq
    %v1189 = vshrl.u32 %v1188, 7
    %v1190 = vsub.s32 %v1187, %v1189
    %v1191 = vrot.slane %v1169, %v1190
    %v1193 = vunpack.c.l.s4 1966171168
    %v1194 = vunpack.c.0.s8 %v1193
    %v1195 = vlaneseq
    %v1196 = vshrl.u32 %v1195, 7
    %v1197 = vsub.s32 %v1194, %v1196
    %v1198 = vrot.slane %v1170, %v1197
    %v1199 = vcombine.high %v1177, %v1177
    %v1200 = vcombine.high %v1184, %v1184
    %v1201 = vcombine.high %v1191, %v1191
    %1209 = vmatprep.subr.bf16.mxu0 0
    %1210 = vmatpush1.bf16.msra.mxu0 %v432
    %1211 = vmatprep.subr.bf16.mxu0 0
    %1212 = vmatpush1.bf16.msra.mxu0 %v431
    %1213 = vmatprep.subr.bf16.mxu0 0
    %1214 = vmatpush1.bf16.msra.mxu0 %v430
    %1215 = vmatprep.subr.bf16.mxu0 0
    %1216 = vmatpush1.bf16.msra.mxu0 %v429
    %1217 = vmatprep.subr.bf16.mxu0 0
    %1218 = vmatpush1.bf16.msra.mxu0 %v428
    %1219 = vmatprep.subr.bf16.mxu0 0
    %1220 = vmatpush1.bf16.msra.mxu0 %v427
    %1221 = vmatprep.subr.bf16.mxu0 0
    %1222 = vmatpush1.bf16.msra.mxu0 %v426
    %1223 = vmatprep.subr.bf16.mxu0 0
    %1224 = vmatpush1.bf16.msra.mxu0 %v425
    %1225 = vmatprep.subr.bf16.mxu0 0
    %1226 = vmatpush2.bf16.msra.mxu0 %v440
    %1227 = vmatprep.subr.bf16.mxu0 0
    %1228 = vmatpush2.bf16.msra.mxu0 %v439
    %1229 = vmatprep.subr.bf16.mxu0 0
    %1230 = vmatpush2.bf16.msra.mxu0 %v438
    %1231 = vmatprep.subr.bf16.mxu0 0
    %1232 = vmatpush2.bf16.msra.mxu0 %v437
    %1233 = vmatprep.subr.bf16.mxu0 0
    %1234 = vmatpush2.bf16.msra.mxu0 %v436
    %1235 = vmatprep.subr.bf16.mxu0 0
    %1236 = vmatpush2.bf16.msra.mxu0 %v435
    %1237 = vmatprep.subr.bf16.mxu0 0
    %1238 = vmatpush2.bf16.msra.mxu0 %v434
    %1239 = vmatprep.subr.bf16.mxu0 0
    %1240 = vmatpush2.bf16.msra.mxu0 %v433
    %1241 = vmatprep.mubr.bf16.mxu0 %v1191
    %1242 = vmatmul.mubr.bf16.gmra.mxu0 %v1177
    %v1243 = vpop.f32.mrf.mxu0
    %v1244 = vadd.f32 %v144, %v1243
    %v1245 = vpop.f32.mrf.mxu0
    %v1246 = vpop.f32.mrf.mxu0
    %v1247 = vpop.f32.mrf.mxu0
    %1248 = vdwg.mxu0
    %1249 = vmatprep.subr.bf16.mxu0 0
    %1250 = vmatpush1.bf16.msra.mxu0 %v448
    %1251 = vmatprep.subr.bf16.mxu0 0
    %1252 = vmatpush1.bf16.msra.mxu0 %v447
    %1253 = vmatprep.subr.bf16.mxu0 0
    %1254 = vmatpush1.bf16.msra.mxu0 %v446
    %1255 = vmatprep.subr.bf16.mxu0 0
    %1256 = vmatpush1.bf16.msra.mxu0 %v445
    %1257 = vmatprep.subr.bf16.mxu0 0
    %1258 = vmatpush1.bf16.msra.mxu0 %v444
    %1259 = vmatprep.subr.bf16.mxu0 0
    %1260 = vmatpush1.bf16.msra.mxu0 %v443
    %1261 = vmatprep.subr.bf16.mxu0 0
    %1262 = vmatpush1.bf16.msra.mxu0 %v442
    %1263 = vmatprep.subr.bf16.mxu0 0
    %1264 = vmatpush1.bf16.msra.mxu0 %v441
    %1265 = vmatprep.subr.bf16.mxu0 0
    %1266 = vmatpush2.bf16.msra.mxu0 %v456
    %1267 = vmatprep.subr.bf16.mxu0 0
    %1268 = vmatpush2.bf16.msra.mxu0 %v455
    %1269 = vmatprep.subr.bf16.mxu0 0
    %1270 = vmatpush2.bf16.msra.mxu0 %v454
    %1271 = vmatprep.subr.bf16.mxu0 0
    %1272 = vmatpush2.bf16.msra.mxu0 %v453
    %1273 = vmatprep.subr.bf16.mxu0 0
    %1274 = vmatpush2.bf16.msra.mxu0 %v452
    %1275 = vmatprep.subr.bf16.mxu0 0
    %1276 = vmatpush2.bf16.msra.mxu0 %v451
    %1277 = vmatprep.subr.bf16.mxu0 0
    %1278 = vmatpush2.bf16.msra.mxu0 %v450
    %1279 = vmatprep.subr.bf16.mxu0 0
    %1280 = vmatpush2.bf16.msra.mxu0 %v449
    %1281 = vmatprep.mubr.bf16.mxu0 %v1201
    %1282 = vmatmul.mubr.bf16.gmra.mxu0 %v1199
    %v1283 = vpop.f32.mrf.mxu0
    %v1284 = vadd.f32 %v1244, %v1283
    %v1285 = vpop.f32.mrf.mxu0
    %v1286 = vpop.f32.mrf.mxu0
    %v1287 = vpop.f32.mrf.mxu0
    %1288 = vdwg.mxu0
    %1289 = vmatprep.subr.bf16.mxu0 0
    %1290 = vmatpush1.bf16.msra.mxu0 %v464
    %1291 = vmatprep.subr.bf16.mxu0 0
    %1292 = vmatpush1.bf16.msra.mxu0 %v463
    %1293 = vmatprep.subr.bf16.mxu0 0
    %1294 = vmatpush1.bf16.msra.mxu0 %v462
    %1295 = vmatprep.subr.bf16.mxu0 0
    %1296 = vmatpush1.bf16.msra.mxu0 %v461
    %1297 = vmatprep.subr.bf16.mxu0 0
    %1298 = vmatpush1.bf16.msra.mxu0 %v460
    %1299 = vmatprep.subr.bf16.mxu0 0
    %1300 = vmatpush1.bf16.msra.mxu0 %v459
    %1301 = vmatprep.subr.bf16.mxu0 0
    %1302 = vmatpush1.bf16.msra.mxu0 %v458
    %1303 = vmatprep.subr.bf16.mxu0 0
    %1304 = vmatpush1.bf16.msra.mxu0 %v457
    %1305 = vmatprep.subr.bf16.mxu0 0
    %1306 = vmatpush2.bf16.msra.mxu0 %v472
    %1307 = vmatprep.subr.bf16.mxu0 0
    %1308 = vmatpush2.bf16.msra.mxu0 %v471
    %1309 = vmatprep.subr.bf16.mxu0 0
    %1310 = vmatpush2.bf16.msra.mxu0 %v470
    %1311 = vmatprep.subr.bf16.mxu0 0
    %1312 = vmatpush2.bf16.msra.mxu0 %v469
    %1313 = vmatprep.subr.bf16.mxu0 0
    %1314 = vmatpush2.bf16.msra.mxu0 %v468
    %1315 = vmatprep.subr.bf16.mxu0 0
    %1316 = vmatpush2.bf16.msra.mxu0 %v467
    %1317 = vmatprep.subr.bf16.mxu0 0
    %1318 = vmatpush2.bf16.msra.mxu0 %v466
    %1319 = vmatprep.subr.bf16.mxu0 0
    %1320 = vmatpush2.bf16.msra.mxu0 %v465
    %1321 = vmatprep.mubr.bf16.mxu0 %v1198
    %1322 = vmatmul.mubr.bf16.gmra.mxu0 %v1184
    %v1323 = vpop.f32.mrf.mxu0
    %v1324 = vadd.f32 %v1284, %v1323
    %v1325 = vpop.f32.mrf.mxu0
    %v1326 = vpop.f32.mrf.mxu0
    %v1327 = vpop.f32.mrf.mxu0
    %1328 = vdwg.mxu0
    %1329 = vmatprep.subr.bf16.mxu0 0
    %1330 = vmatpush1.bf16.msra.mxu0 %v480
    %1331 = vmatprep.subr.bf16.mxu0 0
    %1332 = vmatpush1.bf16.msra.mxu0 %v479
    %1333 = vmatprep.subr.bf16.mxu0 0
    %1334 = vmatpush1.bf16.msra.mxu0 %v478
    %1335 = vmatprep.subr.bf16.mxu0 0
    %1336 = vmatpush1.bf16.msra.mxu0 %v477
    %1337 = vmatprep.subr.bf16.mxu0 0
    %1338 = vmatpush1.bf16.msra.mxu0 %v476
    %1339 = vmatprep.subr.bf16.mxu0 0
    %1340 = vmatpush1.bf16.msra.mxu0 %v475
    %1341 = vmatprep.subr.bf16.mxu0 0
    %1342 = vmatpush1.bf16.msra.mxu0 %v474
    %1343 = vmatprep.subr.bf16.mxu0 0
    %1344 = vmatpush1.bf16.msra.mxu0 %v473
    %1345 = vmatprep.subr.bf16.mxu0 0
    %1346 = vmatpush2.bf16.msra.mxu0 0
    %1347 = vmatprep.subr.bf16.mxu0 0
    %1348 = vmatpush2.bf16.msra.mxu0 0
    %1349 = vmatprep.subr.bf16.mxu0 0
    %1350 = vmatpush2.bf16.msra.mxu0 0
    %1351 = vmatprep.subr.bf16.mxu0 0
    %1352 = vmatpush2.bf16.msra.mxu0 0
    %1353 = vmatprep.subr.bf16.mxu0 0
    %1354 = vmatpush2.bf16.msra.mxu0 0
    %1355 = vmatprep.subr.bf16.mxu0 0
    %1356 = vmatpush2.bf16.msra.mxu0 0
    %1357 = vmatprep.subr.bf16.mxu0 0
    %1358 = vmatpush2.bf16.msra.mxu0 0
    %1359 = vmatprep.subr.bf16.mxu0 0
    %1360 = vmatpush2.bf16.msra.mxu0 0
    %1361 = vmatprep.mubr.bf16.mxu0 0
    %1362 = vmatmul.mubr.bf16.gmra.mxu0 %v1200
    %v1363 = vpop.f32.mrf.mxu0
    %v1364 = vadd.f32 %v1324, %v1363
    %v1365 = vpop.f32.mrf.mxu0
    %v1366 = vpop.f32.mrf.mxu0
    %v1367 = vpop.f32.mrf.mxu0
    %1368 = vdwg.mxu0
    %v1369 = vmax.f32 %v1364, 0.0
    %v1370 = vmul.f32 %v1369, %v701
    %v1371 = vadd.f32 %v1370, %v706
    %v1372 = vmax.f32 %v1150, %v1371
    %v1373 = vmax.f32 %v929, %v1372
    %v1374 = vld [vmem:[%s4] sm:$0xff]
    %v1375 = vld [vmem:[%s4 + $0x8] sm:$0xff]
    %v1376 = vld [vmem:[%s4 + $0x10] sm:$0xff]
    %v1377 = vld [vmem:[%s4 + $0x18] sm:$0xff]
    %v1378 = vld [vmem:[%s4 + $0x20] sm:$0xff]
    %v1379 = vld [vmem:[%s4 + $0x28] sm:$0xff]
    %v1380 = vld [vmem:[%s4 + $0x30] sm:$0xff]
    %v1381 = vld [vmem:[%s4 + $0x38] sm:$0xff]
    %v1382 = vld [vmem:[%s4 + $0x40] sm:$0xff]
    %v1383 = vld [vmem:[%s4 + $0x48] sm:$0xff]
    %v1384 = vld [vmem:[%s4 + $0x50] sm:$0xff]
    %v1385 = vld [vmem:[%s4 + $0x58] sm:$0xff]
    %v1386 = vld [vmem:[%s4 + $0x60] sm:$0xff]
    %v1387 = vld [vmem:[%s4 + $0x68] sm:$0xff]
    %v1388 = vld [vmem:[%s4 + $0x70] sm:$0xff]
    %v1389 = vld [vmem:[%s4 + $0x78] sm:$0xff]
    %v1390 = vld [vmem:[%s5] sm:$0x1]
    %v1391 = vlaneseq
    %v1392 = vshrl.u32 %v1391, 7
    %v1393 = vsub.s32 0, %v1392
    %v1394 = vrot.slane %v1390, %v1393
    %1395 = vmatprep.subr.mxu0 0.0
    %1396 = vmatpush1.msra.mxu0 %v1389
    %1397 = vmatprep.subr.mxu0 0.0
    %1398 = vmatpush1.msra.mxu0 %v1388
    %1399 = vmatprep.subr.mxu0 0.0
    %1400 = vmatpush1.msra.mxu0 %v1387
    %1401 = vmatprep.subr.mxu0 0.0
    %1402 = vmatpush1.msra.mxu0 %v1386
    %1403 = vmatprep.subr.mxu0 0.0
    %1404 = vmatpush1.msra.mxu0 %v1385
    %1405 = vmatprep.subr.mxu0 0.0
    %1406 = vmatpush1.msra.mxu0 %v1384
    %1407 = vmatprep.subr.mxu0 0.0
    %1408 = vmatpush1.msra.mxu0 %v1383
    %1409 = vmatprep.subr.mxu0 0.0
    %1410 = vmatpush1.msra.mxu0 %v1382
    %1411 = vmatprep.subr.mxu0 0.0
    %1412 = vmatpush1.msra.mxu0 %v1381
    %1413 = vmatprep.subr.mxu0 0.0
    %1414 = vmatpush1.msra.mxu0 %v1380
    %1415 = vmatprep.subr.mxu0 0.0
    %1416 = vmatpush1.msra.mxu0 %v1379
    %1417 = vmatprep.subr.mxu0 0.0
    %1418 = vmatpush1.msra.mxu0 %v1378
    %1419 = vmatprep.subr.mxu0 0.0
    %1420 = vmatpush1.msra.mxu0 %v1377
    %1421 = vmatprep.subr.mxu0 0.0
    %1422 = vmatpush1.msra.mxu0 %v1376
    %1423 = vmatprep.subr.mxu0 0.0
    %1424 = vmatpush1.msra.mxu0 %v1375
    %1425 = vmatprep.subr.mxu0 0.0
    %1426 = vmatpush1.msra.mxu0 %v1374
    %1427 = vmatprep.subr.mxu0 0.0
    %1428 = vmatpush2.msra.mxu0 0.0
    %1429 = vmatprep.subr.mxu0 0.0
    %1430 = vmatpush2.msra.mxu0 0.0
    %1431 = vmatprep.subr.mxu0 0.0
    %1432 = vmatpush2.msra.mxu0 0.0
    %1433 = vmatprep.subr.mxu0 0.0
    %1434 = vmatpush2.msra.mxu0 0.0
    %1435 = vmatprep.subr.mxu0 0.0
    %1436 = vmatpush2.msra.mxu0 0.0
    %1437 = vmatprep.subr.mxu0 0.0
    %1438 = vmatpush2.msra.mxu0 0.0
    %1439 = vmatprep.subr.mxu0 0.0
    %1440 = vmatpush2.msra.mxu0 0.0
    %1441 = vmatprep.subr.mxu0 0.0
    %1442 = vmatpush2.msra.mxu0 0.0
    %1443 = vmatprep.subr.mxu0 0.0
    %1444 = vmatpush2.msra.mxu0 0.0
    %1445 = vmatprep.subr.mxu0 0.0
    %1446 = vmatpush2.msra.mxu0 0.0
    %1447 = vmatprep.subr.mxu0 0.0
    %1448 = vmatpush2.msra.mxu0 0.0
    %1449 = vmatprep.subr.mxu0 0.0
    %1450 = vmatpush2.msra.mxu0 0.0
    %1451 = vmatprep.subr.mxu0 0.0
    %1452 = vmatpush2.msra.mxu0 0.0
    %1453 = vmatprep.subr.mxu0 0.0
    %1454 = vmatpush2.msra.mxu0 0.0
    %1455 = vmatprep.subr.mxu0 0.0
    %1456 = vmatpush2.msra.mxu0 0.0
    %1457 = vmatprep.subr.mxu0 0.0
    %1458 = vmatpush2.msra.mxu0 0.0
    %1459 = vmatprep.mubr.f32.mxu0 0.0
    %1460 = vmatmul.mubr.f32.gmra.mxu0 %v1373
    %v1461 = vpop.f32.mrf.mxu0
    %v1462 = vadd.f32 %v1394, %v1461
    %v1463 = vpop.f32.mrf.mxu0
    %1464 = vdwg.mxu0
    %v1465 = vmax.f32 %v1462, 0.0
    %v1466 = vld [vmem:[%s1] sm:$0x3]
    %s1467 = scalar_lea.vmem %s4, 128
    %v1468 = vld [vmem:[%s1467] sm:$0xff]
    %v1469 = vld [vmem:[%s1467 + $0x8] sm:$0xff]
    %v1470 = vld [vmem:[%s1467 + $0x10] sm:$0xff]
    %v1471 = vld [vmem:[%s1467 + $0x18] sm:$0xff]
    %v1472 = vld [vmem:[%s1467 + $0x20] sm:$0xff]
    %v1473 = vld [vmem:[%s1467 + $0x28] sm:$0xff]
    %v1474 = vld [vmem:[%s1467 + $0x30] sm:$0xff]
    %v1475 = vld [vmem:[%s1467 + $0x38] sm:$0xff]
    %v1476 = vld [vmem:[%s1467 + $0x40] sm:$0xff]
    %v1477 = vld [vmem:[%s1467 + $0x48] sm:$0xff]
    %v1478 = vld [vmem:[%s1467 + $0x50] sm:$0xff]
    %v1479 = vld [vmem:[%s1467 + $0x58] sm:$0xff]
    %v1480 = vld [vmem:[%s1467 + $0x60] sm:$0xff]
    %v1481 = vld [vmem:[%s1467 + $0x68] sm:$0xff]
    %v1482 = vld [vmem:[%s1467 + $0x70] sm:$0xff]
    %v1483 = vld [vmem:[%s1467 + $0x78] sm:$0xff]
    %v1484 = vld [vmem:[%s5 + $0x1] sm:$0x1]
    %v1485 = vlaneseq
    %v1486 = vshrl.u32 %v1485, 7
    %v1487 = vsub.s32 0, %v1486
    %v1488 = vrot.slane %v1484, %v1487
    %1489 = vmatprep.subr.mxu0 0.0
    %1490 = vmatpush1.msra.mxu0 %v1483
    %1491 = vmatprep.subr.mxu0 0.0
    %1492 = vmatpush1.msra.mxu0 %v1482
    %1493 = vmatprep.subr.mxu0 0.0
    %1494 = vmatpush1.msra.mxu0 %v1481
    %1495 = vmatprep.subr.mxu0 0.0
    %1496 = vmatpush1.msra.mxu0 %v1480
    %1497 = vmatprep.subr.mxu0 0.0
    %1498 = vmatpush1.msra.mxu0 %v1479
    %1499 = vmatprep.subr.mxu0 0.0
    %1500 = vmatpush1.msra.mxu0 %v1478
    %1501 = vmatprep.subr.mxu0 0.0
    %1502 = vmatpush1.msra.mxu0 %v1477
    %1503 = vmatprep.subr.mxu0 0.0
    %1504 = vmatpush1.msra.mxu0 %v1476
    %1505 = vmatprep.subr.mxu0 0.0
    %1506 = vmatpush1.msra.mxu0 %v1475
    %1507 = vmatprep.subr.mxu0 0.0
    %1508 = vmatpush1.msra.mxu0 %v1474
    %1509 = vmatprep.subr.mxu0 0.0
    %1510 = vmatpush1.msra.mxu0 %v1473
    %1511 = vmatprep.subr.mxu0 0.0
    %1512 = vmatpush1.msra.mxu0 %v1472
    %1513 = vmatprep.subr.mxu0 0.0
    %1514 = vmatpush1.msra.mxu0 %v1471
    %1515 = vmatprep.subr.mxu0 0.0
    %1516 = vmatpush1.msra.mxu0 %v1470
    %1517 = vmatprep.subr.mxu0 0.0
    %1518 = vmatpush1.msra.mxu0 %v1469
    %1519 = vmatprep.subr.mxu0 0.0
    %1520 = vmatpush1.msra.mxu0 %v1468
    %1521 = vmatprep.subr.mxu0 0.0
    %1522 = vmatpush2.msra.mxu0 0.0
    %1523 = vmatprep.subr.mxu0 0.0
    %1524 = vmatpush2.msra.mxu0 0.0
    %1525 = vmatprep.subr.mxu0 0.0
    %1526 = vmatpush2.msra.mxu0 0.0
    %1527 = vmatprep.subr.mxu0 0.0
    %1528 = vmatpush2.msra.mxu0 0.0
    %1529 = vmatprep.subr.mxu0 0.0
    %1530 = vmatpush2.msra.mxu0 0.0
    %1531 = vmatprep.subr.mxu0 0.0
    %1532 = vmatpush2.msra.mxu0 0.0
    %1533 = vmatprep.subr.mxu0 0.0
    %1534 = vmatpush2.msra.mxu0 0.0
    %1535 = vmatprep.subr.mxu0 0.0
    %1536 = vmatpush2.msra.mxu0 0.0
    %1537 = vmatprep.subr.mxu0 0.0
    %1538 = vmatpush2.msra.mxu0 0.0
    %1539 = vmatprep.subr.mxu0 0.0
    %1540 = vmatpush2.msra.mxu0 0.0
    %1541 = vmatprep.subr.mxu0 0.0
    %1542 = vmatpush2.msra.mxu0 0.0
    %1543 = vmatprep.subr.mxu0 0.0
    %1544 = vmatpush2.msra.mxu0 0.0
    %1545 = vmatprep.subr.mxu0 0.0
    %1546 = vmatpush2.msra.mxu0 0.0
    %1547 = vmatprep.subr.mxu0 0.0
    %1548 = vmatpush2.msra.mxu0 0.0
    %1549 = vmatprep.subr.mxu0 0.0
    %1550 = vmatpush2.msra.mxu0 0.0
    %1551 = vmatprep.subr.mxu0 0.0
    %1552 = vmatpush2.msra.mxu0 0.0
    %1553 = vmatprep.mubr.f32.mxu0 0.0
    %1554 = vmatmul.mubr.f32.gmra.mxu0 %v1466
    %v1555 = vpop.f32.mrf.mxu0
    %v1556 = vadd.f32 %v1488, %v1555
    %v1557 = vpop.f32.mrf.mxu0
    %1558 = vdwg.mxu0
    %v1559 = vmax.f32 %v1556, 0.0
    %s1560 = scalar_lea.vmem %s4, 256
    %v1561 = vld [vmem:[%s1560] sm:$0xff]
    %v1562 = vld [vmem:[%s1560 + $0x8] sm:$0xff]
    %v1563 = vld [vmem:[%s1560 + $0x10] sm:$0xff]
    %v1564 = vld [vmem:[%s1560 + $0x18] sm:$0xff]
    %v1565 = vld [vmem:[%s1560 + $0x20] sm:$0xff]
    %v1566 = vld [vmem:[%s1560 + $0x28] sm:$0xff]
    %v1567 = vld [vmem:[%s1560 + $0x30] sm:$0xff]
    %v1568 = vld [vmem:[%s1560 + $0x38] sm:$0xff]
    %v1569 = vld [vmem:[%s1560 + $0x40] sm:$0xff]
    %v1570 = vld [vmem:[%s1560 + $0x48] sm:$0xff]
    %v1571 = vld [vmem:[%s1560 + $0x50] sm:$0xff]
    %v1572 = vld [vmem:[%s1560 + $0x58] sm:$0xff]
    %v1573 = vld [vmem:[%s1560 + $0x60] sm:$0xff]
    %v1574 = vld [vmem:[%s1560 + $0x68] sm:$0xff]
    %v1575 = vld [vmem:[%s1560 + $0x70] sm:$0xff]
    %v1576 = vld [vmem:[%s1560 + $0x78] sm:$0xff]
    %v1577 = vld [vmem:[%s5 + $0x2] sm:$0x1]
    %v1578 = vlaneseq
    %v1579 = vshrl.u32 %v1578, 7
    %v1580 = vsub.s32 0, %v1579
    %v1581 = vrot.slane %v1577, %v1580
    %1582 = vmatprep.subr.mxu0 0.0
    %1583 = vmatpush1.msra.mxu0 %v1576
    %1584 = vmatprep.subr.mxu0 0.0
    %1585 = vmatpush1.msra.mxu0 %v1575
    %1586 = vmatprep.subr.mxu0 0.0
    %1587 = vmatpush1.msra.mxu0 %v1574
    %1588 = vmatprep.subr.mxu0 0.0
    %1589 = vmatpush1.msra.mxu0 %v1573
    %1590 = vmatprep.subr.mxu0 0.0
    %1591 = vmatpush1.msra.mxu0 %v1572
    %1592 = vmatprep.subr.mxu0 0.0
    %1593 = vmatpush1.msra.mxu0 %v1571
    %1594 = vmatprep.subr.mxu0 0.0
    %1595 = vmatpush1.msra.mxu0 %v1570
    %1596 = vmatprep.subr.mxu0 0.0
    %1597 = vmatpush1.msra.mxu0 %v1569
    %1598 = vmatprep.subr.mxu0 0.0
    %1599 = vmatpush1.msra.mxu0 %v1568
    %1600 = vmatprep.subr.mxu0 0.0
    %1601 = vmatpush1.msra.mxu0 %v1567
    %1602 = vmatprep.subr.mxu0 0.0
    %1603 = vmatpush1.msra.mxu0 %v1566
    %1604 = vmatprep.subr.mxu0 0.0
    %1605 = vmatpush1.msra.mxu0 %v1565
    %1606 = vmatprep.subr.mxu0 0.0
    %1607 = vmatpush1.msra.mxu0 %v1564
    %1608 = vmatprep.subr.mxu0 0.0
    %1609 = vmatpush1.msra.mxu0 %v1563
    %1610 = vmatprep.subr.mxu0 0.0
    %1611 = vmatpush1.msra.mxu0 %v1562
    %1612 = vmatprep.subr.mxu0 0.0
    %1613 = vmatpush1.msra.mxu0 %v1561
    %1614 = vmatprep.subr.mxu0 0.0
    %1615 = vmatpush2.msra.mxu0 0.0
    %1616 = vmatprep.subr.mxu0 0.0
    %1617 = vmatpush2.msra.mxu0 0.0
    %1618 = vmatprep.subr.mxu0 0.0
    %1619 = vmatpush2.msra.mxu0 0.0
    %1620 = vmatprep.subr.mxu0 0.0
    %1621 = vmatpush2.msra.mxu0 0.0
    %1622 = vmatprep.subr.mxu0 0.0
    %1623 = vmatpush2.msra.mxu0 0.0
    %1624 = vmatprep.subr.mxu0 0.0
    %1625 = vmatpush2.msra.mxu0 0.0
    %1626 = vmatprep.subr.mxu0 0.0
    %1627 = vmatpush2.msra.mxu0 0.0
    %1628 = vmatprep.subr.mxu0 0.0
    %1629 = vmatpush2.msra.mxu0 0.0
    %1630 = vmatprep.subr.mxu0 0.0
    %1631 = vmatpush2.msra.mxu0 0.0
    %1632 = vmatprep.subr.mxu0 0.0
    %1633 = vmatpush2.msra.mxu0 0.0
    %1634 = vmatprep.subr.mxu0 0.0
    %1635 = vmatpush2.msra.mxu0 0.0
    %1636 = vmatprep.subr.mxu0 0.0
    %1637 = vmatpush2.msra.mxu0 0.0
    %1638 = vmatprep.subr.mxu0 0.0
    %1639 = vmatpush2.msra.mxu0 0.0
    %1640 = vmatprep.subr.mxu0 0.0
    %1641 = vmatpush2.msra.mxu0 0.0
    %1642 = vmatprep.subr.mxu0 0.0
    %1643 = vmatpush2.msra.mxu0 0.0
    %1644 = vmatprep.subr.mxu0 0.0
    %1645 = vmatpush2.msra.mxu0 0.0
    %1646 = vmatprep.mubr.f32.mxu0 0.0
    %1647 = vmatmul.mubr.f32.gmra.mxu0 %v1559
    %v1648 = vpop.f32.mrf.mxu0
    %v1649 = vadd.f32 %v1581, %v1648
    %v1650 = vpop.f32.mrf.mxu0
    %1651 = vdwg.mxu0
    %v1652 = vmax.f32 %v1649, 0.0
    %s1653 = scalar_lea.vmem %s4, 384
    %v1654 = vld [vmem:[%s1653] sm:$0xff]
    %v1655 = vld [vmem:[%s1653 + $0x8] sm:$0xff]
    %v1656 = vld [vmem:[%s1653 + $0x10] sm:$0xff]
    %v1657 = vld [vmem:[%s1653 + $0x18] sm:$0xff]
    %v1658 = vld [vmem:[%s1653 + $0x20] sm:$0xff]
    %v1659 = vld [vmem:[%s1653 + $0x28] sm:$0xff]
    %v1660 = vld [vmem:[%s1653 + $0x30] sm:$0xff]
    %v1661 = vld [vmem:[%s1653 + $0x38] sm:$0xff]
    %v1662 = vld [vmem:[%s1653 + $0x40] sm:$0xff]
    %v1663 = vld [vmem:[%s1653 + $0x48] sm:$0xff]
    %v1664 = vld [vmem:[%s1653 + $0x50] sm:$0xff]
    %v1665 = vld [vmem:[%s1653 + $0x58] sm:$0xff]
    %v1666 = vld [vmem:[%s1653 + $0x60] sm:$0xff]
    %v1667 = vld [vmem:[%s1653 + $0x68] sm:$0xff]
    %v1668 = vld [vmem:[%s1653 + $0x70] sm:$0xff]
    %v1669 = vld [vmem:[%s1653 + $0x78] sm:$0xff]
    %v1670 = vld [vmem:[%s5 + $0x3] sm:$0x1]
    %v1671 = vlaneseq
    %v1672 = vshrl.u32 %v1671, 7
    %v1673 = vsub.s32 0, %v1672
    %v1674 = vrot.slane %v1670, %v1673
    %1675 = vmatprep.subr.mxu0 0.0
    %1676 = vmatpush1.msra.mxu0 %v1669
    %1677 = vmatprep.subr.mxu0 0.0
    %1678 = vmatpush1.msra.mxu0 %v1668
    %1679 = vmatprep.subr.mxu0 0.0
    %1680 = vmatpush1.msra.mxu0 %v1667
    %1681 = vmatprep.subr.mxu0 0.0
    %1682 = vmatpush1.msra.mxu0 %v1666
    %1683 = vmatprep.subr.mxu0 0.0
    %1684 = vmatpush1.msra.mxu0 %v1665
    %1685 = vmatprep.subr.mxu0 0.0
    %1686 = vmatpush1.msra.mxu0 %v1664
    %1687 = vmatprep.subr.mxu0 0.0
    %1688 = vmatpush1.msra.mxu0 %v1663
    %1689 = vmatprep.subr.mxu0 0.0
    %1690 = vmatpush1.msra.mxu0 %v1662
    %1691 = vmatprep.subr.mxu0 0.0
    %1692 = vmatpush1.msra.mxu0 %v1661
    %1693 = vmatprep.subr.mxu0 0.0
    %1694 = vmatpush1.msra.mxu0 %v1660
    %1695 = vmatprep.subr.mxu0 0.0
    %1696 = vmatpush1.msra.mxu0 %v1659
    %1697 = vmatprep.subr.mxu0 0.0
    %1698 = vmatpush1.msra.mxu0 %v1658
    %1699 = vmatprep.subr.mxu0 0.0
    %1700 = vmatpush1.msra.mxu0 %v1657
    %1701 = vmatprep.subr.mxu0 0.0
    %1702 = vmatpush1.msra.mxu0 %v1656
    %1703 = vmatprep.subr.mxu0 0.0
    %1704 = vmatpush1.msra.mxu0 %v1655
    %1705 = vmatprep.subr.mxu0 0.0
    %1706 = vmatpush1.msra.mxu0 %v1654
    %1707 = vmatprep.subr.mxu0 0.0
    %1708 = vmatpush2.msra.mxu0 0.0
    %1709 = vmatprep.subr.mxu0 0.0
    %1710 = vmatpush2.msra.mxu0 0.0
    %1711 = vmatprep.subr.mxu0 0.0
    %1712 = vmatpush2.msra.mxu0 0.0
    %1713 = vmatprep.subr.mxu0 0.0
    %1714 = vmatpush2.msra.mxu0 0.0
    %1715 = vmatprep.subr.mxu0 0.0
    %1716 = vmatpush2.msra.mxu0 0.0
    %1717 = vmatprep.subr.mxu0 0.0
    %1718 = vmatpush2.msra.mxu0 0.0
    %1719 = vmatprep.subr.mxu0 0.0
    %1720 = vmatpush2.msra.mxu0 0.0
    %1721 = vmatprep.subr.mxu0 0.0
    %1722 = vmatpush2.msra.mxu0 0.0
    %1723 = vmatprep.subr.mxu0 0.0
    %1724 = vmatpush2.msra.mxu0 0.0
    %1725 = vmatprep.subr.mxu0 0.0
    %1726 = vmatpush2.msra.mxu0 0.0
    %1727 = vmatprep.subr.mxu0 0.0
    %1728 = vmatpush2.msra.mxu0 0.0
    %1729 = vmatprep.subr.mxu0 0.0
    %1730 = vmatpush2.msra.mxu0 0.0
    %1731 = vmatprep.subr.mxu0 0.0
    %1732 = vmatpush2.msra.mxu0 0.0
    %1733 = vmatprep.subr.mxu0 0.0
    %1734 = vmatpush2.msra.mxu0 0.0
    %1735 = vmatprep.subr.mxu0 0.0
    %1736 = vmatpush2.msra.mxu0 0.0
    %1737 = vmatprep.subr.mxu0 0.0
    %1738 = vmatpush2.msra.mxu0 0.0
    %1739 = vmatprep.mubr.f32.mxu0 0.0
    %1740 = vmatmul.mubr.f32.gmra.mxu0 %v1652
    %v1741 = vpop.f32.mrf.mxu0
    %v1742 = vadd.f32 %v1674, %v1741
    %v1743 = vpop.f32.mrf.mxu0
    %1744 = vdwg.mxu0
    %v1745 = vmax.f32 %v1742, 0.0
    %v1746 = vlaneseq
    %v1747 = vand.u32 %v1746, 127
    %vm1748 = vcmp.lt.s32.totalorder %v1747, 32
    %vm1749 = vcmp.lt.s32.totalorder %v1747, 16
    %v1750 = vsel %vm1748, 1, 0
    %vm1751 = vcmp.eq.s32.totalorder %v1750, 1
    %v1752 = vsel %vm1751, %v1745, 0.0
    %vm1753 = vcmask 1041408
    %v1754 = vsel %vm1753, %v1752, -inf
    %1755 = vmax.xlane.f32.xlu0 %v1754
    %v1756 = vpop.xlane.xlu0 %1755
    %v1757 = vsel %vm1749, 1, 0
    %vm1758 = vcmp.eq.s32.totalorder %v1757, 1
    %v1759 = vsel %vm1758, %v1465, 0.0
    %v1760 = vsel %vm1753, %v1759, -inf
    %1761 = vmax.xlane.f32.xlu0 %v1760
    %v1762 = vpop.xlane.xlu0 %1761
    %v1763 = vmax.f32 %v1756, %v1762
    %v1764 = vsub.f32 %v1745, %v1763
    %v1765 = vmul.f32 %v1764, 1.442695
    %v1766 = vpow.pop %v1765
    %v1767 = vsel %vm1751, %v1766, 0.0
    %v1768 = vsub.f32 %v1465, %v1763
    %v1769 = vmul.f32 %v1768, 1.442695
    %v1770 = vpow.pop %v1769
    %v1771 = vsel %vm1758, %v1770, 0.0
    %v1772 = vsel %vm1753, %v1767, 0.0
    %1773 = vadd.xlane.f32.xlu0 %v1772
    %v1774 = vpop.xlane.xlu0 %1773
    %v1775 = vsel %vm1753, %v1771, 0.0
    %1776 = vadd.xlane.f32.xlu0 %v1775
    %v1777 = vpop.xlane.xlu0 %1776
    %v1778 = vadd.f32 %v1774, %v1777
    %s1779 = scalar_lea.vmem %s4, 512
    %v1780 = vld [vmem:[%s1779] sm:$0xff]
    %v1781 = vld [vmem:[%s1779 + $0x8] sm:$0xff]
    %v1782 = vld [vmem:[%s1779 + $0x10] sm:$0xff]
    %v1783 = vld [vmem:[%s1779 + $0x18] sm:$0xff]
    %v1784 = vld [vmem:[%s1779 + $0x20] sm:$0xff]
    %v1785 = vld [vmem:[%s1779 + $0x28] sm:$0xff]
    %v1786 = vld [vmem:[%s1779 + $0x30] sm:$0xff]
    %v1787 = vld [vmem:[%s1779 + $0x38] sm:$0xff]
    %v1788 = vld [vmem:[%s1779 + $0x40] sm:$0xff]
    %v1789 = vld [vmem:[%s1779 + $0x48] sm:$0xff]
    %v1790 = vld [vmem:[%s1779 + $0x50] sm:$0xff]
    %v1791 = vld [vmem:[%s1779 + $0x58] sm:$0xff]
    %v1792 = vld [vmem:[%s1779 + $0x60] sm:$0xff]
    %v1793 = vld [vmem:[%s1779 + $0x68] sm:$0xff]
    %v1794 = vld [vmem:[%s1779 + $0x70] sm:$0xff]
    %v1795 = vld [vmem:[%s1779 + $0x78] sm:$0xff]
    %s1796 = scalar_lea.vmem %s4, 640
    %v1797 = vld [vmem:[%s1796] sm:$0xff]
    %v1798 = vld [vmem:[%s1796 + $0x8] sm:$0xff]
    %v1799 = vld [vmem:[%s1796 + $0x10] sm:$0xff]
    %v1800 = vld [vmem:[%s1796 + $0x18] sm:$0xff]
    %v1801 = vld [vmem:[%s1796 + $0x20] sm:$0xff]
    %v1802 = vld [vmem:[%s1796 + $0x28] sm:$0xff]
    %v1803 = vld [vmem:[%s1796 + $0x30] sm:$0xff]
    %v1804 = vld [vmem:[%s1796 + $0x38] sm:$0xff]
    %v1805 = vld [vmem:[%s1796 + $0x40] sm:$0xff]
    %v1806 = vld [vmem:[%s1796 + $0x48] sm:$0xff]
    %v1807 = vld [vmem:[%s1796 + $0x50] sm:$0xff]
    %v1808 = vld [vmem:[%s1796 + $0x58] sm:$0xff]
    %v1809 = vld [vmem:[%s1796 + $0x60] sm:$0xff]
    %v1810 = vld [vmem:[%s1796 + $0x68] sm:$0xff]
    %v1811 = vld [vmem:[%s1796 + $0x70] sm:$0xff]
    %v1812 = vld [vmem:[%s1796 + $0x78] sm:$0xff]
    %1813 = vmatprep.subr.mxu0 0.0
    %1814 = vmatpush1.msra.mxu0 %v1812
    %1815 = vmatprep.subr.mxu0 0.0
    %1816 = vmatpush1.msra.mxu0 %v1811
    %1817 = vmatprep.subr.mxu0 0.0
    %1818 = vmatpush1.msra.mxu0 %v1810
    %1819 = vmatprep.subr.mxu0 0.0
    %1820 = vmatpush1.msra.mxu0 %v1809
    %1821 = vmatprep.subr.mxu0 0.0
    %1822 = vmatpush1.msra.mxu0 %v1808
    %1823 = vmatprep.subr.mxu0 0.0
    %1824 = vmatpush1.msra.mxu0 %v1807
    %1825 = vmatprep.subr.mxu0 0.0
    %1826 = vmatpush1.msra.mxu0 %v1806
    %1827 = vmatprep.subr.mxu0 0.0
    %1828 = vmatpush1.msra.mxu0 %v1805
    %1829 = vmatprep.subr.mxu0 0.0
    %1830 = vmatpush1.msra.mxu0 %v1804
    %1831 = vmatprep.subr.mxu0 0.0
    %1832 = vmatpush1.msra.mxu0 %v1803
    %1833 = vmatprep.subr.mxu0 0.0
    %1834 = vmatpush1.msra.mxu0 %v1802
    %1835 = vmatprep.subr.mxu0 0.0
    %1836 = vmatpush1.msra.mxu0 %v1801
    %1837 = vmatprep.subr.mxu0 0.0
    %1838 = vmatpush1.msra.mxu0 %v1800
    %1839 = vmatprep.subr.mxu0 0.0
    %1840 = vmatpush1.msra.mxu0 %v1799
    %1841 = vmatprep.subr.mxu0 0.0
    %1842 = vmatpush1.msra.mxu0 %v1798
    %1843 = vmatprep.subr.mxu0 0.0
    %1844 = vmatpush1.msra.mxu0 %v1797
    %1845 = vmatprep.subr.mxu0 0.0
    %1846 = vmatpush2.msra.mxu0 0.0
    %1847 = vmatprep.subr.mxu0 0.0
    %1848 = vmatpush2.msra.mxu0 0.0
    %1849 = vmatprep.subr.mxu0 0.0
    %1850 = vmatpush2.msra.mxu0 0.0
    %1851 = vmatprep.subr.mxu0 0.0
    %1852 = vmatpush2.msra.mxu0 0.0
    %1853 = vmatprep.subr.mxu0 0.0
    %1854 = vmatpush2.msra.mxu0 0.0
    %1855 = vmatprep.subr.mxu0 0.0
    %1856 = vmatpush2.msra.mxu0 0.0
    %1857 = vmatprep.subr.mxu0 0.0
    %1858 = vmatpush2.msra.mxu0 0.0
    %1859 = vmatprep.subr.mxu0 0.0
    %1860 = vmatpush2.msra.mxu0 0.0
    %1861 = vmatprep.subr.mxu0 0.0
    %1862 = vmatpush2.msra.mxu0 0.0
    %1863 = vmatprep.subr.mxu0 0.0
    %1864 = vmatpush2.msra.mxu0 0.0
    %1865 = vmatprep.subr.mxu0 0.0
    %1866 = vmatpush2.msra.mxu0 0.0
    %1867 = vmatprep.subr.mxu0 0.0
    %1868 = vmatpush2.msra.mxu0 0.0
    %1869 = vmatprep.subr.mxu0 0.0
    %1870 = vmatpush2.msra.mxu0 0.0
    %1871 = vmatprep.subr.mxu0 0.0
    %1872 = vmatpush2.msra.mxu0 0.0
    %1873 = vmatprep.subr.mxu0 0.0
    %1874 = vmatpush2.msra.mxu0 0.0
    %1875 = vmatprep.subr.mxu0 0.0
    %1876 = vmatpush2.msra.mxu0 0.0
    %1877 = vmatprep.mubr.f32.mxu0 0.0
    %1878 = vmatmul.mubr.f32.gmra.mxu0 %v1771
    %v1879 = vpop.f32.mrf.mxu0
    %v1880 = vadd.f32 0.0, %v1879
    %v1881 = vpop.f32.mrf.mxu0
    %1882 = vdwg.mxu0
    %1883 = vmatprep.subr.mxu0 0.0
    %1884 = vmatpush1.msra.mxu0 %v1795
    %1885 = vmatprep.subr.mxu0 0.0
    %1886 = vmatpush1.msra.mxu0 %v1794
    %1887 = vmatprep.subr.mxu0 0.0
    %1888 = vmatpush1.msra.mxu0 %v1793
    %1889 = vmatprep.subr.mxu0 0.0
    %1890 = vmatpush1.msra.mxu0 %v1792
    %1891 = vmatprep.subr.mxu0 0.0
    %1892 = vmatpush1.msra.mxu0 %v1791
    %1893 = vmatprep.subr.mxu0 0.0
    %1894 = vmatpush1.msra.mxu0 %v1790
    %1895 = vmatprep.subr.mxu0 0.0
    %1896 = vmatpush1.msra.mxu0 %v1789
    %1897 = vmatprep.subr.mxu0 0.0
    %1898 = vmatpush1.msra.mxu0 %v1788
    %1899 = vmatprep.subr.mxu0 0.0
    %1900 = vmatpush1.msra.mxu0 %v1787
    %1901 = vmatprep.subr.mxu0 0.0
    %1902 = vmatpush1.msra.mxu0 %v1786
    %1903 = vmatprep.subr.mxu0 0.0
    %1904 = vmatpush1.msra.mxu0 %v1785
    %1905 = vmatprep.subr.mxu0 0.0
    %1906 = vmatpush1.msra.mxu0 %v1784
    %1907 = vmatprep.subr.mxu0 0.0
    %1908 = vmatpush1.msra.mxu0 %v1783
    %1909 = vmatprep.subr.mxu0 0.0
    %1910 = vmatpush1.msra.mxu0 %v1782
    %1911 = vmatprep.subr.mxu0 0.0
    %1912 = vmatpush1.msra.mxu0 %v1781
    %1913 = vmatprep.subr.mxu0 0.0
    %1914 = vmatpush1.msra.mxu0 %v1780
    %1915 = vmatprep.subr.mxu0 0.0
    %1916 = vmatpush2.msra.mxu0 0.0
    %1917 = vmatprep.subr.mxu0 0.0
    %1918 = vmatpush2.msra.mxu0 0.0
    %1919 = vmatprep.subr.mxu0 0.0
    %1920 = vmatpush2.msra.mxu0 0.0
    %1921 = vmatprep.subr.mxu0 0.0
    %1922 = vmatpush2.msra.mxu0 0.0
    %1923 = vmatprep.subr.mxu0 0.0
    %1924 = vmatpush2.msra.mxu0 0.0
    %1925 = vmatprep.subr.mxu0 0.0
    %1926 = vmatpush2.msra.mxu0 0.0
    %1927 = vmatprep.subr.mxu0 0.0
    %1928 = vmatpush2.msra.mxu0 0.0
    %1929 = vmatprep.subr.mxu0 0.0
    %1930 = vmatpush2.msra.mxu0 0.0
    %1931 = vmatprep.subr.mxu0 0.0
    %1932 = vmatpush2.msra.mxu0 0.0
    %1933 = vmatprep.subr.mxu0 0.0
    %1934 = vmatpush2.msra.mxu0 0.0
    %1935 = vmatprep.subr.mxu0 0.0
    %1936 = vmatpush2.msra.mxu0 0.0
    %1937 = vmatprep.subr.mxu0 0.0
    %1938 = vmatpush2.msra.mxu0 0.0
    %1939 = vmatprep.subr.mxu0 0.0
    %1940 = vmatpush2.msra.mxu0 0.0
    %1941 = vmatprep.subr.mxu0 0.0
    %1942 = vmatpush2.msra.mxu0 0.0
    %1943 = vmatprep.subr.mxu0 0.0
    %1944 = vmatpush2.msra.mxu0 0.0
    %1945 = vmatprep.subr.mxu0 0.0
    %1946 = vmatpush2.msra.mxu0 0.0
    %1947 = vmatprep.mubr.f32.mxu0 0.0
    %1948 = vmatmul.mubr.f32.gmra.mxu0 %v1767
    %v1949 = vpop.f32.mrf.mxu0
    %v1950 = vadd.f32 %v1880, %v1949
    %v1951 = vpop.f32.mrf.mxu0
    %1952 = vdwg.mxu0
    %v1953 = vrcp.pop %v1778
    %v1954 = vmul.f32 %v1950, %v1953
    %v1955 = vld [vmem:[%s5 + $0x4] sm:$0x1]
    %v1956 = vlaneseq
    %v1957 = vshrl.u32 %v1956, 7
    %v1958 = vsub.s32 0, %v1957
    %v1959 = vrot.slane %v1955, %v1958
    %v1960 = vadd.f32 %v1954, %v1959
    %1961 = vst [vmem:[#allocation2] sm:$0x3] %v1960
    // Predicated region
    $region26: #{classifier_forward.5} parent=1 // pred_check
      _
    $region27: #{classifier_forward.5} parent=1 // pred_check_branch
      %1963 = sbr.rel (0) target = $region29
    $region28: #{classifier_forward.5} parent=1 // pred_region
      %s1965 = ssub.s32 32, 32
      %1966 = vsyncadd [#allocation3], %s1965
      %s1968 = sshll.u32 [#allocation2], 4
      %s1969 = int_to_ptr.vmem [resolvable:$true] %s1968
      %1971 = dma.vmem_to_hbm [thread:$0]  %s1969, 32, %s6, [#allocation3]
    $region29: #{classifier_forward.5} parent=1 // pred_fallthru
      _
    // Predicated region
    $region30: #{classifier_forward.5} parent=1 // pred_check
      _
    $region31: #{classifier_forward.5} parent=1 // pred_check_branch
      %1973 = sbr.rel (0) target = $region33
    $region32: #{classifier_forward.5} parent=1 // pred_region
      %1974 = dma.done [#allocation3], 32
    $region33: #{classifier_forward.5} parent=1 // pred_fallthru
      _
    %1975 = vsyncpa [#allocation3], 1

</llo_original>
